<compile_context>
chip_gen: v7x
topology: tpu7x:2x2x1
jax: 0.10.0
libtpu: 0.0.40
codegen_flags: <defaults>
</compile_context>

<pallas_src>
import numpy as np
import jax
import jax.numpy as jnp
from jax.experimental import pallas as pl
from jax.experimental.pallas import tpu as pltpu

LOOP = 4             # conv out-channels ("loop" in the reference code)
H = W = 4
FEAT = LOOP * H * W  # 64  (logical feature width)
PFEAT = 128          # lane-padded feature width
EPS = 1e-5


def _swish(v):
    # numerically-stable sigmoid via tanh (EUP): sigmoid(v) = 0.5*(tanh(v/2)+1)
    return v * (0.5 * jnp.tanh(0.5 * v) + 0.5)


def model_kernel(x_ref, front_ref, cbias_ref, bng_ref, bnb_ref, gmat_ref,
                 w1_ref, b1_ref, w2_ref, b2_ref, ln2g_ref, ln2b_ref,
                 w3_ref, b3_ref, w4_ref, b4_ref, o_ref):
    f32 = jnp.float32
    bf16 = jnp.bfloat16
    x = x_ref[...]                                                     # (B, 16) f32

    # --- Conv2d(1->LOOP,3x3,pad=1) Toeplitz + AvgPool2d(2)-broadcast, one matmul ---
    combo = jnp.dot(x, front_ref[...], preferred_element_type=f32)     # (B, 256)
    a = combo[:, :PFEAT] + cbias_ref[...]                              # conv out (cols>=64 are 0)
    bcols = combo[:, PFEAT:]                                           # pooled bcast (cols>=64 are 0)

    a = _swish(a)                                                      # swish

    # --- BatchNorm2d (training-mode batch stats, biased var, two-pass) ---
    inv_n = jnp.float32(1.0 / (x.shape[0] * H * W))
    col_sum = jnp.sum(a, axis=0, keepdims=True)                        # (1, 128)
    mean_cols = jnp.dot(col_sum, gmat_ref[...],
                        preferred_element_type=f32) * inv_n            # per-channel mean bcast
    centered = a - mean_cols
    col_sq = jnp.sum(centered * centered, axis=0, keepdims=True)       # (1, 128)
    var_cols = jnp.dot(col_sq, gmat_ref[...],
                       preferred_element_type=f32) * inv_n             # per-channel var bcast
    a = centered * jax.lax.rsqrt(var_cols + EPS) * bng_ref[...] + bnb_ref[...]

    # --- z = a * pooled-broadcast (PyTorch (B,1,1,4) broadcast), then regr MLP ---
    z = a * bcols                                                      # (B, 128)

    h = jnp.dot(z.astype(bf16), w1_ref[...],
                preferred_element_type=f32) + b1_ref[...]              # (B, 2048)
    h = _swish(h)
    h = jnp.dot(h.astype(bf16), w2_ref[...],
                preferred_element_type=f32) + b2_ref[...]              # (B, 1024)
    h = jnp.maximum(h, 0.0)                                            # relu
    mu = jnp.mean(h, axis=-1, keepdims=True)                           # LayerNorm(1024)
    var = jnp.mean((h - mu) ** 2, axis=-1, keepdims=True)
    h = (h - mu) * jax.lax.rsqrt(var + EPS) * ln2g_ref[...] + ln2b_ref[...]
    h = jnp.dot(h.astype(bf16), w3_ref[...],
                preferred_element_type=f32) + b3_ref[...]              # (B, 512)
    h = _swish(h)
    o_ref[...] = jnp.dot(h.astype(bf16), w4_ref[...],
                         preferred_element_type=f32) + b4_ref[...]     # (B, 128)


# ---------------- setup glue (parameter init + conv/pool lowering matrices) ----------------

def build_conv_matrix(conv_w):
    """conv_w: (LOOP,1,3,3) -> (16, PFEAT) so that conv_flat = x_flat @ M (cols>=64 zero)."""
    m = np.zeros((H * W, PFEAT), np.float32)
    for c in range(LOOP):
        for oh in range(H):
            for ow in range(W):
                oi = c * 16 + oh * 4 + ow
                for kh in range(3):
                    for kw in range(3):
                        ih, iw = oh + kh - 1, ow + kw - 1
                        if 0 <= ih < H and 0 <= iw < W:
                            m[ih * 4 + iw, oi] = conv_w[c, 0, kh, kw]
    return m


def build_pool_bcast_matrix():
    """(16, PFEAT): x_flat @ M gives AvgPool2d(2) values broadcast per the
    PyTorch (B,1,1,4) rule: column i (= c*16+h*4+w) gets pooled flat index i%4."""
    pool = np.zeros((H * W, 4), np.float32)
    for ph in range(2):
        for pw in range(2):
            for dh in range(2):
                for dw in range(2):
                    pool[(2 * ph + dh) * 4 + (2 * pw + dw), ph * 2 + pw] = 0.25
    tsel = np.zeros((4, PFEAT), np.float32)
    for i in range(FEAT):
        tsel[i % 4, i] = 1.0
    return pool @ tsel


def build_params():
    key = jax.random.PRNGKey(0)
    ks = jax.random.split(key, 16)

    conv_w = np.asarray(jax.random.normal(ks[0], (LOOP, 1, 3, 3), jnp.float32)) * 0.3
    conv_b = np.asarray(jax.random.normal(ks[1], (LOOP,), jnp.float32)) * 0.1
    bn_g = np.asarray(jax.random.normal(ks[2], (LOOP,), jnp.float32)) * 0.1 + 1.0
    bn_b = np.asarray(jax.random.normal(ks[3], (LOOP,), jnp.float32)) * 0.1

    def lin(kw, kb, fan_in, fan_out):
        w = jax.random.normal(kw, (fan_in, fan_out), jnp.float32) / np.sqrt(fan_in)
        b = jax.random.normal(kb, (1, fan_out), jnp.float32) * 0.02
        return w, b

    w1, b1 = lin(ks[4], ks[5], FEAT, 2048)
    w2, b2 = lin(ks[6], ks[7], 2048, 1024)
    w3, b3 = lin(ks[8], ks[9], 1024, 512)
    w4, b4 = lin(ks[10], ks[11], 512, 128)
    ln2_g = jax.random.normal(ks[12], (1, 1024), jnp.float32) * 0.1 + 1.0
    ln2_b = jax.random.normal(ks[13], (1, 1024), jnp.float32) * 0.1

    # Fused conv-Toeplitz | pool-broadcast matrix: (16, 2*PFEAT).
    front = jnp.asarray(
        np.concatenate([build_conv_matrix(conv_w), build_pool_bcast_matrix()], axis=1))

    def pad_cols(v):  # (LOOP,) -> (1, PFEAT): repeat 16x, zero-pad lanes 64..127
        out = np.zeros((1, PFEAT), np.float32)
        out[0, :FEAT] = np.repeat(v, 16)
        return jnp.asarray(out)

    cbias_cols = pad_cols(conv_b)
    bng_cols = pad_cols(bn_g)
    bnb_cols = pad_cols(bn_b)

    # Per-channel grouping/averaging matrix (block-diag ones over 16-col groups).
    gmat = np.zeros((PFEAT, PFEAT), np.float32)
    for i in range(PFEAT):
        c = i // 16
        gmat[i, c * 16:(c + 1) * 16] = 1.0
    gmat = jnp.asarray(gmat)

    # Pad lin1's input dim 64 -> 128 with zero rows (padded z columns are 0 anyway).
    w1p = np.zeros((PFEAT, 2048), np.float32)
    w1p[:FEAT, :] = np.asarray(w1)

    bf16 = jnp.bfloat16
    return (front, cbias_cols, bng_cols, bnb_cols, gmat,
            jnp.asarray(w1p).astype(bf16), b1,
            w2.astype(bf16), b2, ln2_g, ln2_b,
            w3.astype(bf16), b3,
            w4.astype(bf16), b4)


def model_forward(x, params):
    # x: (B, 1, 4, 4)  (NCHW, like the PyTorch module's reshape target)
    b = x.shape[0]
    x_flat = x.reshape(b, H * W).astype(jnp.float32)                   # (B, 16)
    n_in = 1 + len(params)
    vmem_specs = [pl.BlockSpec(memory_space=pltpu.MemorySpace.VMEM) for _ in range(n_in)]
    return pl.pallas_call(
        model_kernel,
        out_shape=jax.ShapeDtypeStruct((b, 128), jnp.float32),
        in_specs=vmem_specs,
        out_specs=pl.BlockSpec(memory_space=pltpu.MemorySpace.VMEM),
        compiler_params=pltpu.CompilerParams(vmem_limit_bytes=32 * 1024 * 1024),
    )(x_flat, *params)


if __name__ == "__main__":
    B = 8
    params = build_params()
    x = jax.random.normal(jax.random.PRNGKey(0), (B, 1, 4, 4), dtype=jnp.float32)
    out = model_forward(x, params)
    jax.block_until_ready(out)
    assert out.shape == (B, 128) and out.dtype == jnp.float32
    assert bool(jnp.all(jnp.isfinite(out)))
    print("KERNEL_OK")
</pallas_src>

<mosaic_0001>
module attributes {stable_mosaic.version = 11 : i64} {
  func.func @model_kernel(%arg0: memref<8x16xf32, #tpu.memory_space<vmem>>, %arg1: memref<16x256xf32, #tpu.memory_space<vmem>>, %arg2: memref<1x128xf32, #tpu.memory_space<vmem>>, %arg3: memref<1x128xf32, #tpu.memory_space<vmem>>, %arg4: memref<1x128xf32, #tpu.memory_space<vmem>>, %arg5: memref<128x128xf32, #tpu.memory_space<vmem>>, %arg6: memref<128x2048xbf16, #tpu.memory_space<vmem>>, %arg7: memref<1x2048xf32, #tpu.memory_space<vmem>>, %arg8: memref<2048x1024xbf16, #tpu.memory_space<vmem>>, %arg9: memref<1x1024xf32, #tpu.memory_space<vmem>>, %arg10: memref<1x1024xf32, #tpu.memory_space<vmem>>, %arg11: memref<1x1024xf32, #tpu.memory_space<vmem>>, %arg12: memref<1024x512xbf16, #tpu.memory_space<vmem>>, %arg13: memref<1x512xf32, #tpu.memory_space<vmem>>, %arg14: memref<512x128xbf16, #tpu.memory_space<vmem>>, %arg15: memref<1x128xf32, #tpu.memory_space<vmem>>, %arg16: memref<8x128xf32, #tpu.memory_space<vmem>>) attributes {dimension_semantics = [], scalar_prefetch = 0 : i64, scratch_operands = 0 : i64, tpu.core_type = #tpu.core_type<tc>} {
    %c0 = arith.constant 0 : index
    %c0_0 = arith.constant 0 : index
    %0 = vector.load %arg0[%c0, %c0_0] : memref<8x16xf32, #tpu.memory_space<vmem>>, vector<8x16xf32>
    %c0_1 = arith.constant 0 : index
    %c0_2 = arith.constant 0 : index
    %1 = vector.load %arg1[%c0_1, %c0_2] : memref<16x256xf32, #tpu.memory_space<vmem>>, vector<16x256xf32>
    %cst = arith.constant dense<0.000000e+00> : vector<8x256xf32>
    %2 = tpu.matmul %0, %1, %cst {dimension_numbers = #tpu.dot_dimension_numbers<[1], [0], [0], [1], [0, 0, 1, 1], [], []>} : vector<8x16xf32>, vector<16x256xf32>, vector<8x256xf32> -> vector<8x256xf32>
    %3 = vector.extract_strided_slice %2 {offsets = [0, 0], sizes = [8, 128], strides = [1, 1]} : vector<8x256xf32> to vector<8x128xf32>
    %c0_3 = arith.constant 0 : index
    %c0_4 = arith.constant 0 : index
    %4 = vector.load %arg2[%c0_3, %c0_4] : memref<1x128xf32, #tpu.memory_space<vmem>>, vector<1x128xf32>
    %5 = vector.broadcast %4 : vector<1x128xf32> to vector<8x128xf32>
    %6 = arith.addf %3, %5 : vector<8x128xf32>
    %7 = vector.extract_strided_slice %2 {offsets = [0, 128], sizes = [8, 128], strides = [1, 1]} : vector<8x256xf32> to vector<8x128xf32>
    %cst_5 = arith.constant 5.000000e-01 : f32
    %8 = vector.broadcast %cst_5 : f32 to vector<8x128xf32>
    %9 = arith.mulf %8, %6 : vector<8x128xf32>
    %10 = math.tanh %9 : vector<8x128xf32>
    %cst_6 = arith.constant 5.000000e-01 : f32
    %11 = vector.broadcast %cst_6 : f32 to vector<8x128xf32>
    %12 = arith.mulf %11, %10 : vector<8x128xf32>
    %cst_7 = arith.constant 5.000000e-01 : f32
    %13 = vector.broadcast %cst_7 : f32 to vector<8x128xf32>
    %14 = arith.addf %12, %13 : vector<8x128xf32>
    %15 = arith.mulf %6, %14 : vector<8x128xf32>
    %cst_8 = arith.constant dense<0.000000e+00> : vector<128xf32>
    %16 = vector.multi_reduction <add>, %15, %cst_8 [0] : vector<8x128xf32> to vector<128xf32>
    %17 = vector.shape_cast %16 : vector<128xf32> to vector<1x128xf32>
    %c0_9 = arith.constant 0 : index
    %c0_10 = arith.constant 0 : index
    %18 = vector.load %arg5[%c0_9, %c0_10] : memref<128x128xf32, #tpu.memory_space<vmem>>, vector<128x128xf32>
    %cst_11 = arith.constant dense<0.000000e+00> : vector<1x128xf32>
    %19 = tpu.matmul %17, %18, %cst_11 {dimension_numbers = #tpu.dot_dimension_numbers<[1], [0], [0], [1], [0, 0, 1, 1], [], []>} : vector<1x128xf32>, vector<128x128xf32>, vector<1x128xf32> -> vector<1x128xf32>
    %cst_12 = arith.constant 7.812500e-03 : f32
    %20 = vector.broadcast %cst_12 : f32 to vector<1x128xf32>
    %21 = arith.mulf %19, %20 : vector<1x128xf32>
    %22 = vector.broadcast %21 : vector<1x128xf32> to vector<8x128xf32>
    %23 = arith.subf %15, %22 : vector<8x128xf32>
    %24 = arith.mulf %23, %23 : vector<8x128xf32>
    %cst_13 = arith.constant dense<0.000000e+00> : vector<128xf32>
    %25 = vector.multi_reduction <add>, %24, %cst_13 [0] : vector<8x128xf32> to vector<128xf32>
    %26 = vector.shape_cast %25 : vector<128xf32> to vector<1x128xf32>
    %c0_14 = arith.constant 0 : index
    %c0_15 = arith.constant 0 : index
    %27 = vector.load %arg5[%c0_14, %c0_15] : memref<128x128xf32, #tpu.memory_space<vmem>>, vector<128x128xf32>
    %cst_16 = arith.constant dense<0.000000e+00> : vector<1x128xf32>
    %28 = tpu.matmul %26, %27, %cst_16 {dimension_numbers = #tpu.dot_dimension_numbers<[1], [0], [0], [1], [0, 0, 1, 1], [], []>} : vector<1x128xf32>, vector<128x128xf32>, vector<1x128xf32> -> vector<1x128xf32>
    %cst_17 = arith.constant 7.812500e-03 : f32
    %29 = vector.broadcast %cst_17 : f32 to vector<1x128xf32>
    %30 = arith.mulf %28, %29 : vector<1x128xf32>
    %cst_18 = arith.constant 9.99999974E-6 : f32
    %31 = vector.broadcast %cst_18 : f32 to vector<1x128xf32>
    %32 = arith.addf %30, %31 : vector<1x128xf32>
    %33 = math.rsqrt %32 : vector<1x128xf32>
    %34 = vector.broadcast %33 : vector<1x128xf32> to vector<8x128xf32>
    %35 = arith.mulf %23, %34 : vector<8x128xf32>
    %c0_19 = arith.constant 0 : index
    %c0_20 = arith.constant 0 : index
    %36 = vector.load %arg3[%c0_19, %c0_20] : memref<1x128xf32, #tpu.memory_space<vmem>>, vector<1x128xf32>
    %37 = vector.broadcast %36 : vector<1x128xf32> to vector<8x128xf32>
    %38 = arith.mulf %35, %37 : vector<8x128xf32>
    %c0_21 = arith.constant 0 : index
    %c0_22 = arith.constant 0 : index
    %39 = vector.load %arg4[%c0_21, %c0_22] : memref<1x128xf32, #tpu.memory_space<vmem>>, vector<1x128xf32>
    %40 = vector.broadcast %39 : vector<1x128xf32> to vector<8x128xf32>
    %41 = arith.addf %38, %40 : vector<8x128xf32>
    %42 = arith.mulf %41, %7 : vector<8x128xf32>
    %43 = arith.truncf %42 : vector<8x128xf32> to vector<8x128xbf16>
    %c0_23 = arith.constant 0 : index
    %c0_24 = arith.constant 0 : index
    %44 = vector.load %arg6[%c0_23, %c0_24] : memref<128x2048xbf16, #tpu.memory_space<vmem>>, vector<128x2048xbf16>
    %cst_25 = arith.constant dense<0.000000e+00> : vector<8x2048xf32>
    %45 = tpu.matmul %43, %44, %cst_25 {dimension_numbers = #tpu.dot_dimension_numbers<[1], [0], [0], [1], [0, 0, 1, 1], [], []>} : vector<8x128xbf16>, vector<128x2048xbf16>, vector<8x2048xf32> -> vector<8x2048xf32>
    %c0_26 = arith.constant 0 : index
    %c0_27 = arith.constant 0 : index
    %46 = vector.load %arg7[%c0_26, %c0_27] : memref<1x2048xf32, #tpu.memory_space<vmem>>, vector<1x2048xf32>
    %47 = vector.broadcast %46 : vector<1x2048xf32> to vector<8x2048xf32>
    %48 = arith.addf %45, %47 : vector<8x2048xf32>
    %cst_28 = arith.constant 5.000000e-01 : f32
    %49 = vector.broadcast %cst_28 : f32 to vector<8x2048xf32>
    %50 = arith.mulf %49, %48 : vector<8x2048xf32>
    %51 = math.tanh %50 : vector<8x2048xf32>
    %cst_29 = arith.constant 5.000000e-01 : f32
    %52 = vector.broadcast %cst_29 : f32 to vector<8x2048xf32>
    %53 = arith.mulf %52, %51 : vector<8x2048xf32>
    %cst_30 = arith.constant 5.000000e-01 : f32
    %54 = vector.broadcast %cst_30 : f32 to vector<8x2048xf32>
    %55 = arith.addf %53, %54 : vector<8x2048xf32>
    %56 = arith.mulf %48, %55 : vector<8x2048xf32>
    %57 = arith.truncf %56 : vector<8x2048xf32> to vector<8x2048xbf16>
    %c0_31 = arith.constant 0 : index
    %c0_32 = arith.constant 0 : index
    %58 = vector.load %arg8[%c0_31, %c0_32] : memref<2048x1024xbf16, #tpu.memory_space<vmem>>, vector<2048x1024xbf16>
    %cst_33 = arith.constant dense<0.000000e+00> : vector<8x1024xf32>
    %59 = tpu.matmul %57, %58, %cst_33 {dimension_numbers = #tpu.dot_dimension_numbers<[1], [0], [0], [1], [0, 0, 1, 1], [], []>} : vector<8x2048xbf16>, vector<2048x1024xbf16>, vector<8x1024xf32> -> vector<8x1024xf32>
    %c0_34 = arith.constant 0 : index
    %c0_35 = arith.constant 0 : index
    %60 = vector.load %arg9[%c0_34, %c0_35] : memref<1x1024xf32, #tpu.memory_space<vmem>>, vector<1x1024xf32>
    %61 = vector.broadcast %60 : vector<1x1024xf32> to vector<8x1024xf32>
    %62 = arith.addf %59, %61 : vector<8x1024xf32>
    %cst_36 = arith.constant 0.000000e+00 : f32
    %63 = vector.broadcast %cst_36 : f32 to vector<8x1024xf32>
    %64 = arith.maximumf %62, %63 : vector<8x1024xf32>
    %cst_37 = arith.constant dense<0.000000e+00> : vector<8xf32>
    %65 = vector.multi_reduction <add>, %64, %cst_37 [1] : vector<8x1024xf32> to vector<8xf32>
    %66 = vector.shape_cast %65 : vector<8xf32> to vector<8x1xf32>
    %cst_38 = arith.constant 1.024000e+03 : f32
    %67 = vector.broadcast %cst_38 : f32 to vector<8x1xf32>
    %68 = arith.divf %66, %67 : vector<8x1xf32>
    %69 = vector.broadcast %68 : vector<8x1xf32> to vector<8x1024xf32>
    %70 = arith.subf %64, %69 : vector<8x1024xf32>
    %71 = arith.mulf %70, %70 : vector<8x1024xf32>
    %cst_39 = arith.constant dense<0.000000e+00> : vector<8xf32>
    %72 = vector.multi_reduction <add>, %71, %cst_39 [1] : vector<8x1024xf32> to vector<8xf32>
    %73 = vector.shape_cast %72 : vector<8xf32> to vector<8x1xf32>
    %cst_40 = arith.constant 1.024000e+03 : f32
    %74 = vector.broadcast %cst_40 : f32 to vector<8x1xf32>
    %75 = arith.divf %73, %74 : vector<8x1xf32>
    %76 = vector.broadcast %68 : vector<8x1xf32> to vector<8x1024xf32>
    %77 = arith.subf %64, %76 : vector<8x1024xf32>
    %cst_41 = arith.constant 9.99999974E-6 : f32
    %78 = vector.broadcast %cst_41 : f32 to vector<8x1xf32>
    %79 = arith.addf %75, %78 : vector<8x1xf32>
    %80 = math.rsqrt %79 : vector<8x1xf32>
    %81 = vector.broadcast %80 : vector<8x1xf32> to vector<8x1024xf32>
    %82 = arith.mulf %77, %81 : vector<8x1024xf32>
    %c0_42 = arith.constant 0 : index
    %c0_43 = arith.constant 0 : index
    %83 = vector.load %arg10[%c0_42, %c0_43] : memref<1x1024xf32, #tpu.memory_space<vmem>>, vector<1x1024xf32>
    %84 = vector.broadcast %83 : vector<1x1024xf32> to vector<8x1024xf32>
    %85 = arith.mulf %82, %84 : vector<8x1024xf32>
    %c0_44 = arith.constant 0 : index
    %c0_45 = arith.constant 0 : index
    %86 = vector.load %arg11[%c0_44, %c0_45] : memref<1x1024xf32, #tpu.memory_space<vmem>>, vector<1x1024xf32>
    %87 = vector.broadcast %86 : vector<1x1024xf32> to vector<8x1024xf32>
    %88 = arith.addf %85, %87 : vector<8x1024xf32>
    %89 = arith.truncf %88 : vector<8x1024xf32> to vector<8x1024xbf16>
    %c0_46 = arith.constant 0 : index
    %c0_47 = arith.constant 0 : index
    %90 = vector.load %arg12[%c0_46, %c0_47] : memref<1024x512xbf16, #tpu.memory_space<vmem>>, vector<1024x512xbf16>
    %cst_48 = arith.constant dense<0.000000e+00> : vector<8x512xf32>
    %91 = tpu.matmul %89, %90, %cst_48 {dimension_numbers = #tpu.dot_dimension_numbers<[1], [0], [0], [1], [0, 0, 1, 1], [], []>} : vector<8x1024xbf16>, vector<1024x512xbf16>, vector<8x512xf32> -> vector<8x512xf32>
    %c0_49 = arith.constant 0 : index
    %c0_50 = arith.constant 0 : index
    %92 = vector.load %arg13[%c0_49, %c0_50] : memref<1x512xf32, #tpu.memory_space<vmem>>, vector<1x512xf32>
    %93 = vector.broadcast %92 : vector<1x512xf32> to vector<8x512xf32>
    %94 = arith.addf %91, %93 : vector<8x512xf32>
    %cst_51 = arith.constant 5.000000e-01 : f32
    %95 = vector.broadcast %cst_51 : f32 to vector<8x512xf32>
    %96 = arith.mulf %95, %94 : vector<8x512xf32>
    %97 = math.tanh %96 : vector<8x512xf32>
    %cst_52 = arith.constant 5.000000e-01 : f32
    %98 = vector.broadcast %cst_52 : f32 to vector<8x512xf32>
    %99 = arith.mulf %98, %97 : vector<8x512xf32>
    %cst_53 = arith.constant 5.000000e-01 : f32
    %100 = vector.broadcast %cst_53 : f32 to vector<8x512xf32>
    %101 = arith.addf %99, %100 : vector<8x512xf32>
    %102 = arith.mulf %94, %101 : vector<8x512xf32>
    %103 = arith.truncf %102 : vector<8x512xf32> to vector<8x512xbf16>
    %c0_54 = arith.constant 0 : index
    %c0_55 = arith.constant 0 : index
    %104 = vector.load %arg14[%c0_54, %c0_55] : memref<512x128xbf16, #tpu.memory_space<vmem>>, vector<512x128xbf16>
    %cst_56 = arith.constant dense<0.000000e+00> : vector<8x128xf32>
    %105 = tpu.matmul %103, %104, %cst_56 {dimension_numbers = #tpu.dot_dimension_numbers<[1], [0], [0], [1], [0, 0, 1, 1], [], []>} : vector<8x512xbf16>, vector<512x128xbf16>, vector<8x128xf32> -> vector<8x128xf32>
    %c0_57 = arith.constant 0 : index
    %c0_58 = arith.constant 0 : index
    %106 = vector.load %arg15[%c0_57, %c0_58] : memref<1x128xf32, #tpu.memory_space<vmem>>, vector<1x128xf32>
    %107 = vector.broadcast %106 : vector<1x128xf32> to vector<8x128xf32>
    %108 = arith.addf %105, %107 : vector<8x128xf32>
    %c0_59 = arith.constant 0 : index
    %c0_60 = arith.constant 0 : index
    %109 = vector.load %arg16[%c0_59, %c0_60] : memref<8x128xf32, #tpu.memory_space<vmem>>, vector<8x128xf32>
    tpu.vector_store %arg16[%c0_59, %c0_60], %108 {strides = array<i32>} : memref<8x128xf32, #tpu.memory_space<vmem>>, vector<8x128xf32>,
    return
  }
}

</mosaic_0001>

<llo_original>
// kernel: tpu_custom_call.1
$region0: #{tpu_custom_call.1}
  #allocation0 [shape = 'u32[]', space=smem, size = 0x4, offset = 0x4, fixed_abs, tag = 'smem constant byte address 0x4 - core index']
  #allocation1 [shape = 'u32[144,128]{1,0:T(1,128)}', space=vmem, size = 0x12000, scoped, tag = 'internal scratch']
  %s0 = inlined_call_operand.hbm [shape: f32[8,16], index: 0, kind: input, shape index: {}]
  %s1 = inlined_call_operand.hbm [shape: f32[16,256], index: 1, kind: input, shape index: {}]
  %s2 = inlined_call_operand.hbm [shape: f32[1,128], index: 2, kind: input, shape index: {}]
  %s3 = inlined_call_operand.hbm [shape: f32[1,128], index: 3, kind: input, shape index: {}]
  %s4 = inlined_call_operand.hbm [shape: f32[1,128], index: 4, kind: input, shape index: {}]
  %s5 = inlined_call_operand.hbm [shape: f32[128,128], index: 5, kind: input, shape index: {}]
  %s6 = inlined_call_operand.hbm [shape: bf16[128,2048], index: 6, kind: input, shape index: {}]
  %s7 = inlined_call_operand.hbm [shape: f32[1,2048], index: 7, kind: input, shape index: {}]
  %s8 = inlined_call_operand.hbm [shape: bf16[2048,1024], index: 8, kind: input, shape index: {}]
  %s9 = inlined_call_operand.hbm [shape: f32[1,1024], index: 9, kind: input, shape index: {}]
  %s10 = inlined_call_operand.hbm [shape: f32[1,1024], index: 10, kind: input, shape index: {}]
  %s11 = inlined_call_operand.hbm [shape: f32[1,1024], index: 11, kind: input, shape index: {}]
  %s12 = inlined_call_operand.hbm [shape: bf16[1024,512], index: 12, kind: input, shape index: {}]
  %s13 = inlined_call_operand.hbm [shape: f32[1,512], index: 13, kind: input, shape index: {}]
  %s14 = inlined_call_operand.hbm [shape: bf16[512,128], index: 14, kind: input, shape index: {}]
  %s15 = inlined_call_operand.hbm [shape: f32[1,128], index: 15, kind: input, shape index: {}]
  %s16 = inlined_call_operand.hbm [shape: f32[8,128], index: 16, kind: output, shape index: {}]
  %s17 = sld [smem:[#allocation0]]
  $region138: #{tpu_custom_call.1} parent=0
    _
  %s19 = ssub.s32 1, %s17
  %s20 = scalar_select 0, %s19, %s17
  $region1: #{tpu_custom_call.1} parent=0
    #allocation2 [shape = 'u8[4096]{0}', space=vmem, size = 0x1000, scoped, tag = 'input window, operand 0, single buffered']
    #allocation3 [shape = 's32[1]{0}', space=sflag, size = 0x4, scoped, tag = 'scoped memory for tpu_custom_call.1']
    #allocation4 [shape = 's32[1]{0}', space=sflag, size = 0x4, scoped, tag = 'scoped memory for tpu_custom_call.1']
    #allocation5 [shape = 'u8[16384]{0}', space=vmem, size = 0x4000, scoped, tag = 'input window, operand 1, single buffered']
    #allocation6 [shape = 's32[1]{0}', space=sflag, size = 0x4, scoped, tag = 'scoped memory for tpu_custom_call.1']
    #allocation7 [shape = 'u8[512]{0}', space=vmem, size = 0x400, scoped, tag = 'input window, operand 2, single buffered']
    #allocation8 [shape = 'u8[512]{0}', space=vmem, size = 0x400, scoped, tag = 'input window, operand 3, single buffered']
    #allocation9 [shape = 's32[1]{0}', space=sflag, size = 0x4, scoped, tag = 'scoped memory for tpu_custom_call.1']
    #allocation10 [shape = 'u8[512]{0}', space=vmem, size = 0x400, scoped, tag = 'input window, operand 4, single buffered']
    #allocation11 [shape = 'u8[65536]{0}', space=vmem, size = 0x10000, scoped, tag = 'input window, operand 5, single buffered']
    #allocation12 [shape = 's32[1]{0}', space=sflag, size = 0x4, scoped, tag = 'scoped memory for tpu_custom_call.1']
    #allocation13 [shape = 'u8[524288]{0}', space=vmem, size = 0x80000, scoped, tag = 'input window, operand 6, single buffered']
    #allocation14 [shape = 'u8[8192]{0}', space=vmem, size = 0x2000, scoped, tag = 'input window, operand 7, single buffered']
    #allocation15 [shape = 's32[1]{0}', space=sflag, size = 0x4, scoped, tag = 'scoped memory for tpu_custom_call.1']
    #allocation16 [shape = 'u8[4194304]{0}', space=vmem, size = 0x400000, scoped, tag = 'input window, operand 8, single buffered']
    #allocation17 [shape = 'u8[4096]{0}', space=vmem, size = 0x1000, scoped, tag = 'input window, operand 9, single buffered']
    #allocation18 [shape = 's32[1]{0}', space=sflag, size = 0x4, scoped, tag = 'scoped memory for tpu_custom_call.1']
    #allocation19 [shape = 'u8[4096]{0}', space=vmem, size = 0x1000, scoped, tag = 'input window, operand 10, single buffered']
    #allocation20 [shape = 'u8[4096]{0}', space=vmem, size = 0x1000, scoped, tag = 'input window, operand 11, single buffered']
    #allocation21 [shape = 's32[1]{0}', space=sflag, size = 0x4, scoped, tag = 'scoped memory for tpu_custom_call.1']
    #allocation22 [shape = 'u8[1048576]{0}', space=vmem, size = 0x100000, scoped, tag = 'input window, operand 12, single buffered']
    #allocation23 [shape = 'u8[2048]{0}', space=vmem, size = 0x800, scoped, tag = 'input window, operand 13, single buffered']
    #allocation24 [shape = 's32[1]{0}', space=sflag, size = 0x4, scoped, tag = 'scoped memory for tpu_custom_call.1']
    #allocation25 [shape = 'u8[131072]{0}', space=vmem, size = 0x20000, scoped, tag = 'input window, operand 14, single buffered']
    #allocation26 [shape = 'u8[512]{0}', space=vmem, size = 0x400, scoped, tag = 'input window, operand 15, single buffered']
    #allocation27 [shape = 's32[1]{0}', space=sflag, size = 0x4, scoped, tag = 'scoped memory for tpu_custom_call.1']
    #allocation28 [shape = 'u8[4096]{0}', space=vmem, size = 0x1000, scoped, tag = 'output window, operand 0, single buffered']
    %21 = vsyncpa [#allocation3], 0
    %22 = vsyncpa [#allocation6], 0
    %23 = vsyncpa [#allocation9], 0
    %24 = vsyncpa [#allocation12], 0
    %25 = vsyncpa [#allocation15], 0
    %26 = vsyncpa [#allocation18], 0
    %27 = vsyncpa [#allocation21], 0
    %28 = vsyncpa [#allocation24], 0
    %29 = vsyncpa [#allocation27], 0
    %30 = vsyncpa [#allocation4], 0
    // Predicated region
    $region2: #{tpu_custom_call.1} parent=1 // pred_check
      _
    $region3: #{tpu_custom_call.1} parent=1 // pred_check_branch
      %32 = sbr.rel (0) target = $region5
    $region4: #{tpu_custom_call.1} parent=1 // pred_region
      %s34 = ssub.s32 128, 128
      %35 = vsyncadd [#allocation3], %s34
      %s37 = sshll.u32 [#allocation2], 4
      %s38 = int_to_ptr.vmem [resolvable:$true] %s37
      %40 = dma.hbm_to_vmem [thread:$0]  %s0, 128, %s38, [#allocation3]
    $region5: #{tpu_custom_call.1} parent=1 // pred_fallthru
      _
    // Predicated region
    $region6: #{tpu_custom_call.1} parent=1 // pred_check
      _
    $region7: #{tpu_custom_call.1} parent=1 // pred_check_branch
      %42 = sbr.rel (0) target = $region9
    $region8: #{tpu_custom_call.1} parent=1 // pred_region
      %s44 = ssub.s32 512, 512
      %45 = vsyncadd [#allocation6], %s44
      %s46 = sshll.u32 [#allocation5], 4
      %s47 = int_to_ptr.vmem [resolvable:$true] %s46
      %52 = dma.hbm_to_vmem [thread:$0]  %s1, 512, %s47, [#allocation6], 256, 256, 16
    $region9: #{tpu_custom_call.1} parent=1 // pred_fallthru
      _
    // Predicated region
    $region10: #{tpu_custom_call.1} parent=1 // pred_check
      _
    $region11: #{tpu_custom_call.1} parent=1 // pred_check_branch
      %54 = sbr.rel (0) target = $region13
    $region12: #{tpu_custom_call.1} parent=1 // pred_region
      %s56 = ssub.s32 16, 16
      %57 = vsyncadd [#allocation6], %s56
      %s59 = sshll.u32 [#allocation7], 4
      %s60 = int_to_ptr.vmem [resolvable:$true] %s59
      %62 = dma.hbm_to_vmem [thread:$0]  %s2, 16, %s60, [#allocation6]
    $region13: #{tpu_custom_call.1} parent=1 // pred_fallthru
      _
    // Predicated region
    $region14: #{tpu_custom_call.1} parent=1 // pred_check
      _
    $region15: #{tpu_custom_call.1} parent=1 // pred_check_branch
      %64 = sbr.rel (0) target = $region17
    $region16: #{tpu_custom_call.1} parent=1 // pred_region
      %s66 = ssub.s32 16, 16
      %67 = vsyncadd [#allocation9], %s66
      %s69 = sshll.u32 [#allocation8], 4
      %s70 = int_to_ptr.vmem [resolvable:$true] %s69
      %72 = dma.hbm_to_vmem [thread:$0]  %s3, 16, %s70, [#allocation9]
    $region17: #{tpu_custom_call.1} parent=1 // pred_fallthru
      _
    // Predicated region
    $region18: #{tpu_custom_call.1} parent=1 // pred_check
      _
    $region19: #{tpu_custom_call.1} parent=1 // pred_check_branch
      %74 = sbr.rel (0) target = $region21
    $region20: #{tpu_custom_call.1} parent=1 // pred_region
      %s76 = ssub.s32 16, 16
      %77 = vsyncadd [#allocation9], %s76
      %s79 = sshll.u32 [#allocation10], 4
      %s80 = int_to_ptr.vmem [resolvable:$true] %s79
      %82 = dma.hbm_to_vmem [thread:$0]  %s4, 16, %s80, [#allocation9]
    $region21: #{tpu_custom_call.1} parent=1 // pred_fallthru
      _
    // Predicated region
    $region22: #{tpu_custom_call.1} parent=1 // pred_check
      _
    $region23: #{tpu_custom_call.1} parent=1 // pred_check_branch
      %84 = sbr.rel (0) target = $region25
    $region24: #{tpu_custom_call.1} parent=1 // pred_region
      %s86 = ssub.s32 2048, 2048
      %87 = vsyncadd [#allocation12], %s86
      %s88 = sshll.u32 [#allocation11], 4
      %s89 = int_to_ptr.vmem [resolvable:$true] %s88
      %94 = dma.hbm_to_vmem [thread:$0]  %s5, 2048, %s89, [#allocation12], 128, 128, 8
    $region25: #{tpu_custom_call.1} parent=1 // pred_fallthru
      _
    // Predicated region
    $region26: #{tpu_custom_call.1} parent=1 // pred_check
      _
    $region27: #{tpu_custom_call.1} parent=1 // pred_check_branch
      %96 = sbr.rel (0) target = $region29
    $region28: #{tpu_custom_call.1} parent=1 // pred_region
      %s98 = ssub.s32 16384, 16384
      %99 = vsyncadd [#allocation12], %s98
      %s100 = sshll.u32 [#allocation13], 4
      %s101 = int_to_ptr.vmem [resolvable:$true] %s100
      %106 = dma.hbm_to_vmem [thread:$0]  %s6, 16384, %s101, [#allocation12], 1024, 1024, 64
    $region29: #{tpu_custom_call.1} parent=1 // pred_fallthru
      _
    // Predicated region
    $region30: #{tpu_custom_call.1} parent=1 // pred_check
      _
    $region31: #{tpu_custom_call.1} parent=1 // pred_check_branch
      %108 = sbr.rel (0) target = $region33
    $region32: #{tpu_custom_call.1} parent=1 // pred_region
      %s110 = ssub.s32 256, 256
      %111 = vsyncadd [#allocation15], %s110
      %s113 = sshll.u32 [#allocation14], 4
      %s114 = int_to_ptr.vmem [resolvable:$true] %s113
      %116 = dma.hbm_to_vmem [thread:$0]  %s7, 256, %s114, [#allocation15]
    $region33: #{tpu_custom_call.1} parent=1 // pred_fallthru
      _
    // Predicated region
    $region34: #{tpu_custom_call.1} parent=1 // pred_check
      _
    $region35: #{tpu_custom_call.1} parent=1 // pred_check_branch
      %118 = sbr.rel (0) target = $region37
    $region36: #{tpu_custom_call.1} parent=1 // pred_region
      %s120 = ssub.s32 131072, 131072
      %121 = vsyncadd [#allocation15], %s120
      %s122 = sshll.u32 [#allocation16], 4
      %s123 = int_to_ptr.vmem [resolvable:$true] %s122
      %128 = dma.hbm_to_vmem [thread:$0]  %s8, 131072, %s123, [#allocation15], 512, 512, 32
    $region37: #{tpu_custom_call.1} parent=1 // pred_fallthru
      _
    // Predicated region
    $region38: #{tpu_custom_call.1} parent=1 // pred_check
      _
    $region39: #{tpu_custom_call.1} parent=1 // pred_check_branch
      %130 = sbr.rel (0) target = $region41
    $region40: #{tpu_custom_call.1} parent=1 // pred_region
      %s132 = ssub.s32 128, 128
      %133 = vsyncadd [#allocation18], %s132
      %s135 = sshll.u32 [#allocation17], 4
      %s136 = int_to_ptr.vmem [resolvable:$true] %s135
      %138 = dma.hbm_to_vmem [thread:$0]  %s9, 128, %s136, [#allocation18]
    $region41: #{tpu_custom_call.1} parent=1 // pred_fallthru
      _
    // Predicated region
    $region42: #{tpu_custom_call.1} parent=1 // pred_check
      _
    $region43: #{tpu_custom_call.1} parent=1 // pred_check_branch
      %140 = sbr.rel (0) target = $region45
    $region44: #{tpu_custom_call.1} parent=1 // pred_region
      %s142 = ssub.s32 128, 128
      %143 = vsyncadd [#allocation18], %s142
      %s145 = sshll.u32 [#allocation19], 4
      %s146 = int_to_ptr.vmem [resolvable:$true] %s145
      %148 = dma.hbm_to_vmem [thread:$0]  %s10, 128, %s146, [#allocation18]
    $region45: #{tpu_custom_call.1} parent=1 // pred_fallthru
      _
    // Predicated region
    $region46: #{tpu_custom_call.1} parent=1 // pred_check
      _
    $region47: #{tpu_custom_call.1} parent=1 // pred_check_branch
      %150 = sbr.rel (0) target = $region49
    $region48: #{tpu_custom_call.1} parent=1 // pred_region
      %s152 = ssub.s32 128, 128
      %153 = vsyncadd [#allocation21], %s152
      %s155 = sshll.u32 [#allocation20], 4
      %s156 = int_to_ptr.vmem [resolvable:$true] %s155
      %158 = dma.hbm_to_vmem [thread:$0]  %s11, 128, %s156, [#allocation21]
    $region49: #{tpu_custom_call.1} parent=1 // pred_fallthru
      _
    // Predicated region
    $region50: #{tpu_custom_call.1} parent=1 // pred_check
      _
    $region51: #{tpu_custom_call.1} parent=1 // pred_check_branch
      %160 = sbr.rel (0) target = $region53
    $region52: #{tpu_custom_call.1} parent=1 // pred_region
      %s162 = ssub.s32 32768, 32768
      %163 = vsyncadd [#allocation21], %s162
      %s164 = sshll.u32 [#allocation22], 4
      %s165 = int_to_ptr.vmem [resolvable:$true] %s164
      %170 = dma.hbm_to_vmem [thread:$0]  %s12, 32768, %s165, [#allocation21], 256, 256, 16
    $region53: #{tpu_custom_call.1} parent=1 // pred_fallthru
      _
    // Predicated region
    $region54: #{tpu_custom_call.1} parent=1 // pred_check
      _
    $region55: #{tpu_custom_call.1} parent=1 // pred_check_branch
      %172 = sbr.rel (0) target = $region57
    $region56: #{tpu_custom_call.1} parent=1 // pred_region
      %s174 = ssub.s32 64, 64
      %175 = vsyncadd [#allocation24], %s174
      %s177 = sshll.u32 [#allocation23], 4
      %s178 = int_to_ptr.vmem [resolvable:$true] %s177
      %180 = dma.hbm_to_vmem [thread:$0]  %s13, 64, %s178, [#allocation24]
    $region57: #{tpu_custom_call.1} parent=1 // pred_fallthru
      _
    // Predicated region
    $region58: #{tpu_custom_call.1} parent=1 // pred_check
      _
    $region59: #{tpu_custom_call.1} parent=1 // pred_check_branch
      %182 = sbr.rel (0) target = $region61
    $region60: #{tpu_custom_call.1} parent=1 // pred_region
      %s184 = ssub.s32 4096, 4096
      %185 = vsyncadd [#allocation24], %s184
      %s186 = sshll.u32 [#allocation25], 4
      %s187 = int_to_ptr.vmem [resolvable:$true] %s186
      %192 = dma.hbm_to_vmem [thread:$0]  %s14, 4096, %s187, [#allocation24], 64, 64, 4
    $region61: #{tpu_custom_call.1} parent=1 // pred_fallthru
      _
    // Predicated region
    $region62: #{tpu_custom_call.1} parent=1 // pred_check
      _
    $region63: #{tpu_custom_call.1} parent=1 // pred_check_branch
      %194 = sbr.rel (0) target = $region65
    $region64: #{tpu_custom_call.1} parent=1 // pred_region
      %s196 = ssub.s32 16, 16
      %197 = vsyncadd [#allocation27], %s196
      %s199 = sshll.u32 [#allocation26], 4
      %s200 = int_to_ptr.vmem [resolvable:$true] %s199
      %202 = dma.hbm_to_vmem [thread:$0]  %s15, 16, %s200, [#allocation27]
    $region65: #{tpu_custom_call.1} parent=1 // pred_fallthru
      _
    // Predicated region
    $region66: #{tpu_custom_call.1} parent=1 // pred_check
      _
    $region67: #{tpu_custom_call.1} parent=1 // pred_check_branch
      %204 = sbr.rel (0) target = $region69
    $region68: #{tpu_custom_call.1} parent=1 // pred_region
      %205 = dma.done [#allocation3], 128
    $region69: #{tpu_custom_call.1} parent=1 // pred_fallthru
      _
    // Predicated region
    $region70: #{tpu_custom_call.1} parent=1 // pred_check
      _
    $region71: #{tpu_custom_call.1} parent=1 // pred_check_branch
      %207 = sbr.rel (0) target = $region73
    $region72: #{tpu_custom_call.1} parent=1 // pred_region
      %208 = dma.done [#allocation6], 512
    $region73: #{tpu_custom_call.1} parent=1 // pred_fallthru
      _
    // Predicated region
    $region74: #{tpu_custom_call.1} parent=1 // pred_check
      _
    $region75: #{tpu_custom_call.1} parent=1 // pred_check_branch
      %210 = sbr.rel (0) target = $region77
    $region76: #{tpu_custom_call.1} parent=1 // pred_region
      %211 = dma.done [#allocation6], 16
    $region77: #{tpu_custom_call.1} parent=1 // pred_fallthru
      _
    // Predicated region
    $region78: #{tpu_custom_call.1} parent=1 // pred_check
      _
    $region79: #{tpu_custom_call.1} parent=1 // pred_check_branch
      %213 = sbr.rel (0) target = $region81
    $region80: #{tpu_custom_call.1} parent=1 // pred_region
      %214 = dma.done [#allocation9], 16
    $region81: #{tpu_custom_call.1} parent=1 // pred_fallthru
      _
    // Predicated region
    $region82: #{tpu_custom_call.1} parent=1 // pred_check
      _
    $region83: #{tpu_custom_call.1} parent=1 // pred_check_branch
      %216 = sbr.rel (0) target = $region85
    $region84: #{tpu_custom_call.1} parent=1 // pred_region
      %217 = dma.done [#allocation9], 16
    $region85: #{tpu_custom_call.1} parent=1 // pred_fallthru
      _
    // Predicated region
    $region86: #{tpu_custom_call.1} parent=1 // pred_check
      _
    $region87: #{tpu_custom_call.1} parent=1 // pred_check_branch
      %219 = sbr.rel (0) target = $region89
    $region88: #{tpu_custom_call.1} parent=1 // pred_region
      %220 = dma.done [#allocation12], 2048
    $region89: #{tpu_custom_call.1} parent=1 // pred_fallthru
      _
    // Predicated region
    $region90: #{tpu_custom_call.1} parent=1 // pred_check
      _
    $region91: #{tpu_custom_call.1} parent=1 // pred_check_branch
      %222 = sbr.rel (0) target = $region93
    $region92: #{tpu_custom_call.1} parent=1 // pred_region
      %223 = dma.done [#allocation12], 16384
    $region93: #{tpu_custom_call.1} parent=1 // pred_fallthru
      _
    // Predicated region
    $region94: #{tpu_custom_call.1} parent=1 // pred_check
      _
    $region95: #{tpu_custom_call.1} parent=1 // pred_check_branch
      %225 = sbr.rel (0) target = $region97
    $region96: #{tpu_custom_call.1} parent=1 // pred_region
      %226 = dma.done [#allocation15], 256
    $region97: #{tpu_custom_call.1} parent=1 // pred_fallthru
      _
    // Predicated region
    $region98: #{tpu_custom_call.1} parent=1 // pred_check
      _
    $region99: #{tpu_custom_call.1} parent=1 // pred_check_branch
      %228 = sbr.rel (0) target = $region101
    $region100: #{tpu_custom_call.1} parent=1 // pred_region
      %229 = dma.done [#allocation15], 131072
    $region101: #{tpu_custom_call.1} parent=1 // pred_fallthru
      _
    // Predicated region
    $region102: #{tpu_custom_call.1} parent=1 // pred_check
      _
    $region103: #{tpu_custom_call.1} parent=1 // pred_check_branch
      %231 = sbr.rel (0) target = $region105
    $region104: #{tpu_custom_call.1} parent=1 // pred_region
      %232 = dma.done [#allocation18], 128
    $region105: #{tpu_custom_call.1} parent=1 // pred_fallthru
      _
    // Predicated region
    $region106: #{tpu_custom_call.1} parent=1 // pred_check
      _
    $region107: #{tpu_custom_call.1} parent=1 // pred_check_branch
      %234 = sbr.rel (0) target = $region109
    $region108: #{tpu_custom_call.1} parent=1 // pred_region
      %235 = dma.done [#allocation18], 128
    $region109: #{tpu_custom_call.1} parent=1 // pred_fallthru
      _
    // Predicated region
    $region110: #{tpu_custom_call.1} parent=1 // pred_check
      _
    $region111: #{tpu_custom_call.1} parent=1 // pred_check_branch
      %237 = sbr.rel (0) target = $region113
    $region112: #{tpu_custom_call.1} parent=1 // pred_region
      %238 = dma.done [#allocation21], 128
    $region113: #{tpu_custom_call.1} parent=1 // pred_fallthru
      _
    // Predicated region
    $region114: #{tpu_custom_call.1} parent=1 // pred_check
      _
    $region115: #{tpu_custom_call.1} parent=1 // pred_check_branch
      %240 = sbr.rel (0) target = $region117
    $region116: #{tpu_custom_call.1} parent=1 // pred_region
      %241 = dma.done [#allocation21], 32768
    $region117: #{tpu_custom_call.1} parent=1 // pred_fallthru
      _
    // Predicated region
    $region118: #{tpu_custom_call.1} parent=1 // pred_check
      _
    $region119: #{tpu_custom_call.1} parent=1 // pred_check_branch
      %243 = sbr.rel (0) target = $region121
    $region120: #{tpu_custom_call.1} parent=1 // pred_region
      %244 = dma.done [#allocation24], 64
    $region121: #{tpu_custom_call.1} parent=1 // pred_fallthru
      _
    // Predicated region
    $region122: #{tpu_custom_call.1} parent=1 // pred_check
      _
    $region123: #{tpu_custom_call.1} parent=1 // pred_check_branch
      %246 = sbr.rel (0) target = $region125
    $region124: #{tpu_custom_call.1} parent=1 // pred_region
      %247 = dma.done [#allocation24], 4096
    $region125: #{tpu_custom_call.1} parent=1 // pred_fallthru
      _
    // Predicated region
    $region126: #{tpu_custom_call.1} parent=1 // pred_check
      _
    $region127: #{tpu_custom_call.1} parent=1 // pred_check_branch
      %249 = sbr.rel (0) target = $region129
    $region128: #{tpu_custom_call.1} parent=1 // pred_region
      %250 = dma.done [#allocation27], 16
    $region129: #{tpu_custom_call.1} parent=1 // pred_fallthru
      _
    %v252 = vld [vmem:[#allocation2] sm:$0xff]
    %v253 = vld [vmem:[#allocation5] sm:$0xff]
    %v254 = vld [vmem:[#allocation5 + $0x8] sm:$0xff]
    %v255 = vld [vmem:[#allocation5 + $0x10] sm:$0xff]
    %v256 = vld [vmem:[#allocation5 + $0x18] sm:$0xff]
    %vm257 = vcmask 130048
    %v259 = vsel %vm257, %v252, 0
    %261 = vmatprep.subr.mxu0 %v254
    %262 = vmatpush1.msra.mxu0 %v253
    %263 = vmatprep.subr.mxu0 %v256
    %264 = vmatpush1.msra.mxu0 %v255
    %265 = vmatprep.subr.mxu0 0.0
    %266 = vmatpush1.msra.mxu0 0.0
    %267 = vmatprep.subr.mxu0 0.0
    %268 = vmatpush1.msra.mxu0 0.0
    %269 = vmatprep.subr.mxu0 0.0
    %270 = vmatpush1.msra.mxu0 0.0
    %271 = vmatprep.subr.mxu0 0.0
    %272 = vmatpush1.msra.mxu0 0.0
    %273 = vmatprep.subr.mxu0 0.0
    %274 = vmatpush1.msra.mxu0 0.0
    %275 = vmatprep.subr.mxu0 0.0
    %276 = vmatpush1.msra.mxu0 0.0
    %277 = vmatprep.subr.mxu0 0.0
    %278 = vmatpush1.msra.mxu0 0.0
    %279 = vmatprep.subr.mxu0 0.0
    %280 = vmatpush1.msra.mxu0 0.0
    %281 = vmatprep.subr.mxu0 0.0
    %282 = vmatpush1.msra.mxu0 0.0
    %283 = vmatprep.subr.mxu0 0.0
    %284 = vmatpush1.msra.mxu0 0.0
    %285 = vmatprep.subr.mxu0 0.0
    %286 = vmatpush1.msra.mxu0 0.0
    %287 = vmatprep.subr.mxu0 0.0
    %288 = vmatpush1.msra.mxu0 0.0
    %289 = vmatprep.subr.mxu0 0.0
    %290 = vmatpush1.msra.mxu0 0.0
    %291 = vmatprep.subr.mxu0 0.0
    %292 = vmatpush1.msra.mxu0 0.0
    %293 = vmatprep.subr.mxu0 0.0
    %294 = vmatpush1.msra.mxu0 0.0
    %295 = vmatprep.subr.mxu0 0.0
    %296 = vmatpush1.msra.mxu0 0.0
    %297 = vmatprep.subr.mxu0 0.0
    %298 = vmatpush1.msra.mxu0 0.0
    %299 = vmatprep.subr.mxu0 0.0
    %300 = vmatpush1.msra.mxu0 0.0
    %301 = vmatprep.subr.mxu0 0.0
    %302 = vmatpush1.msra.mxu0 0.0
    %303 = vmatprep.subr.mxu0 0.0
    %304 = vmatpush1.msra.mxu0 0.0
    %305 = vmatprep.subr.mxu0 0.0
    %306 = vmatpush1.msra.mxu0 0.0
    %307 = vmatprep.subr.mxu0 0.0
    %308 = vmatpush1.msra.mxu0 0.0
    %309 = vmatprep.subr.mxu0 0.0
    %310 = vmatpush1.msra.mxu0 0.0
    %311 = vmatprep.subr.mxu0 0.0
    %312 = vmatpush1.msra.mxu0 0.0
    %313 = vmatprep.subr.mxu0 0.0
    %314 = vmatpush1.msra.mxu0 0.0
    %315 = vmatprep.subr.mxu0 0.0
    %316 = vmatpush1.msra.mxu0 0.0
    %317 = vmatprep.subr.mxu0 0.0
    %318 = vmatpush1.msra.mxu0 0.0
    %319 = vmatprep.subr.mxu0 0.0
    %320 = vmatpush1.msra.mxu0 0.0
    %321 = vmatprep.subr.mxu0 0.0
    %322 = vmatpush1.msra.mxu0 0.0
    %323 = vmatprep.subr.mxu0 0.0
    %324 = vmatpush1.msra.mxu0 0.0
    %325 = vmatprep.mubr.f32.mxu0 0.0
    %326 = vmatmul.mubr.f32.gmra.mrb[0].mxu0 %v259
    %v327 = vpop.f32.mrb[0].mxu0
    %v328 = vadd.f32 0.0, %v327
    %v329 = vpop.f32.mrb[0].mxu0
    %v330 = vadd.f32 0.0, %v329
    %331 = vdwg.mxu0
    %v332 = vld [vmem:[#allocation7] sm:$0x1]
    %v334 = vlaneseq
    %v335 = vshrl.u32 %v334, 7
    %v336 = vsub.s32 0, %v335
    %v337 = vrot.slane %v332, %v336
    %v339 = vadd.f32 %v328, %v337
    %v340 = vmul.f32 %v339, 0.5
    %v341 = vtanh.pop %v340
    %v342 = vmul.f32 %v341, 0.5
    %v343 = vadd.f32 %v342, 0.5
    %v344 = vmul.f32 %v339, %v343
    %v345 = vrot.slane %v344, 4
    %v346 = vadd.f32 %v344, %v345
    %v347 = vrot.slane %v346, 2
    %v348 = vadd.f32 %v346, %v347
    %v349 = vrot.slane %v348, 1
    %v350 = vadd.f32 %v348, %v349
    %v351 = vld [vmem:[#allocation11] sm:$0xff]
    %v352 = vld [vmem:[#allocation11 + $0x8] sm:$0xff]
    %v353 = vld [vmem:[#allocation11 + $0x10] sm:$0xff]
    %v354 = vld [vmem:[#allocation11 + $0x18] sm:$0xff]
    %v355 = vld [vmem:[#allocation11 + $0x20] sm:$0xff]
    %v356 = vld [vmem:[#allocation11 + $0x28] sm:$0xff]
    %v357 = vld [vmem:[#allocation11 + $0x30] sm:$0xff]
    %v358 = vld [vmem:[#allocation11 + $0x38] sm:$0xff]
    %v359 = vld [vmem:[#allocation11 + $0x40] sm:$0xff]
    %v360 = vld [vmem:[#allocation11 + $0x48] sm:$0xff]
    %v361 = vld [vmem:[#allocation11 + $0x50] sm:$0xff]
    %v362 = vld [vmem:[#allocation11 + $0x58] sm:$0xff]
    %v363 = vld [vmem:[#allocation11 + $0x60] sm:$0xff]
    %v364 = vld [vmem:[#allocation11 + $0x68] sm:$0xff]
    %v365 = vld [vmem:[#allocation11 + $0x70] sm:$0xff]
    %v366 = vld [vmem:[#allocation11 + $0x78] sm:$0xff]
    %367 = vmatprep.subr.mxu0 0.0
    %368 = vmatpush1.msra.mxu0 %v351
    %369 = vmatprep.subr.mxu0 0.0
    %370 = vmatpush1.msra.mxu0 %v352
    %371 = vmatprep.subr.mxu0 0.0
    %372 = vmatpush1.msra.mxu0 %v353
    %373 = vmatprep.subr.mxu0 0.0
    %374 = vmatpush1.msra.mxu0 %v354
    %375 = vmatprep.subr.mxu0 0.0
    %376 = vmatpush1.msra.mxu0 %v355
    %377 = vmatprep.subr.mxu0 0.0
    %378 = vmatpush1.msra.mxu0 %v356
    %379 = vmatprep.subr.mxu0 0.0
    %380 = vmatpush1.msra.mxu0 %v357
    %381 = vmatprep.subr.mxu0 0.0
    %382 = vmatpush1.msra.mxu0 %v358
    %383 = vmatprep.subr.mxu0 0.0
    %384 = vmatpush1.msra.mxu0 %v359
    %385 = vmatprep.subr.mxu0 0.0
    %386 = vmatpush1.msra.mxu0 %v360
    %387 = vmatprep.subr.mxu0 0.0
    %388 = vmatpush1.msra.mxu0 %v361
    %389 = vmatprep.subr.mxu0 0.0
    %390 = vmatpush1.msra.mxu0 %v362
    %391 = vmatprep.subr.mxu0 0.0
    %392 = vmatpush1.msra.mxu0 %v363
    %393 = vmatprep.subr.mxu0 0.0
    %394 = vmatpush1.msra.mxu0 %v364
    %395 = vmatprep.subr.mxu0 0.0
    %396 = vmatpush1.msra.mxu0 %v365
    %397 = vmatprep.subr.mxu0 0.0
    %398 = vmatpush1.msra.mxu0 %v366
    %399 = vmatprep.subr.mxu0 0.0
    %400 = vmatpush1.msra.mxu0 0.0
    %401 = vmatprep.subr.mxu0 0.0
    %402 = vmatpush1.msra.mxu0 0.0
    %403 = vmatprep.subr.mxu0 0.0
    %404 = vmatpush1.msra.mxu0 0.0
    %405 = vmatprep.subr.mxu0 0.0
    %406 = vmatpush1.msra.mxu0 0.0
    %407 = vmatprep.subr.mxu0 0.0
    %408 = vmatpush1.msra.mxu0 0.0
    %409 = vmatprep.subr.mxu0 0.0
    %410 = vmatpush1.msra.mxu0 0.0
    %411 = vmatprep.subr.mxu0 0.0
    %412 = vmatpush1.msra.mxu0 0.0
    %413 = vmatprep.subr.mxu0 0.0
    %414 = vmatpush1.msra.mxu0 0.0
    %415 = vmatprep.subr.mxu0 0.0
    %416 = vmatpush1.msra.mxu0 0.0
    %417 = vmatprep.subr.mxu0 0.0
    %418 = vmatpush1.msra.mxu0 0.0
    %419 = vmatprep.subr.mxu0 0.0
    %420 = vmatpush1.msra.mxu0 0.0
    %421 = vmatprep.subr.mxu0 0.0
    %422 = vmatpush1.msra.mxu0 0.0
    %423 = vmatprep.subr.mxu0 0.0
    %424 = vmatpush1.msra.mxu0 0.0
    %425 = vmatprep.subr.mxu0 0.0
    %426 = vmatpush1.msra.mxu0 0.0
    %427 = vmatprep.subr.mxu0 0.0
    %428 = vmatpush1.msra.mxu0 0.0
    %429 = vmatprep.subr.mxu0 0.0
    %430 = vmatpush1.msra.mxu0 0.0
    %431 = vmatprep.mubr.f32.mxu0 0.0
    %432 = vmatmul.mubr.f32.gmra.mrb[0].mxu0 %v350
    %v433 = vpop.f32.mrb[0].mxu0
    %v434 = vadd.f32 0.0, %v433
    %v435 = vpop.f32.mrb[0].mxu0
    %436 = vdwg.mxu0
    %v437 = vmul.f32 %v434, 0.0078125
    %v438 = vlaneseq
    %v439 = vshrl.u32 %v438, 7
    %v440 = vsub.s32 0, %v439
    %v441 = vrot.slane %v437, %v440
    %v442 = vsub.f32 %v344, %v441
    %v443 = vmul.f32 %v442, %v442
    %v444 = vrot.slane %v443, 4
    %v445 = vadd.f32 %v443, %v444
    %v446 = vrot.slane %v445, 2
    %v447 = vadd.f32 %v445, %v446
    %v448 = vrot.slane %v447, 1
    %v449 = vadd.f32 %v447, %v448
    %450 = vmatprep.subr.mxu0 0.0
    %451 = vmatpush1.msra.mxu0 %v351
    %452 = vmatprep.subr.mxu0 0.0
    %453 = vmatpush1.msra.mxu0 %v352
    %454 = vmatprep.subr.mxu0 0.0
    %455 = vmatpush1.msra.mxu0 %v353
    %456 = vmatprep.subr.mxu0 0.0
    %457 = vmatpush1.msra.mxu0 %v354
    %458 = vmatprep.subr.mxu0 0.0
    %459 = vmatpush1.msra.mxu0 %v355
    %460 = vmatprep.subr.mxu0 0.0
    %461 = vmatpush1.msra.mxu0 %v356
    %462 = vmatprep.subr.mxu0 0.0
    %463 = vmatpush1.msra.mxu0 %v357
    %464 = vmatprep.subr.mxu0 0.0
    %465 = vmatpush1.msra.mxu0 %v358
    %466 = vmatprep.subr.mxu0 0.0
    %467 = vmatpush1.msra.mxu0 %v359
    %468 = vmatprep.subr.mxu0 0.0
    %469 = vmatpush1.msra.mxu0 %v360
    %470 = vmatprep.subr.mxu0 0.0
    %471 = vmatpush1.msra.mxu0 %v361
    %472 = vmatprep.subr.mxu0 0.0
    %473 = vmatpush1.msra.mxu0 %v362
    %474 = vmatprep.subr.mxu0 0.0
    %475 = vmatpush1.msra.mxu0 %v363
    %476 = vmatprep.subr.mxu0 0.0
    %477 = vmatpush1.msra.mxu0 %v364
    %478 = vmatprep.subr.mxu0 0.0
    %479 = vmatpush1.msra.mxu0 %v365
    %480 = vmatprep.subr.mxu0 0.0
    %481 = vmatpush1.msra.mxu0 %v366
    %482 = vmatprep.subr.mxu0 0.0
    %483 = vmatpush1.msra.mxu0 0.0
    %484 = vmatprep.subr.mxu0 0.0
    %485 = vmatpush1.msra.mxu0 0.0
    %486 = vmatprep.subr.mxu0 0.0
    %487 = vmatpush1.msra.mxu0 0.0
    %488 = vmatprep.subr.mxu0 0.0
    %489 = vmatpush1.msra.mxu0 0.0
    %490 = vmatprep.subr.mxu0 0.0
    %491 = vmatpush1.msra.mxu0 0.0
    %492 = vmatprep.subr.mxu0 0.0
    %493 = vmatpush1.msra.mxu0 0.0
    %494 = vmatprep.subr.mxu0 0.0
    %495 = vmatpush1.msra.mxu0 0.0
    %496 = vmatprep.subr.mxu0 0.0
    %497 = vmatpush1.msra.mxu0 0.0
    %498 = vmatprep.subr.mxu0 0.0
    %499 = vmatpush1.msra.mxu0 0.0
    %500 = vmatprep.subr.mxu0 0.0
    %501 = vmatpush1.msra.mxu0 0.0
    %502 = vmatprep.subr.mxu0 0.0
    %503 = vmatpush1.msra.mxu0 0.0
    %504 = vmatprep.subr.mxu0 0.0
    %505 = vmatpush1.msra.mxu0 0.0
    %506 = vmatprep.subr.mxu0 0.0
    %507 = vmatpush1.msra.mxu0 0.0
    %508 = vmatprep.subr.mxu0 0.0
    %509 = vmatpush1.msra.mxu0 0.0
    %510 = vmatprep.subr.mxu0 0.0
    %511 = vmatpush1.msra.mxu0 0.0
    %512 = vmatprep.subr.mxu0 0.0
    %513 = vmatpush1.msra.mxu0 0.0
    %514 = vmatprep.mubr.f32.mxu0 0.0
    %515 = vmatmul.mubr.f32.gmra.mrb[0].mxu0 %v449
    %v516 = vpop.f32.mrb[0].mxu0
    %v517 = vadd.f32 0.0, %v516
    %v518 = vpop.f32.mrb[0].mxu0
    %519 = vdwg.mxu0
    %v520 = vmul.f32 %v517, 0.0078125
    %v521 = vadd.f32 %v520, 1e-05
    %v522 = vrsqrt.pop %v521
    %v523 = vlaneseq
    %v524 = vshrl.u32 %v523, 7
    %v525 = vsub.s32 0, %v524
    %v526 = vrot.slane %v522, %v525
    %v527 = vmul.f32 %v442, %v526
    %v528 = vld [vmem:[#allocation8] sm:$0x1]
    %v530 = vlaneseq
    %v531 = vshrl.u32 %v530, 7
    %v532 = vsub.s32 0, %v531
    %v533 = vrot.slane %v528, %v532
    %v535 = vmul.f32 %v527, %v533
    %v536 = vld [vmem:[#allocation10] sm:$0x1]
    %v538 = vlaneseq
    %v539 = vshrl.u32 %v538, 7
    %v540 = vsub.s32 0, %v539
    %v541 = vrot.slane %v536, %v540
    %v543 = vadd.f32 %v535, %v541
    %v544 = vmul.f32 %v543, %v330
    %v545 = vpack.c.bf16 %v544, %v544
    %v546 = vld [vmem:[#allocation13] sm:$0xff]
    %v547 = vld [vmem:[#allocation13 + $0x8] sm:$0xff]
    %v548 = vld [vmem:[#allocation13 + $0x10] sm:$0xff]
    %v549 = vld [vmem:[#allocation13 + $0x18] sm:$0xff]
    %v550 = vld [vmem:[#allocation13 + $0x20] sm:$0xff]
    %v551 = vld [vmem:[#allocation13 + $0x28] sm:$0xff]
    %v552 = vld [vmem:[#allocation13 + $0x30] sm:$0xff]
    %v553 = vld [vmem:[#allocation13 + $0x38] sm:$0xff]
    %v554 = vld [vmem:[#allocation13 + $0x40] sm:$0xff]
    %v555 = vld [vmem:[#allocation13 + $0x48] sm:$0xff]
    %v556 = vld [vmem:[#allocation13 + $0x50] sm:$0xff]
    %v557 = vld [vmem:[#allocation13 + $0x58] sm:$0xff]
    %v558 = vld [vmem:[#allocation13 + $0x60] sm:$0xff]
    %v559 = vld [vmem:[#allocation13 + $0x68] sm:$0xff]
    %v560 = vld [vmem:[#allocation13 + $0x70] sm:$0xff]
    %v561 = vld [vmem:[#allocation13 + $0x78] sm:$0xff]
    %v562 = vld [vmem:[#allocation13 + $0x80] sm:$0xff]
    %v563 = vld [vmem:[#allocation13 + $0x88] sm:$0xff]
    %v564 = vld [vmem:[#allocation13 + $0x90] sm:$0xff]
    %v565 = vld [vmem:[#allocation13 + $0x98] sm:$0xff]
    %v566 = vld [vmem:[#allocation13 + $0xa0] sm:$0xff]
    %v567 = vld [vmem:[#allocation13 + $0xa8] sm:$0xff]
    %v568 = vld [vmem:[#allocation13 + $0xb0] sm:$0xff]
    %v569 = vld [vmem:[#allocation13 + $0xb8] sm:$0xff]
    %v570 = vld [vmem:[#allocation13 + $0xc0] sm:$0xff]
    %v571 = vld [vmem:[#allocation13 + $0xc8] sm:$0xff]
    %v572 = vld [vmem:[#allocation13 + $0xd0] sm:$0xff]
    %v573 = vld [vmem:[#allocation13 + $0xd8] sm:$0xff]
    %v574 = vld [vmem:[#allocation13 + $0xe0] sm:$0xff]
    %v575 = vld [vmem:[#allocation13 + $0xe8] sm:$0xff]
    %v576 = vld [vmem:[#allocation13 + $0xf0] sm:$0xff]
    %v577 = vld [vmem:[#allocation13 + $0xf8] sm:$0xff]
    %v578 = vld [vmem:[#allocation13 + $0x100] sm:$0xff]
    %v579 = vld [vmem:[#allocation13 + $0x108] sm:$0xff]
    %v580 = vld [vmem:[#allocation13 + $0x110] sm:$0xff]
    %v581 = vld [vmem:[#allocation13 + $0x118] sm:$0xff]
    %v582 = vld [vmem:[#allocation13 + $0x120] sm:$0xff]
    %v583 = vld [vmem:[#allocation13 + $0x128] sm:$0xff]
    %v584 = vld [vmem:[#allocation13 + $0x130] sm:$0xff]
    %v585 = vld [vmem:[#allocation13 + $0x138] sm:$0xff]
    %v586 = vld [vmem:[#allocation13 + $0x140] sm:$0xff]
    %v587 = vld [vmem:[#allocation13 + $0x148] sm:$0xff]
    %v588 = vld [vmem:[#allocation13 + $0x150] sm:$0xff]
    %v589 = vld [vmem:[#allocation13 + $0x158] sm:$0xff]
    %v590 = vld [vmem:[#allocation13 + $0x160] sm:$0xff]
    %v591 = vld [vmem:[#allocation13 + $0x168] sm:$0xff]
    %v592 = vld [vmem:[#allocation13 + $0x170] sm:$0xff]
    %v593 = vld [vmem:[#allocation13 + $0x178] sm:$0xff]
    %v594 = vld [vmem:[#allocation13 + $0x180] sm:$0xff]
    %v595 = vld [vmem:[#allocation13 + $0x188] sm:$0xff]
    %v596 = vld [vmem:[#allocation13 + $0x190] sm:$0xff]
    %v597 = vld [vmem:[#allocation13 + $0x198] sm:$0xff]
    %v598 = vld [vmem:[#allocation13 + $0x1a0] sm:$0xff]
    %v599 = vld [vmem:[#allocation13 + $0x1a8] sm:$0xff]
    %v600 = vld [vmem:[#allocation13 + $0x1b0] sm:$0xff]
    %v601 = vld [vmem:[#allocation13 + $0x1b8] sm:$0xff]
    %v602 = vld [vmem:[#allocation13 + $0x1c0] sm:$0xff]
    %v603 = vld [vmem:[#allocation13 + $0x1c8] sm:$0xff]
    %v604 = vld [vmem:[#allocation13 + $0x1d0] sm:$0xff]
    %v605 = vld [vmem:[#allocation13 + $0x1d8] sm:$0xff]
    %v606 = vld [vmem:[#allocation13 + $0x1e0] sm:$0xff]
    %v607 = vld [vmem:[#allocation13 + $0x1e8] sm:$0xff]
    %v608 = vld [vmem:[#allocation13 + $0x1f0] sm:$0xff]
    %v609 = vld [vmem:[#allocation13 + $0x1f8] sm:$0xff]
    %v610 = vld [vmem:[#allocation13 + $0x200] sm:$0xff]
    %v611 = vld [vmem:[#allocation13 + $0x208] sm:$0xff]
    %v612 = vld [vmem:[#allocation13 + $0x210] sm:$0xff]
    %v613 = vld [vmem:[#allocation13 + $0x218] sm:$0xff]
    %v614 = vld [vmem:[#allocation13 + $0x220] sm:$0xff]
    %v615 = vld [vmem:[#allocation13 + $0x228] sm:$0xff]
    %v616 = vld [vmem:[#allocation13 + $0x230] sm:$0xff]
    %v617 = vld [vmem:[#allocation13 + $0x238] sm:$0xff]
    %v618 = vld [vmem:[#allocation13 + $0x240] sm:$0xff]
    %v619 = vld [vmem:[#allocation13 + $0x248] sm:$0xff]
    %v620 = vld [vmem:[#allocation13 + $0x250] sm:$0xff]
    %v621 = vld [vmem:[#allocation13 + $0x258] sm:$0xff]
    %v622 = vld [vmem:[#allocation13 + $0x260] sm:$0xff]
    %v623 = vld [vmem:[#allocation13 + $0x268] sm:$0xff]
    %v624 = vld [vmem:[#allocation13 + $0x270] sm:$0xff]
    %v625 = vld [vmem:[#allocation13 + $0x278] sm:$0xff]
    %v626 = vld [vmem:[#allocation13 + $0x280] sm:$0xff]
    %v627 = vld [vmem:[#allocation13 + $0x288] sm:$0xff]
    %v628 = vld [vmem:[#allocation13 + $0x290] sm:$0xff]
    %v629 = vld [vmem:[#allocation13 + $0x298] sm:$0xff]
    %v630 = vld [vmem:[#allocation13 + $0x2a0] sm:$0xff]
    %v631 = vld [vmem:[#allocation13 + $0x2a8] sm:$0xff]
    %v632 = vld [vmem:[#allocation13 + $0x2b0] sm:$0xff]
    %v633 = vld [vmem:[#allocation13 + $0x2b8] sm:$0xff]
    %v634 = vld [vmem:[#allocation13 + $0x2c0] sm:$0xff]
    %v635 = vld [vmem:[#allocation13 + $0x2c8] sm:$0xff]
    %v636 = vld [vmem:[#allocation13 + $0x2d0] sm:$0xff]
    %v637 = vld [vmem:[#allocation13 + $0x2d8] sm:$0xff]
    %v638 = vld [vmem:[#allocation13 + $0x2e0] sm:$0xff]
    %v639 = vld [vmem:[#allocation13 + $0x2e8] sm:$0xff]
    %v640 = vld [vmem:[#allocation13 + $0x2f0] sm:$0xff]
    %v641 = vld [vmem:[#allocation13 + $0x2f8] sm:$0xff]
    %v642 = vld [vmem:[#allocation13 + $0x300] sm:$0xff]
    %v643 = vld [vmem:[#allocation13 + $0x308] sm:$0xff]
    %v644 = vld [vmem:[#allocation13 + $0x310] sm:$0xff]
    %v645 = vld [vmem:[#allocation13 + $0x318] sm:$0xff]
    %v646 = vld [vmem:[#allocation13 + $0x320] sm:$0xff]
    %v647 = vld [vmem:[#allocation13 + $0x328] sm:$0xff]
    %v648 = vld [vmem:[#allocation13 + $0x330] sm:$0xff]
    %v649 = vld [vmem:[#allocation13 + $0x338] sm:$0xff]
    %v650 = vld [vmem:[#allocation13 + $0x340] sm:$0xff]
    %v651 = vld [vmem:[#allocation13 + $0x348] sm:$0xff]
    %v652 = vld [vmem:[#allocation13 + $0x350] sm:$0xff]
    %v653 = vld [vmem:[#allocation13 + $0x358] sm:$0xff]
    %v654 = vld [vmem:[#allocation13 + $0x360] sm:$0xff]
    %v655 = vld [vmem:[#allocation13 + $0x368] sm:$0xff]
    %v656 = vld [vmem:[#allocation13 + $0x370] sm:$0xff]
    %v657 = vld [vmem:[#allocation13 + $0x378] sm:$0xff]
    %v658 = vld [vmem:[#allocation13 + $0x380] sm:$0xff]
    %v659 = vld [vmem:[#allocation13 + $0x388] sm:$0xff]
    %v660 = vld [vmem:[#allocation13 + $0x390] sm:$0xff]
    %v661 = vld [vmem:[#allocation13 + $0x398] sm:$0xff]
    %v662 = vld [vmem:[#allocation13 + $0x3a0] sm:$0xff]
    %v663 = vld [vmem:[#allocation13 + $0x3a8] sm:$0xff]
    %v664 = vld [vmem:[#allocation13 + $0x3b0] sm:$0xff]
    %v665 = vld [vmem:[#allocation13 + $0x3b8] sm:$0xff]
    %v666 = vld [vmem:[#allocation13 + $0x3c0] sm:$0xff]
    %v667 = vld [vmem:[#allocation13 + $0x3c8] sm:$0xff]
    %v668 = vld [vmem:[#allocation13 + $0x3d0] sm:$0xff]
    %v669 = vld [vmem:[#allocation13 + $0x3d8] sm:$0xff]
    %v670 = vld [vmem:[#allocation13 + $0x3e0] sm:$0xff]
    %v671 = vld [vmem:[#allocation13 + $0x3e8] sm:$0xff]
    %v672 = vld [vmem:[#allocation13 + $0x3f0] sm:$0xff]
    %v673 = vld [vmem:[#allocation13 + $0x3f8] sm:$0xff]
    %v674 = vld [vmem:[#allocation14] sm:$0xff]
    %v675 = vld [vmem:[#allocation14 + $0x8] sm:$0xff]
    %v678 = vlaneseq
    %v679 = vshrl.u32 %v678, 7
    %v680 = vsub.s32 0, %v679
    %v681 = vrot.slane %v674, %v680
    %v682 = vlaneseq
    %v683 = vshrl.u32 %v682, 7
    %v684 = vsub.s32 1, %v683
    %v685 = vrot.slane %v674, %v684
    %v686 = vlaneseq
    %v687 = vshrl.u32 %v686, 7
    %v688 = vsub.s32 2, %v687
    %v689 = vrot.slane %v674, %v688
    %v690 = vlaneseq
    %v691 = vshrl.u32 %v690, 7
    %v692 = vsub.s32 3, %v691
    %v693 = vrot.slane %v674, %v692
    %v694 = vlaneseq
    %v695 = vshrl.u32 %v694, 7
    %v696 = vsub.s32 4, %v695
    %v697 = vrot.slane %v674, %v696
    %v698 = vlaneseq
    %v699 = vshrl.u32 %v698, 7
    %v700 = vsub.s32 5, %v699
    %v701 = vrot.slane %v674, %v700
    %v702 = vlaneseq
    %v703 = vshrl.u32 %v702, 7
    %v704 = vsub.s32 6, %v703
    %v705 = vrot.slane %v674, %v704
    %v706 = vlaneseq
    %v707 = vshrl.u32 %v706, 7
    %v708 = vsub.s32 7, %v707
    %v709 = vrot.slane %v674, %v708
    %v710 = vlaneseq
    %v711 = vshrl.u32 %v710, 7
    %v712 = vsub.s32 0, %v711
    %v713 = vrot.slane %v675, %v712
    %v714 = vlaneseq
    %v715 = vshrl.u32 %v714, 7
    %v716 = vsub.s32 1, %v715
    %v717 = vrot.slane %v675, %v716
    %v718 = vlaneseq
    %v719 = vshrl.u32 %v718, 7
    %v720 = vsub.s32 2, %v719
    %v721 = vrot.slane %v675, %v720
    %v722 = vlaneseq
    %v723 = vshrl.u32 %v722, 7
    %v724 = vsub.s32 3, %v723
    %v725 = vrot.slane %v675, %v724
    %v726 = vlaneseq
    %v727 = vshrl.u32 %v726, 7
    %v728 = vsub.s32 4, %v727
    %v729 = vrot.slane %v675, %v728
    %v730 = vlaneseq
    %v731 = vshrl.u32 %v730, 7
    %v732 = vsub.s32 5, %v731
    %v733 = vrot.slane %v675, %v732
    %v734 = vlaneseq
    %v735 = vshrl.u32 %v734, 7
    %v736 = vsub.s32 6, %v735
    %v737 = vrot.slane %v675, %v736
    %v738 = vlaneseq
    %v739 = vshrl.u32 %v738, 7
    %v740 = vsub.s32 7, %v739
    %v741 = vrot.slane %v675, %v740
    %v886 = vunpack.c.l.b16 %v546
    %v887 = vunpack.c.h.b16 %v546
    %v888 = vunpack.c.l.b16 %v547
    %v889 = vunpack.c.h.b16 %v547
    %v890 = vunpack.c.l.b16 %v548
    %v891 = vunpack.c.h.b16 %v548
    %v892 = vunpack.c.l.b16 %v549
    %v893 = vunpack.c.h.b16 %v549
    %v894 = vunpack.c.l.b16 %v550
    %v895 = vunpack.c.h.b16 %v550
    %v896 = vunpack.c.l.b16 %v551
    %v897 = vunpack.c.h.b16 %v551
    %v898 = vunpack.c.l.b16 %v552
    %v899 = vunpack.c.h.b16 %v552
    %v900 = vunpack.c.l.b16 %v553
    %v901 = vunpack.c.h.b16 %v553
    %v902 = vunpack.c.l.b16 %v554
    %v903 = vunpack.c.h.b16 %v554
    %v904 = vunpack.c.l.b16 %v555
    %v905 = vunpack.c.h.b16 %v555
    %v906 = vunpack.c.l.b16 %v556
    %v907 = vunpack.c.h.b16 %v556
    %v908 = vunpack.c.l.b16 %v557
    %v909 = vunpack.c.h.b16 %v557
    %v910 = vunpack.c.l.b16 %v558
    %v911 = vunpack.c.h.b16 %v558
    %v912 = vunpack.c.l.b16 %v559
    %v913 = vunpack.c.h.b16 %v559
    %v914 = vunpack.c.l.b16 %v560
    %v915 = vunpack.c.h.b16 %v560
    %v916 = vunpack.c.l.b16 %v561
    %v917 = vunpack.c.h.b16 %v561
    %v918 = vunpack.c.l.b16 %v562
    %v919 = vunpack.c.h.b16 %v562
    %v920 = vunpack.c.l.b16 %v563
    %v921 = vunpack.c.h.b16 %v563
    %v922 = vunpack.c.l.b16 %v564
    %v923 = vunpack.c.h.b16 %v564
    %v924 = vunpack.c.l.b16 %v565
    %v925 = vunpack.c.h.b16 %v565
    %v926 = vunpack.c.l.b16 %v566
    %v927 = vunpack.c.h.b16 %v566
    %v928 = vunpack.c.l.b16 %v567
    %v929 = vunpack.c.h.b16 %v567
    %v930 = vunpack.c.l.b16 %v568
    %v931 = vunpack.c.h.b16 %v568
    %v932 = vunpack.c.l.b16 %v569
    %v933 = vunpack.c.h.b16 %v569
    %v934 = vunpack.c.l.b16 %v570
    %v935 = vunpack.c.h.b16 %v570
    %v936 = vunpack.c.l.b16 %v571
    %v937 = vunpack.c.h.b16 %v571
    %v938 = vunpack.c.l.b16 %v572
    %v939 = vunpack.c.h.b16 %v572
    %v940 = vunpack.c.l.b16 %v573
    %v941 = vunpack.c.h.b16 %v573
    %v942 = vunpack.c.l.b16 %v574
    %v943 = vunpack.c.h.b16 %v574
    %v944 = vunpack.c.l.b16 %v575
    %v945 = vunpack.c.h.b16 %v575
    %v946 = vunpack.c.l.b16 %v576
    %v947 = vunpack.c.h.b16 %v576
    %v948 = vunpack.c.l.b16 %v577
    %v949 = vunpack.c.h.b16 %v577
    %v950 = vunpack.c.l.b16 %v578
    %v951 = vunpack.c.h.b16 %v578
    %v952 = vunpack.c.l.b16 %v579
    %v953 = vunpack.c.h.b16 %v579
    %v954 = vunpack.c.l.b16 %v580
    %v955 = vunpack.c.h.b16 %v580
    %v956 = vunpack.c.l.b16 %v581
    %v957 = vunpack.c.h.b16 %v581
    %v958 = vunpack.c.l.b16 %v582
    %v959 = vunpack.c.h.b16 %v582
    %v960 = vunpack.c.l.b16 %v583
    %v961 = vunpack.c.h.b16 %v583
    %v962 = vunpack.c.l.b16 %v584
    %v963 = vunpack.c.h.b16 %v584
    %v964 = vunpack.c.l.b16 %v585
    %v965 = vunpack.c.h.b16 %v585
    %v966 = vunpack.c.l.b16 %v586
    %v967 = vunpack.c.h.b16 %v586
    %v968 = vunpack.c.l.b16 %v587
    %v969 = vunpack.c.h.b16 %v587
    %v970 = vunpack.c.l.b16 %v588
    %v971 = vunpack.c.h.b16 %v588
    %v972 = vunpack.c.l.b16 %v589
    %v973 = vunpack.c.h.b16 %v589
    %v974 = vunpack.c.l.b16 %v590
    %v975 = vunpack.c.h.b16 %v590
    %v976 = vunpack.c.l.b16 %v591
    %v977 = vunpack.c.h.b16 %v591
    %v978 = vunpack.c.l.b16 %v592
    %v979 = vunpack.c.h.b16 %v592
    %v980 = vunpack.c.l.b16 %v593
    %v981 = vunpack.c.h.b16 %v593
    %v982 = vunpack.c.l.b16 %v594
    %v983 = vunpack.c.h.b16 %v594
    %v984 = vunpack.c.l.b16 %v595
    %v985 = vunpack.c.h.b16 %v595
    %v986 = vunpack.c.l.b16 %v596
    %v987 = vunpack.c.h.b16 %v596
    %v988 = vunpack.c.l.b16 %v597
    %v989 = vunpack.c.h.b16 %v597
    %v990 = vunpack.c.l.b16 %v598
    %v991 = vunpack.c.h.b16 %v598
    %v992 = vunpack.c.l.b16 %v599
    %v993 = vunpack.c.h.b16 %v599
    %v994 = vunpack.c.l.b16 %v600
    %v995 = vunpack.c.h.b16 %v600
    %v996 = vunpack.c.l.b16 %v601
    %v997 = vunpack.c.h.b16 %v601
    %v998 = vunpack.c.l.b16 %v602
    %v999 = vunpack.c.h.b16 %v602
    %v1000 = vunpack.c.l.b16 %v603
    %v1001 = vunpack.c.h.b16 %v603
    %v1002 = vunpack.c.l.b16 %v604
    %v1003 = vunpack.c.h.b16 %v604
    %v1004 = vunpack.c.l.b16 %v605
    %v1005 = vunpack.c.h.b16 %v605
    %v1006 = vunpack.c.l.b16 %v606
    %v1007 = vunpack.c.h.b16 %v606
    %v1008 = vunpack.c.l.b16 %v607
    %v1009 = vunpack.c.h.b16 %v607
    %v1010 = vunpack.c.l.b16 %v608
    %v1011 = vunpack.c.h.b16 %v608
    %v1012 = vunpack.c.l.b16 %v609
    %v1013 = vunpack.c.h.b16 %v609
    %v1014 = vunpack.c.l.b16 %v610
    %v1015 = vunpack.c.h.b16 %v610
    %v1016 = vunpack.c.l.b16 %v611
    %v1017 = vunpack.c.h.b16 %v611
    %v1018 = vunpack.c.l.b16 %v612
    %v1019 = vunpack.c.h.b16 %v612
    %v1020 = vunpack.c.l.b16 %v613
    %v1021 = vunpack.c.h.b16 %v613
    %v1022 = vunpack.c.l.b16 %v614
    %v1023 = vunpack.c.h.b16 %v614
    %v1024 = vunpack.c.l.b16 %v615
    %v1025 = vunpack.c.h.b16 %v615
    %v1026 = vunpack.c.l.b16 %v616
    %v1027 = vunpack.c.h.b16 %v616
    %v1028 = vunpack.c.l.b16 %v617
    %v1029 = vunpack.c.h.b16 %v617
    %v1030 = vunpack.c.l.b16 %v618
    %v1031 = vunpack.c.h.b16 %v618
    %v1032 = vunpack.c.l.b16 %v619
    %v1033 = vunpack.c.h.b16 %v619
    %v1034 = vunpack.c.l.b16 %v620
    %v1035 = vunpack.c.h.b16 %v620
    %v1036 = vunpack.c.l.b16 %v621
    %v1037 = vunpack.c.h.b16 %v621
    %v1038 = vunpack.c.l.b16 %v622
    %v1039 = vunpack.c.h.b16 %v622
    %v1040 = vunpack.c.l.b16 %v623
    %v1041 = vunpack.c.h.b16 %v623
    %v1042 = vunpack.c.l.b16 %v624
    %v1043 = vunpack.c.h.b16 %v624
    %v1044 = vunpack.c.l.b16 %v625
    %v1045 = vunpack.c.h.b16 %v625
    %v1046 = vunpack.c.l.b16 %v626
    %v1047 = vunpack.c.h.b16 %v626
    %v1048 = vunpack.c.l.b16 %v627
    %v1049 = vunpack.c.h.b16 %v627
    %v1050 = vunpack.c.l.b16 %v628
    %v1051 = vunpack.c.h.b16 %v628
    %v1052 = vunpack.c.l.b16 %v629
    %v1053 = vunpack.c.h.b16 %v629
    %v1054 = vunpack.c.l.b16 %v630
    %v1055 = vunpack.c.h.b16 %v630
    %v1056 = vunpack.c.l.b16 %v631
    %v1057 = vunpack.c.h.b16 %v631
    %v1058 = vunpack.c.l.b16 %v632
    %v1059 = vunpack.c.h.b16 %v632
    %v1060 = vunpack.c.l.b16 %v633
    %v1061 = vunpack.c.h.b16 %v633
    %v1062 = vunpack.c.l.b16 %v634
    %v1063 = vunpack.c.h.b16 %v634
    %v1064 = vunpack.c.l.b16 %v635
    %v1065 = vunpack.c.h.b16 %v635
    %v1066 = vunpack.c.l.b16 %v636
    %v1067 = vunpack.c.h.b16 %v636
    %v1068 = vunpack.c.l.b16 %v637
    %v1069 = vunpack.c.h.b16 %v637
    %v1070 = vunpack.c.l.b16 %v638
    %v1071 = vunpack.c.h.b16 %v638
    %v1072 = vunpack.c.l.b16 %v639
    %v1073 = vunpack.c.h.b16 %v639
    %v1074 = vunpack.c.l.b16 %v640
    %v1075 = vunpack.c.h.b16 %v640
    %v1076 = vunpack.c.l.b16 %v641
    %v1077 = vunpack.c.h.b16 %v641
    %v1078 = vunpack.c.l.b16 %v642
    %v1079 = vunpack.c.h.b16 %v642
    %v1080 = vunpack.c.l.b16 %v643
    %v1081 = vunpack.c.h.b16 %v643
    %v1082 = vunpack.c.l.b16 %v644
    %v1083 = vunpack.c.h.b16 %v644
    %v1084 = vunpack.c.l.b16 %v645
    %v1085 = vunpack.c.h.b16 %v645
    %v1086 = vunpack.c.l.b16 %v646
    %v1087 = vunpack.c.h.b16 %v646
    %v1088 = vunpack.c.l.b16 %v647
    %v1089 = vunpack.c.h.b16 %v647
    %v1090 = vunpack.c.l.b16 %v648
    %v1091 = vunpack.c.h.b16 %v648
    %v1092 = vunpack.c.l.b16 %v649
    %v1093 = vunpack.c.h.b16 %v649
    %v1094 = vunpack.c.l.b16 %v650
    %v1095 = vunpack.c.h.b16 %v650
    %v1096 = vunpack.c.l.b16 %v651
    %v1097 = vunpack.c.h.b16 %v651
    %v1098 = vunpack.c.l.b16 %v652
    %v1099 = vunpack.c.h.b16 %v652
    %v1100 = vunpack.c.l.b16 %v653
    %v1101 = vunpack.c.h.b16 %v653
    %v1102 = vunpack.c.l.b16 %v654
    %v1103 = vunpack.c.h.b16 %v654
    %v1104 = vunpack.c.l.b16 %v655
    %v1105 = vunpack.c.h.b16 %v655
    %v1106 = vunpack.c.l.b16 %v656
    %v1107 = vunpack.c.h.b16 %v656
    %v1108 = vunpack.c.l.b16 %v657
    %v1109 = vunpack.c.h.b16 %v657
    %v1110 = vunpack.c.l.b16 %v658
    %v1111 = vunpack.c.h.b16 %v658
    %v1112 = vunpack.c.l.b16 %v659
    %v1113 = vunpack.c.h.b16 %v659
    %v1114 = vunpack.c.l.b16 %v660
    %v1115 = vunpack.c.h.b16 %v660
    %v1116 = vunpack.c.l.b16 %v661
    %v1117 = vunpack.c.h.b16 %v661
    %v1118 = vunpack.c.l.b16 %v662
    %v1119 = vunpack.c.h.b16 %v662
    %v1120 = vunpack.c.l.b16 %v663
    %v1121 = vunpack.c.h.b16 %v663
    %v1122 = vunpack.c.l.b16 %v664
    %v1123 = vunpack.c.h.b16 %v664
    %v1124 = vunpack.c.l.b16 %v665
    %v1125 = vunpack.c.h.b16 %v665
    %v1126 = vunpack.c.l.b16 %v666
    %v1127 = vunpack.c.h.b16 %v666
    %v1128 = vunpack.c.l.b16 %v667
    %v1129 = vunpack.c.h.b16 %v667
    %v1130 = vunpack.c.l.b16 %v668
    %v1131 = vunpack.c.h.b16 %v668
    %v1132 = vunpack.c.l.b16 %v669
    %v1133 = vunpack.c.h.b16 %v669
    %v1134 = vunpack.c.l.b16 %v670
    %v1135 = vunpack.c.h.b16 %v670
    %v1136 = vunpack.c.l.b16 %v671
    %v1137 = vunpack.c.h.b16 %v671
    %v1138 = vunpack.c.l.b16 %v672
    %v1139 = vunpack.c.h.b16 %v672
    %v1140 = vunpack.c.l.b16 %v673
    %v1141 = vunpack.c.h.b16 %v673
    %v1142 = vpack.c.b16 %v902, %v886
    %v1143 = vpack.c.b16 %v903, %v887
    %v1144 = vpack.c.b16 %v904, %v888
    %v1145 = vpack.c.b16 %v905, %v889
    %v1146 = vpack.c.b16 %v906, %v890
    %v1147 = vpack.c.b16 %v907, %v891
    %v1148 = vpack.c.b16 %v908, %v892
    %v1149 = vpack.c.b16 %v909, %v893
    %v1150 = vpack.c.b16 %v910, %v894
    %v1151 = vpack.c.b16 %v911, %v895
    %v1152 = vpack.c.b16 %v912, %v896
    %v1153 = vpack.c.b16 %v913, %v897
    %v1154 = vpack.c.b16 %v914, %v898
    %v1155 = vpack.c.b16 %v915, %v899
    %v1156 = vpack.c.b16 %v916, %v900
    %v1157 = vpack.c.b16 %v917, %v901
    %v1158 = vpack.c.b16 %v934, %v918
    %v1159 = vpack.c.b16 %v935, %v919
    %v1160 = vpack.c.b16 %v936, %v920
    %v1161 = vpack.c.b16 %v937, %v921
    %v1162 = vpack.c.b16 %v938, %v922
    %v1163 = vpack.c.b16 %v939, %v923
    %v1164 = vpack.c.b16 %v940, %v924
    %v1165 = vpack.c.b16 %v941, %v925
    %v1166 = vpack.c.b16 %v942, %v926
    %v1167 = vpack.c.b16 %v943, %v927
    %v1168 = vpack.c.b16 %v944, %v928
    %v1169 = vpack.c.b16 %v945, %v929
    %v1170 = vpack.c.b16 %v946, %v930
    %v1171 = vpack.c.b16 %v947, %v931
    %v1172 = vpack.c.b16 %v948, %v932
    %v1173 = vpack.c.b16 %v949, %v933
    %v1174 = vpack.c.b16 %v966, %v950
    %v1175 = vpack.c.b16 %v967, %v951
    %v1176 = vpack.c.b16 %v968, %v952
    %v1177 = vpack.c.b16 %v969, %v953
    %v1178 = vpack.c.b16 %v970, %v954
    %v1179 = vpack.c.b16 %v971, %v955
    %v1180 = vpack.c.b16 %v972, %v956
    %v1181 = vpack.c.b16 %v973, %v957
    %v1182 = vpack.c.b16 %v974, %v958
    %v1183 = vpack.c.b16 %v975, %v959
    %v1184 = vpack.c.b16 %v976, %v960
    %v1185 = vpack.c.b16 %v977, %v961
    %v1186 = vpack.c.b16 %v978, %v962
    %v1187 = vpack.c.b16 %v979, %v963
    %v1188 = vpack.c.b16 %v980, %v964
    %v1189 = vpack.c.b16 %v981, %v965
    %v1190 = vpack.c.b16 %v998, %v982
    %v1191 = vpack.c.b16 %v999, %v983
    %v1192 = vpack.c.b16 %v1000, %v984
    %v1193 = vpack.c.b16 %v1001, %v985
    %v1194 = vpack.c.b16 %v1002, %v986
    %v1195 = vpack.c.b16 %v1003, %v987
    %v1196 = vpack.c.b16 %v1004, %v988
    %v1197 = vpack.c.b16 %v1005, %v989
    %v1198 = vpack.c.b16 %v1006, %v990
    %v1199 = vpack.c.b16 %v1007, %v991
    %v1200 = vpack.c.b16 %v1008, %v992
    %v1201 = vpack.c.b16 %v1009, %v993
    %v1202 = vpack.c.b16 %v1010, %v994
    %v1203 = vpack.c.b16 %v1011, %v995
    %v1204 = vpack.c.b16 %v1012, %v996
    %v1205 = vpack.c.b16 %v1013, %v997
    %v1206 = vpack.c.b16 %v1030, %v1014
    %v1207 = vpack.c.b16 %v1031, %v1015
    %v1208 = vpack.c.b16 %v1032, %v1016
    %v1209 = vpack.c.b16 %v1033, %v1017
    %v1210 = vpack.c.b16 %v1034, %v1018
    %v1211 = vpack.c.b16 %v1035, %v1019
    %v1212 = vpack.c.b16 %v1036, %v1020
    %v1213 = vpack.c.b16 %v1037, %v1021
    %v1214 = vpack.c.b16 %v1038, %v1022
    %v1215 = vpack.c.b16 %v1039, %v1023
    %v1216 = vpack.c.b16 %v1040, %v1024
    %v1217 = vpack.c.b16 %v1041, %v1025
    %v1218 = vpack.c.b16 %v1042, %v1026
    %v1219 = vpack.c.b16 %v1043, %v1027
    %v1220 = vpack.c.b16 %v1044, %v1028
    %v1221 = vpack.c.b16 %v1045, %v1029
    %v1222 = vpack.c.b16 %v1062, %v1046
    %v1223 = vpack.c.b16 %v1063, %v1047
    %v1224 = vpack.c.b16 %v1064, %v1048
    %v1225 = vpack.c.b16 %v1065, %v1049
    %v1226 = vpack.c.b16 %v1066, %v1050
    %v1227 = vpack.c.b16 %v1067, %v1051
    %v1228 = vpack.c.b16 %v1068, %v1052
    %v1229 = vpack.c.b16 %v1069, %v1053
    %v1230 = vpack.c.b16 %v1070, %v1054
    %v1231 = vpack.c.b16 %v1071, %v1055
    %v1232 = vpack.c.b16 %v1072, %v1056
    %v1233 = vpack.c.b16 %v1073, %v1057
    %v1234 = vpack.c.b16 %v1074, %v1058
    %v1235 = vpack.c.b16 %v1075, %v1059
    %v1236 = vpack.c.b16 %v1076, %v1060
    %v1237 = vpack.c.b16 %v1077, %v1061
    %v1238 = vpack.c.b16 %v1094, %v1078
    %v1239 = vpack.c.b16 %v1095, %v1079
    %v1240 = vpack.c.b16 %v1096, %v1080
    %v1241 = vpack.c.b16 %v1097, %v1081
    %v1242 = vpack.c.b16 %v1098, %v1082
    %v1243 = vpack.c.b16 %v1099, %v1083
    %v1244 = vpack.c.b16 %v1100, %v1084
    %v1245 = vpack.c.b16 %v1101, %v1085
    %v1246 = vpack.c.b16 %v1102, %v1086
    %v1247 = vpack.c.b16 %v1103, %v1087
    %v1248 = vpack.c.b16 %v1104, %v1088
    %v1249 = vpack.c.b16 %v1105, %v1089
    %v1250 = vpack.c.b16 %v1106, %v1090
    %v1251 = vpack.c.b16 %v1107, %v1091
    %v1252 = vpack.c.b16 %v1108, %v1092
    %v1253 = vpack.c.b16 %v1109, %v1093
    %v1254 = vpack.c.b16 %v1126, %v1110
    %v1255 = vpack.c.b16 %v1127, %v1111
    %v1256 = vpack.c.b16 %v1128, %v1112
    %v1257 = vpack.c.b16 %v1129, %v1113
    %v1258 = vpack.c.b16 %v1130, %v1114
    %v1259 = vpack.c.b16 %v1131, %v1115
    %v1260 = vpack.c.b16 %v1132, %v1116
    %v1261 = vpack.c.b16 %v1133, %v1117
    %v1262 = vpack.c.b16 %v1134, %v1118
    %v1263 = vpack.c.b16 %v1135, %v1119
    %v1264 = vpack.c.b16 %v1136, %v1120
    %v1265 = vpack.c.b16 %v1137, %v1121
    %v1266 = vpack.c.b16 %v1138, %v1122
    %v1267 = vpack.c.b16 %v1139, %v1123
    %v1268 = vpack.c.b16 %v1140, %v1124
    %v1269 = vpack.c.b16 %v1141, %v1125
    %1398 = vmatprep.subr.bf16.mxu0 %v1143
    %1399 = vmatpush1.bf16.msra.mxu0 %v1142
    %1400 = vmatprep.subr.bf16.mxu0 %v1159
    %1401 = vmatpush1.bf16.msra.mxu0 %v1158
    %1402 = vmatprep.subr.bf16.mxu0 %v1175
    %1403 = vmatpush1.bf16.msra.mxu0 %v1174
    %1404 = vmatprep.subr.bf16.mxu0 %v1191
    %1405 = vmatpush1.bf16.msra.mxu0 %v1190
    %1406 = vmatprep.subr.bf16.mxu0 %v1207
    %1407 = vmatpush1.bf16.msra.mxu0 %v1206
    %1408 = vmatprep.subr.bf16.mxu0 %v1223
    %1409 = vmatpush1.bf16.msra.mxu0 %v1222
    %1410 = vmatprep.subr.bf16.mxu0 %v1239
    %1411 = vmatpush1.bf16.msra.mxu0 %v1238
    %1412 = vmatprep.subr.bf16.mxu0 %v1255
    %1413 = vmatpush1.bf16.msra.mxu0 %v1254
    %1414 = vmatprep.subr.bf16.mxu0 0
    %1415 = vmatpush1.bf16.msra.mxu0 0
    %1416 = vmatprep.subr.bf16.mxu0 0
    %1417 = vmatpush1.bf16.msra.mxu0 0
    %1418 = vmatprep.subr.bf16.mxu0 0
    %1419 = vmatpush1.bf16.msra.mxu0 0
    %1420 = vmatprep.subr.bf16.mxu0 0
    %1421 = vmatpush1.bf16.msra.mxu0 0
    %1422 = vmatprep.subr.bf16.mxu0 0
    %1423 = vmatpush1.bf16.msra.mxu0 0
    %1424 = vmatprep.subr.bf16.mxu0 0
    %1425 = vmatpush1.bf16.msra.mxu0 0
    %1426 = vmatprep.subr.bf16.mxu0 0
    %1427 = vmatpush1.bf16.msra.mxu0 0
    %1428 = vmatprep.subr.bf16.mxu0 0
    %1429 = vmatpush1.bf16.msra.mxu0 0
    %1430 = vmatprep.mubr.bf16.mxu0 0
    %1431 = vmatmul.mubr.bf16.gmra.mrb[0].mxu0 %v545
    %v1432 = vpop.f32.mrb[0].mxu0
    %v1433 = vadd.f32 %v681, %v1432
    %v1434 = vpop.f32.mrb[0].mxu0
    %v1435 = vadd.f32 %v685, %v1434
    %v1436 = vpop.f32.mrb[0].mxu0
    %v1437 = vpop.f32.mrb[0].mxu0
    %1438 = vdwg.mxu0
    %1439 = vmatprep.subr.bf16.mxu0 %v1145
    %1440 = vmatpush1.bf16.msra.mxu0 %v1144
    %1441 = vmatprep.subr.bf16.mxu0 %v1161
    %1442 = vmatpush1.bf16.msra.mxu0 %v1160
    %1443 = vmatprep.subr.bf16.mxu0 %v1177
    %1444 = vmatpush1.bf16.msra.mxu0 %v1176
    %1445 = vmatprep.subr.bf16.mxu0 %v1193
    %1446 = vmatpush1.bf16.msra.mxu0 %v1192
    %1447 = vmatprep.subr.bf16.mxu0 %v1209
    %1448 = vmatpush1.bf16.msra.mxu0 %v1208
    %1449 = vmatprep.subr.bf16.mxu0 %v1225
    %1450 = vmatpush1.bf16.msra.mxu0 %v1224
    %1451 = vmatprep.subr.bf16.mxu0 %v1241
    %1452 = vmatpush1.bf16.msra.mxu0 %v1240
    %1453 = vmatprep.subr.bf16.mxu0 %v1257
    %1454 = vmatpush1.bf16.msra.mxu0 %v1256
    %1455 = vmatprep.subr.bf16.mxu0 0
    %1456 = vmatpush1.bf16.msra.mxu0 0
    %1457 = vmatprep.subr.bf16.mxu0 0
    %1458 = vmatpush1.bf16.msra.mxu0 0
    %1459 = vmatprep.subr.bf16.mxu0 0
    %1460 = vmatpush1.bf16.msra.mxu0 0
    %1461 = vmatprep.subr.bf16.mxu0 0
    %1462 = vmatpush1.bf16.msra.mxu0 0
    %1463 = vmatprep.subr.bf16.mxu0 0
    %1464 = vmatpush1.bf16.msra.mxu0 0
    %1465 = vmatprep.subr.bf16.mxu0 0
    %1466 = vmatpush1.bf16.msra.mxu0 0
    %1467 = vmatprep.subr.bf16.mxu0 0
    %1468 = vmatpush1.bf16.msra.mxu0 0
    %1469 = vmatprep.subr.bf16.mxu0 0
    %1470 = vmatpush1.bf16.msra.mxu0 0
    %1471 = vmatprep.mubr.bf16.mxu0 0
    %1472 = vmatmul.mubr.bf16.gmra.mrb[0].mxu0 %v545
    %v1473 = vpop.f32.mrb[0].mxu0
    %v1474 = vadd.f32 %v689, %v1473
    %v1475 = vpop.f32.mrb[0].mxu0
    %v1476 = vadd.f32 %v693, %v1475
    %v1477 = vpop.f32.mrb[0].mxu0
    %v1478 = vpop.f32.mrb[0].mxu0
    %1479 = vdwg.mxu0
    %1480 = vmatprep.subr.bf16.mxu0 %v1147
    %1481 = vmatpush1.bf16.msra.mxu0 %v1146
    %1482 = vmatprep.subr.bf16.mxu0 %v1163
    %1483 = vmatpush1.bf16.msra.mxu0 %v1162
    %1484 = vmatprep.subr.bf16.mxu0 %v1179
    %1485 = vmatpush1.bf16.msra.mxu0 %v1178
    %1486 = vmatprep.subr.bf16.mxu0 %v1195
    %1487 = vmatpush1.bf16.msra.mxu0 %v1194
    %1488 = vmatprep.subr.bf16.mxu0 %v1211
    %1489 = vmatpush1.bf16.msra.mxu0 %v1210
    %1490 = vmatprep.subr.bf16.mxu0 %v1227
    %1491 = vmatpush1.bf16.msra.mxu0 %v1226
    %1492 = vmatprep.subr.bf16.mxu0 %v1243
    %1493 = vmatpush1.bf16.msra.mxu0 %v1242
    %1494 = vmatprep.subr.bf16.mxu0 %v1259
    %1495 = vmatpush1.bf16.msra.mxu0 %v1258
    %1496 = vmatprep.subr.bf16.mxu0 0
    %1497 = vmatpush1.bf16.msra.mxu0 0
    %1498 = vmatprep.subr.bf16.mxu0 0
    %1499 = vmatpush1.bf16.msra.mxu0 0
    %1500 = vmatprep.subr.bf16.mxu0 0
    %1501 = vmatpush1.bf16.msra.mxu0 0
    %1502 = vmatprep.subr.bf16.mxu0 0
    %1503 = vmatpush1.bf16.msra.mxu0 0
    %1504 = vmatprep.subr.bf16.mxu0 0
    %1505 = vmatpush1.bf16.msra.mxu0 0
    %1506 = vmatprep.subr.bf16.mxu0 0
    %1507 = vmatpush1.bf16.msra.mxu0 0
    %1508 = vmatprep.subr.bf16.mxu0 0
    %1509 = vmatpush1.bf16.msra.mxu0 0
    %1510 = vmatprep.subr.bf16.mxu0 0
    %1511 = vmatpush1.bf16.msra.mxu0 0
    %1512 = vmatprep.mubr.bf16.mxu0 0
    %1513 = vmatmul.mubr.bf16.gmra.mrb[0].mxu0 %v545
    %v1514 = vpop.f32.mrb[0].mxu0
    %v1515 = vadd.f32 %v697, %v1514
    %v1516 = vpop.f32.mrb[0].mxu0
    %v1517 = vadd.f32 %v701, %v1516
    %v1518 = vpop.f32.mrb[0].mxu0
    %v1519 = vpop.f32.mrb[0].mxu0
    %1520 = vdwg.mxu0
    %1521 = vmatprep.subr.bf16.mxu0 %v1149
    %1522 = vmatpush1.bf16.msra.mxu0 %v1148
    %1523 = vmatprep.subr.bf16.mxu0 %v1165
    %1524 = vmatpush1.bf16.msra.mxu0 %v1164
    %1525 = vmatprep.subr.bf16.mxu0 %v1181
    %1526 = vmatpush1.bf16.msra.mxu0 %v1180
    %1527 = vmatprep.subr.bf16.mxu0 %v1197
    %1528 = vmatpush1.bf16.msra.mxu0 %v1196
    %1529 = vmatprep.subr.bf16.mxu0 %v1213
    %1530 = vmatpush1.bf16.msra.mxu0 %v1212
    %1531 = vmatprep.subr.bf16.mxu0 %v1229
    %1532 = vmatpush1.bf16.msra.mxu0 %v1228
    %1533 = vmatprep.subr.bf16.mxu0 %v1245
    %1534 = vmatpush1.bf16.msra.mxu0 %v1244
    %1535 = vmatprep.subr.bf16.mxu0 %v1261
    %1536 = vmatpush1.bf16.msra.mxu0 %v1260
    %1537 = vmatprep.subr.bf16.mxu0 0
    %1538 = vmatpush1.bf16.msra.mxu0 0
    %1539 = vmatprep.subr.bf16.mxu0 0
    %1540 = vmatpush1.bf16.msra.mxu0 0
    %1541 = vmatprep.subr.bf16.mxu0 0
    %1542 = vmatpush1.bf16.msra.mxu0 0
    %1543 = vmatprep.subr.bf16.mxu0 0
    %1544 = vmatpush1.bf16.msra.mxu0 0
    %1545 = vmatprep.subr.bf16.mxu0 0
    %1546 = vmatpush1.bf16.msra.mxu0 0
    %1547 = vmatprep.subr.bf16.mxu0 0
    %1548 = vmatpush1.bf16.msra.mxu0 0
    %1549 = vmatprep.subr.bf16.mxu0 0
    %1550 = vmatpush1.bf16.msra.mxu0 0
    %1551 = vmatprep.subr.bf16.mxu0 0
    %1552 = vmatpush1.bf16.msra.mxu0 0
    %1553 = vmatprep.mubr.bf16.mxu0 0
    %1554 = vmatmul.mubr.bf16.gmra.mrb[0].mxu0 %v545
    %v1555 = vpop.f32.mrb[0].mxu0
    %v1556 = vadd.f32 %v705, %v1555
    %v1557 = vpop.f32.mrb[0].mxu0
    %v1558 = vadd.f32 %v709, %v1557
    %v1559 = vpop.f32.mrb[0].mxu0
    %v1560 = vpop.f32.mrb[0].mxu0
    %1561 = vdwg.mxu0
    %1562 = vmatprep.subr.bf16.mxu0 %v1151
    %1563 = vmatpush1.bf16.msra.mxu0 %v1150
    %1564 = vmatprep.subr.bf16.mxu0 %v1167
    %1565 = vmatpush1.bf16.msra.mxu0 %v1166
    %1566 = vmatprep.subr.bf16.mxu0 %v1183
    %1567 = vmatpush1.bf16.msra.mxu0 %v1182
    %1568 = vmatprep.subr.bf16.mxu0 %v1199
    %1569 = vmatpush1.bf16.msra.mxu0 %v1198
    %1570 = vmatprep.subr.bf16.mxu0 %v1215
    %1571 = vmatpush1.bf16.msra.mxu0 %v1214
    %1572 = vmatprep.subr.bf16.mxu0 %v1231
    %1573 = vmatpush1.bf16.msra.mxu0 %v1230
    %1574 = vmatprep.subr.bf16.mxu0 %v1247
    %1575 = vmatpush1.bf16.msra.mxu0 %v1246
    %1576 = vmatprep.subr.bf16.mxu0 %v1263
    %1577 = vmatpush1.bf16.msra.mxu0 %v1262
    %1578 = vmatprep.subr.bf16.mxu0 0
    %1579 = vmatpush1.bf16.msra.mxu0 0
    %1580 = vmatprep.subr.bf16.mxu0 0
    %1581 = vmatpush1.bf16.msra.mxu0 0
    %1582 = vmatprep.subr.bf16.mxu0 0
    %1583 = vmatpush1.bf16.msra.mxu0 0
    %1584 = vmatprep.subr.bf16.mxu0 0
    %1585 = vmatpush1.bf16.msra.mxu0 0
    %1586 = vmatprep.subr.bf16.mxu0 0
    %1587 = vmatpush1.bf16.msra.mxu0 0
    %1588 = vmatprep.subr.bf16.mxu0 0
    %1589 = vmatpush1.bf16.msra.mxu0 0
    %1590 = vmatprep.subr.bf16.mxu0 0
    %1591 = vmatpush1.bf16.msra.mxu0 0
    %1592 = vmatprep.subr.bf16.mxu0 0
    %1593 = vmatpush1.bf16.msra.mxu0 0
    %1594 = vmatprep.mubr.bf16.mxu0 0
    %1595 = vmatmul.mubr.bf16.gmra.mrb[0].mxu0 %v545
    %v1596 = vpop.f32.mrb[0].mxu0
    %v1597 = vadd.f32 %v713, %v1596
    %v1598 = vpop.f32.mrb[0].mxu0
    %v1599 = vadd.f32 %v717, %v1598
    %v1600 = vpop.f32.mrb[0].mxu0
    %v1601 = vpop.f32.mrb[0].mxu0
    %1602 = vdwg.mxu0
    %1603 = vmatprep.subr.bf16.mxu0 %v1153
    %1604 = vmatpush1.bf16.msra.mxu0 %v1152
    %1605 = vmatprep.subr.bf16.mxu0 %v1169
    %1606 = vmatpush1.bf16.msra.mxu0 %v1168
    %1607 = vmatprep.subr.bf16.mxu0 %v1185
    %1608 = vmatpush1.bf16.msra.mxu0 %v1184
    %1609 = vmatprep.subr.bf16.mxu0 %v1201
    %1610 = vmatpush1.bf16.msra.mxu0 %v1200
    %1611 = vmatprep.subr.bf16.mxu0 %v1217
    %1612 = vmatpush1.bf16.msra.mxu0 %v1216
    %1613 = vmatprep.subr.bf16.mxu0 %v1233
    %1614 = vmatpush1.bf16.msra.mxu0 %v1232
    %1615 = vmatprep.subr.bf16.mxu0 %v1249
    %1616 = vmatpush1.bf16.msra.mxu0 %v1248
    %1617 = vmatprep.subr.bf16.mxu0 %v1265
    %1618 = vmatpush1.bf16.msra.mxu0 %v1264
    %1619 = vmatprep.subr.bf16.mxu0 0
    %1620 = vmatpush1.bf16.msra.mxu0 0
    %1621 = vmatprep.subr.bf16.mxu0 0
    %1622 = vmatpush1.bf16.msra.mxu0 0
    %1623 = vmatprep.subr.bf16.mxu0 0
    %1624 = vmatpush1.bf16.msra.mxu0 0
    %1625 = vmatprep.subr.bf16.mxu0 0
    %1626 = vmatpush1.bf16.msra.mxu0 0
    %1627 = vmatprep.subr.bf16.mxu0 0
    %1628 = vmatpush1.bf16.msra.mxu0 0
    %1629 = vmatprep.subr.bf16.mxu0 0
    %1630 = vmatpush1.bf16.msra.mxu0 0
    %1631 = vmatprep.subr.bf16.mxu0 0
    %1632 = vmatpush1.bf16.msra.mxu0 0
    %1633 = vmatprep.subr.bf16.mxu0 0
    %1634 = vmatpush1.bf16.msra.mxu0 0
    %1635 = vmatprep.mubr.bf16.mxu0 0
    %1636 = vmatmul.mubr.bf16.gmra.mrb[0].mxu0 %v545
    %v1637 = vpop.f32.mrb[0].mxu0
    %v1638 = vadd.f32 %v721, %v1637
    %v1639 = vpop.f32.mrb[0].mxu0
    %v1640 = vadd.f32 %v725, %v1639
    %v1641 = vpop.f32.mrb[0].mxu0
    %v1642 = vpop.f32.mrb[0].mxu0
    %1643 = vdwg.mxu0
    %1644 = vmatprep.subr.bf16.mxu0 %v1155
    %1645 = vmatpush1.bf16.msra.mxu0 %v1154
    %1646 = vmatprep.subr.bf16.mxu0 %v1171
    %1647 = vmatpush1.bf16.msra.mxu0 %v1170
    %1648 = vmatprep.subr.bf16.mxu0 %v1187
    %1649 = vmatpush1.bf16.msra.mxu0 %v1186
    %1650 = vmatprep.subr.bf16.mxu0 %v1203
    %1651 = vmatpush1.bf16.msra.mxu0 %v1202
    %1652 = vmatprep.subr.bf16.mxu0 %v1219
    %1653 = vmatpush1.bf16.msra.mxu0 %v1218
    %1654 = vmatprep.subr.bf16.mxu0 %v1235
    %1655 = vmatpush1.bf16.msra.mxu0 %v1234
    %1656 = vmatprep.subr.bf16.mxu0 %v1251
    %1657 = vmatpush1.bf16.msra.mxu0 %v1250
    %1658 = vmatprep.subr.bf16.mxu0 %v1267
    %1659 = vmatpush1.bf16.msra.mxu0 %v1266
    %1660 = vmatprep.subr.bf16.mxu0 0
    %1661 = vmatpush1.bf16.msra.mxu0 0
    %1662 = vmatprep.subr.bf16.mxu0 0
    %1663 = vmatpush1.bf16.msra.mxu0 0
    %1664 = vmatprep.subr.bf16.mxu0 0
    %1665 = vmatpush1.bf16.msra.mxu0 0
    %1666 = vmatprep.subr.bf16.mxu0 0
    %1667 = vmatpush1.bf16.msra.mxu0 0
    %1668 = vmatprep.subr.bf16.mxu0 0
    %1669 = vmatpush1.bf16.msra.mxu0 0
    %1670 = vmatprep.subr.bf16.mxu0 0
    %1671 = vmatpush1.bf16.msra.mxu0 0
    %1672 = vmatprep.subr.bf16.mxu0 0
    %1673 = vmatpush1.bf16.msra.mxu0 0
    %1674 = vmatprep.subr.bf16.mxu0 0
    %1675 = vmatpush1.bf16.msra.mxu0 0
    %1676 = vmatprep.mubr.bf16.mxu0 0
    %1677 = vmatmul.mubr.bf16.gmra.mrb[0].mxu0 %v545
    %v1678 = vpop.f32.mrb[0].mxu0
    %v1679 = vadd.f32 %v729, %v1678
    %v1680 = vpop.f32.mrb[0].mxu0
    %v1681 = vadd.f32 %v733, %v1680
    %v1682 = vpop.f32.mrb[0].mxu0
    %v1683 = vpop.f32.mrb[0].mxu0
    %1684 = vdwg.mxu0
    %1685 = vmatprep.subr.bf16.mxu0 %v1157
    %1686 = vmatpush1.bf16.msra.mxu0 %v1156
    %1687 = vmatprep.subr.bf16.mxu0 %v1173
    %1688 = vmatpush1.bf16.msra.mxu0 %v1172
    %1689 = vmatprep.subr.bf16.mxu0 %v1189
    %1690 = vmatpush1.bf16.msra.mxu0 %v1188
    %1691 = vmatprep.subr.bf16.mxu0 %v1205
    %1692 = vmatpush1.bf16.msra.mxu0 %v1204
    %1693 = vmatprep.subr.bf16.mxu0 %v1221
    %1694 = vmatpush1.bf16.msra.mxu0 %v1220
    %1695 = vmatprep.subr.bf16.mxu0 %v1237
    %1696 = vmatpush1.bf16.msra.mxu0 %v1236
    %1697 = vmatprep.subr.bf16.mxu0 %v1253
    %1698 = vmatpush1.bf16.msra.mxu0 %v1252
    %1699 = vmatprep.subr.bf16.mxu0 %v1269
    %1700 = vmatpush1.bf16.msra.mxu0 %v1268
    %1701 = vmatprep.subr.bf16.mxu0 0
    %1702 = vmatpush1.bf16.msra.mxu0 0
    %1703 = vmatprep.subr.bf16.mxu0 0
    %1704 = vmatpush1.bf16.msra.mxu0 0
    %1705 = vmatprep.subr.bf16.mxu0 0
    %1706 = vmatpush1.bf16.msra.mxu0 0
    %1707 = vmatprep.subr.bf16.mxu0 0
    %1708 = vmatpush1.bf16.msra.mxu0 0
    %1709 = vmatprep.subr.bf16.mxu0 0
    %1710 = vmatpush1.bf16.msra.mxu0 0
    %1711 = vmatprep.subr.bf16.mxu0 0
    %1712 = vmatpush1.bf16.msra.mxu0 0
    %1713 = vmatprep.subr.bf16.mxu0 0
    %1714 = vmatpush1.bf16.msra.mxu0 0
    %1715 = vmatprep.subr.bf16.mxu0 0
    %1716 = vmatpush1.bf16.msra.mxu0 0
    %1717 = vmatprep.mubr.bf16.mxu0 0
    %1718 = vmatmul.mubr.bf16.gmra.mrb[0].mxu0 %v545
    %v1719 = vpop.f32.mrb[0].mxu0
    %v1720 = vadd.f32 %v737, %v1719
    %v1721 = vpop.f32.mrb[0].mxu0
    %v1722 = vadd.f32 %v741, %v1721
    %v1723 = vpop.f32.mrb[0].mxu0
    %v1724 = vpop.f32.mrb[0].mxu0
    %1725 = vdwg.mxu0
    %v1726 = vmul.f32 %v1433, 0.5
    %v1727 = vmul.f32 %v1435, 0.5
    %v1728 = vmul.f32 %v1474, 0.5
    %v1729 = vmul.f32 %v1476, 0.5
    %v1730 = vmul.f32 %v1515, 0.5
    %v1731 = vmul.f32 %v1517, 0.5
    %v1732 = vmul.f32 %v1556, 0.5
    %v1733 = vmul.f32 %v1558, 0.5
    %v1734 = vmul.f32 %v1597, 0.5
    %v1735 = vmul.f32 %v1599, 0.5
    %v1736 = vmul.f32 %v1638, 0.5
    %v1737 = vmul.f32 %v1640, 0.5
    %v1738 = vmul.f32 %v1679, 0.5
    %v1739 = vmul.f32 %v1681, 0.5
    %v1740 = vmul.f32 %v1720, 0.5
    %v1741 = vmul.f32 %v1722, 0.5
    %v1742 = vtanh.pop %v1726
    %v1743 = vtanh.pop %v1727
    %v1744 = vtanh.pop %v1728
    %v1745 = vtanh.pop %v1729
    %v1746 = vtanh.pop %v1730
    %v1747 = vtanh.pop %v1731
    %v1748 = vtanh.pop %v1732
    %v1749 = vtanh.pop %v1733
    %v1750 = vtanh.pop %v1734
    %v1751 = vtanh.pop %v1735
    %v1752 = vtanh.pop %v1736
    %v1753 = vtanh.pop %v1737
    %v1754 = vtanh.pop %v1738
    %v1755 = vtanh.pop %v1739
    %v1756 = vtanh.pop %v1740
    %v1757 = vtanh.pop %v1741
    %v1758 = vmul.f32 %v1742, 0.5
    %v1759 = vmul.f32 %v1743, 0.5
    %v1760 = vmul.f32 %v1744, 0.5
    %v1761 = vmul.f32 %v1745, 0.5
    %v1762 = vmul.f32 %v1746, 0.5
    %v1763 = vmul.f32 %v1747, 0.5
    %v1764 = vmul.f32 %v1748, 0.5
    %v1765 = vmul.f32 %v1749, 0.5
    %v1766 = vmul.f32 %v1750, 0.5
    %v1767 = vmul.f32 %v1751, 0.5
    %v1768 = vmul.f32 %v1752, 0.5
    %v1769 = vmul.f32 %v1753, 0.5
    %v1770 = vmul.f32 %v1754, 0.5
    %v1771 = vmul.f32 %v1755, 0.5
    %v1772 = vmul.f32 %v1756, 0.5
    %v1773 = vmul.f32 %v1757, 0.5
    %v1774 = vadd.f32 %v1758, 0.5
    %v1775 = vadd.f32 %v1759, 0.5
    %v1776 = vadd.f32 %v1760, 0.5
    %v1777 = vadd.f32 %v1761, 0.5
    %v1778 = vadd.f32 %v1762, 0.5
    %v1779 = vadd.f32 %v1763, 0.5
    %v1780 = vadd.f32 %v1764, 0.5
    %v1781 = vadd.f32 %v1765, 0.5
    %v1782 = vadd.f32 %v1766, 0.5
    %v1783 = vadd.f32 %v1767, 0.5
    %v1784 = vadd.f32 %v1768, 0.5
    %v1785 = vadd.f32 %v1769, 0.5
    %v1786 = vadd.f32 %v1770, 0.5
    %v1787 = vadd.f32 %v1771, 0.5
    %v1788 = vadd.f32 %v1772, 0.5
    %v1789 = vadd.f32 %v1773, 0.5
    %v1790 = vmul.f32 %v1433, %v1774
    %v1791 = vmul.f32 %v1435, %v1775
    %v1792 = vmul.f32 %v1474, %v1776
    %v1793 = vmul.f32 %v1476, %v1777
    %v1794 = vmul.f32 %v1515, %v1778
    %v1795 = vmul.f32 %v1517, %v1779
    %v1796 = vmul.f32 %v1556, %v1780
    %v1797 = vmul.f32 %v1558, %v1781
    %v1798 = vmul.f32 %v1597, %v1782
    %v1799 = vmul.f32 %v1599, %v1783
    %v1800 = vmul.f32 %v1638, %v1784
    %v1801 = vmul.f32 %v1640, %v1785
    %v1802 = vmul.f32 %v1679, %v1786
    %v1803 = vmul.f32 %v1681, %v1787
    %v1804 = vmul.f32 %v1720, %v1788
    %v1805 = vmul.f32 %v1722, %v1789
    %v1806 = vpack.c.bf16 %v1790, %v1790
    %v1807 = vpack.c.bf16 %v1791, %v1791
    %v1808 = vpack.c.bf16 %v1792, %v1792
    %v1809 = vpack.c.bf16 %v1793, %v1793
    %v1810 = vpack.c.bf16 %v1794, %v1794
    %v1811 = vpack.c.bf16 %v1795, %v1795
    %v1812 = vpack.c.bf16 %v1796, %v1796
    %v1813 = vpack.c.bf16 %v1797, %v1797
    %v1814 = vpack.c.bf16 %v1798, %v1798
    %v1815 = vpack.c.bf16 %v1799, %v1799
    %v1816 = vpack.c.bf16 %v1800, %v1800
    %v1817 = vpack.c.bf16 %v1801, %v1801
    %v1818 = vpack.c.bf16 %v1802, %v1802
    %v1819 = vpack.c.bf16 %v1803, %v1803
    %v1820 = vpack.c.bf16 %v1804, %v1804
    %v1821 = vpack.c.bf16 %v1805, %v1805
    %v1822 = vld [vmem:[#allocation16] sm:$0xff]
    %v1823 = vld [vmem:[#allocation16 + $0x8] sm:$0xff]
    %v1824 = vld [vmem:[#allocation16 + $0x10] sm:$0xff]
    %v1825 = vld [vmem:[#allocation16 + $0x18] sm:$0xff]
    %v1826 = vld [vmem:[#allocation16 + $0x20] sm:$0xff]
    %v1827 = vld [vmem:[#allocation16 + $0x28] sm:$0xff]
    %v1828 = vld [vmem:[#allocation16 + $0x30] sm:$0xff]
    %v1829 = vld [vmem:[#allocation16 + $0x38] sm:$0xff]
    %v1830 = vld [vmem:[#allocation16 + $0x40] sm:$0xff]
    %v1831 = vld [vmem:[#allocation16 + $0x48] sm:$0xff]
    %v1832 = vld [vmem:[#allocation16 + $0x50] sm:$0xff]
    %v1833 = vld [vmem:[#allocation16 + $0x58] sm:$0xff]
    %v1834 = vld [vmem:[#allocation16 + $0x60] sm:$0xff]
    %v1835 = vld [vmem:[#allocation16 + $0x68] sm:$0xff]
    %v1836 = vld [vmem:[#allocation16 + $0x70] sm:$0xff]
    %v1837 = vld [vmem:[#allocation16 + $0x78] sm:$0xff]
    %v1838 = vld [vmem:[#allocation16 + $0x80] sm:$0xff]
    %v1839 = vld [vmem:[#allocation16 + $0x88] sm:$0xff]
    %v1840 = vld [vmem:[#allocation16 + $0x90] sm:$0xff]
    %v1841 = vld [vmem:[#allocation16 + $0x98] sm:$0xff]
    %v1842 = vld [vmem:[#allocation16 + $0xa0] sm:$0xff]
    %v1843 = vld [vmem:[#allocation16 + $0xa8] sm:$0xff]
    %v1844 = vld [vmem:[#allocation16 + $0xb0] sm:$0xff]
    %v1845 = vld [vmem:[#allocation16 + $0xb8] sm:$0xff]
    %v1846 = vld [vmem:[#allocation16 + $0xc0] sm:$0xff]
    %v1847 = vld [vmem:[#allocation16 + $0xc8] sm:$0xff]
    %v1848 = vld [vmem:[#allocation16 + $0xd0] sm:$0xff]
    %v1849 = vld [vmem:[#allocation16 + $0xd8] sm:$0xff]
    %v1850 = vld [vmem:[#allocation16 + $0xe0] sm:$0xff]
    %v1851 = vld [vmem:[#allocation16 + $0xe8] sm:$0xff]
    %v1852 = vld [vmem:[#allocation16 + $0xf0] sm:$0xff]
    %v1853 = vld [vmem:[#allocation16 + $0xf8] sm:$0xff]
    %v1854 = vld [vmem:[#allocation16 + $0x100] sm:$0xff]
    %v1855 = vld [vmem:[#allocation16 + $0x108] sm:$0xff]
    %v1856 = vld [vmem:[#allocation16 + $0x110] sm:$0xff]
    %v1857 = vld [vmem:[#allocation16 + $0x118] sm:$0xff]
    %v1858 = vld [vmem:[#allocation16 + $0x120] sm:$0xff]
    %v1859 = vld [vmem:[#allocation16 + $0x128] sm:$0xff]
    %v1860 = vld [vmem:[#allocation16 + $0x130] sm:$0xff]
    %v1861 = vld [vmem:[#allocation16 + $0x138] sm:$0xff]
    %v1862 = vld [vmem:[#allocation16 + $0x140] sm:$0xff]
    %v1863 = vld [vmem:[#allocation16 + $0x148] sm:$0xff]
    %v1864 = vld [vmem:[#allocation16 + $0x150] sm:$0xff]
    %v1865 = vld [vmem:[#allocation16 + $0x158] sm:$0xff]
    %v1866 = vld [vmem:[#allocation16 + $0x160] sm:$0xff]
    %v1867 = vld [vmem:[#allocation16 + $0x168] sm:$0xff]
    %v1868 = vld [vmem:[#allocation16 + $0x170] sm:$0xff]
    %v1869 = vld [vmem:[#allocation16 + $0x178] sm:$0xff]
    %v1870 = vld [vmem:[#allocation16 + $0x180] sm:$0xff]
    %v1871 = vld [vmem:[#allocation16 + $0x188] sm:$0xff]
    %v1872 = vld [vmem:[#allocation16 + $0x190] sm:$0xff]
    %v1873 = vld [vmem:[#allocation16 + $0x198] sm:$0xff]
    %v1874 = vld [vmem:[#allocation16 + $0x1a0] sm:$0xff]
    %v1875 = vld [vmem:[#allocation16 + $0x1a8] sm:$0xff]
    %v1876 = vld [vmem:[#allocation16 + $0x1b0] sm:$0xff]
    %v1877 = vld [vmem:[#allocation16 + $0x1b8] sm:$0xff]
    %v1878 = vld [vmem:[#allocation16 + $0x1c0] sm:$0xff]
    %v1879 = vld [vmem:[#allocation16 + $0x1c8] sm:$0xff]
    %v1880 = vld [vmem:[#allocation16 + $0x1d0] sm:$0xff]
    %v1881 = vld [vmem:[#allocation16 + $0x1d8] sm:$0xff]
    %v1882 = vld [vmem:[#allocation16 + $0x1e0] sm:$0xff]
    %v1883 = vld [vmem:[#allocation16 + $0x1e8] sm:$0xff]
    %v1884 = vld [vmem:[#allocation16 + $0x1f0] sm:$0xff]
    %v1885 = vld [vmem:[#allocation16 + $0x1f8] sm:$0xff]
    %v1886 = vld [vmem:[#allocation16 + $0x200] sm:$0xff]
    %v1887 = vld [vmem:[#allocation16 + $0x208] sm:$0xff]
    %v1888 = vld [vmem:[#allocation16 + $0x210] sm:$0xff]
    %v1889 = vld [vmem:[#allocation16 + $0x218] sm:$0xff]
    %v1890 = vld [vmem:[#allocation16 + $0x220] sm:$0xff]
    %v1891 = vld [vmem:[#allocation16 + $0x228] sm:$0xff]
    %v1892 = vld [vmem:[#allocation16 + $0x230] sm:$0xff]
    %v1893 = vld [vmem:[#allocation16 + $0x238] sm:$0xff]
    %v1894 = vld [vmem:[#allocation16 + $0x240] sm:$0xff]
    %v1895 = vld [vmem:[#allocation16 + $0x248] sm:$0xff]
    %v1896 = vld [vmem:[#allocation16 + $0x250] sm:$0xff]
    %v1897 = vld [vmem:[#allocation16 + $0x258] sm:$0xff]
    %v1898 = vld [vmem:[#allocation16 + $0x260] sm:$0xff]
    %v1899 = vld [vmem:[#allocation16 + $0x268] sm:$0xff]
    %v1900 = vld [vmem:[#allocation16 + $0x270] sm:$0xff]
    %v1901 = vld [vmem:[#allocation16 + $0x278] sm:$0xff]
    %v1902 = vld [vmem:[#allocation16 + $0x280] sm:$0xff]
    %v1903 = vld [vmem:[#allocation16 + $0x288] sm:$0xff]
    %v1904 = vld [vmem:[#allocation16 + $0x290] sm:$0xff]
    %v1905 = vld [vmem:[#allocation16 + $0x298] sm:$0xff]
    %v1906 = vld [vmem:[#allocation16 + $0x2a0] sm:$0xff]
    %v1907 = vld [vmem:[#allocation16 + $0x2a8] sm:$0xff]
    %v1908 = vld [vmem:[#allocation16 + $0x2b0] sm:$0xff]
    %v1909 = vld [vmem:[#allocation16 + $0x2b8] sm:$0xff]
    %v1910 = vld [vmem:[#allocation16 + $0x2c0] sm:$0xff]
    %v1911 = vld [vmem:[#allocation16 + $0x2c8] sm:$0xff]
    %v1912 = vld [vmem:[#allocation16 + $0x2d0] sm:$0xff]
    %v1913 = vld [vmem:[#allocation16 + $0x2d8] sm:$0xff]
    %v1914 = vld [vmem:[#allocation16 + $0x2e0] sm:$0xff]
    %v1915 = vld [vmem:[#allocation16 + $0x2e8] sm:$0xff]
    %v1916 = vld [vmem:[#allocation16 + $0x2f0] sm:$0xff]
    %v1917 = vld [vmem:[#allocation16 + $0x2f8] sm:$0xff]
    %v1918 = vld [vmem:[#allocation16 + $0x300] sm:$0xff]
    %v1919 = vld [vmem:[#allocation16 + $0x308] sm:$0xff]
    %v1920 = vld [vmem:[#allocation16 + $0x310] sm:$0xff]
    %v1921 = vld [vmem:[#allocation16 + $0x318] sm:$0xff]
    %v1922 = vld [vmem:[#allocation16 + $0x320] sm:$0xff]
    %v1923 = vld [vmem:[#allocation16 + $0x328] sm:$0xff]
    %v1924 = vld [vmem:[#allocation16 + $0x330] sm:$0xff]
    %v1925 = vld [vmem:[#allocation16 + $0x338] sm:$0xff]
    %v1926 = vld [vmem:[#allocation16 + $0x340] sm:$0xff]
    %v1927 = vld [vmem:[#allocation16 + $0x348] sm:$0xff]
    %v1928 = vld [vmem:[#allocation16 + $0x350] sm:$0xff]
    %v1929 = vld [vmem:[#allocation16 + $0x358] sm:$0xff]
    %v1930 = vld [vmem:[#allocation16 + $0x360] sm:$0xff]
    %v1931 = vld [vmem:[#allocation16 + $0x368] sm:$0xff]
    %v1932 = vld [vmem:[#allocation16 + $0x370] sm:$0xff]
    %v1933 = vld [vmem:[#allocation16 + $0x378] sm:$0xff]
    %v1934 = vld [vmem:[#allocation16 + $0x380] sm:$0xff]
    %v1935 = vld [vmem:[#allocation16 + $0x388] sm:$0xff]
    %v1936 = vld [vmem:[#allocation16 + $0x390] sm:$0xff]
    %v1937 = vld [vmem:[#allocation16 + $0x398] sm:$0xff]
    %v1938 = vld [vmem:[#allocation16 + $0x3a0] sm:$0xff]
    %v1939 = vld [vmem:[#allocation16 + $0x3a8] sm:$0xff]
    %v1940 = vld [vmem:[#allocation16 + $0x3b0] sm:$0xff]
    %v1941 = vld [vmem:[#allocation16 + $0x3b8] sm:$0xff]
    %v1942 = vld [vmem:[#allocation16 + $0x3c0] sm:$0xff]
    %v1943 = vld [vmem:[#allocation16 + $0x3c8] sm:$0xff]
    %v1944 = vld [vmem:[#allocation16 + $0x3d0] sm:$0xff]
    %v1945 = vld [vmem:[#allocation16 + $0x3d8] sm:$0xff]
    %v1946 = vld [vmem:[#allocation16 + $0x3e0] sm:$0xff]
    %v1947 = vld [vmem:[#allocation16 + $0x3e8] sm:$0xff]
    %v1948 = vld [vmem:[#allocation16 + $0x3f0] sm:$0xff]
    %v1949 = vld [vmem:[#allocation16 + $0x3f8] sm:$0xff]
    %v1950 = vld [vmem:[#allocation16 + $0x400] sm:$0xff]
    %v1951 = vld [vmem:[#allocation16 + $0x408] sm:$0xff]
    %v1952 = vld [vmem:[#allocation16 + $0x410] sm:$0xff]
    %v1953 = vld [vmem:[#allocation16 + $0x418] sm:$0xff]
    %v1954 = vld [vmem:[#allocation16 + $0x420] sm:$0xff]
    %v1955 = vld [vmem:[#allocation16 + $0x428] sm:$0xff]
    %v1956 = vld [vmem:[#allocation16 + $0x430] sm:$0xff]
    %v1957 = vld [vmem:[#allocation16 + $0x438] sm:$0xff]
    %v1958 = vld [vmem:[#allocation16 + $0x440] sm:$0xff]
    %v1959 = vld [vmem:[#allocation16 + $0x448] sm:$0xff]
    %v1960 = vld [vmem:[#allocation16 + $0x450] sm:$0xff]
    %v1961 = vld [vmem:[#allocation16 + $0x458] sm:$0xff]
    %v1962 = vld [vmem:[#allocation16 + $0x460] sm:$0xff]
    %v1963 = vld [vmem:[#allocation16 + $0x468] sm:$0xff]
    %v1964 = vld [vmem:[#allocation16 + $0x470] sm:$0xff]
    %v1965 = vld [vmem:[#allocation16 + $0x478] sm:$0xff]
    %v1966 = vld [vmem:[#allocation16 + $0x480] sm:$0xff]
    %v1967 = vld [vmem:[#allocation16 + $0x488] sm:$0xff]
    %v1968 = vld [vmem:[#allocation16 + $0x490] sm:$0xff]
    %v1969 = vld [vmem:[#allocation16 + $0x498] sm:$0xff]
    %v1970 = vld [vmem:[#allocation16 + $0x4a0] sm:$0xff]
    %v1971 = vld [vmem:[#allocation16 + $0x4a8] sm:$0xff]
    %v1972 = vld [vmem:[#allocation16 + $0x4b0] sm:$0xff]
    %v1973 = vld [vmem:[#allocation16 + $0x4b8] sm:$0xff]
    %v1974 = vld [vmem:[#allocation16 + $0x4c0] sm:$0xff]
    %v1975 = vld [vmem:[#allocation16 + $0x4c8] sm:$0xff]
    %v1976 = vld [vmem:[#allocation16 + $0x4d0] sm:$0xff]
    %v1977 = vld [vmem:[#allocation16 + $0x4d8] sm:$0xff]
    %v1978 = vld [vmem:[#allocation16 + $0x4e0] sm:$0xff]
    %v1979 = vld [vmem:[#allocation16 + $0x4e8] sm:$0xff]
    %v1980 = vld [vmem:[#allocation16 + $0x4f0] sm:$0xff]
    %v1981 = vld [vmem:[#allocation16 + $0x4f8] sm:$0xff]
    %v1982 = vld [vmem:[#allocation16 + $0x500] sm:$0xff]
    %v1983 = vld [vmem:[#allocation16 + $0x508] sm:$0xff]
    %v1984 = vld [vmem:[#allocation16 + $0x510] sm:$0xff]
    %v1985 = vld [vmem:[#allocation16 + $0x518] sm:$0xff]
    %v1986 = vld [vmem:[#allocation16 + $0x520] sm:$0xff]
    %v1987 = vld [vmem:[#allocation16 + $0x528] sm:$0xff]
    %v1988 = vld [vmem:[#allocation16 + $0x530] sm:$0xff]
    %v1989 = vld [vmem:[#allocation16 + $0x538] sm:$0xff]
    %v1990 = vld [vmem:[#allocation16 + $0x540] sm:$0xff]
    %v1991 = vld [vmem:[#allocation16 + $0x548] sm:$0xff]
    %v1992 = vld [vmem:[#allocation16 + $0x550] sm:$0xff]
    %v1993 = vld [vmem:[#allocation16 + $0x558] sm:$0xff]
    %v1994 = vld [vmem:[#allocation16 + $0x560] sm:$0xff]
    %v1995 = vld [vmem:[#allocation16 + $0x568] sm:$0xff]
    %v1996 = vld [vmem:[#allocation16 + $0x570] sm:$0xff]
    %v1997 = vld [vmem:[#allocation16 + $0x578] sm:$0xff]
    %v1998 = vld [vmem:[#allocation16 + $0x580] sm:$0xff]
    %v1999 = vld [vmem:[#allocation16 + $0x588] sm:$0xff]
    %v2000 = vld [vmem:[#allocation16 + $0x590] sm:$0xff]
    %v2001 = vld [vmem:[#allocation16 + $0x598] sm:$0xff]
    %v2002 = vld [vmem:[#allocation16 + $0x5a0] sm:$0xff]
    %v2003 = vld [vmem:[#allocation16 + $0x5a8] sm:$0xff]
    %v2004 = vld [vmem:[#allocation16 + $0x5b0] sm:$0xff]
    %v2005 = vld [vmem:[#allocation16 + $0x5b8] sm:$0xff]
    %v2006 = vld [vmem:[#allocation16 + $0x5c0] sm:$0xff]
    %v2007 = vld [vmem:[#allocation16 + $0x5c8] sm:$0xff]
    %v2008 = vld [vmem:[#allocation16 + $0x5d0] sm:$0xff]
    %v2009 = vld [vmem:[#allocation16 + $0x5d8] sm:$0xff]
    %v2010 = vld [vmem:[#allocation16 + $0x5e0] sm:$0xff]
    %v2011 = vld [vmem:[#allocation16 + $0x5e8] sm:$0xff]
    %v2012 = vld [vmem:[#allocation16 + $0x5f0] sm:$0xff]
    %v2013 = vld [vmem:[#allocation16 + $0x5f8] sm:$0xff]
    %v2014 = vld [vmem:[#allocation16 + $0x600] sm:$0xff]
    %v2015 = vld [vmem:[#allocation16 + $0x608] sm:$0xff]
    %v2016 = vld [vmem:[#allocation16 + $0x610] sm:$0xff]
    %v2017 = vld [vmem:[#allocation16 + $0x618] sm:$0xff]
    %v2018 = vld [vmem:[#allocation16 + $0x620] sm:$0xff]
    %v2019 = vld [vmem:[#allocation16 + $0x628] sm:$0xff]
    %v2020 = vld [vmem:[#allocation16 + $0x630] sm:$0xff]
    %v2021 = vld [vmem:[#allocation16 + $0x638] sm:$0xff]
    %v2022 = vld [vmem:[#allocation16 + $0x640] sm:$0xff]
    %v2023 = vld [vmem:[#allocation16 + $0x648] sm:$0xff]
    %v2024 = vld [vmem:[#allocation16 + $0x650] sm:$0xff]
    %v2025 = vld [vmem:[#allocation16 + $0x658] sm:$0xff]
    %v2026 = vld [vmem:[#allocation16 + $0x660] sm:$0xff]
    %v2027 = vld [vmem:[#allocation16 + $0x668] sm:$0xff]
    %v2028 = vld [vmem:[#allocation16 + $0x670] sm:$0xff]
    %v2029 = vld [vmem:[#allocation16 + $0x678] sm:$0xff]
    %v2030 = vld [vmem:[#allocation16 + $0x680] sm:$0xff]
    %v2031 = vld [vmem:[#allocation16 + $0x688] sm:$0xff]
    %v2032 = vld [vmem:[#allocation16 + $0x690] sm:$0xff]
    %v2033 = vld [vmem:[#allocation16 + $0x698] sm:$0xff]
    %v2034 = vld [vmem:[#allocation16 + $0x6a0] sm:$0xff]
    %v2035 = vld [vmem:[#allocation16 + $0x6a8] sm:$0xff]
    %v2036 = vld [vmem:[#allocation16 + $0x6b0] sm:$0xff]
    %v2037 = vld [vmem:[#allocation16 + $0x6b8] sm:$0xff]
    %v2038 = vld [vmem:[#allocation16 + $0x6c0] sm:$0xff]
    %v2039 = vld [vmem:[#allocation16 + $0x6c8] sm:$0xff]
    %v2040 = vld [vmem:[#allocation16 + $0x6d0] sm:$0xff]
    %v2041 = vld [vmem:[#allocation16 + $0x6d8] sm:$0xff]
    %v2042 = vld [vmem:[#allocation16 + $0x6e0] sm:$0xff]
    %v2043 = vld [vmem:[#allocation16 + $0x6e8] sm:$0xff]
    %v2044 = vld [vmem:[#allocation16 + $0x6f0] sm:$0xff]
    %v2045 = vld [vmem:[#allocation16 + $0x6f8] sm:$0xff]
    %v2046 = vld [vmem:[#allocation16 + $0x700] sm:$0xff]
    %v2047 = vld [vmem:[#allocation16 + $0x708] sm:$0xff]
    %v2048 = vld [vmem:[#allocation16 + $0x710] sm:$0xff]
    %v2049 = vld [vmem:[#allocation16 + $0x718] sm:$0xff]
    %v2050 = vld [vmem:[#allocation16 + $0x720] sm:$0xff]
    %v2051 = vld [vmem:[#allocation16 + $0x728] sm:$0xff]
    %v2052 = vld [vmem:[#allocation16 + $0x730] sm:$0xff]
    %v2053 = vld [vmem:[#allocation16 + $0x738] sm:$0xff]
    %v2054 = vld [vmem:[#allocation16 + $0x740] sm:$0xff]
    %v2055 = vld [vmem:[#allocation16 + $0x748] sm:$0xff]
    %v2056 = vld [vmem:[#allocation16 + $0x750] sm:$0xff]
    %v2057 = vld [vmem:[#allocation16 + $0x758] sm:$0xff]
    %v2058 = vld [vmem:[#allocation16 + $0x760] sm:$0xff]
    %v2059 = vld [vmem:[#allocation16 + $0x768] sm:$0xff]
    %v2060 = vld [vmem:[#allocation16 + $0x770] sm:$0xff]
    %v2061 = vld [vmem:[#allocation16 + $0x778] sm:$0xff]
    %v2062 = vld [vmem:[#allocation16 + $0x780] sm:$0xff]
    %v2063 = vld [vmem:[#allocation16 + $0x788] sm:$0xff]
    %v2064 = vld [vmem:[#allocation16 + $0x790] sm:$0xff]
    %v2065 = vld [vmem:[#allocation16 + $0x798] sm:$0xff]
    %v2066 = vld [vmem:[#allocation16 + $0x7a0] sm:$0xff]
    %v2067 = vld [vmem:[#allocation16 + $0x7a8] sm:$0xff]
    %v2068 = vld [vmem:[#allocation16 + $0x7b0] sm:$0xff]
    %v2069 = vld [vmem:[#allocation16 + $0x7b8] sm:$0xff]
    %v2070 = vld [vmem:[#allocation16 + $0x7c0] sm:$0xff]
    %v2071 = vld [vmem:[#allocation16 + $0x7c8] sm:$0xff]
    %v2072 = vld [vmem:[#allocation16 + $0x7d0] sm:$0xff]
    %v2073 = vld [vmem:[#allocation16 + $0x7d8] sm:$0xff]
    %v2074 = vld [vmem:[#allocation16 + $0x7e0] sm:$0xff]
    %v2075 = vld [vmem:[#allocation16 + $0x7e8] sm:$0xff]
    %v2076 = vld [vmem:[#allocation16 + $0x7f0] sm:$0xff]
    %v2077 = vld [vmem:[#allocation16 + $0x7f8] sm:$0xff]
    %v2078 = vld [vmem:[#allocation16 + $0x800] sm:$0xff]
    %v2079 = vld [vmem:[#allocation16 + $0x808] sm:$0xff]
    %v2080 = vld [vmem:[#allocation16 + $0x810] sm:$0xff]
    %v2081 = vld [vmem:[#allocation16 + $0x818] sm:$0xff]
    %v2082 = vld [vmem:[#allocation16 + $0x820] sm:$0xff]
    %v2083 = vld [vmem:[#allocation16 + $0x828] sm:$0xff]
    %v2084 = vld [vmem:[#allocation16 + $0x830] sm:$0xff]
    %v2085 = vld [vmem:[#allocation16 + $0x838] sm:$0xff]
    %v2086 = vld [vmem:[#allocation16 + $0x840] sm:$0xff]
    %v2087 = vld [vmem:[#allocation16 + $0x848] sm:$0xff]
    %v2088 = vld [vmem:[#allocation16 + $0x850] sm:$0xff]
    %v2089 = vld [vmem:[#allocation16 + $0x858] sm:$0xff]
    %v2090 = vld [vmem:[#allocation16 + $0x860] sm:$0xff]
    %v2091 = vld [vmem:[#allocation16 + $0x868] sm:$0xff]
    %v2092 = vld [vmem:[#allocation16 + $0x870] sm:$0xff]
    %v2093 = vld [vmem:[#allocation16 + $0x878] sm:$0xff]
    %v2094 = vld [vmem:[#allocation16 + $0x880] sm:$0xff]
    %v2095 = vld [vmem:[#allocation16 + $0x888] sm:$0xff]
    %v2096 = vld [vmem:[#allocation16 + $0x890] sm:$0xff]
    %v2097 = vld [vmem:[#allocation16 + $0x898] sm:$0xff]
    %v2098 = vld [vmem:[#allocation16 + $0x8a0] sm:$0xff]
    %v2099 = vld [vmem:[#allocation16 + $0x8a8] sm:$0xff]
    %v2100 = vld [vmem:[#allocation16 + $0x8b0] sm:$0xff]
    %v2101 = vld [vmem:[#allocation16 + $0x8b8] sm:$0xff]
    %v2102 = vld [vmem:[#allocation16 + $0x8c0] sm:$0xff]
    %v2103 = vld [vmem:[#allocation16 + $0x8c8] sm:$0xff]
    %v2104 = vld [vmem:[#allocation16 + $0x8d0] sm:$0xff]
    %v2105 = vld [vmem:[#allocation16 + $0x8d8] sm:$0xff]
    %v2106 = vld [vmem:[#allocation16 + $0x8e0] sm:$0xff]
    %v2107 = vld [vmem:[#allocation16 + $0x8e8] sm:$0xff]
    %v2108 = vld [vmem:[#allocation16 + $0x8f0] sm:$0xff]
    %v2109 = vld [vmem:[#allocation16 + $0x8f8] sm:$0xff]
    %v2110 = vld [vmem:[#allocation16 + $0x900] sm:$0xff]
    %v2111 = vld [vmem:[#allocation16 + $0x908] sm:$0xff]
    %v2112 = vld [vmem:[#allocation16 + $0x910] sm:$0xff]
    %v2113 = vld [vmem:[#allocation16 + $0x918] sm:$0xff]
    %v2114 = vld [vmem:[#allocation16 + $0x920] sm:$0xff]
    %v2115 = vld [vmem:[#allocation16 + $0x928] sm:$0xff]
    %v2116 = vld [vmem:[#allocation16 + $0x930] sm:$0xff]
    %v2117 = vld [vmem:[#allocation16 + $0x938] sm:$0xff]
    %v2118 = vld [vmem:[#allocation16 + $0x940] sm:$0xff]
    %v2119 = vld [vmem:[#allocation16 + $0x948] sm:$0xff]
    %v2120 = vld [vmem:[#allocation16 + $0x950] sm:$0xff]
    %v2121 = vld [vmem:[#allocation16 + $0x958] sm:$0xff]
    %v2122 = vld [vmem:[#allocation16 + $0x960] sm:$0xff]
    %v2123 = vld [vmem:[#allocation16 + $0x968] sm:$0xff]
    %v2124 = vld [vmem:[#allocation16 + $0x970] sm:$0xff]
    %v2125 = vld [vmem:[#allocation16 + $0x978] sm:$0xff]
    %v2126 = vld [vmem:[#allocation16 + $0x980] sm:$0xff]
    %v2127 = vld [vmem:[#allocation16 + $0x988] sm:$0xff]
    %v2128 = vld [vmem:[#allocation16 + $0x990] sm:$0xff]
    %v2129 = vld [vmem:[#allocation16 + $0x998] sm:$0xff]
    %v2130 = vld [vmem:[#allocation16 + $0x9a0] sm:$0xff]
    %v2131 = vld [vmem:[#allocation16 + $0x9a8] sm:$0xff]
    %v2132 = vld [vmem:[#allocation16 + $0x9b0] sm:$0xff]
    %v2133 = vld [vmem:[#allocation16 + $0x9b8] sm:$0xff]
    %v2134 = vld [vmem:[#allocation16 + $0x9c0] sm:$0xff]
    %v2135 = vld [vmem:[#allocation16 + $0x9c8] sm:$0xff]
    %v2136 = vld [vmem:[#allocation16 + $0x9d0] sm:$0xff]
    %v2137 = vld [vmem:[#allocation16 + $0x9d8] sm:$0xff]
    %v2138 = vld [vmem:[#allocation16 + $0x9e0] sm:$0xff]
    %v2139 = vld [vmem:[#allocation16 + $0x9e8] sm:$0xff]
    %v2140 = vld [vmem:[#allocation16 + $0x9f0] sm:$0xff]
    %v2141 = vld [vmem:[#allocation16 + $0x9f8] sm:$0xff]
    %v2142 = vld [vmem:[#allocation16 + $0xa00] sm:$0xff]
    %v2143 = vld [vmem:[#allocation16 + $0xa08] sm:$0xff]
    %v2144 = vld [vmem:[#allocation16 + $0xa10] sm:$0xff]
    %v2145 = vld [vmem:[#allocation16 + $0xa18] sm:$0xff]
    %v2146 = vld [vmem:[#allocation16 + $0xa20] sm:$0xff]
    %v2147 = vld [vmem:[#allocation16 + $0xa28] sm:$0xff]
    %v2148 = vld [vmem:[#allocation16 + $0xa30] sm:$0xff]
    %v2149 = vld [vmem:[#allocation16 + $0xa38] sm:$0xff]
    %v2150 = vld [vmem:[#allocation16 + $0xa40] sm:$0xff]
    %v2151 = vld [vmem:[#allocation16 + $0xa48] sm:$0xff]
    %v2152 = vld [vmem:[#allocation16 + $0xa50] sm:$0xff]
    %v2153 = vld [vmem:[#allocation16 + $0xa58] sm:$0xff]
    %v2154 = vld [vmem:[#allocation16 + $0xa60] sm:$0xff]
    %v2155 = vld [vmem:[#allocation16 + $0xa68] sm:$0xff]
    %v2156 = vld [vmem:[#allocation16 + $0xa70] sm:$0xff]
    %v2157 = vld [vmem:[#allocation16 + $0xa78] sm:$0xff]
    %v2158 = vld [vmem:[#allocation16 + $0xa80] sm:$0xff]
    %v2159 = vld [vmem:[#allocation16 + $0xa88] sm:$0xff]
    %v2160 = vld [vmem:[#allocation16 + $0xa90] sm:$0xff]
    %v2161 = vld [vmem:[#allocation16 + $0xa98] sm:$0xff]
    %v2162 = vld [vmem:[#allocation16 + $0xaa0] sm:$0xff]
    %v2163 = vld [vmem:[#allocation16 + $0xaa8] sm:$0xff]
    %v2164 = vld [vmem:[#allocation16 + $0xab0] sm:$0xff]
    %v2165 = vld [vmem:[#allocation16 + $0xab8] sm:$0xff]
    %v2166 = vld [vmem:[#allocation16 + $0xac0] sm:$0xff]
    %v2167 = vld [vmem:[#allocation16 + $0xac8] sm:$0xff]
    %v2168 = vld [vmem:[#allocation16 + $0xad0] sm:$0xff]
    %v2169 = vld [vmem:[#allocation16 + $0xad8] sm:$0xff]
    %v2170 = vld [vmem:[#allocation16 + $0xae0] sm:$0xff]
    %v2171 = vld [vmem:[#allocation16 + $0xae8] sm:$0xff]
    %v2172 = vld [vmem:[#allocation16 + $0xaf0] sm:$0xff]
    %v2173 = vld [vmem:[#allocation16 + $0xaf8] sm:$0xff]
    %v2174 = vld [vmem:[#allocation16 + $0xb00] sm:$0xff]
    %v2175 = vld [vmem:[#allocation16 + $0xb08] sm:$0xff]
    %v2176 = vld [vmem:[#allocation16 + $0xb10] sm:$0xff]
    %v2177 = vld [vmem:[#allocation16 + $0xb18] sm:$0xff]
    %v2178 = vld [vmem:[#allocation16 + $0xb20] sm:$0xff]
    %v2179 = vld [vmem:[#allocation16 + $0xb28] sm:$0xff]
    %v2180 = vld [vmem:[#allocation16 + $0xb30] sm:$0xff]
    %v2181 = vld [vmem:[#allocation16 + $0xb38] sm:$0xff]
    %v2182 = vld [vmem:[#allocation16 + $0xb40] sm:$0xff]
    %v2183 = vld [vmem:[#allocation16 + $0xb48] sm:$0xff]
    %v2184 = vld [vmem:[#allocation16 + $0xb50] sm:$0xff]
    %v2185 = vld [vmem:[#allocation16 + $0xb58] sm:$0xff]
    %v2186 = vld [vmem:[#allocation16 + $0xb60] sm:$0xff]
    %v2187 = vld [vmem:[#allocation16 + $0xb68] sm:$0xff]
    %v2188 = vld [vmem:[#allocation16 + $0xb70] sm:$0xff]
    %v2189 = vld [vmem:[#allocation16 + $0xb78] sm:$0xff]
    %v2190 = vld [vmem:[#allocation16 + $0xb80] sm:$0xff]
    %v2191 = vld [vmem:[#allocation16 + $0xb88] sm:$0xff]
    %v2192 = vld [vmem:[#allocation16 + $0xb90] sm:$0xff]
    %v2193 = vld [vmem:[#allocation16 + $0xb98] sm:$0xff]
    %v2194 = vld [vmem:[#allocation16 + $0xba0] sm:$0xff]
    %v2195 = vld [vmem:[#allocation16 + $0xba8] sm:$0xff]
    %v2196 = vld [vmem:[#allocation16 + $0xbb0] sm:$0xff]
    %v2197 = vld [vmem:[#allocation16 + $0xbb8] sm:$0xff]
    %v2198 = vld [vmem:[#allocation16 + $0xbc0] sm:$0xff]
    %v2199 = vld [vmem:[#allocation16 + $0xbc8] sm:$0xff]
    %v2200 = vld [vmem:[#allocation16 + $0xbd0] sm:$0xff]
    %v2201 = vld [vmem:[#allocation16 + $0xbd8] sm:$0xff]
    %v2202 = vld [vmem:[#allocation16 + $0xbe0] sm:$0xff]
    %v2203 = vld [vmem:[#allocation16 + $0xbe8] sm:$0xff]
    %v2204 = vld [vmem:[#allocation16 + $0xbf0] sm:$0xff]
    %v2205 = vld [vmem:[#allocation16 + $0xbf8] sm:$0xff]
    %v2206 = vld [vmem:[#allocation16 + $0xc00] sm:$0xff]
    %v2207 = vld [vmem:[#allocation16 + $0xc08] sm:$0xff]
    %v2208 = vld [vmem:[#allocation16 + $0xc10] sm:$0xff]
    %v2209 = vld [vmem:[#allocation16 + $0xc18] sm:$0xff]
    %v2210 = vld [vmem:[#allocation16 + $0xc20] sm:$0xff]
    %v2211 = vld [vmem:[#allocation16 + $0xc28] sm:$0xff]
    %v2212 = vld [vmem:[#allocation16 + $0xc30] sm:$0xff]
    %v2213 = vld [vmem:[#allocation16 + $0xc38] sm:$0xff]
    %v2214 = vld [vmem:[#allocation16 + $0xc40] sm:$0xff]
    %v2215 = vld [vmem:[#allocation16 + $0xc48] sm:$0xff]
    %v2216 = vld [vmem:[#allocation16 + $0xc50] sm:$0xff]
    %v2217 = vld [vmem:[#allocation16 + $0xc58] sm:$0xff]
    %v2218 = vld [vmem:[#allocation16 + $0xc60] sm:$0xff]
    %v2219 = vld [vmem:[#allocation16 + $0xc68] sm:$0xff]
    %v2220 = vld [vmem:[#allocation16 + $0xc70] sm:$0xff]
    %v2221 = vld [vmem:[#allocation16 + $0xc78] sm:$0xff]
    %v2222 = vld [vmem:[#allocation16 + $0xc80] sm:$0xff]
    %v2223 = vld [vmem:[#allocation16 + $0xc88] sm:$0xff]
    %v2224 = vld [vmem:[#allocation16 + $0xc90] sm:$0xff]
    %v2225 = vld [vmem:[#allocation16 + $0xc98] sm:$0xff]
    %v2226 = vld [vmem:[#allocation16 + $0xca0] sm:$0xff]
    %v2227 = vld [vmem:[#allocation16 + $0xca8] sm:$0xff]
    %v2228 = vld [vmem:[#allocation16 + $0xcb0] sm:$0xff]
    %v2229 = vld [vmem:[#allocation16 + $0xcb8] sm:$0xff]
    %v2230 = vld [vmem:[#allocation16 + $0xcc0] sm:$0xff]
    %v2231 = vld [vmem:[#allocation16 + $0xcc8] sm:$0xff]
    %v2232 = vld [vmem:[#allocation16 + $0xcd0] sm:$0xff]
    %v2233 = vld [vmem:[#allocation16 + $0xcd8] sm:$0xff]
    %v2234 = vld [vmem:[#allocation16 + $0xce0] sm:$0xff]
    %v2235 = vld [vmem:[#allocation16 + $0xce8] sm:$0xff]
    %v2236 = vld [vmem:[#allocation16 + $0xcf0] sm:$0xff]
    %v2237 = vld [vmem:[#allocation16 + $0xcf8] sm:$0xff]
    %v2238 = vld [vmem:[#allocation16 + $0xd00] sm:$0xff]
    %v2239 = vld [vmem:[#allocation16 + $0xd08] sm:$0xff]
    %v2240 = vld [vmem:[#allocation16 + $0xd10] sm:$0xff]
    %v2241 = vld [vmem:[#allocation16 + $0xd18] sm:$0xff]
    %v2242 = vld [vmem:[#allocation16 + $0xd20] sm:$0xff]
    %v2243 = vld [vmem:[#allocation16 + $0xd28] sm:$0xff]
    %v2244 = vld [vmem:[#allocation16 + $0xd30] sm:$0xff]
    %v2245 = vld [vmem:[#allocation16 + $0xd38] sm:$0xff]
    %v2246 = vld [vmem:[#allocation16 + $0xd40] sm:$0xff]
    %v2247 = vld [vmem:[#allocation16 + $0xd48] sm:$0xff]
    %v2248 = vld [vmem:[#allocation16 + $0xd50] sm:$0xff]
    %v2249 = vld [vmem:[#allocation16 + $0xd58] sm:$0xff]
    %v2250 = vld [vmem:[#allocation16 + $0xd60] sm:$0xff]
    %v2251 = vld [vmem:[#allocation16 + $0xd68] sm:$0xff]
    %v2252 = vld [vmem:[#allocation16 + $0xd70] sm:$0xff]
    %v2253 = vld [vmem:[#allocation16 + $0xd78] sm:$0xff]
    %v2254 = vld [vmem:[#allocation16 + $0xd80] sm:$0xff]
    %v2255 = vld [vmem:[#allocation16 + $0xd88] sm:$0xff]
    %v2256 = vld [vmem:[#allocation16 + $0xd90] sm:$0xff]
    %v2257 = vld [vmem:[#allocation16 + $0xd98] sm:$0xff]
    %v2258 = vld [vmem:[#allocation16 + $0xda0] sm:$0xff]
    %v2259 = vld [vmem:[#allocation16 + $0xda8] sm:$0xff]
    %v2260 = vld [vmem:[#allocation16 + $0xdb0] sm:$0xff]
    %v2261 = vld [vmem:[#allocation16 + $0xdb8] sm:$0xff]
    %v2262 = vld [vmem:[#allocation16 + $0xdc0] sm:$0xff]
    %v2263 = vld [vmem:[#allocation16 + $0xdc8] sm:$0xff]
    %v2264 = vld [vmem:[#allocation16 + $0xdd0] sm:$0xff]
    %v2265 = vld [vmem:[#allocation16 + $0xdd8] sm:$0xff]
    %v2266 = vld [vmem:[#allocation16 + $0xde0] sm:$0xff]
    %v2267 = vld [vmem:[#allocation16 + $0xde8] sm:$0xff]
    %v2268 = vld [vmem:[#allocation16 + $0xdf0] sm:$0xff]
    %v2269 = vld [vmem:[#allocation16 + $0xdf8] sm:$0xff]
    %v2270 = vld [vmem:[#allocation16 + $0xe00] sm:$0xff]
    %v2271 = vld [vmem:[#allocation16 + $0xe08] sm:$0xff]
    %v2272 = vld [vmem:[#allocation16 + $0xe10] sm:$0xff]
    %v2273 = vld [vmem:[#allocation16 + $0xe18] sm:$0xff]
    %v2274 = vld [vmem:[#allocation16 + $0xe20] sm:$0xff]
    %v2275 = vld [vmem:[#allocation16 + $0xe28] sm:$0xff]
    %v2276 = vld [vmem:[#allocation16 + $0xe30] sm:$0xff]
    %v2277 = vld [vmem:[#allocation16 + $0xe38] sm:$0xff]
    %v2278 = vld [vmem:[#allocation16 + $0xe40] sm:$0xff]
    %v2279 = vld [vmem:[#allocation16 + $0xe48] sm:$0xff]
    %v2280 = vld [vmem:[#allocation16 + $0xe50] sm:$0xff]
    %v2281 = vld [vmem:[#allocation16 + $0xe58] sm:$0xff]
    %v2282 = vld [vmem:[#allocation16 + $0xe60] sm:$0xff]
    %v2283 = vld [vmem:[#allocation16 + $0xe68] sm:$0xff]
    %v2284 = vld [vmem:[#allocation16 + $0xe70] sm:$0xff]
    %v2285 = vld [vmem:[#allocation16 + $0xe78] sm:$0xff]
    %v2286 = vld [vmem:[#allocation16 + $0xe80] sm:$0xff]
    %v2287 = vld [vmem:[#allocation16 + $0xe88] sm:$0xff]
    %v2288 = vld [vmem:[#allocation16 + $0xe90] sm:$0xff]
    %v2289 = vld [vmem:[#allocation16 + $0xe98] sm:$0xff]
    %v2290 = vld [vmem:[#allocation16 + $0xea0] sm:$0xff]
    %v2291 = vld [vmem:[#allocation16 + $0xea8] sm:$0xff]
    %v2292 = vld [vmem:[#allocation16 + $0xeb0] sm:$0xff]
    %v2293 = vld [vmem:[#allocation16 + $0xeb8] sm:$0xff]
    %v2294 = vld [vmem:[#allocation16 + $0xec0] sm:$0xff]
    %v2295 = vld [vmem:[#allocation16 + $0xec8] sm:$0xff]
    %v2296 = vld [vmem:[#allocation16 + $0xed0] sm:$0xff]
    %v2297 = vld [vmem:[#allocation16 + $0xed8] sm:$0xff]
    %v2298 = vld [vmem:[#allocation16 + $0xee0] sm:$0xff]
    %v2299 = vld [vmem:[#allocation16 + $0xee8] sm:$0xff]
    %v2300 = vld [vmem:[#allocation16 + $0xef0] sm:$0xff]
    %v2301 = vld [vmem:[#allocation16 + $0xef8] sm:$0xff]
    %v2302 = vld [vmem:[#allocation16 + $0xf00] sm:$0xff]
    %v2303 = vld [vmem:[#allocation16 + $0xf08] sm:$0xff]
    %v2304 = vld [vmem:[#allocation16 + $0xf10] sm:$0xff]
    %v2305 = vld [vmem:[#allocation16 + $0xf18] sm:$0xff]
    %v2306 = vld [vmem:[#allocation16 + $0xf20] sm:$0xff]
    %v2307 = vld [vmem:[#allocation16 + $0xf28] sm:$0xff]
    %v2308 = vld [vmem:[#allocation16 + $0xf30] sm:$0xff]
    %v2309 = vld [vmem:[#allocation16 + $0xf38] sm:$0xff]
    %v2310 = vld [vmem:[#allocation16 + $0xf40] sm:$0xff]
    %v2311 = vld [vmem:[#allocation16 + $0xf48] sm:$0xff]
    %v2312 = vld [vmem:[#allocation16 + $0xf50] sm:$0xff]
    %v2313 = vld [vmem:[#allocation16 + $0xf58] sm:$0xff]
    %v2314 = vld [vmem:[#allocation16 + $0xf60] sm:$0xff]
    %v2315 = vld [vmem:[#allocation16 + $0xf68] sm:$0xff]
    %v2316 = vld [vmem:[#allocation16 + $0xf70] sm:$0xff]
    %v2317 = vld [vmem:[#allocation16 + $0xf78] sm:$0xff]
    %v2318 = vld [vmem:[#allocation16 + $0xf80] sm:$0xff]
    %v2319 = vld [vmem:[#allocation16 + $0xf88] sm:$0xff]
    %v2320 = vld [vmem:[#allocation16 + $0xf90] sm:$0xff]
    %v2321 = vld [vmem:[#allocation16 + $0xf98] sm:$0xff]
    %v2322 = vld [vmem:[#allocation16 + $0xfa0] sm:$0xff]
    %v2323 = vld [vmem:[#allocation16 + $0xfa8] sm:$0xff]
    %v2324 = vld [vmem:[#allocation16 + $0xfb0] sm:$0xff]
    %v2325 = vld [vmem:[#allocation16 + $0xfb8] sm:$0xff]
    %v2326 = vld [vmem:[#allocation16 + $0xfc0] sm:$0xff]
    %v2327 = vld [vmem:[#allocation16 + $0xfc8] sm:$0xff]
    %v2328 = vld [vmem:[#allocation16 + $0xfd0] sm:$0xff]
    %v2329 = vld [vmem:[#allocation16 + $0xfd8] sm:$0xff]
    %v2330 = vld [vmem:[#allocation16 + $0xfe0] sm:$0xff]
    %v2331 = vld [vmem:[#allocation16 + $0xfe8] sm:$0xff]
    %v2332 = vld [vmem:[#allocation16 + $0xff0] sm:$0xff]
    %v2333 = vld [vmem:[#allocation16 + $0xff8] sm:$0xff]
    %v2334 = vld [vmem:[#allocation16 + $0x1000] sm:$0xff]
    %v2335 = vld [vmem:[#allocation16 + $0x1008] sm:$0xff]
    %v2336 = vld [vmem:[#allocation16 + $0x1010] sm:$0xff]
    %v2337 = vld [vmem:[#allocation16 + $0x1018] sm:$0xff]
    %v2338 = vld [vmem:[#allocation16 + $0x1020] sm:$0xff]
    %v2339 = vld [vmem:[#allocation16 + $0x1028] sm:$0xff]
    %v2340 = vld [vmem:[#allocation16 + $0x1030] sm:$0xff]
    %v2341 = vld [vmem:[#allocation16 + $0x1038] sm:$0xff]
    %v2342 = vld [vmem:[#allocation16 + $0x1040] sm:$0xff]
    %v2343 = vld [vmem:[#allocation16 + $0x1048] sm:$0xff]
    %v2344 = vld [vmem:[#allocation16 + $0x1050] sm:$0xff]
    %v2345 = vld [vmem:[#allocation16 + $0x1058] sm:$0xff]
    %v2346 = vld [vmem:[#allocation16 + $0x1060] sm:$0xff]
    %v2347 = vld [vmem:[#allocation16 + $0x1068] sm:$0xff]
    %v2348 = vld [vmem:[#allocation16 + $0x1070] sm:$0xff]
    %v2349 = vld [vmem:[#allocation16 + $0x1078] sm:$0xff]
    %v2350 = vld [vmem:[#allocation16 + $0x1080] sm:$0xff]
    %v2351 = vld [vmem:[#allocation16 + $0x1088] sm:$0xff]
    %v2352 = vld [vmem:[#allocation16 + $0x1090] sm:$0xff]
    %v2353 = vld [vmem:[#allocation16 + $0x1098] sm:$0xff]
    %v2354 = vld [vmem:[#allocation16 + $0x10a0] sm:$0xff]
    %v2355 = vld [vmem:[#allocation16 + $0x10a8] sm:$0xff]
    %v2356 = vld [vmem:[#allocation16 + $0x10b0] sm:$0xff]
    %v2357 = vld [vmem:[#allocation16 + $0x10b8] sm:$0xff]
    %v2358 = vld [vmem:[#allocation16 + $0x10c0] sm:$0xff]
    %v2359 = vld [vmem:[#allocation16 + $0x10c8] sm:$0xff]
    %v2360 = vld [vmem:[#allocation16 + $0x10d0] sm:$0xff]
    %v2361 = vld [vmem:[#allocation16 + $0x10d8] sm:$0xff]
    %v2362 = vld [vmem:[#allocation16 + $0x10e0] sm:$0xff]
    %v2363 = vld [vmem:[#allocation16 + $0x10e8] sm:$0xff]
    %v2364 = vld [vmem:[#allocation16 + $0x10f0] sm:$0xff]
    %v2365 = vld [vmem:[#allocation16 + $0x10f8] sm:$0xff]
    %v2366 = vld [vmem:[#allocation16 + $0x1100] sm:$0xff]
    %v2367 = vld [vmem:[#allocation16 + $0x1108] sm:$0xff]
    %v2368 = vld [vmem:[#allocation16 + $0x1110] sm:$0xff]
    %v2369 = vld [vmem:[#allocation16 + $0x1118] sm:$0xff]
    %v2370 = vld [vmem:[#allocation16 + $0x1120] sm:$0xff]
    %v2371 = vld [vmem:[#allocation16 + $0x1128] sm:$0xff]
    %v2372 = vld [vmem:[#allocation16 + $0x1130] sm:$0xff]
    %v2373 = vld [vmem:[#allocation16 + $0x1138] sm:$0xff]
    %v2374 = vld [vmem:[#allocation16 + $0x1140] sm:$0xff]
    %v2375 = vld [vmem:[#allocation16 + $0x1148] sm:$0xff]
    %v2376 = vld [vmem:[#allocation16 + $0x1150] sm:$0xff]
    %v2377 = vld [vmem:[#allocation16 + $0x1158] sm:$0xff]
    %v2378 = vld [vmem:[#allocation16 + $0x1160] sm:$0xff]
    %v2379 = vld [vmem:[#allocation16 + $0x1168] sm:$0xff]
    %v2380 = vld [vmem:[#allocation16 + $0x1170] sm:$0xff]
    %v2381 = vld [vmem:[#allocation16 + $0x1178] sm:$0xff]
    %v2382 = vld [vmem:[#allocation16 + $0x1180] sm:$0xff]
    %v2383 = vld [vmem:[#allocation16 + $0x1188] sm:$0xff]
    %v2384 = vld [vmem:[#allocation16 + $0x1190] sm:$0xff]
    %v2385 = vld [vmem:[#allocation16 + $0x1198] sm:$0xff]
    %v2386 = vld [vmem:[#allocation16 + $0x11a0] sm:$0xff]
    %v2387 = vld [vmem:[#allocation16 + $0x11a8] sm:$0xff]
    %v2388 = vld [vmem:[#allocation16 + $0x11b0] sm:$0xff]
    %v2389 = vld [vmem:[#allocation16 + $0x11b8] sm:$0xff]
    %v2390 = vld [vmem:[#allocation16 + $0x11c0] sm:$0xff]
    %v2391 = vld [vmem:[#allocation16 + $0x11c8] sm:$0xff]
    %v2392 = vld [vmem:[#allocation16 + $0x11d0] sm:$0xff]
    %v2393 = vld [vmem:[#allocation16 + $0x11d8] sm:$0xff]
    %v2394 = vld [vmem:[#allocation16 + $0x11e0] sm:$0xff]
    %v2395 = vld [vmem:[#allocation16 + $0x11e8] sm:$0xff]
    %v2396 = vld [vmem:[#allocation16 + $0x11f0] sm:$0xff]
    %v2397 = vld [vmem:[#allocation16 + $0x11f8] sm:$0xff]
    %v2398 = vld [vmem:[#allocation16 + $0x1200] sm:$0xff]
    %v2399 = vld [vmem:[#allocation16 + $0x1208] sm:$0xff]
    %v2400 = vld [vmem:[#allocation16 + $0x1210] sm:$0xff]
    %v2401 = vld [vmem:[#allocation16 + $0x1218] sm:$0xff]
    %v2402 = vld [vmem:[#allocation16 + $0x1220] sm:$0xff]
    %v2403 = vld [vmem:[#allocation16 + $0x1228] sm:$0xff]
    %v2404 = vld [vmem:[#allocation16 + $0x1230] sm:$0xff]
    %v2405 = vld [vmem:[#allocation16 + $0x1238] sm:$0xff]
    %v2406 = vld [vmem:[#allocation16 + $0x1240] sm:$0xff]
    %v2407 = vld [vmem:[#allocation16 + $0x1248] sm:$0xff]
    %v2408 = vld [vmem:[#allocation16 + $0x1250] sm:$0xff]
    %v2409 = vld [vmem:[#allocation16 + $0x1258] sm:$0xff]
    %v2410 = vld [vmem:[#allocation16 + $0x1260] sm:$0xff]
    %v2411 = vld [vmem:[#allocation16 + $0x1268] sm:$0xff]
    %v2412 = vld [vmem:[#allocation16 + $0x1270] sm:$0xff]
    %v2413 = vld [vmem:[#allocation16 + $0x1278] sm:$0xff]
    %v2414 = vld [vmem:[#allocation16 + $0x1280] sm:$0xff]
    %v2415 = vld [vmem:[#allocation16 + $0x1288] sm:$0xff]
    %v2416 = vld [vmem:[#allocation16 + $0x1290] sm:$0xff]
    %v2417 = vld [vmem:[#allocation16 + $0x1298] sm:$0xff]
    %v2418 = vld [vmem:[#allocation16 + $0x12a0] sm:$0xff]
    %v2419 = vld [vmem:[#allocation16 + $0x12a8] sm:$0xff]
    %v2420 = vld [vmem:[#allocation16 + $0x12b0] sm:$0xff]
    %v2421 = vld [vmem:[#allocation16 + $0x12b8] sm:$0xff]
    %v2422 = vld [vmem:[#allocation16 + $0x12c0] sm:$0xff]
    %v2423 = vld [vmem:[#allocation16 + $0x12c8] sm:$0xff]
    %v2424 = vld [vmem:[#allocation16 + $0x12d0] sm:$0xff]
    %v2425 = vld [vmem:[#allocation16 + $0x12d8] sm:$0xff]
    %v2426 = vld [vmem:[#allocation16 + $0x12e0] sm:$0xff]
    %v2427 = vld [vmem:[#allocation16 + $0x12e8] sm:$0xff]
    %v2428 = vld [vmem:[#allocation16 + $0x12f0] sm:$0xff]
    %v2429 = vld [vmem:[#allocation16 + $0x12f8] sm:$0xff]
    %v2430 = vld [vmem:[#allocation16 + $0x1300] sm:$0xff]
    %v2431 = vld [vmem:[#allocation16 + $0x1308] sm:$0xff]
    %v2432 = vld [vmem:[#allocation16 + $0x1310] sm:$0xff]
    %v2433 = vld [vmem:[#allocation16 + $0x1318] sm:$0xff]
    %v2434 = vld [vmem:[#allocation16 + $0x1320] sm:$0xff]
    %v2435 = vld [vmem:[#allocation16 + $0x1328] sm:$0xff]
    %v2436 = vld [vmem:[#allocation16 + $0x1330] sm:$0xff]
    %v2437 = vld [vmem:[#allocation16 + $0x1338] sm:$0xff]
    %v2438 = vld [vmem:[#allocation16 + $0x1340] sm:$0xff]
    %v2439 = vld [vmem:[#allocation16 + $0x1348] sm:$0xff]
    %v2440 = vld [vmem:[#allocation16 + $0x1350] sm:$0xff]
    %v2441 = vld [vmem:[#allocation16 + $0x1358] sm:$0xff]
    %v2442 = vld [vmem:[#allocation16 + $0x1360] sm:$0xff]
    %v2443 = vld [vmem:[#allocation16 + $0x1368] sm:$0xff]
    %v2444 = vld [vmem:[#allocation16 + $0x1370] sm:$0xff]
    %v2445 = vld [vmem:[#allocation16 + $0x1378] sm:$0xff]
    %v2446 = vld [vmem:[#allocation16 + $0x1380] sm:$0xff]
    %v2447 = vld [vmem:[#allocation16 + $0x1388] sm:$0xff]
    %v2448 = vld [vmem:[#allocation16 + $0x1390] sm:$0xff]
    %v2449 = vld [vmem:[#allocation16 + $0x1398] sm:$0xff]
    %v2450 = vld [vmem:[#allocation16 + $0x13a0] sm:$0xff]
    %v2451 = vld [vmem:[#allocation16 + $0x13a8] sm:$0xff]
    %v2452 = vld [vmem:[#allocation16 + $0x13b0] sm:$0xff]
    %v2453 = vld [vmem:[#allocation16 + $0x13b8] sm:$0xff]
    %v2454 = vld [vmem:[#allocation16 + $0x13c0] sm:$0xff]
    %v2455 = vld [vmem:[#allocation16 + $0x13c8] sm:$0xff]
    %v2456 = vld [vmem:[#allocation16 + $0x13d0] sm:$0xff]
    %v2457 = vld [vmem:[#allocation16 + $0x13d8] sm:$0xff]
    %v2458 = vld [vmem:[#allocation16 + $0x13e0] sm:$0xff]
    %v2459 = vld [vmem:[#allocation16 + $0x13e8] sm:$0xff]
    %v2460 = vld [vmem:[#allocation16 + $0x13f0] sm:$0xff]
    %v2461 = vld [vmem:[#allocation16 + $0x13f8] sm:$0xff]
    %v2462 = vld [vmem:[#allocation16 + $0x1400] sm:$0xff]
    %v2463 = vld [vmem:[#allocation16 + $0x1408] sm:$0xff]
    %v2464 = vld [vmem:[#allocation16 + $0x1410] sm:$0xff]
    %v2465 = vld [vmem:[#allocation16 + $0x1418] sm:$0xff]
    %v2466 = vld [vmem:[#allocation16 + $0x1420] sm:$0xff]
    %v2467 = vld [vmem:[#allocation16 + $0x1428] sm:$0xff]
    %v2468 = vld [vmem:[#allocation16 + $0x1430] sm:$0xff]
    %v2469 = vld [vmem:[#allocation16 + $0x1438] sm:$0xff]
    %v2470 = vld [vmem:[#allocation16 + $0x1440] sm:$0xff]
    %v2471 = vld [vmem:[#allocation16 + $0x1448] sm:$0xff]
    %v2472 = vld [vmem:[#allocation16 + $0x1450] sm:$0xff]
    %v2473 = vld [vmem:[#allocation16 + $0x1458] sm:$0xff]
    %v2474 = vld [vmem:[#allocation16 + $0x1460] sm:$0xff]
    %v2475 = vld [vmem:[#allocation16 + $0x1468] sm:$0xff]
    %v2476 = vld [vmem:[#allocation16 + $0x1470] sm:$0xff]
    %v2477 = vld [vmem:[#allocation16 + $0x1478] sm:$0xff]
    %v2478 = vld [vmem:[#allocation16 + $0x1480] sm:$0xff]
    %v2479 = vld [vmem:[#allocation16 + $0x1488] sm:$0xff]
    %v2480 = vld [vmem:[#allocation16 + $0x1490] sm:$0xff]
    %v2481 = vld [vmem:[#allocation16 + $0x1498] sm:$0xff]
    %v2482 = vld [vmem:[#allocation16 + $0x14a0] sm:$0xff]
    %v2483 = vld [vmem:[#allocation16 + $0x14a8] sm:$0xff]
    %v2484 = vld [vmem:[#allocation16 + $0x14b0] sm:$0xff]
    %v2485 = vld [vmem:[#allocation16 + $0x14b8] sm:$0xff]
    %v2486 = vld [vmem:[#allocation16 + $0x14c0] sm:$0xff]
    %v2487 = vld [vmem:[#allocation16 + $0x14c8] sm:$0xff]
    %v2488 = vld [vmem:[#allocation16 + $0x14d0] sm:$0xff]
    %v2489 = vld [vmem:[#allocation16 + $0x14d8] sm:$0xff]
    %v2490 = vld [vmem:[#allocation16 + $0x14e0] sm:$0xff]
    %v2491 = vld [vmem:[#allocation16 + $0x14e8] sm:$0xff]
    %v2492 = vld [vmem:[#allocation16 + $0x14f0] sm:$0xff]
    %v2493 = vld [vmem:[#allocation16 + $0x14f8] sm:$0xff]
    %v2494 = vld [vmem:[#allocation16 + $0x1500] sm:$0xff]
    %v2495 = vld [vmem:[#allocation16 + $0x1508] sm:$0xff]
    %v2496 = vld [vmem:[#allocation16 + $0x1510] sm:$0xff]
    %v2497 = vld [vmem:[#allocation16 + $0x1518] sm:$0xff]
    %v2498 = vld [vmem:[#allocation16 + $0x1520] sm:$0xff]
    %v2499 = vld [vmem:[#allocation16 + $0x1528] sm:$0xff]
    %v2500 = vld [vmem:[#allocation16 + $0x1530] sm:$0xff]
    %v2501 = vld [vmem:[#allocation16 + $0x1538] sm:$0xff]
    %v2502 = vld [vmem:[#allocation16 + $0x1540] sm:$0xff]
    %v2503 = vld [vmem:[#allocation16 + $0x1548] sm:$0xff]
    %v2504 = vld [vmem:[#allocation16 + $0x1550] sm:$0xff]
    %v2505 = vld [vmem:[#allocation16 + $0x1558] sm:$0xff]
    %v2506 = vld [vmem:[#allocation16 + $0x1560] sm:$0xff]
    %v2507 = vld [vmem:[#allocation16 + $0x1568] sm:$0xff]
    %v2508 = vld [vmem:[#allocation16 + $0x1570] sm:$0xff]
    %v2509 = vld [vmem:[#allocation16 + $0x1578] sm:$0xff]
    %v2510 = vld [vmem:[#allocation16 + $0x1580] sm:$0xff]
    %v2511 = vld [vmem:[#allocation16 + $0x1588] sm:$0xff]
    %v2512 = vld [vmem:[#allocation16 + $0x1590] sm:$0xff]
    %v2513 = vld [vmem:[#allocation16 + $0x1598] sm:$0xff]
    %v2514 = vld [vmem:[#allocation16 + $0x15a0] sm:$0xff]
    %v2515 = vld [vmem:[#allocation16 + $0x15a8] sm:$0xff]
    %v2516 = vld [vmem:[#allocation16 + $0x15b0] sm:$0xff]
    %v2517 = vld [vmem:[#allocation16 + $0x15b8] sm:$0xff]
    %v2518 = vld [vmem:[#allocation16 + $0x15c0] sm:$0xff]
    %v2519 = vld [vmem:[#allocation16 + $0x15c8] sm:$0xff]
    %v2520 = vld [vmem:[#allocation16 + $0x15d0] sm:$0xff]
    %v2521 = vld [vmem:[#allocation16 + $0x15d8] sm:$0xff]
    %v2522 = vld [vmem:[#allocation16 + $0x15e0] sm:$0xff]
    %v2523 = vld [vmem:[#allocation16 + $0x15e8] sm:$0xff]
    %v2524 = vld [vmem:[#allocation16 + $0x15f0] sm:$0xff]
    %v2525 = vld [vmem:[#allocation16 + $0x15f8] sm:$0xff]
    %v2526 = vld [vmem:[#allocation16 + $0x1600] sm:$0xff]
    %v2527 = vld [vmem:[#allocation16 + $0x1608] sm:$0xff]
    %v2528 = vld [vmem:[#allocation16 + $0x1610] sm:$0xff]
    %v2529 = vld [vmem:[#allocation16 + $0x1618] sm:$0xff]
    %v2530 = vld [vmem:[#allocation16 + $0x1620] sm:$0xff]
    %v2531 = vld [vmem:[#allocation16 + $0x1628] sm:$0xff]
    %v2532 = vld [vmem:[#allocation16 + $0x1630] sm:$0xff]
    %v2533 = vld [vmem:[#allocation16 + $0x1638] sm:$0xff]
    %v2534 = vld [vmem:[#allocation16 + $0x1640] sm:$0xff]
    %v2535 = vld [vmem:[#allocation16 + $0x1648] sm:$0xff]
    %v2536 = vld [vmem:[#allocation16 + $0x1650] sm:$0xff]
    %v2537 = vld [vmem:[#allocation16 + $0x1658] sm:$0xff]
    %v2538 = vld [vmem:[#allocation16 + $0x1660] sm:$0xff]
    %v2539 = vld [vmem:[#allocation16 + $0x1668] sm:$0xff]
    %v2540 = vld [vmem:[#allocation16 + $0x1670] sm:$0xff]
    %v2541 = vld [vmem:[#allocation16 + $0x1678] sm:$0xff]
    %v2542 = vld [vmem:[#allocation16 + $0x1680] sm:$0xff]
    %v2543 = vld [vmem:[#allocation16 + $0x1688] sm:$0xff]
    %v2544 = vld [vmem:[#allocation16 + $0x1690] sm:$0xff]
    %v2545 = vld [vmem:[#allocation16 + $0x1698] sm:$0xff]
    %v2546 = vld [vmem:[#allocation16 + $0x16a0] sm:$0xff]
    %v2547 = vld [vmem:[#allocation16 + $0x16a8] sm:$0xff]
    %v2548 = vld [vmem:[#allocation16 + $0x16b0] sm:$0xff]
    %v2549 = vld [vmem:[#allocation16 + $0x16b8] sm:$0xff]
    %v2550 = vld [vmem:[#allocation16 + $0x16c0] sm:$0xff]
    %v2551 = vld [vmem:[#allocation16 + $0x16c8] sm:$0xff]
    %v2552 = vld [vmem:[#allocation16 + $0x16d0] sm:$0xff]
    %v2553 = vld [vmem:[#allocation16 + $0x16d8] sm:$0xff]
    %v2554 = vld [vmem:[#allocation16 + $0x16e0] sm:$0xff]
    %v2555 = vld [vmem:[#allocation16 + $0x16e8] sm:$0xff]
    %v2556 = vld [vmem:[#allocation16 + $0x16f0] sm:$0xff]
    %v2557 = vld [vmem:[#allocation16 + $0x16f8] sm:$0xff]
    %v2558 = vld [vmem:[#allocation16 + $0x1700] sm:$0xff]
    %v2559 = vld [vmem:[#allocation16 + $0x1708] sm:$0xff]
    %v2560 = vld [vmem:[#allocation16 + $0x1710] sm:$0xff]
    %v2561 = vld [vmem:[#allocation16 + $0x1718] sm:$0xff]
    %v2562 = vld [vmem:[#allocation16 + $0x1720] sm:$0xff]
    %v2563 = vld [vmem:[#allocation16 + $0x1728] sm:$0xff]
    %v2564 = vld [vmem:[#allocation16 + $0x1730] sm:$0xff]
    %v2565 = vld [vmem:[#allocation16 + $0x1738] sm:$0xff]
    %v2566 = vld [vmem:[#allocation16 + $0x1740] sm:$0xff]
    %v2567 = vld [vmem:[#allocation16 + $0x1748] sm:$0xff]
    %v2568 = vld [vmem:[#allocation16 + $0x1750] sm:$0xff]
    %v2569 = vld [vmem:[#allocation16 + $0x1758] sm:$0xff]
    %v2570 = vld [vmem:[#allocation16 + $0x1760] sm:$0xff]
    %v2571 = vld [vmem:[#allocation16 + $0x1768] sm:$0xff]
    %v2572 = vld [vmem:[#allocation16 + $0x1770] sm:$0xff]
    %v2573 = vld [vmem:[#allocation16 + $0x1778] sm:$0xff]
    %v2574 = vld [vmem:[#allocation16 + $0x1780] sm:$0xff]
    %v2575 = vld [vmem:[#allocation16 + $0x1788] sm:$0xff]
    %v2576 = vld [vmem:[#allocation16 + $0x1790] sm:$0xff]
    %v2577 = vld [vmem:[#allocation16 + $0x1798] sm:$0xff]
    %v2578 = vld [vmem:[#allocation16 + $0x17a0] sm:$0xff]
    %v2579 = vld [vmem:[#allocation16 + $0x17a8] sm:$0xff]
    %v2580 = vld [vmem:[#allocation16 + $0x17b0] sm:$0xff]
    %v2581 = vld [vmem:[#allocation16 + $0x17b8] sm:$0xff]
    %v2582 = vld [vmem:[#allocation16 + $0x17c0] sm:$0xff]
    %v2583 = vld [vmem:[#allocation16 + $0x17c8] sm:$0xff]
    %v2584 = vld [vmem:[#allocation16 + $0x17d0] sm:$0xff]
    %v2585 = vld [vmem:[#allocation16 + $0x17d8] sm:$0xff]
    %v2586 = vld [vmem:[#allocation16 + $0x17e0] sm:$0xff]
    %v2587 = vld [vmem:[#allocation16 + $0x17e8] sm:$0xff]
    %v2588 = vld [vmem:[#allocation16 + $0x17f0] sm:$0xff]
    %v2589 = vld [vmem:[#allocation16 + $0x17f8] sm:$0xff]
    %v2590 = vld [vmem:[#allocation16 + $0x1800] sm:$0xff]
    %v2591 = vld [vmem:[#allocation16 + $0x1808] sm:$0xff]
    %v2592 = vld [vmem:[#allocation16 + $0x1810] sm:$0xff]
    %v2593 = vld [vmem:[#allocation16 + $0x1818] sm:$0xff]
    %v2594 = vld [vmem:[#allocation16 + $0x1820] sm:$0xff]
    %v2595 = vld [vmem:[#allocation16 + $0x1828] sm:$0xff]
    %v2596 = vld [vmem:[#allocation16 + $0x1830] sm:$0xff]
    %v2597 = vld [vmem:[#allocation16 + $0x1838] sm:$0xff]
    %v2598 = vld [vmem:[#allocation16 + $0x1840] sm:$0xff]
    %v2599 = vld [vmem:[#allocation16 + $0x1848] sm:$0xff]
    %v2600 = vld [vmem:[#allocation16 + $0x1850] sm:$0xff]
    %v2601 = vld [vmem:[#allocation16 + $0x1858] sm:$0xff]
    %v2602 = vld [vmem:[#allocation16 + $0x1860] sm:$0xff]
    %v2603 = vld [vmem:[#allocation16 + $0x1868] sm:$0xff]
    %v2604 = vld [vmem:[#allocation16 + $0x1870] sm:$0xff]
    %v2605 = vld [vmem:[#allocation16 + $0x1878] sm:$0xff]
    %v2606 = vld [vmem:[#allocation16 + $0x1880] sm:$0xff]
    %v2607 = vld [vmem:[#allocation16 + $0x1888] sm:$0xff]
    %v2608 = vld [vmem:[#allocation16 + $0x1890] sm:$0xff]
    %v2609 = vld [vmem:[#allocation16 + $0x1898] sm:$0xff]
    %v2610 = vld [vmem:[#allocation16 + $0x18a0] sm:$0xff]
    %v2611 = vld [vmem:[#allocation16 + $0x18a8] sm:$0xff]
    %v2612 = vld [vmem:[#allocation16 + $0x18b0] sm:$0xff]
    %v2613 = vld [vmem:[#allocation16 + $0x18b8] sm:$0xff]
    %v2614 = vld [vmem:[#allocation16 + $0x18c0] sm:$0xff]
    %v2615 = vld [vmem:[#allocation16 + $0x18c8] sm:$0xff]
    %v2616 = vld [vmem:[#allocation16 + $0x18d0] sm:$0xff]
    %v2617 = vld [vmem:[#allocation16 + $0x18d8] sm:$0xff]
    %v2618 = vld [vmem:[#allocation16 + $0x18e0] sm:$0xff]
    %v2619 = vld [vmem:[#allocation16 + $0x18e8] sm:$0xff]
    %v2620 = vld [vmem:[#allocation16 + $0x18f0] sm:$0xff]
    %v2621 = vld [vmem:[#allocation16 + $0x18f8] sm:$0xff]
    %v2622 = vld [vmem:[#allocation16 + $0x1900] sm:$0xff]
    %v2623 = vld [vmem:[#allocation16 + $0x1908] sm:$0xff]
    %v2624 = vld [vmem:[#allocation16 + $0x1910] sm:$0xff]
    %v2625 = vld [vmem:[#allocation16 + $0x1918] sm:$0xff]
    %v2626 = vld [vmem:[#allocation16 + $0x1920] sm:$0xff]
    %v2627 = vld [vmem:[#allocation16 + $0x1928] sm:$0xff]
    %v2628 = vld [vmem:[#allocation16 + $0x1930] sm:$0xff]
    %v2629 = vld [vmem:[#allocation16 + $0x1938] sm:$0xff]
    %v2630 = vld [vmem:[#allocation16 + $0x1940] sm:$0xff]
    %v2631 = vld [vmem:[#allocation16 + $0x1948] sm:$0xff]
    %v2632 = vld [vmem:[#allocation16 + $0x1950] sm:$0xff]
    %v2633 = vld [vmem:[#allocation16 + $0x1958] sm:$0xff]
    %v2634 = vld [vmem:[#allocation16 + $0x1960] sm:$0xff]
    %v2635 = vld [vmem:[#allocation16 + $0x1968] sm:$0xff]
    %v2636 = vld [vmem:[#allocation16 + $0x1970] sm:$0xff]
    %v2637 = vld [vmem:[#allocation16 + $0x1978] sm:$0xff]
    %v2638 = vld [vmem:[#allocation16 + $0x1980] sm:$0xff]
    %v2639 = vld [vmem:[#allocation16 + $0x1988] sm:$0xff]
    %v2640 = vld [vmem:[#allocation16 + $0x1990] sm:$0xff]
    %v2641 = vld [vmem:[#allocation16 + $0x1998] sm:$0xff]
    %v2642 = vld [vmem:[#allocation16 + $0x19a0] sm:$0xff]
    %v2643 = vld [vmem:[#allocation16 + $0x19a8] sm:$0xff]
    %v2644 = vld [vmem:[#allocation16 + $0x19b0] sm:$0xff]
    %v2645 = vld [vmem:[#allocation16 + $0x19b8] sm:$0xff]
    %v2646 = vld [vmem:[#allocation16 + $0x19c0] sm:$0xff]
    %v2647 = vld [vmem:[#allocation16 + $0x19c8] sm:$0xff]
    %v2648 = vld [vmem:[#allocation16 + $0x19d0] sm:$0xff]
    %v2649 = vld [vmem:[#allocation16 + $0x19d8] sm:$0xff]
    %v2650 = vld [vmem:[#allocation16 + $0x19e0] sm:$0xff]
    %v2651 = vld [vmem:[#allocation16 + $0x19e8] sm:$0xff]
    %v2652 = vld [vmem:[#allocation16 + $0x19f0] sm:$0xff]
    %v2653 = vld [vmem:[#allocation16 + $0x19f8] sm:$0xff]
    %v2654 = vld [vmem:[#allocation16 + $0x1a00] sm:$0xff]
    %v2655 = vld [vmem:[#allocation16 + $0x1a08] sm:$0xff]
    %v2656 = vld [vmem:[#allocation16 + $0x1a10] sm:$0xff]
    %v2657 = vld [vmem:[#allocation16 + $0x1a18] sm:$0xff]
    %v2658 = vld [vmem:[#allocation16 + $0x1a20] sm:$0xff]
    %v2659 = vld [vmem:[#allocation16 + $0x1a28] sm:$0xff]
    %v2660 = vld [vmem:[#allocation16 + $0x1a30] sm:$0xff]
    %v2661 = vld [vmem:[#allocation16 + $0x1a38] sm:$0xff]
    %v2662 = vld [vmem:[#allocation16 + $0x1a40] sm:$0xff]
    %v2663 = vld [vmem:[#allocation16 + $0x1a48] sm:$0xff]
    %v2664 = vld [vmem:[#allocation16 + $0x1a50] sm:$0xff]
    %v2665 = vld [vmem:[#allocation16 + $0x1a58] sm:$0xff]
    %v2666 = vld [vmem:[#allocation16 + $0x1a60] sm:$0xff]
    %v2667 = vld [vmem:[#allocation16 + $0x1a68] sm:$0xff]
    %v2668 = vld [vmem:[#allocation16 + $0x1a70] sm:$0xff]
    %v2669 = vld [vmem:[#allocation16 + $0x1a78] sm:$0xff]
    %v2670 = vld [vmem:[#allocation16 + $0x1a80] sm:$0xff]
    %v2671 = vld [vmem:[#allocation16 + $0x1a88] sm:$0xff]
    %v2672 = vld [vmem:[#allocation16 + $0x1a90] sm:$0xff]
    %v2673 = vld [vmem:[#allocation16 + $0x1a98] sm:$0xff]
    %v2674 = vld [vmem:[#allocation16 + $0x1aa0] sm:$0xff]
    %v2675 = vld [vmem:[#allocation16 + $0x1aa8] sm:$0xff]
    %v2676 = vld [vmem:[#allocation16 + $0x1ab0] sm:$0xff]
    %v2677 = vld [vmem:[#allocation16 + $0x1ab8] sm:$0xff]
    %v2678 = vld [vmem:[#allocation16 + $0x1ac0] sm:$0xff]
    %v2679 = vld [vmem:[#allocation16 + $0x1ac8] sm:$0xff]
    %v2680 = vld [vmem:[#allocation16 + $0x1ad0] sm:$0xff]
    %v2681 = vld [vmem:[#allocation16 + $0x1ad8] sm:$0xff]
    %v2682 = vld [vmem:[#allocation16 + $0x1ae0] sm:$0xff]
    %v2683 = vld [vmem:[#allocation16 + $0x1ae8] sm:$0xff]
    %v2684 = vld [vmem:[#allocation16 + $0x1af0] sm:$0xff]
    %v2685 = vld [vmem:[#allocation16 + $0x1af8] sm:$0xff]
    %v2686 = vld [vmem:[#allocation16 + $0x1b00] sm:$0xff]
    %v2687 = vld [vmem:[#allocation16 + $0x1b08] sm:$0xff]
    %v2688 = vld [vmem:[#allocation16 + $0x1b10] sm:$0xff]
    %v2689 = vld [vmem:[#allocation16 + $0x1b18] sm:$0xff]
    %v2690 = vld [vmem:[#allocation16 + $0x1b20] sm:$0xff]
    %v2691 = vld [vmem:[#allocation16 + $0x1b28] sm:$0xff]
    %v2692 = vld [vmem:[#allocation16 + $0x1b30] sm:$0xff]
    %v2693 = vld [vmem:[#allocation16 + $0x1b38] sm:$0xff]
    %v2694 = vld [vmem:[#allocation16 + $0x1b40] sm:$0xff]
    %v2695 = vld [vmem:[#allocation16 + $0x1b48] sm:$0xff]
    %v2696 = vld [vmem:[#allocation16 + $0x1b50] sm:$0xff]
    %v2697 = vld [vmem:[#allocation16 + $0x1b58] sm:$0xff]
    %v2698 = vld [vmem:[#allocation16 + $0x1b60] sm:$0xff]
    %v2699 = vld [vmem:[#allocation16 + $0x1b68] sm:$0xff]
    %v2700 = vld [vmem:[#allocation16 + $0x1b70] sm:$0xff]
    %v2701 = vld [vmem:[#allocation16 + $0x1b78] sm:$0xff]
    %v2702 = vld [vmem:[#allocation16 + $0x1b80] sm:$0xff]
    %v2703 = vld [vmem:[#allocation16 + $0x1b88] sm:$0xff]
    %v2704 = vld [vmem:[#allocation16 + $0x1b90] sm:$0xff]
    %v2705 = vld [vmem:[#allocation16 + $0x1b98] sm:$0xff]
    %v2706 = vld [vmem:[#allocation16 + $0x1ba0] sm:$0xff]
    %v2707 = vld [vmem:[#allocation16 + $0x1ba8] sm:$0xff]
    %v2708 = vld [vmem:[#allocation16 + $0x1bb0] sm:$0xff]
    %v2709 = vld [vmem:[#allocation16 + $0x1bb8] sm:$0xff]
    %v2710 = vld [vmem:[#allocation16 + $0x1bc0] sm:$0xff]
    %v2711 = vld [vmem:[#allocation16 + $0x1bc8] sm:$0xff]
    %v2712 = vld [vmem:[#allocation16 + $0x1bd0] sm:$0xff]
    %v2713 = vld [vmem:[#allocation16 + $0x1bd8] sm:$0xff]
    %v2714 = vld [vmem:[#allocation16 + $0x1be0] sm:$0xff]
    %v2715 = vld [vmem:[#allocation16 + $0x1be8] sm:$0xff]
    %v2716 = vld [vmem:[#allocation16 + $0x1bf0] sm:$0xff]
    %v2717 = vld [vmem:[#allocation16 + $0x1bf8] sm:$0xff]
    %v2718 = vld [vmem:[#allocation16 + $0x1c00] sm:$0xff]
    %v2719 = vld [vmem:[#allocation16 + $0x1c08] sm:$0xff]
    %v2720 = vld [vmem:[#allocation16 + $0x1c10] sm:$0xff]
    %v2721 = vld [vmem:[#allocation16 + $0x1c18] sm:$0xff]
    %v2722 = vld [vmem:[#allocation16 + $0x1c20] sm:$0xff]
    %v2723 = vld [vmem:[#allocation16 + $0x1c28] sm:$0xff]
    %v2724 = vld [vmem:[#allocation16 + $0x1c30] sm:$0xff]
    %v2725 = vld [vmem:[#allocation16 + $0x1c38] sm:$0xff]
    %v2726 = vld [vmem:[#allocation16 + $0x1c40] sm:$0xff]
    %v2727 = vld [vmem:[#allocation16 + $0x1c48] sm:$0xff]
    %v2728 = vld [vmem:[#allocation16 + $0x1c50] sm:$0xff]
    %v2729 = vld [vmem:[#allocation16 + $0x1c58] sm:$0xff]
    %v2730 = vld [vmem:[#allocation16 + $0x1c60] sm:$0xff]
    %v2731 = vld [vmem:[#allocation16 + $0x1c68] sm:$0xff]
    %v2732 = vld [vmem:[#allocation16 + $0x1c70] sm:$0xff]
    %v2733 = vld [vmem:[#allocation16 + $0x1c78] sm:$0xff]
    %v2734 = vld [vmem:[#allocation16 + $0x1c80] sm:$0xff]
    %v2735 = vld [vmem:[#allocation16 + $0x1c88] sm:$0xff]
    %v2736 = vld [vmem:[#allocation16 + $0x1c90] sm:$0xff]
    %v2737 = vld [vmem:[#allocation16 + $0x1c98] sm:$0xff]
    %v2738 = vld [vmem:[#allocation16 + $0x1ca0] sm:$0xff]
    %v2739 = vld [vmem:[#allocation16 + $0x1ca8] sm:$0xff]
    %v2740 = vld [vmem:[#allocation16 + $0x1cb0] sm:$0xff]
    %v2741 = vld [vmem:[#allocation16 + $0x1cb8] sm:$0xff]
    %v2742 = vld [vmem:[#allocation16 + $0x1cc0] sm:$0xff]
    %v2743 = vld [vmem:[#allocation16 + $0x1cc8] sm:$0xff]
    %v2744 = vld [vmem:[#allocation16 + $0x1cd0] sm:$0xff]
    %v2745 = vld [vmem:[#allocation16 + $0x1cd8] sm:$0xff]
    %v2746 = vld [vmem:[#allocation16 + $0x1ce0] sm:$0xff]
    %v2747 = vld [vmem:[#allocation16 + $0x1ce8] sm:$0xff]
    %v2748 = vld [vmem:[#allocation16 + $0x1cf0] sm:$0xff]
    %v2749 = vld [vmem:[#allocation16 + $0x1cf8] sm:$0xff]
    %v2750 = vld [vmem:[#allocation16 + $0x1d00] sm:$0xff]
    %v2751 = vld [vmem:[#allocation16 + $0x1d08] sm:$0xff]
    %v2752 = vld [vmem:[#allocation16 + $0x1d10] sm:$0xff]
    %v2753 = vld [vmem:[#allocation16 + $0x1d18] sm:$0xff]
    %v2754 = vld [vmem:[#allocation16 + $0x1d20] sm:$0xff]
    %v2755 = vld [vmem:[#allocation16 + $0x1d28] sm:$0xff]
    %v2756 = vld [vmem:[#allocation16 + $0x1d30] sm:$0xff]
    %v2757 = vld [vmem:[#allocation16 + $0x1d38] sm:$0xff]
    %v2758 = vld [vmem:[#allocation16 + $0x1d40] sm:$0xff]
    %v2759 = vld [vmem:[#allocation16 + $0x1d48] sm:$0xff]
    %v2760 = vld [vmem:[#allocation16 + $0x1d50] sm:$0xff]
    %v2761 = vld [vmem:[#allocation16 + $0x1d58] sm:$0xff]
    %v2762 = vld [vmem:[#allocation16 + $0x1d60] sm:$0xff]
    %v2763 = vld [vmem:[#allocation16 + $0x1d68] sm:$0xff]
    %v2764 = vld [vmem:[#allocation16 + $0x1d70] sm:$0xff]
    %v2765 = vld [vmem:[#allocation16 + $0x1d78] sm:$0xff]
    %v2766 = vld [vmem:[#allocation16 + $0x1d80] sm:$0xff]
    %v2767 = vld [vmem:[#allocation16 + $0x1d88] sm:$0xff]
    %v2768 = vld [vmem:[#allocation16 + $0x1d90] sm:$0xff]
    %v2769 = vld [vmem:[#allocation16 + $0x1d98] sm:$0xff]
    %v2770 = vld [vmem:[#allocation16 + $0x1da0] sm:$0xff]
    %v2771 = vld [vmem:[#allocation16 + $0x1da8] sm:$0xff]
    %v2772 = vld [vmem:[#allocation16 + $0x1db0] sm:$0xff]
    %v2773 = vld [vmem:[#allocation16 + $0x1db8] sm:$0xff]
    %v2774 = vld [vmem:[#allocation16 + $0x1dc0] sm:$0xff]
    %v2775 = vld [vmem:[#allocation16 + $0x1dc8] sm:$0xff]
    %v2776 = vld [vmem:[#allocation16 + $0x1dd0] sm:$0xff]
    %v2777 = vld [vmem:[#allocation16 + $0x1dd8] sm:$0xff]
    %v2778 = vld [vmem:[#allocation16 + $0x1de0] sm:$0xff]
    %v2779 = vld [vmem:[#allocation16 + $0x1de8] sm:$0xff]
    %v2780 = vld [vmem:[#allocation16 + $0x1df0] sm:$0xff]
    %v2781 = vld [vmem:[#allocation16 + $0x1df8] sm:$0xff]
    %v2782 = vld [vmem:[#allocation16 + $0x1e00] sm:$0xff]
    %v2783 = vld [vmem:[#allocation16 + $0x1e08] sm:$0xff]
    %v2784 = vld [vmem:[#allocation16 + $0x1e10] sm:$0xff]
    %v2785 = vld [vmem:[#allocation16 + $0x1e18] sm:$0xff]
    %v2786 = vld [vmem:[#allocation16 + $0x1e20] sm:$0xff]
    %v2787 = vld [vmem:[#allocation16 + $0x1e28] sm:$0xff]
    %v2788 = vld [vmem:[#allocation16 + $0x1e30] sm:$0xff]
    %v2789 = vld [vmem:[#allocation16 + $0x1e38] sm:$0xff]
    %v2790 = vld [vmem:[#allocation16 + $0x1e40] sm:$0xff]
    %v2791 = vld [vmem:[#allocation16 + $0x1e48] sm:$0xff]
    %v2792 = vld [vmem:[#allocation16 + $0x1e50] sm:$0xff]
    %v2793 = vld [vmem:[#allocation16 + $0x1e58] sm:$0xff]
    %v2794 = vld [vmem:[#allocation16 + $0x1e60] sm:$0xff]
    %v2795 = vld [vmem:[#allocation16 + $0x1e68] sm:$0xff]
    %v2796 = vld [vmem:[#allocation16 + $0x1e70] sm:$0xff]
    %v2797 = vld [vmem:[#allocation16 + $0x1e78] sm:$0xff]
    %v2798 = vld [vmem:[#allocation16 + $0x1e80] sm:$0xff]
    %v2799 = vld [vmem:[#allocation16 + $0x1e88] sm:$0xff]
    %v2800 = vld [vmem:[#allocation16 + $0x1e90] sm:$0xff]
    %v2801 = vld [vmem:[#allocation16 + $0x1e98] sm:$0xff]
    %v2802 = vld [vmem:[#allocation16 + $0x1ea0] sm:$0xff]
    %v2803 = vld [vmem:[#allocation16 + $0x1ea8] sm:$0xff]
    %v2804 = vld [vmem:[#allocation16 + $0x1eb0] sm:$0xff]
    %v2805 = vld [vmem:[#allocation16 + $0x1eb8] sm:$0xff]
    %v2806 = vld [vmem:[#allocation16 + $0x1ec0] sm:$0xff]
    %v2807 = vld [vmem:[#allocation16 + $0x1ec8] sm:$0xff]
    %v2808 = vld [vmem:[#allocation16 + $0x1ed0] sm:$0xff]
    %v2809 = vld [vmem:[#allocation16 + $0x1ed8] sm:$0xff]
    %v2810 = vld [vmem:[#allocation16 + $0x1ee0] sm:$0xff]
    %v2811 = vld [vmem:[#allocation16 + $0x1ee8] sm:$0xff]
    %v2812 = vld [vmem:[#allocation16 + $0x1ef0] sm:$0xff]
    %v2813 = vld [vmem:[#allocation16 + $0x1ef8] sm:$0xff]
    %v2814 = vld [vmem:[#allocation16 + $0x1f00] sm:$0xff]
    %v2815 = vld [vmem:[#allocation16 + $0x1f08] sm:$0xff]
    %v2816 = vld [vmem:[#allocation16 + $0x1f10] sm:$0xff]
    %v2817 = vld [vmem:[#allocation16 + $0x1f18] sm:$0xff]
    %v2818 = vld [vmem:[#allocation16 + $0x1f20] sm:$0xff]
    %v2819 = vld [vmem:[#allocation16 + $0x1f28] sm:$0xff]
    %v2820 = vld [vmem:[#allocation16 + $0x1f30] sm:$0xff]
    %v2821 = vld [vmem:[#allocation16 + $0x1f38] sm:$0xff]
    %v2822 = vld [vmem:[#allocation16 + $0x1f40] sm:$0xff]
    %v2823 = vld [vmem:[#allocation16 + $0x1f48] sm:$0xff]
    %v2824 = vld [vmem:[#allocation16 + $0x1f50] sm:$0xff]
    %v2825 = vld [vmem:[#allocation16 + $0x1f58] sm:$0xff]
    %v2826 = vld [vmem:[#allocation16 + $0x1f60] sm:$0xff]
    %v2827 = vld [vmem:[#allocation16 + $0x1f68] sm:$0xff]
    %v2828 = vld [vmem:[#allocation16 + $0x1f70] sm:$0xff]
    %v2829 = vld [vmem:[#allocation16 + $0x1f78] sm:$0xff]
    %v2830 = vld [vmem:[#allocation16 + $0x1f80] sm:$0xff]
    %v2831 = vld [vmem:[#allocation16 + $0x1f88] sm:$0xff]
    %v2832 = vld [vmem:[#allocation16 + $0x1f90] sm:$0xff]
    %v2833 = vld [vmem:[#allocation16 + $0x1f98] sm:$0xff]
    %v2834 = vld [vmem:[#allocation16 + $0x1fa0] sm:$0xff]
    %v2835 = vld [vmem:[#allocation16 + $0x1fa8] sm:$0xff]
    %v2836 = vld [vmem:[#allocation16 + $0x1fb0] sm:$0xff]
    %v2837 = vld [vmem:[#allocation16 + $0x1fb8] sm:$0xff]
    %v2838 = vld [vmem:[#allocation16 + $0x1fc0] sm:$0xff]
    %v2839 = vld [vmem:[#allocation16 + $0x1fc8] sm:$0xff]
    %v2840 = vld [vmem:[#allocation16 + $0x1fd0] sm:$0xff]
    %v2841 = vld [vmem:[#allocation16 + $0x1fd8] sm:$0xff]
    %v2842 = vld [vmem:[#allocation16 + $0x1fe0] sm:$0xff]
    %v2843 = vld [vmem:[#allocation16 + $0x1fe8] sm:$0xff]
    %v2844 = vld [vmem:[#allocation16 + $0x1ff0] sm:$0xff]
    %v2845 = vld [vmem:[#allocation16 + $0x1ff8] sm:$0xff]
    %v2846 = vld [vmem:[#allocation17] sm:$0xff]
    %v2848 = vlaneseq
    %v2849 = vshrl.u32 %v2848, 7
    %v2850 = vsub.s32 0, %v2849
    %v2851 = vrot.slane %v2846, %v2850
    %v2852 = vlaneseq
    %v2853 = vshrl.u32 %v2852, 7
    %v2854 = vsub.s32 1, %v2853
    %v2855 = vrot.slane %v2846, %v2854
    %v2856 = vlaneseq
    %v2857 = vshrl.u32 %v2856, 7
    %v2858 = vsub.s32 2, %v2857
    %v2859 = vrot.slane %v2846, %v2858
    %v2860 = vlaneseq
    %v2861 = vshrl.u32 %v2860, 7
    %v2862 = vsub.s32 3, %v2861
    %v2863 = vrot.slane %v2846, %v2862
    %v2864 = vlaneseq
    %v2865 = vshrl.u32 %v2864, 7
    %v2866 = vsub.s32 4, %v2865
    %v2867 = vrot.slane %v2846, %v2866
    %v2868 = vlaneseq
    %v2869 = vshrl.u32 %v2868, 7
    %v2870 = vsub.s32 5, %v2869
    %v2871 = vrot.slane %v2846, %v2870
    %v2872 = vlaneseq
    %v2873 = vshrl.u32 %v2872, 7
    %v2874 = vsub.s32 6, %v2873
    %v2875 = vrot.slane %v2846, %v2874
    %v2876 = vlaneseq
    %v2877 = vshrl.u32 %v2876, 7
    %v2878 = vsub.s32 7, %v2877
    %v2879 = vrot.slane %v2846, %v2878
    %v3912 = vunpack.c.l.b16 %v1822
    %v3913 = vunpack.c.h.b16 %v1822
    %v3914 = vunpack.c.l.b16 %v1823
    %v3915 = vunpack.c.h.b16 %v1823
    %v3916 = vunpack.c.l.b16 %v1824
    %v3917 = vunpack.c.h.b16 %v1824
    %v3918 = vunpack.c.l.b16 %v1825
    %v3919 = vunpack.c.h.b16 %v1825
    %v3920 = vunpack.c.l.b16 %v1826
    %v3921 = vunpack.c.h.b16 %v1826
    %v3922 = vunpack.c.l.b16 %v1827
    %v3923 = vunpack.c.h.b16 %v1827
    %v3924 = vunpack.c.l.b16 %v1828
    %v3925 = vunpack.c.h.b16 %v1828
    %v3926 = vunpack.c.l.b16 %v1829
    %v3927 = vunpack.c.h.b16 %v1829
    %v3928 = vunpack.c.l.b16 %v1830
    %v3929 = vunpack.c.h.b16 %v1830
    %v3930 = vunpack.c.l.b16 %v1831
    %v3931 = vunpack.c.h.b16 %v1831
    %v3932 = vunpack.c.l.b16 %v1832
    %v3933 = vunpack.c.h.b16 %v1832
    %v3934 = vunpack.c.l.b16 %v1833
    %v3935 = vunpack.c.h.b16 %v1833
    %v3936 = vunpack.c.l.b16 %v1834
    %v3937 = vunpack.c.h.b16 %v1834
    %v3938 = vunpack.c.l.b16 %v1835
    %v3939 = vunpack.c.h.b16 %v1835
    %v3940 = vunpack.c.l.b16 %v1836
    %v3941 = vunpack.c.h.b16 %v1836
    %v3942 = vunpack.c.l.b16 %v1837
    %v3943 = vunpack.c.h.b16 %v1837
    %v3944 = vunpack.c.l.b16 %v1838
    %v3945 = vunpack.c.h.b16 %v1838
    %v3946 = vunpack.c.l.b16 %v1839
    %v3947 = vunpack.c.h.b16 %v1839
    %v3948 = vunpack.c.l.b16 %v1840
    %v3949 = vunpack.c.h.b16 %v1840
    %v3950 = vunpack.c.l.b16 %v1841
    %v3951 = vunpack.c.h.b16 %v1841
    %v3952 = vunpack.c.l.b16 %v1842
    %v3953 = vunpack.c.h.b16 %v1842
    %v3954 = vunpack.c.l.b16 %v1843
    %v3955 = vunpack.c.h.b16 %v1843
    %v3956 = vunpack.c.l.b16 %v1844
    %v3957 = vunpack.c.h.b16 %v1844
    %v3958 = vunpack.c.l.b16 %v1845
    %v3959 = vunpack.c.h.b16 %v1845
    %v3960 = vunpack.c.l.b16 %v1846
    %v3961 = vunpack.c.h.b16 %v1846
    %v3962 = vunpack.c.l.b16 %v1847
    %v3963 = vunpack.c.h.b16 %v1847
    %v3964 = vunpack.c.l.b16 %v1848
    %v3965 = vunpack.c.h.b16 %v1848
    %v3966 = vunpack.c.l.b16 %v1849
    %v3967 = vunpack.c.h.b16 %v1849
    %v3968 = vunpack.c.l.b16 %v1850
    %v3969 = vunpack.c.h.b16 %v1850
    %v3970 = vunpack.c.l.b16 %v1851
    %v3971 = vunpack.c.h.b16 %v1851
    %v3972 = vunpack.c.l.b16 %v1852
    %v3973 = vunpack.c.h.b16 %v1852
    %v3974 = vunpack.c.l.b16 %v1853
    %v3975 = vunpack.c.h.b16 %v1853
    %v3976 = vunpack.c.l.b16 %v1854
    %v3977 = vunpack.c.h.b16 %v1854
    %v3978 = vunpack.c.l.b16 %v1855
    %v3979 = vunpack.c.h.b16 %v1855
    %v3980 = vunpack.c.l.b16 %v1856
    %v3981 = vunpack.c.h.b16 %v1856
    %v3982 = vunpack.c.l.b16 %v1857
    %v3983 = vunpack.c.h.b16 %v1857
    %v3984 = vunpack.c.l.b16 %v1858
    %v3985 = vunpack.c.h.b16 %v1858
    %v3986 = vunpack.c.l.b16 %v1859
    %v3987 = vunpack.c.h.b16 %v1859
    %v3988 = vunpack.c.l.b16 %v1860
    %v3989 = vunpack.c.h.b16 %v1860
    %v3990 = vunpack.c.l.b16 %v1861
    %v3991 = vunpack.c.h.b16 %v1861
    %v3992 = vunpack.c.l.b16 %v1862
    %v3993 = vunpack.c.h.b16 %v1862
    %v3994 = vunpack.c.l.b16 %v1863
    %v3995 = vunpack.c.h.b16 %v1863
    %v3996 = vunpack.c.l.b16 %v1864
    %v3997 = vunpack.c.h.b16 %v1864
    %v3998 = vunpack.c.l.b16 %v1865
    %v3999 = vunpack.c.h.b16 %v1865
    %v4000 = vunpack.c.l.b16 %v1866
    %v4001 = vunpack.c.h.b16 %v1866
    %v4002 = vunpack.c.l.b16 %v1867
    %v4003 = vunpack.c.h.b16 %v1867
    %v4004 = vunpack.c.l.b16 %v1868
    %v4005 = vunpack.c.h.b16 %v1868
    %v4006 = vunpack.c.l.b16 %v1869
    %v4007 = vunpack.c.h.b16 %v1869
    %v4008 = vunpack.c.l.b16 %v1870
    %v4009 = vunpack.c.h.b16 %v1870
    %v4010 = vunpack.c.l.b16 %v1871
    %v4011 = vunpack.c.h.b16 %v1871
    %v4012 = vunpack.c.l.b16 %v1872
    %v4013 = vunpack.c.h.b16 %v1872
    %v4014 = vunpack.c.l.b16 %v1873
    %v4015 = vunpack.c.h.b16 %v1873
    %v4016 = vunpack.c.l.b16 %v1874
    %v4017 = vunpack.c.h.b16 %v1874
    %v4018 = vunpack.c.l.b16 %v1875
    %v4019 = vunpack.c.h.b16 %v1875
    %v4020 = vunpack.c.l.b16 %v1876
    %v4021 = vunpack.c.h.b16 %v1876
    %v4022 = vunpack.c.l.b16 %v1877
    %v4023 = vunpack.c.h.b16 %v1877
    %v4024 = vunpack.c.l.b16 %v1878
    %v4025 = vunpack.c.h.b16 %v1878
    %v4026 = vunpack.c.l.b16 %v1879
    %v4027 = vunpack.c.h.b16 %v1879
    %v4028 = vunpack.c.l.b16 %v1880
    %v4029 = vunpack.c.h.b16 %v1880
    %v4030 = vunpack.c.l.b16 %v1881
    %v4031 = vunpack.c.h.b16 %v1881
    %v4032 = vunpack.c.l.b16 %v1882
    %v4033 = vunpack.c.h.b16 %v1882
    %v4034 = vunpack.c.l.b16 %v1883
    %v4035 = vunpack.c.h.b16 %v1883
    %v4036 = vunpack.c.l.b16 %v1884
    %v4037 = vunpack.c.h.b16 %v1884
    %v4038 = vunpack.c.l.b16 %v1885
    %v4039 = vunpack.c.h.b16 %v1885
    %v4040 = vunpack.c.l.b16 %v1886
    %v4041 = vunpack.c.h.b16 %v1886
    %v4042 = vunpack.c.l.b16 %v1887
    %v4043 = vunpack.c.h.b16 %v1887
    %v4044 = vunpack.c.l.b16 %v1888
    %v4045 = vunpack.c.h.b16 %v1888
    %v4046 = vunpack.c.l.b16 %v1889
    %v4047 = vunpack.c.h.b16 %v1889
    %v4048 = vunpack.c.l.b16 %v1890
    %v4049 = vunpack.c.h.b16 %v1890
    %v4050 = vunpack.c.l.b16 %v1891
    %v4051 = vunpack.c.h.b16 %v1891
    %v4052 = vunpack.c.l.b16 %v1892
    %v4053 = vunpack.c.h.b16 %v1892
    %v4054 = vunpack.c.l.b16 %v1893
    %v4055 = vunpack.c.h.b16 %v1893
    %v4056 = vunpack.c.l.b16 %v1894
    %v4057 = vunpack.c.h.b16 %v1894
    %v4058 = vunpack.c.l.b16 %v1895
    %v4059 = vunpack.c.h.b16 %v1895
    %v4060 = vunpack.c.l.b16 %v1896
    %v4061 = vunpack.c.h.b16 %v1896
    %v4062 = vunpack.c.l.b16 %v1897
    %v4063 = vunpack.c.h.b16 %v1897
    %v4064 = vunpack.c.l.b16 %v1898
    %v4065 = vunpack.c.h.b16 %v1898
    %v4066 = vunpack.c.l.b16 %v1899
    %v4067 = vunpack.c.h.b16 %v1899
    %v4068 = vunpack.c.l.b16 %v1900
    %v4069 = vunpack.c.h.b16 %v1900
    %v4070 = vunpack.c.l.b16 %v1901
    %v4071 = vunpack.c.h.b16 %v1901
    %v4072 = vunpack.c.l.b16 %v1902
    %v4073 = vunpack.c.h.b16 %v1902
    %v4074 = vunpack.c.l.b16 %v1903
    %v4075 = vunpack.c.h.b16 %v1903
    %v4076 = vunpack.c.l.b16 %v1904
    %v4077 = vunpack.c.h.b16 %v1904
    %v4078 = vunpack.c.l.b16 %v1905
    %v4079 = vunpack.c.h.b16 %v1905
    %v4080 = vunpack.c.l.b16 %v1906
    %v4081 = vunpack.c.h.b16 %v1906
    %v4082 = vunpack.c.l.b16 %v1907
    %v4083 = vunpack.c.h.b16 %v1907
    %v4084 = vunpack.c.l.b16 %v1908
    %v4085 = vunpack.c.h.b16 %v1908
    %v4086 = vunpack.c.l.b16 %v1909
    %v4087 = vunpack.c.h.b16 %v1909
    %v4088 = vunpack.c.l.b16 %v1910
    %v4089 = vunpack.c.h.b16 %v1910
    %v4090 = vunpack.c.l.b16 %v1911
    %v4091 = vunpack.c.h.b16 %v1911
    %v4092 = vunpack.c.l.b16 %v1912
    %v4093 = vunpack.c.h.b16 %v1912
    %v4094 = vunpack.c.l.b16 %v1913
    %v4095 = vunpack.c.h.b16 %v1913
    %v4096 = vunpack.c.l.b16 %v1914
    %v4097 = vunpack.c.h.b16 %v1914
    %v4098 = vunpack.c.l.b16 %v1915
    %v4099 = vunpack.c.h.b16 %v1915
    %v4100 = vunpack.c.l.b16 %v1916
    %v4101 = vunpack.c.h.b16 %v1916
    %v4102 = vunpack.c.l.b16 %v1917
    %v4103 = vunpack.c.h.b16 %v1917
    %v4104 = vunpack.c.l.b16 %v1918
    %v4105 = vunpack.c.h.b16 %v1918
    %v4106 = vunpack.c.l.b16 %v1919
    %v4107 = vunpack.c.h.b16 %v1919
    %v4108 = vunpack.c.l.b16 %v1920
    %v4109 = vunpack.c.h.b16 %v1920
    %v4110 = vunpack.c.l.b16 %v1921
    %v4111 = vunpack.c.h.b16 %v1921
    %v4112 = vunpack.c.l.b16 %v1922
    %v4113 = vunpack.c.h.b16 %v1922
    %v4114 = vunpack.c.l.b16 %v1923
    %v4115 = vunpack.c.h.b16 %v1923
    %v4116 = vunpack.c.l.b16 %v1924
    %v4117 = vunpack.c.h.b16 %v1924
    %v4118 = vunpack.c.l.b16 %v1925
    %v4119 = vunpack.c.h.b16 %v1925
    %v4120 = vunpack.c.l.b16 %v1926
    %v4121 = vunpack.c.h.b16 %v1926
    %v4122 = vunpack.c.l.b16 %v1927
    %v4123 = vunpack.c.h.b16 %v1927
    %v4124 = vunpack.c.l.b16 %v1928
    %v4125 = vunpack.c.h.b16 %v1928
    %v4126 = vunpack.c.l.b16 %v1929
    %v4127 = vunpack.c.h.b16 %v1929
    %v4128 = vunpack.c.l.b16 %v1930
    %v4129 = vunpack.c.h.b16 %v1930
    %v4130 = vunpack.c.l.b16 %v1931
    %v4131 = vunpack.c.h.b16 %v1931
    %v4132 = vunpack.c.l.b16 %v1932
    %v4133 = vunpack.c.h.b16 %v1932
    %v4134 = vunpack.c.l.b16 %v1933
    %v4135 = vunpack.c.h.b16 %v1933
    %v4136 = vunpack.c.l.b16 %v1934
    %v4137 = vunpack.c.h.b16 %v1934
    %v4138 = vunpack.c.l.b16 %v1935
    %v4139 = vunpack.c.h.b16 %v1935
    %v4140 = vunpack.c.l.b16 %v1936
    %v4141 = vunpack.c.h.b16 %v1936
    %v4142 = vunpack.c.l.b16 %v1937
    %v4143 = vunpack.c.h.b16 %v1937
    %v4144 = vunpack.c.l.b16 %v1938
    %v4145 = vunpack.c.h.b16 %v1938
    %v4146 = vunpack.c.l.b16 %v1939
    %v4147 = vunpack.c.h.b16 %v1939
    %v4148 = vunpack.c.l.b16 %v1940
    %v4149 = vunpack.c.h.b16 %v1940
    %v4150 = vunpack.c.l.b16 %v1941
    %v4151 = vunpack.c.h.b16 %v1941
    %v4152 = vunpack.c.l.b16 %v1942
    %v4153 = vunpack.c.h.b16 %v1942
    %v4154 = vunpack.c.l.b16 %v1943
    %v4155 = vunpack.c.h.b16 %v1943
    %v4156 = vunpack.c.l.b16 %v1944
    %v4157 = vunpack.c.h.b16 %v1944
    %v4158 = vunpack.c.l.b16 %v1945
    %v4159 = vunpack.c.h.b16 %v1945
    %v4160 = vunpack.c.l.b16 %v1946
    %v4161 = vunpack.c.h.b16 %v1946
    %v4162 = vunpack.c.l.b16 %v1947
    %v4163 = vunpack.c.h.b16 %v1947
    %v4164 = vunpack.c.l.b16 %v1948
    %v4165 = vunpack.c.h.b16 %v1948
    %v4166 = vunpack.c.l.b16 %v1949
    %v4167 = vunpack.c.h.b16 %v1949
    %v4168 = vunpack.c.l.b16 %v1950
    %v4169 = vunpack.c.h.b16 %v1950
    %v4170 = vunpack.c.l.b16 %v1951
    %v4171 = vunpack.c.h.b16 %v1951
    %v4172 = vunpack.c.l.b16 %v1952
    %v4173 = vunpack.c.h.b16 %v1952
    %v4174 = vunpack.c.l.b16 %v1953
    %v4175 = vunpack.c.h.b16 %v1953
    %v4176 = vunpack.c.l.b16 %v1954
    %v4177 = vunpack.c.h.b16 %v1954
    %v4178 = vunpack.c.l.b16 %v1955
    %v4179 = vunpack.c.h.b16 %v1955
    %v4180 = vunpack.c.l.b16 %v1956
    %v4181 = vunpack.c.h.b16 %v1956
    %v4182 = vunpack.c.l.b16 %v1957
    %v4183 = vunpack.c.h.b16 %v1957
    %v4184 = vunpack.c.l.b16 %v1958
    %v4185 = vunpack.c.h.b16 %v1958
    %v4186 = vunpack.c.l.b16 %v1959
    %v4187 = vunpack.c.h.b16 %v1959
    %v4188 = vunpack.c.l.b16 %v1960
    %v4189 = vunpack.c.h.b16 %v1960
    %v4190 = vunpack.c.l.b16 %v1961
    %v4191 = vunpack.c.h.b16 %v1961
    %v4192 = vunpack.c.l.b16 %v1962
    %v4193 = vunpack.c.h.b16 %v1962
    %v4194 = vunpack.c.l.b16 %v1963
    %v4195 = vunpack.c.h.b16 %v1963
    %v4196 = vunpack.c.l.b16 %v1964
    %v4197 = vunpack.c.h.b16 %v1964
    %v4198 = vunpack.c.l.b16 %v1965
    %v4199 = vunpack.c.h.b16 %v1965
    %v4200 = vunpack.c.l.b16 %v1966
    %v4201 = vunpack.c.h.b16 %v1966
    %v4202 = vunpack.c.l.b16 %v1967
    %v4203 = vunpack.c.h.b16 %v1967
    %v4204 = vunpack.c.l.b16 %v1968
    %v4205 = vunpack.c.h.b16 %v1968
    %v4206 = vunpack.c.l.b16 %v1969
    %v4207 = vunpack.c.h.b16 %v1969
    %v4208 = vunpack.c.l.b16 %v1970
    %v4209 = vunpack.c.h.b16 %v1970
    %v4210 = vunpack.c.l.b16 %v1971
    %v4211 = vunpack.c.h.b16 %v1971
    %v4212 = vunpack.c.l.b16 %v1972
    %v4213 = vunpack.c.h.b16 %v1972
    %v4214 = vunpack.c.l.b16 %v1973
    %v4215 = vunpack.c.h.b16 %v1973
    %v4216 = vunpack.c.l.b16 %v1974
    %v4217 = vunpack.c.h.b16 %v1974
    %v4218 = vunpack.c.l.b16 %v1975
    %v4219 = vunpack.c.h.b16 %v1975
    %v4220 = vunpack.c.l.b16 %v1976
    %v4221 = vunpack.c.h.b16 %v1976
    %v4222 = vunpack.c.l.b16 %v1977
    %v4223 = vunpack.c.h.b16 %v1977
    %v4224 = vunpack.c.l.b16 %v1978
    %v4225 = vunpack.c.h.b16 %v1978
    %v4226 = vunpack.c.l.b16 %v1979
    %v4227 = vunpack.c.h.b16 %v1979
    %v4228 = vunpack.c.l.b16 %v1980
    %v4229 = vunpack.c.h.b16 %v1980
    %v4230 = vunpack.c.l.b16 %v1981
    %v4231 = vunpack.c.h.b16 %v1981
    %v4232 = vunpack.c.l.b16 %v1982
    %v4233 = vunpack.c.h.b16 %v1982
    %v4234 = vunpack.c.l.b16 %v1983
    %v4235 = vunpack.c.h.b16 %v1983
    %v4236 = vunpack.c.l.b16 %v1984
    %v4237 = vunpack.c.h.b16 %v1984
    %v4238 = vunpack.c.l.b16 %v1985
    %v4239 = vunpack.c.h.b16 %v1985
    %v4240 = vunpack.c.l.b16 %v1986
    %v4241 = vunpack.c.h.b16 %v1986
    %v4242 = vunpack.c.l.b16 %v1987
    %v4243 = vunpack.c.h.b16 %v1987
    %v4244 = vunpack.c.l.b16 %v1988
    %v4245 = vunpack.c.h.b16 %v1988
    %v4246 = vunpack.c.l.b16 %v1989
    %v4247 = vunpack.c.h.b16 %v1989
    %v4248 = vunpack.c.l.b16 %v1990
    %v4249 = vunpack.c.h.b16 %v1990
    %v4250 = vunpack.c.l.b16 %v1991
    %v4251 = vunpack.c.h.b16 %v1991
    %v4252 = vunpack.c.l.b16 %v1992
    %v4253 = vunpack.c.h.b16 %v1992
    %v4254 = vunpack.c.l.b16 %v1993
    %v4255 = vunpack.c.h.b16 %v1993
    %v4256 = vunpack.c.l.b16 %v1994
    %v4257 = vunpack.c.h.b16 %v1994
    %v4258 = vunpack.c.l.b16 %v1995
    %v4259 = vunpack.c.h.b16 %v1995
    %v4260 = vunpack.c.l.b16 %v1996
    %v4261 = vunpack.c.h.b16 %v1996
    %v4262 = vunpack.c.l.b16 %v1997
    %v4263 = vunpack.c.h.b16 %v1997
    %v4264 = vunpack.c.l.b16 %v1998
    %v4265 = vunpack.c.h.b16 %v1998
    %v4266 = vunpack.c.l.b16 %v1999
    %v4267 = vunpack.c.h.b16 %v1999
    %v4268 = vunpack.c.l.b16 %v2000
    %v4269 = vunpack.c.h.b16 %v2000
    %v4270 = vunpack.c.l.b16 %v2001
    %v4271 = vunpack.c.h.b16 %v2001
    %v4272 = vunpack.c.l.b16 %v2002
    %v4273 = vunpack.c.h.b16 %v2002
    %v4274 = vunpack.c.l.b16 %v2003
    %v4275 = vunpack.c.h.b16 %v2003
    %v4276 = vunpack.c.l.b16 %v2004
    %v4277 = vunpack.c.h.b16 %v2004
    %v4278 = vunpack.c.l.b16 %v2005
    %v4279 = vunpack.c.h.b16 %v2005
    %v4280 = vunpack.c.l.b16 %v2006
    %v4281 = vunpack.c.h.b16 %v2006
    %v4282 = vunpack.c.l.b16 %v2007
    %v4283 = vunpack.c.h.b16 %v2007
    %v4284 = vunpack.c.l.b16 %v2008
    %v4285 = vunpack.c.h.b16 %v2008
    %v4286 = vunpack.c.l.b16 %v2009
    %v4287 = vunpack.c.h.b16 %v2009
    %v4288 = vunpack.c.l.b16 %v2010
    %v4289 = vunpack.c.h.b16 %v2010
    %v4290 = vunpack.c.l.b16 %v2011
    %v4291 = vunpack.c.h.b16 %v2011
    %v4292 = vunpack.c.l.b16 %v2012
    %v4293 = vunpack.c.h.b16 %v2012
    %v4294 = vunpack.c.l.b16 %v2013
    %v4295 = vunpack.c.h.b16 %v2013
    %v4296 = vunpack.c.l.b16 %v2014
    %v4297 = vunpack.c.h.b16 %v2014
    %v4298 = vunpack.c.l.b16 %v2015
    %v4299 = vunpack.c.h.b16 %v2015
    %v4300 = vunpack.c.l.b16 %v2016
    %v4301 = vunpack.c.h.b16 %v2016
    %v4302 = vunpack.c.l.b16 %v2017
    %v4303 = vunpack.c.h.b16 %v2017
    %v4304 = vunpack.c.l.b16 %v2018
    %v4305 = vunpack.c.h.b16 %v2018
    %v4306 = vunpack.c.l.b16 %v2019
    %v4307 = vunpack.c.h.b16 %v2019
    %v4308 = vunpack.c.l.b16 %v2020
    %v4309 = vunpack.c.h.b16 %v2020
    %v4310 = vunpack.c.l.b16 %v2021
    %v4311 = vunpack.c.h.b16 %v2021
    %v4312 = vunpack.c.l.b16 %v2022
    %v4313 = vunpack.c.h.b16 %v2022
    %v4314 = vunpack.c.l.b16 %v2023
    %v4315 = vunpack.c.h.b16 %v2023
    %v4316 = vunpack.c.l.b16 %v2024
    %v4317 = vunpack.c.h.b16 %v2024
    %v4318 = vunpack.c.l.b16 %v2025
    %v4319 = vunpack.c.h.b16 %v2025
    %v4320 = vunpack.c.l.b16 %v2026
    %v4321 = vunpack.c.h.b16 %v2026
    %v4322 = vunpack.c.l.b16 %v2027
    %v4323 = vunpack.c.h.b16 %v2027
    %v4324 = vunpack.c.l.b16 %v2028
    %v4325 = vunpack.c.h.b16 %v2028
    %v4326 = vunpack.c.l.b16 %v2029
    %v4327 = vunpack.c.h.b16 %v2029
    %v4328 = vunpack.c.l.b16 %v2030
    %v4329 = vunpack.c.h.b16 %v2030
    %v4330 = vunpack.c.l.b16 %v2031
    %v4331 = vunpack.c.h.b16 %v2031
    %v4332 = vunpack.c.l.b16 %v2032
    %v4333 = vunpack.c.h.b16 %v2032
    %v4334 = vunpack.c.l.b16 %v2033
    %v4335 = vunpack.c.h.b16 %v2033
    %v4336 = vunpack.c.l.b16 %v2034
    %v4337 = vunpack.c.h.b16 %v2034
    %v4338 = vunpack.c.l.b16 %v2035
    %v4339 = vunpack.c.h.b16 %v2035
    %v4340 = vunpack.c.l.b16 %v2036
    %v4341 = vunpack.c.h.b16 %v2036
    %v4342 = vunpack.c.l.b16 %v2037
    %v4343 = vunpack.c.h.b16 %v2037
    %v4344 = vunpack.c.l.b16 %v2038
    %v4345 = vunpack.c.h.b16 %v2038
    %v4346 = vunpack.c.l.b16 %v2039
    %v4347 = vunpack.c.h.b16 %v2039
    %v4348 = vunpack.c.l.b16 %v2040
    %v4349 = vunpack.c.h.b16 %v2040
    %v4350 = vunpack.c.l.b16 %v2041
    %v4351 = vunpack.c.h.b16 %v2041
    %v4352 = vunpack.c.l.b16 %v2042
    %v4353 = vunpack.c.h.b16 %v2042
    %v4354 = vunpack.c.l.b16 %v2043
    %v4355 = vunpack.c.h.b16 %v2043
    %v4356 = vunpack.c.l.b16 %v2044
    %v4357 = vunpack.c.h.b16 %v2044
    %v4358 = vunpack.c.l.b16 %v2045
    %v4359 = vunpack.c.h.b16 %v2045
    %v4360 = vunpack.c.l.b16 %v2046
    %v4361 = vunpack.c.h.b16 %v2046
    %v4362 = vunpack.c.l.b16 %v2047
    %v4363 = vunpack.c.h.b16 %v2047
    %v4364 = vunpack.c.l.b16 %v2048
    %v4365 = vunpack.c.h.b16 %v2048
    %v4366 = vunpack.c.l.b16 %v2049
    %v4367 = vunpack.c.h.b16 %v2049
    %v4368 = vunpack.c.l.b16 %v2050
    %v4369 = vunpack.c.h.b16 %v2050
    %v4370 = vunpack.c.l.b16 %v2051
    %v4371 = vunpack.c.h.b16 %v2051
    %v4372 = vunpack.c.l.b16 %v2052
    %v4373 = vunpack.c.h.b16 %v2052
    %v4374 = vunpack.c.l.b16 %v2053
    %v4375 = vunpack.c.h.b16 %v2053
    %v4376 = vunpack.c.l.b16 %v2054
    %v4377 = vunpack.c.h.b16 %v2054
    %v4378 = vunpack.c.l.b16 %v2055
    %v4379 = vunpack.c.h.b16 %v2055
    %v4380 = vunpack.c.l.b16 %v2056
    %v4381 = vunpack.c.h.b16 %v2056
    %v4382 = vunpack.c.l.b16 %v2057
    %v4383 = vunpack.c.h.b16 %v2057
    %v4384 = vunpack.c.l.b16 %v2058
    %v4385 = vunpack.c.h.b16 %v2058
    %v4386 = vunpack.c.l.b16 %v2059
    %v4387 = vunpack.c.h.b16 %v2059
    %v4388 = vunpack.c.l.b16 %v2060
    %v4389 = vunpack.c.h.b16 %v2060
    %v4390 = vunpack.c.l.b16 %v2061
    %v4391 = vunpack.c.h.b16 %v2061
    %v4392 = vunpack.c.l.b16 %v2062
    %v4393 = vunpack.c.h.b16 %v2062
    %v4394 = vunpack.c.l.b16 %v2063
    %v4395 = vunpack.c.h.b16 %v2063
    %v4396 = vunpack.c.l.b16 %v2064
    %v4397 = vunpack.c.h.b16 %v2064
    %v4398 = vunpack.c.l.b16 %v2065
    %v4399 = vunpack.c.h.b16 %v2065
    %v4400 = vunpack.c.l.b16 %v2066
    %v4401 = vunpack.c.h.b16 %v2066
    %v4402 = vunpack.c.l.b16 %v2067
    %v4403 = vunpack.c.h.b16 %v2067
    %v4404 = vunpack.c.l.b16 %v2068
    %v4405 = vunpack.c.h.b16 %v2068
    %v4406 = vunpack.c.l.b16 %v2069
    %v4407 = vunpack.c.h.b16 %v2069
    %v4408 = vunpack.c.l.b16 %v2070
    %v4409 = vunpack.c.h.b16 %v2070
    %v4410 = vunpack.c.l.b16 %v2071
    %v4411 = vunpack.c.h.b16 %v2071
    %v4412 = vunpack.c.l.b16 %v2072
    %v4413 = vunpack.c.h.b16 %v2072
    %v4414 = vunpack.c.l.b16 %v2073
    %v4415 = vunpack.c.h.b16 %v2073
    %v4416 = vunpack.c.l.b16 %v2074
    %v4417 = vunpack.c.h.b16 %v2074
    %v4418 = vunpack.c.l.b16 %v2075
    %v4419 = vunpack.c.h.b16 %v2075
    %v4420 = vunpack.c.l.b16 %v2076
    %v4421 = vunpack.c.h.b16 %v2076
    %v4422 = vunpack.c.l.b16 %v2077
    %v4423 = vunpack.c.h.b16 %v2077
    %v4424 = vunpack.c.l.b16 %v2078
    %v4425 = vunpack.c.h.b16 %v2078
    %v4426 = vunpack.c.l.b16 %v2079
    %v4427 = vunpack.c.h.b16 %v2079
    %v4428 = vunpack.c.l.b16 %v2080
    %v4429 = vunpack.c.h.b16 %v2080
    %v4430 = vunpack.c.l.b16 %v2081
    %v4431 = vunpack.c.h.b16 %v2081
    %v4432 = vunpack.c.l.b16 %v2082
    %v4433 = vunpack.c.h.b16 %v2082
    %v4434 = vunpack.c.l.b16 %v2083
    %v4435 = vunpack.c.h.b16 %v2083
    %v4436 = vunpack.c.l.b16 %v2084
    %v4437 = vunpack.c.h.b16 %v2084
    %v4438 = vunpack.c.l.b16 %v2085
    %v4439 = vunpack.c.h.b16 %v2085
    %v4440 = vunpack.c.l.b16 %v2086
    %v4441 = vunpack.c.h.b16 %v2086
    %v4442 = vunpack.c.l.b16 %v2087
    %v4443 = vunpack.c.h.b16 %v2087
    %v4444 = vunpack.c.l.b16 %v2088
    %v4445 = vunpack.c.h.b16 %v2088
    %v4446 = vunpack.c.l.b16 %v2089
    %v4447 = vunpack.c.h.b16 %v2089
    %v4448 = vunpack.c.l.b16 %v2090
    %v4449 = vunpack.c.h.b16 %v2090
    %v4450 = vunpack.c.l.b16 %v2091
    %v4451 = vunpack.c.h.b16 %v2091
    %v4452 = vunpack.c.l.b16 %v2092
    %v4453 = vunpack.c.h.b16 %v2092
    %v4454 = vunpack.c.l.b16 %v2093
    %v4455 = vunpack.c.h.b16 %v2093
    %v4456 = vunpack.c.l.b16 %v2094
    %v4457 = vunpack.c.h.b16 %v2094
    %v4458 = vunpack.c.l.b16 %v2095
    %v4459 = vunpack.c.h.b16 %v2095
    %v4460 = vunpack.c.l.b16 %v2096
    %v4461 = vunpack.c.h.b16 %v2096
    %v4462 = vunpack.c.l.b16 %v2097
    %v4463 = vunpack.c.h.b16 %v2097
    %v4464 = vunpack.c.l.b16 %v2098
    %v4465 = vunpack.c.h.b16 %v2098
    %v4466 = vunpack.c.l.b16 %v2099
    %v4467 = vunpack.c.h.b16 %v2099
    %v4468 = vunpack.c.l.b16 %v2100
    %v4469 = vunpack.c.h.b16 %v2100
    %v4470 = vunpack.c.l.b16 %v2101
    %v4471 = vunpack.c.h.b16 %v2101
    %v4472 = vunpack.c.l.b16 %v2102
    %v4473 = vunpack.c.h.b16 %v2102
    %v4474 = vunpack.c.l.b16 %v2103
    %v4475 = vunpack.c.h.b16 %v2103
    %v4476 = vunpack.c.l.b16 %v2104
    %v4477 = vunpack.c.h.b16 %v2104
    %v4478 = vunpack.c.l.b16 %v2105
    %v4479 = vunpack.c.h.b16 %v2105
    %v4480 = vunpack.c.l.b16 %v2106
    %v4481 = vunpack.c.h.b16 %v2106
    %v4482 = vunpack.c.l.b16 %v2107
    %v4483 = vunpack.c.h.b16 %v2107
    %v4484 = vunpack.c.l.b16 %v2108
    %v4485 = vunpack.c.h.b16 %v2108
    %v4486 = vunpack.c.l.b16 %v2109
    %v4487 = vunpack.c.h.b16 %v2109
    %v4488 = vunpack.c.l.b16 %v2110
    %v4489 = vunpack.c.h.b16 %v2110
    %v4490 = vunpack.c.l.b16 %v2111
    %v4491 = vunpack.c.h.b16 %v2111
    %v4492 = vunpack.c.l.b16 %v2112
    %v4493 = vunpack.c.h.b16 %v2112
    %v4494 = vunpack.c.l.b16 %v2113
    %v4495 = vunpack.c.h.b16 %v2113
    %v4496 = vunpack.c.l.b16 %v2114
    %v4497 = vunpack.c.h.b16 %v2114
    %v4498 = vunpack.c.l.b16 %v2115
    %v4499 = vunpack.c.h.b16 %v2115
    %v4500 = vunpack.c.l.b16 %v2116
    %v4501 = vunpack.c.h.b16 %v2116
    %v4502 = vunpack.c.l.b16 %v2117
    %v4503 = vunpack.c.h.b16 %v2117
    %v4504 = vunpack.c.l.b16 %v2118
    %v4505 = vunpack.c.h.b16 %v2118
    %v4506 = vunpack.c.l.b16 %v2119
    %v4507 = vunpack.c.h.b16 %v2119
    %v4508 = vunpack.c.l.b16 %v2120
    %v4509 = vunpack.c.h.b16 %v2120
    %v4510 = vunpack.c.l.b16 %v2121
    %v4511 = vunpack.c.h.b16 %v2121
    %v4512 = vunpack.c.l.b16 %v2122
    %v4513 = vunpack.c.h.b16 %v2122
    %v4514 = vunpack.c.l.b16 %v2123
    %v4515 = vunpack.c.h.b16 %v2123
    %v4516 = vunpack.c.l.b16 %v2124
    %v4517 = vunpack.c.h.b16 %v2124
    %v4518 = vunpack.c.l.b16 %v2125
    %v4519 = vunpack.c.h.b16 %v2125
    %v4520 = vunpack.c.l.b16 %v2126
    %v4521 = vunpack.c.h.b16 %v2126
    %v4522 = vunpack.c.l.b16 %v2127
    %v4523 = vunpack.c.h.b16 %v2127
    %v4524 = vunpack.c.l.b16 %v2128
    %v4525 = vunpack.c.h.b16 %v2128
    %v4526 = vunpack.c.l.b16 %v2129
    %v4527 = vunpack.c.h.b16 %v2129
    %v4528 = vunpack.c.l.b16 %v2130
    %v4529 = vunpack.c.h.b16 %v2130
    %v4530 = vunpack.c.l.b16 %v2131
    %v4531 = vunpack.c.h.b16 %v2131
    %v4532 = vunpack.c.l.b16 %v2132
    %v4533 = vunpack.c.h.b16 %v2132
    %v4534 = vunpack.c.l.b16 %v2133
    %v4535 = vunpack.c.h.b16 %v2133
    %v4536 = vunpack.c.l.b16 %v2134
    %v4537 = vunpack.c.h.b16 %v2134
    %v4538 = vunpack.c.l.b16 %v2135
    %v4539 = vunpack.c.h.b16 %v2135
    %v4540 = vunpack.c.l.b16 %v2136
    %v4541 = vunpack.c.h.b16 %v2136
    %v4542 = vunpack.c.l.b16 %v2137
    %v4543 = vunpack.c.h.b16 %v2137
    %v4544 = vunpack.c.l.b16 %v2138
    %v4545 = vunpack.c.h.b16 %v2138
    %v4546 = vunpack.c.l.b16 %v2139
    %v4547 = vunpack.c.h.b16 %v2139
    %v4548 = vunpack.c.l.b16 %v2140
    %v4549 = vunpack.c.h.b16 %v2140
    %v4550 = vunpack.c.l.b16 %v2141
    %v4551 = vunpack.c.h.b16 %v2141
    %v4552 = vunpack.c.l.b16 %v2142
    %v4553 = vunpack.c.h.b16 %v2142
    %v4554 = vunpack.c.l.b16 %v2143
    %v4555 = vunpack.c.h.b16 %v2143
    %v4556 = vunpack.c.l.b16 %v2144
    %v4557 = vunpack.c.h.b16 %v2144
    %v4558 = vunpack.c.l.b16 %v2145
    %v4559 = vunpack.c.h.b16 %v2145
    %v4560 = vunpack.c.l.b16 %v2146
    %v4561 = vunpack.c.h.b16 %v2146
    %v4562 = vunpack.c.l.b16 %v2147
    %v4563 = vunpack.c.h.b16 %v2147
    %v4564 = vunpack.c.l.b16 %v2148
    %v4565 = vunpack.c.h.b16 %v2148
    %v4566 = vunpack.c.l.b16 %v2149
    %v4567 = vunpack.c.h.b16 %v2149
    %v4568 = vunpack.c.l.b16 %v2150
    %v4569 = vunpack.c.h.b16 %v2150
    %v4570 = vunpack.c.l.b16 %v2151
    %v4571 = vunpack.c.h.b16 %v2151
    %v4572 = vunpack.c.l.b16 %v2152
    %v4573 = vunpack.c.h.b16 %v2152
    %v4574 = vunpack.c.l.b16 %v2153
    %v4575 = vunpack.c.h.b16 %v2153
    %v4576 = vunpack.c.l.b16 %v2154
    %v4577 = vunpack.c.h.b16 %v2154
    %v4578 = vunpack.c.l.b16 %v2155
    %v4579 = vunpack.c.h.b16 %v2155
    %v4580 = vunpack.c.l.b16 %v2156
    %v4581 = vunpack.c.h.b16 %v2156
    %v4582 = vunpack.c.l.b16 %v2157
    %v4583 = vunpack.c.h.b16 %v2157
    %v4584 = vunpack.c.l.b16 %v2158
    %v4585 = vunpack.c.h.b16 %v2158
    %v4586 = vunpack.c.l.b16 %v2159
    %v4587 = vunpack.c.h.b16 %v2159
    %v4588 = vunpack.c.l.b16 %v2160
    %v4589 = vunpack.c.h.b16 %v2160
    %v4590 = vunpack.c.l.b16 %v2161
    %v4591 = vunpack.c.h.b16 %v2161
    %v4592 = vunpack.c.l.b16 %v2162
    %v4593 = vunpack.c.h.b16 %v2162
    %v4594 = vunpack.c.l.b16 %v2163
    %v4595 = vunpack.c.h.b16 %v2163
    %v4596 = vunpack.c.l.b16 %v2164
    %v4597 = vunpack.c.h.b16 %v2164
    %v4598 = vunpack.c.l.b16 %v2165
    %v4599 = vunpack.c.h.b16 %v2165
    %v4600 = vunpack.c.l.b16 %v2166
    %v4601 = vunpack.c.h.b16 %v2166
    %v4602 = vunpack.c.l.b16 %v2167
    %v4603 = vunpack.c.h.b16 %v2167
    %v4604 = vunpack.c.l.b16 %v2168
    %v4605 = vunpack.c.h.b16 %v2168
    %v4606 = vunpack.c.l.b16 %v2169
    %v4607 = vunpack.c.h.b16 %v2169
    %v4608 = vunpack.c.l.b16 %v2170
    %v4609 = vunpack.c.h.b16 %v2170
    %v4610 = vunpack.c.l.b16 %v2171
    %v4611 = vunpack.c.h.b16 %v2171
    %v4612 = vunpack.c.l.b16 %v2172
    %v4613 = vunpack.c.h.b16 %v2172
    %v4614 = vunpack.c.l.b16 %v2173
    %v4615 = vunpack.c.h.b16 %v2173
    %v4616 = vunpack.c.l.b16 %v2174
    %v4617 = vunpack.c.h.b16 %v2174
    %v4618 = vunpack.c.l.b16 %v2175
    %v4619 = vunpack.c.h.b16 %v2175
    %v4620 = vunpack.c.l.b16 %v2176
    %v4621 = vunpack.c.h.b16 %v2176
    %v4622 = vunpack.c.l.b16 %v2177
    %v4623 = vunpack.c.h.b16 %v2177
    %v4624 = vunpack.c.l.b16 %v2178
    %v4625 = vunpack.c.h.b16 %v2178
    %v4626 = vunpack.c.l.b16 %v2179
    %v4627 = vunpack.c.h.b16 %v2179
    %v4628 = vunpack.c.l.b16 %v2180
    %v4629 = vunpack.c.h.b16 %v2180
    %v4630 = vunpack.c.l.b16 %v2181
    %v4631 = vunpack.c.h.b16 %v2181
    %v4632 = vunpack.c.l.b16 %v2182
    %v4633 = vunpack.c.h.b16 %v2182
    %v4634 = vunpack.c.l.b16 %v2183
    %v4635 = vunpack.c.h.b16 %v2183
    %v4636 = vunpack.c.l.b16 %v2184
    %v4637 = vunpack.c.h.b16 %v2184
    %v4638 = vunpack.c.l.b16 %v2185
    %v4639 = vunpack.c.h.b16 %v2185
    %v4640 = vunpack.c.l.b16 %v2186
    %v4641 = vunpack.c.h.b16 %v2186
    %v4642 = vunpack.c.l.b16 %v2187
    %v4643 = vunpack.c.h.b16 %v2187
    %v4644 = vunpack.c.l.b16 %v2188
    %v4645 = vunpack.c.h.b16 %v2188
    %v4646 = vunpack.c.l.b16 %v2189
    %v4647 = vunpack.c.h.b16 %v2189
    %v4648 = vunpack.c.l.b16 %v2190
    %v4649 = vunpack.c.h.b16 %v2190
    %v4650 = vunpack.c.l.b16 %v2191
    %v4651 = vunpack.c.h.b16 %v2191
    %v4652 = vunpack.c.l.b16 %v2192
    %v4653 = vunpack.c.h.b16 %v2192
    %v4654 = vunpack.c.l.b16 %v2193
    %v4655 = vunpack.c.h.b16 %v2193
    %v4656 = vunpack.c.l.b16 %v2194
    %v4657 = vunpack.c.h.b16 %v2194
    %v4658 = vunpack.c.l.b16 %v2195
    %v4659 = vunpack.c.h.b16 %v2195
    %v4660 = vunpack.c.l.b16 %v2196
    %v4661 = vunpack.c.h.b16 %v2196
    %v4662 = vunpack.c.l.b16 %v2197
    %v4663 = vunpack.c.h.b16 %v2197
    %v4664 = vunpack.c.l.b16 %v2198
    %v4665 = vunpack.c.h.b16 %v2198
    %v4666 = vunpack.c.l.b16 %v2199
    %v4667 = vunpack.c.h.b16 %v2199
    %v4668 = vunpack.c.l.b16 %v2200
    %v4669 = vunpack.c.h.b16 %v2200
    %v4670 = vunpack.c.l.b16 %v2201
    %v4671 = vunpack.c.h.b16 %v2201
    %v4672 = vunpack.c.l.b16 %v2202
    %v4673 = vunpack.c.h.b16 %v2202
    %v4674 = vunpack.c.l.b16 %v2203
    %v4675 = vunpack.c.h.b16 %v2203
    %v4676 = vunpack.c.l.b16 %v2204
    %v4677 = vunpack.c.h.b16 %v2204
    %v4678 = vunpack.c.l.b16 %v2205
    %v4679 = vunpack.c.h.b16 %v2205
    %v4680 = vunpack.c.l.b16 %v2206
    %v4681 = vunpack.c.h.b16 %v2206
    %v4682 = vunpack.c.l.b16 %v2207
    %v4683 = vunpack.c.h.b16 %v2207
    %v4684 = vunpack.c.l.b16 %v2208
    %v4685 = vunpack.c.h.b16 %v2208
    %v4686 = vunpack.c.l.b16 %v2209
    %v4687 = vunpack.c.h.b16 %v2209
    %v4688 = vunpack.c.l.b16 %v2210
    %v4689 = vunpack.c.h.b16 %v2210
    %v4690 = vunpack.c.l.b16 %v2211
    %v4691 = vunpack.c.h.b16 %v2211
    %v4692 = vunpack.c.l.b16 %v2212
    %v4693 = vunpack.c.h.b16 %v2212
    %v4694 = vunpack.c.l.b16 %v2213
    %v4695 = vunpack.c.h.b16 %v2213
    %v4696 = vunpack.c.l.b16 %v2214
    %v4697 = vunpack.c.h.b16 %v2214
    %v4698 = vunpack.c.l.b16 %v2215
    %v4699 = vunpack.c.h.b16 %v2215
    %v4700 = vunpack.c.l.b16 %v2216
    %v4701 = vunpack.c.h.b16 %v2216
    %v4702 = vunpack.c.l.b16 %v2217
    %v4703 = vunpack.c.h.b16 %v2217
    %v4704 = vunpack.c.l.b16 %v2218
    %v4705 = vunpack.c.h.b16 %v2218
    %v4706 = vunpack.c.l.b16 %v2219
    %v4707 = vunpack.c.h.b16 %v2219
    %v4708 = vunpack.c.l.b16 %v2220
    %v4709 = vunpack.c.h.b16 %v2220
    %v4710 = vunpack.c.l.b16 %v2221
    %v4711 = vunpack.c.h.b16 %v2221
    %v4712 = vunpack.c.l.b16 %v2222
    %v4713 = vunpack.c.h.b16 %v2222
    %v4714 = vunpack.c.l.b16 %v2223
    %v4715 = vunpack.c.h.b16 %v2223
    %v4716 = vunpack.c.l.b16 %v2224
    %v4717 = vunpack.c.h.b16 %v2224
    %v4718 = vunpack.c.l.b16 %v2225
    %v4719 = vunpack.c.h.b16 %v2225
    %v4720 = vunpack.c.l.b16 %v2226
    %v4721 = vunpack.c.h.b16 %v2226
    %v4722 = vunpack.c.l.b16 %v2227
    %v4723 = vunpack.c.h.b16 %v2227
    %v4724 = vunpack.c.l.b16 %v2228
    %v4725 = vunpack.c.h.b16 %v2228
    %v4726 = vunpack.c.l.b16 %v2229
    %v4727 = vunpack.c.h.b16 %v2229
    %v4728 = vunpack.c.l.b16 %v2230
    %v4729 = vunpack.c.h.b16 %v2230
    %v4730 = vunpack.c.l.b16 %v2231
    %v4731 = vunpack.c.h.b16 %v2231
    %v4732 = vunpack.c.l.b16 %v2232
    %v4733 = vunpack.c.h.b16 %v2232
    %v4734 = vunpack.c.l.b16 %v2233
    %v4735 = vunpack.c.h.b16 %v2233
    %v4736 = vunpack.c.l.b16 %v2234
    %v4737 = vunpack.c.h.b16 %v2234
    %v4738 = vunpack.c.l.b16 %v2235
    %v4739 = vunpack.c.h.b16 %v2235
    %v4740 = vunpack.c.l.b16 %v2236
    %v4741 = vunpack.c.h.b16 %v2236
    %v4742 = vunpack.c.l.b16 %v2237
    %v4743 = vunpack.c.h.b16 %v2237
    %v4744 = vunpack.c.l.b16 %v2238
    %v4745 = vunpack.c.h.b16 %v2238
    %v4746 = vunpack.c.l.b16 %v2239
    %v4747 = vunpack.c.h.b16 %v2239
    %v4748 = vunpack.c.l.b16 %v2240
    %v4749 = vunpack.c.h.b16 %v2240
    %v4750 = vunpack.c.l.b16 %v2241
    %v4751 = vunpack.c.h.b16 %v2241
    %v4752 = vunpack.c.l.b16 %v2242
    %v4753 = vunpack.c.h.b16 %v2242
    %v4754 = vunpack.c.l.b16 %v2243
    %v4755 = vunpack.c.h.b16 %v2243
    %v4756 = vunpack.c.l.b16 %v2244
    %v4757 = vunpack.c.h.b16 %v2244
    %v4758 = vunpack.c.l.b16 %v2245
    %v4759 = vunpack.c.h.b16 %v2245
    %v4760 = vunpack.c.l.b16 %v2246
    %v4761 = vunpack.c.h.b16 %v2246
    %v4762 = vunpack.c.l.b16 %v2247
    %v4763 = vunpack.c.h.b16 %v2247
    %v4764 = vunpack.c.l.b16 %v2248
    %v4765 = vunpack.c.h.b16 %v2248
    %v4766 = vunpack.c.l.b16 %v2249
    %v4767 = vunpack.c.h.b16 %v2249
    %v4768 = vunpack.c.l.b16 %v2250
    %v4769 = vunpack.c.h.b16 %v2250
    %v4770 = vunpack.c.l.b16 %v2251
    %v4771 = vunpack.c.h.b16 %v2251
    %v4772 = vunpack.c.l.b16 %v2252
    %v4773 = vunpack.c.h.b16 %v2252
    %v4774 = vunpack.c.l.b16 %v2253
    %v4775 = vunpack.c.h.b16 %v2253
    %v4776 = vunpack.c.l.b16 %v2254
    %v4777 = vunpack.c.h.b16 %v2254
    %v4778 = vunpack.c.l.b16 %v2255
    %v4779 = vunpack.c.h.b16 %v2255
    %v4780 = vunpack.c.l.b16 %v2256
    %v4781 = vunpack.c.h.b16 %v2256
    %v4782 = vunpack.c.l.b16 %v2257
    %v4783 = vunpack.c.h.b16 %v2257
    %v4784 = vunpack.c.l.b16 %v2258
    %v4785 = vunpack.c.h.b16 %v2258
    %v4786 = vunpack.c.l.b16 %v2259
    %v4787 = vunpack.c.h.b16 %v2259
    %v4788 = vunpack.c.l.b16 %v2260
    %v4789 = vunpack.c.h.b16 %v2260
    %v4790 = vunpack.c.l.b16 %v2261
    %v4791 = vunpack.c.h.b16 %v2261
    %v4792 = vunpack.c.l.b16 %v2262
    %v4793 = vunpack.c.h.b16 %v2262
    %v4794 = vunpack.c.l.b16 %v2263
    %v4795 = vunpack.c.h.b16 %v2263
    %v4796 = vunpack.c.l.b16 %v2264
    %v4797 = vunpack.c.h.b16 %v2264
    %v4798 = vunpack.c.l.b16 %v2265
    %v4799 = vunpack.c.h.b16 %v2265
    %v4800 = vunpack.c.l.b16 %v2266
    %v4801 = vunpack.c.h.b16 %v2266
    %v4802 = vunpack.c.l.b16 %v2267
    %v4803 = vunpack.c.h.b16 %v2267
    %v4804 = vunpack.c.l.b16 %v2268
    %v4805 = vunpack.c.h.b16 %v2268
    %v4806 = vunpack.c.l.b16 %v2269
    %v4807 = vunpack.c.h.b16 %v2269
    %v4808 = vunpack.c.l.b16 %v2270
    %v4809 = vunpack.c.h.b16 %v2270
    %v4810 = vunpack.c.l.b16 %v2271
    %v4811 = vunpack.c.h.b16 %v2271
    %v4812 = vunpack.c.l.b16 %v2272
    %v4813 = vunpack.c.h.b16 %v2272
    %v4814 = vunpack.c.l.b16 %v2273
    %v4815 = vunpack.c.h.b16 %v2273
    %v4816 = vunpack.c.l.b16 %v2274
    %v4817 = vunpack.c.h.b16 %v2274
    %v4818 = vunpack.c.l.b16 %v2275
    %v4819 = vunpack.c.h.b16 %v2275
    %v4820 = vunpack.c.l.b16 %v2276
    %v4821 = vunpack.c.h.b16 %v2276
    %v4822 = vunpack.c.l.b16 %v2277
    %v4823 = vunpack.c.h.b16 %v2277
    %v4824 = vunpack.c.l.b16 %v2278
    %v4825 = vunpack.c.h.b16 %v2278
    %v4826 = vunpack.c.l.b16 %v2279
    %v4827 = vunpack.c.h.b16 %v2279
    %v4828 = vunpack.c.l.b16 %v2280
    %v4829 = vunpack.c.h.b16 %v2280
    %v4830 = vunpack.c.l.b16 %v2281
    %v4831 = vunpack.c.h.b16 %v2281
    %v4832 = vunpack.c.l.b16 %v2282
    %v4833 = vunpack.c.h.b16 %v2282
    %v4834 = vunpack.c.l.b16 %v2283
    %v4835 = vunpack.c.h.b16 %v2283
    %v4836 = vunpack.c.l.b16 %v2284
    %v4837 = vunpack.c.h.b16 %v2284
    %v4838 = vunpack.c.l.b16 %v2285
    %v4839 = vunpack.c.h.b16 %v2285
    %v4840 = vunpack.c.l.b16 %v2286
    %v4841 = vunpack.c.h.b16 %v2286
    %v4842 = vunpack.c.l.b16 %v2287
    %v4843 = vunpack.c.h.b16 %v2287
    %v4844 = vunpack.c.l.b16 %v2288
    %v4845 = vunpack.c.h.b16 %v2288
    %v4846 = vunpack.c.l.b16 %v2289
    %v4847 = vunpack.c.h.b16 %v2289
    %v4848 = vunpack.c.l.b16 %v2290
    %v4849 = vunpack.c.h.b16 %v2290
    %v4850 = vunpack.c.l.b16 %v2291
    %v4851 = vunpack.c.h.b16 %v2291
    %v4852 = vunpack.c.l.b16 %v2292
    %v4853 = vunpack.c.h.b16 %v2292
    %v4854 = vunpack.c.l.b16 %v2293
    %v4855 = vunpack.c.h.b16 %v2293
    %v4856 = vunpack.c.l.b16 %v2294
    %v4857 = vunpack.c.h.b16 %v2294
    %v4858 = vunpack.c.l.b16 %v2295
    %v4859 = vunpack.c.h.b16 %v2295
    %v4860 = vunpack.c.l.b16 %v2296
    %v4861 = vunpack.c.h.b16 %v2296
    %v4862 = vunpack.c.l.b16 %v2297
    %v4863 = vunpack.c.h.b16 %v2297
    %v4864 = vunpack.c.l.b16 %v2298
    %v4865 = vunpack.c.h.b16 %v2298
    %v4866 = vunpack.c.l.b16 %v2299
    %v4867 = vunpack.c.h.b16 %v2299
    %v4868 = vunpack.c.l.b16 %v2300
    %v4869 = vunpack.c.h.b16 %v2300
    %v4870 = vunpack.c.l.b16 %v2301
    %v4871 = vunpack.c.h.b16 %v2301
    %v4872 = vunpack.c.l.b16 %v2302
    %v4873 = vunpack.c.h.b16 %v2302
    %v4874 = vunpack.c.l.b16 %v2303
    %v4875 = vunpack.c.h.b16 %v2303
    %v4876 = vunpack.c.l.b16 %v2304
    %v4877 = vunpack.c.h.b16 %v2304
    %v4878 = vunpack.c.l.b16 %v2305
    %v4879 = vunpack.c.h.b16 %v2305
    %v4880 = vunpack.c.l.b16 %v2306
    %v4881 = vunpack.c.h.b16 %v2306
    %v4882 = vunpack.c.l.b16 %v2307
    %v4883 = vunpack.c.h.b16 %v2307
    %v4884 = vunpack.c.l.b16 %v2308
    %v4885 = vunpack.c.h.b16 %v2308
    %v4886 = vunpack.c.l.b16 %v2309
    %v4887 = vunpack.c.h.b16 %v2309
    %v4888 = vunpack.c.l.b16 %v2310
    %v4889 = vunpack.c.h.b16 %v2310
    %v4890 = vunpack.c.l.b16 %v2311
    %v4891 = vunpack.c.h.b16 %v2311
    %v4892 = vunpack.c.l.b16 %v2312
    %v4893 = vunpack.c.h.b16 %v2312
    %v4894 = vunpack.c.l.b16 %v2313
    %v4895 = vunpack.c.h.b16 %v2313
    %v4896 = vunpack.c.l.b16 %v2314
    %v4897 = vunpack.c.h.b16 %v2314
    %v4898 = vunpack.c.l.b16 %v2315
    %v4899 = vunpack.c.h.b16 %v2315
    %v4900 = vunpack.c.l.b16 %v2316
    %v4901 = vunpack.c.h.b16 %v2316
    %v4902 = vunpack.c.l.b16 %v2317
    %v4903 = vunpack.c.h.b16 %v2317
    %v4904 = vunpack.c.l.b16 %v2318
    %v4905 = vunpack.c.h.b16 %v2318
    %v4906 = vunpack.c.l.b16 %v2319
    %v4907 = vunpack.c.h.b16 %v2319
    %v4908 = vunpack.c.l.b16 %v2320
    %v4909 = vunpack.c.h.b16 %v2320
    %v4910 = vunpack.c.l.b16 %v2321
    %v4911 = vunpack.c.h.b16 %v2321
    %v4912 = vunpack.c.l.b16 %v2322
    %v4913 = vunpack.c.h.b16 %v2322
    %v4914 = vunpack.c.l.b16 %v2323
    %v4915 = vunpack.c.h.b16 %v2323
    %v4916 = vunpack.c.l.b16 %v2324
    %v4917 = vunpack.c.h.b16 %v2324
    %v4918 = vunpack.c.l.b16 %v2325
    %v4919 = vunpack.c.h.b16 %v2325
    %v4920 = vunpack.c.l.b16 %v2326
    %v4921 = vunpack.c.h.b16 %v2326
    %v4922 = vunpack.c.l.b16 %v2327
    %v4923 = vunpack.c.h.b16 %v2327
    %v4924 = vunpack.c.l.b16 %v2328
    %v4925 = vunpack.c.h.b16 %v2328
    %v4926 = vunpack.c.l.b16 %v2329
    %v4927 = vunpack.c.h.b16 %v2329
    %v4928 = vunpack.c.l.b16 %v2330
    %v4929 = vunpack.c.h.b16 %v2330
    %v4930 = vunpack.c.l.b16 %v2331
    %v4931 = vunpack.c.h.b16 %v2331
    %v4932 = vunpack.c.l.b16 %v2332
    %v4933 = vunpack.c.h.b16 %v2332
    %v4934 = vunpack.c.l.b16 %v2333
    %v4935 = vunpack.c.h.b16 %v2333
    %v4936 = vunpack.c.l.b16 %v2334
    %v4937 = vunpack.c.h.b16 %v2334
    %v4938 = vunpack.c.l.b16 %v2335
    %v4939 = vunpack.c.h.b16 %v2335
    %v4940 = vunpack.c.l.b16 %v2336
    %v4941 = vunpack.c.h.b16 %v2336
    %v4942 = vunpack.c.l.b16 %v2337
    %v4943 = vunpack.c.h.b16 %v2337
    %v4944 = vunpack.c.l.b16 %v2338
    %v4945 = vunpack.c.h.b16 %v2338
    %v4946 = vunpack.c.l.b16 %v2339
    %v4947 = vunpack.c.h.b16 %v2339
    %v4948 = vunpack.c.l.b16 %v2340
    %v4949 = vunpack.c.h.b16 %v2340
    %v4950 = vunpack.c.l.b16 %v2341
    %v4951 = vunpack.c.h.b16 %v2341
    %v4952 = vunpack.c.l.b16 %v2342
    %v4953 = vunpack.c.h.b16 %v2342
    %v4954 = vunpack.c.l.b16 %v2343
    %v4955 = vunpack.c.h.b16 %v2343
    %v4956 = vunpack.c.l.b16 %v2344
    %v4957 = vunpack.c.h.b16 %v2344
    %v4958 = vunpack.c.l.b16 %v2345
    %v4959 = vunpack.c.h.b16 %v2345
    %v4960 = vunpack.c.l.b16 %v2346
    %v4961 = vunpack.c.h.b16 %v2346
    %v4962 = vunpack.c.l.b16 %v2347
    %v4963 = vunpack.c.h.b16 %v2347
    %v4964 = vunpack.c.l.b16 %v2348
    %v4965 = vunpack.c.h.b16 %v2348
    %v4966 = vunpack.c.l.b16 %v2349
    %v4967 = vunpack.c.h.b16 %v2349
    %v4968 = vunpack.c.l.b16 %v2350
    %v4969 = vunpack.c.h.b16 %v2350
    %v4970 = vunpack.c.l.b16 %v2351
    %v4971 = vunpack.c.h.b16 %v2351
    %v4972 = vunpack.c.l.b16 %v2352
    %v4973 = vunpack.c.h.b16 %v2352
    %v4974 = vunpack.c.l.b16 %v2353
    %v4975 = vunpack.c.h.b16 %v2353
    %v4976 = vunpack.c.l.b16 %v2354
    %v4977 = vunpack.c.h.b16 %v2354
    %v4978 = vunpack.c.l.b16 %v2355
    %v4979 = vunpack.c.h.b16 %v2355
    %v4980 = vunpack.c.l.b16 %v2356
    %v4981 = vunpack.c.h.b16 %v2356
    %v4982 = vunpack.c.l.b16 %v2357
    %v4983 = vunpack.c.h.b16 %v2357
    %v4984 = vunpack.c.l.b16 %v2358
    %v4985 = vunpack.c.h.b16 %v2358
    %v4986 = vunpack.c.l.b16 %v2359
    %v4987 = vunpack.c.h.b16 %v2359
    %v4988 = vunpack.c.l.b16 %v2360
    %v4989 = vunpack.c.h.b16 %v2360
    %v4990 = vunpack.c.l.b16 %v2361
    %v4991 = vunpack.c.h.b16 %v2361
    %v4992 = vunpack.c.l.b16 %v2362
    %v4993 = vunpack.c.h.b16 %v2362
    %v4994 = vunpack.c.l.b16 %v2363
    %v4995 = vunpack.c.h.b16 %v2363
    %v4996 = vunpack.c.l.b16 %v2364
    %v4997 = vunpack.c.h.b16 %v2364
    %v4998 = vunpack.c.l.b16 %v2365
    %v4999 = vunpack.c.h.b16 %v2365
    %v5000 = vunpack.c.l.b16 %v2366
    %v5001 = vunpack.c.h.b16 %v2366
    %v5002 = vunpack.c.l.b16 %v2367
    %v5003 = vunpack.c.h.b16 %v2367
    %v5004 = vunpack.c.l.b16 %v2368
    %v5005 = vunpack.c.h.b16 %v2368
    %v5006 = vunpack.c.l.b16 %v2369
    %v5007 = vunpack.c.h.b16 %v2369
    %v5008 = vunpack.c.l.b16 %v2370
    %v5009 = vunpack.c.h.b16 %v2370
    %v5010 = vunpack.c.l.b16 %v2371
    %v5011 = vunpack.c.h.b16 %v2371
    %v5012 = vunpack.c.l.b16 %v2372
    %v5013 = vunpack.c.h.b16 %v2372
    %v5014 = vunpack.c.l.b16 %v2373
    %v5015 = vunpack.c.h.b16 %v2373
    %v5016 = vunpack.c.l.b16 %v2374
    %v5017 = vunpack.c.h.b16 %v2374
    %v5018 = vunpack.c.l.b16 %v2375
    %v5019 = vunpack.c.h.b16 %v2375
    %v5020 = vunpack.c.l.b16 %v2376
    %v5021 = vunpack.c.h.b16 %v2376
    %v5022 = vunpack.c.l.b16 %v2377
    %v5023 = vunpack.c.h.b16 %v2377
    %v5024 = vunpack.c.l.b16 %v2378
    %v5025 = vunpack.c.h.b16 %v2378
    %v5026 = vunpack.c.l.b16 %v2379
    %v5027 = vunpack.c.h.b16 %v2379
    %v5028 = vunpack.c.l.b16 %v2380
    %v5029 = vunpack.c.h.b16 %v2380
    %v5030 = vunpack.c.l.b16 %v2381
    %v5031 = vunpack.c.h.b16 %v2381
    %v5032 = vunpack.c.l.b16 %v2382
    %v5033 = vunpack.c.h.b16 %v2382
    %v5034 = vunpack.c.l.b16 %v2383
    %v5035 = vunpack.c.h.b16 %v2383
    %v5036 = vunpack.c.l.b16 %v2384
    %v5037 = vunpack.c.h.b16 %v2384
    %v5038 = vunpack.c.l.b16 %v2385
    %v5039 = vunpack.c.h.b16 %v2385
    %v5040 = vunpack.c.l.b16 %v2386
    %v5041 = vunpack.c.h.b16 %v2386
    %v5042 = vunpack.c.l.b16 %v2387
    %v5043 = vunpack.c.h.b16 %v2387
    %v5044 = vunpack.c.l.b16 %v2388
    %v5045 = vunpack.c.h.b16 %v2388
    %v5046 = vunpack.c.l.b16 %v2389
    %v5047 = vunpack.c.h.b16 %v2389
    %v5048 = vunpack.c.l.b16 %v2390
    %v5049 = vunpack.c.h.b16 %v2390
    %v5050 = vunpack.c.l.b16 %v2391
    %v5051 = vunpack.c.h.b16 %v2391
    %v5052 = vunpack.c.l.b16 %v2392
    %v5053 = vunpack.c.h.b16 %v2392
    %v5054 = vunpack.c.l.b16 %v2393
    %v5055 = vunpack.c.h.b16 %v2393
    %v5056 = vunpack.c.l.b16 %v2394
    %v5057 = vunpack.c.h.b16 %v2394
    %v5058 = vunpack.c.l.b16 %v2395
    %v5059 = vunpack.c.h.b16 %v2395
    %v5060 = vunpack.c.l.b16 %v2396
    %v5061 = vunpack.c.h.b16 %v2396
    %v5062 = vunpack.c.l.b16 %v2397
    %v5063 = vunpack.c.h.b16 %v2397
    %v5064 = vunpack.c.l.b16 %v2398
    %v5065 = vunpack.c.h.b16 %v2398
    %v5066 = vunpack.c.l.b16 %v2399
    %v5067 = vunpack.c.h.b16 %v2399
    %v5068 = vunpack.c.l.b16 %v2400
    %v5069 = vunpack.c.h.b16 %v2400
    %v5070 = vunpack.c.l.b16 %v2401
    %v5071 = vunpack.c.h.b16 %v2401
    %v5072 = vunpack.c.l.b16 %v2402
    %v5073 = vunpack.c.h.b16 %v2402
    %v5074 = vunpack.c.l.b16 %v2403
    %v5075 = vunpack.c.h.b16 %v2403
    %v5076 = vunpack.c.l.b16 %v2404
    %v5077 = vunpack.c.h.b16 %v2404
    %v5078 = vunpack.c.l.b16 %v2405
    %v5079 = vunpack.c.h.b16 %v2405
    %v5080 = vunpack.c.l.b16 %v2406
    %v5081 = vunpack.c.h.b16 %v2406
    %v5082 = vunpack.c.l.b16 %v2407
    %v5083 = vunpack.c.h.b16 %v2407
    %v5084 = vunpack.c.l.b16 %v2408
    %v5085 = vunpack.c.h.b16 %v2408
    %v5086 = vunpack.c.l.b16 %v2409
    %v5087 = vunpack.c.h.b16 %v2409
    %v5088 = vunpack.c.l.b16 %v2410
    %v5089 = vunpack.c.h.b16 %v2410
    %v5090 = vunpack.c.l.b16 %v2411
    %v5091 = vunpack.c.h.b16 %v2411
    %v5092 = vunpack.c.l.b16 %v2412
    %v5093 = vunpack.c.h.b16 %v2412
    %v5094 = vunpack.c.l.b16 %v2413
    %v5095 = vunpack.c.h.b16 %v2413
    %v5096 = vunpack.c.l.b16 %v2414
    %v5097 = vunpack.c.h.b16 %v2414
    %v5098 = vunpack.c.l.b16 %v2415
    %v5099 = vunpack.c.h.b16 %v2415
    %v5100 = vunpack.c.l.b16 %v2416
    %v5101 = vunpack.c.h.b16 %v2416
    %v5102 = vunpack.c.l.b16 %v2417
    %v5103 = vunpack.c.h.b16 %v2417
    %v5104 = vunpack.c.l.b16 %v2418
    %v5105 = vunpack.c.h.b16 %v2418
    %v5106 = vunpack.c.l.b16 %v2419
    %v5107 = vunpack.c.h.b16 %v2419
    %v5108 = vunpack.c.l.b16 %v2420
    %v5109 = vunpack.c.h.b16 %v2420
    %v5110 = vunpack.c.l.b16 %v2421
    %v5111 = vunpack.c.h.b16 %v2421
    %v5112 = vunpack.c.l.b16 %v2422
    %v5113 = vunpack.c.h.b16 %v2422
    %v5114 = vunpack.c.l.b16 %v2423
    %v5115 = vunpack.c.h.b16 %v2423
    %v5116 = vunpack.c.l.b16 %v2424
    %v5117 = vunpack.c.h.b16 %v2424
    %v5118 = vunpack.c.l.b16 %v2425
    %v5119 = vunpack.c.h.b16 %v2425
    %v5120 = vunpack.c.l.b16 %v2426
    %v5121 = vunpack.c.h.b16 %v2426
    %v5122 = vunpack.c.l.b16 %v2427
    %v5123 = vunpack.c.h.b16 %v2427
    %v5124 = vunpack.c.l.b16 %v2428
    %v5125 = vunpack.c.h.b16 %v2428
    %v5126 = vunpack.c.l.b16 %v2429
    %v5127 = vunpack.c.h.b16 %v2429
    %v5128 = vunpack.c.l.b16 %v2430
    %v5129 = vunpack.c.h.b16 %v2430
    %v5130 = vunpack.c.l.b16 %v2431
    %v5131 = vunpack.c.h.b16 %v2431
    %v5132 = vunpack.c.l.b16 %v2432
    %v5133 = vunpack.c.h.b16 %v2432
    %v5134 = vunpack.c.l.b16 %v2433
    %v5135 = vunpack.c.h.b16 %v2433
    %v5136 = vunpack.c.l.b16 %v2434
    %v5137 = vunpack.c.h.b16 %v2434
    %v5138 = vunpack.c.l.b16 %v2435
    %v5139 = vunpack.c.h.b16 %v2435
    %v5140 = vunpack.c.l.b16 %v2436
    %v5141 = vunpack.c.h.b16 %v2436
    %v5142 = vunpack.c.l.b16 %v2437
    %v5143 = vunpack.c.h.b16 %v2437
    %v5144 = vunpack.c.l.b16 %v2438
    %v5145 = vunpack.c.h.b16 %v2438
    %v5146 = vunpack.c.l.b16 %v2439
    %v5147 = vunpack.c.h.b16 %v2439
    %v5148 = vunpack.c.l.b16 %v2440
    %v5149 = vunpack.c.h.b16 %v2440
    %v5150 = vunpack.c.l.b16 %v2441
    %v5151 = vunpack.c.h.b16 %v2441
    %v5152 = vunpack.c.l.b16 %v2442
    %v5153 = vunpack.c.h.b16 %v2442
    %v5154 = vunpack.c.l.b16 %v2443
    %v5155 = vunpack.c.h.b16 %v2443
    %v5156 = vunpack.c.l.b16 %v2444
    %v5157 = vunpack.c.h.b16 %v2444
    %v5158 = vunpack.c.l.b16 %v2445
    %v5159 = vunpack.c.h.b16 %v2445
    %v5160 = vunpack.c.l.b16 %v2446
    %v5161 = vunpack.c.h.b16 %v2446
    %v5162 = vunpack.c.l.b16 %v2447
    %v5163 = vunpack.c.h.b16 %v2447
    %v5164 = vunpack.c.l.b16 %v2448
    %v5165 = vunpack.c.h.b16 %v2448
    %v5166 = vunpack.c.l.b16 %v2449
    %v5167 = vunpack.c.h.b16 %v2449
    %v5168 = vunpack.c.l.b16 %v2450
    %v5169 = vunpack.c.h.b16 %v2450
    %v5170 = vunpack.c.l.b16 %v2451
    %v5171 = vunpack.c.h.b16 %v2451
    %v5172 = vunpack.c.l.b16 %v2452
    %v5173 = vunpack.c.h.b16 %v2452
    %v5174 = vunpack.c.l.b16 %v2453
    %v5175 = vunpack.c.h.b16 %v2453
    %v5176 = vunpack.c.l.b16 %v2454
    %v5177 = vunpack.c.h.b16 %v2454
    %v5178 = vunpack.c.l.b16 %v2455
    %v5179 = vunpack.c.h.b16 %v2455
    %v5180 = vunpack.c.l.b16 %v2456
    %v5181 = vunpack.c.h.b16 %v2456
    %v5182 = vunpack.c.l.b16 %v2457
    %v5183 = vunpack.c.h.b16 %v2457
    %v5184 = vunpack.c.l.b16 %v2458
    %v5185 = vunpack.c.h.b16 %v2458
    %v5186 = vunpack.c.l.b16 %v2459
    %v5187 = vunpack.c.h.b16 %v2459
    %v5188 = vunpack.c.l.b16 %v2460
    %v5189 = vunpack.c.h.b16 %v2460
    %v5190 = vunpack.c.l.b16 %v2461
    %v5191 = vunpack.c.h.b16 %v2461
    %v5192 = vunpack.c.l.b16 %v2462
    %v5193 = vunpack.c.h.b16 %v2462
    %v5194 = vunpack.c.l.b16 %v2463
    %v5195 = vunpack.c.h.b16 %v2463
    %v5196 = vunpack.c.l.b16 %v2464
    %v5197 = vunpack.c.h.b16 %v2464
    %v5198 = vunpack.c.l.b16 %v2465
    %v5199 = vunpack.c.h.b16 %v2465
    %v5200 = vunpack.c.l.b16 %v2466
    %v5201 = vunpack.c.h.b16 %v2466
    %v5202 = vunpack.c.l.b16 %v2467
    %v5203 = vunpack.c.h.b16 %v2467
    %v5204 = vunpack.c.l.b16 %v2468
    %v5205 = vunpack.c.h.b16 %v2468
    %v5206 = vunpack.c.l.b16 %v2469
    %v5207 = vunpack.c.h.b16 %v2469
    %v5208 = vunpack.c.l.b16 %v2470
    %v5209 = vunpack.c.h.b16 %v2470
    %v5210 = vunpack.c.l.b16 %v2471
    %v5211 = vunpack.c.h.b16 %v2471
    %v5212 = vunpack.c.l.b16 %v2472
    %v5213 = vunpack.c.h.b16 %v2472
    %v5214 = vunpack.c.l.b16 %v2473
    %v5215 = vunpack.c.h.b16 %v2473
    %v5216 = vunpack.c.l.b16 %v2474
    %v5217 = vunpack.c.h.b16 %v2474
    %v5218 = vunpack.c.l.b16 %v2475
    %v5219 = vunpack.c.h.b16 %v2475
    %v5220 = vunpack.c.l.b16 %v2476
    %v5221 = vunpack.c.h.b16 %v2476
    %v5222 = vunpack.c.l.b16 %v2477
    %v5223 = vunpack.c.h.b16 %v2477
    %v5224 = vunpack.c.l.b16 %v2478
    %v5225 = vunpack.c.h.b16 %v2478
    %v5226 = vunpack.c.l.b16 %v2479
    %v5227 = vunpack.c.h.b16 %v2479
    %v5228 = vunpack.c.l.b16 %v2480
    %v5229 = vunpack.c.h.b16 %v2480
    %v5230 = vunpack.c.l.b16 %v2481
    %v5231 = vunpack.c.h.b16 %v2481
    %v5232 = vunpack.c.l.b16 %v2482
    %v5233 = vunpack.c.h.b16 %v2482
    %v5234 = vunpack.c.l.b16 %v2483
    %v5235 = vunpack.c.h.b16 %v2483
    %v5236 = vunpack.c.l.b16 %v2484
    %v5237 = vunpack.c.h.b16 %v2484
    %v5238 = vunpack.c.l.b16 %v2485
    %v5239 = vunpack.c.h.b16 %v2485
    %v5240 = vunpack.c.l.b16 %v2486
    %v5241 = vunpack.c.h.b16 %v2486
    %v5242 = vunpack.c.l.b16 %v2487
    %v5243 = vunpack.c.h.b16 %v2487
    %v5244 = vunpack.c.l.b16 %v2488
    %v5245 = vunpack.c.h.b16 %v2488
    %v5246 = vunpack.c.l.b16 %v2489
    %v5247 = vunpack.c.h.b16 %v2489
    %v5248 = vunpack.c.l.b16 %v2490
    %v5249 = vunpack.c.h.b16 %v2490
    %v5250 = vunpack.c.l.b16 %v2491
    %v5251 = vunpack.c.h.b16 %v2491
    %v5252 = vunpack.c.l.b16 %v2492
    %v5253 = vunpack.c.h.b16 %v2492
    %v5254 = vunpack.c.l.b16 %v2493
    %v5255 = vunpack.c.h.b16 %v2493
    %v5256 = vunpack.c.l.b16 %v2494
    %v5257 = vunpack.c.h.b16 %v2494
    %v5258 = vunpack.c.l.b16 %v2495
    %v5259 = vunpack.c.h.b16 %v2495
    %v5260 = vunpack.c.l.b16 %v2496
    %v5261 = vunpack.c.h.b16 %v2496
    %v5262 = vunpack.c.l.b16 %v2497
    %v5263 = vunpack.c.h.b16 %v2497
    %v5264 = vunpack.c.l.b16 %v2498
    %v5265 = vunpack.c.h.b16 %v2498
    %v5266 = vunpack.c.l.b16 %v2499
    %v5267 = vunpack.c.h.b16 %v2499
    %v5268 = vunpack.c.l.b16 %v2500
    %v5269 = vunpack.c.h.b16 %v2500
    %v5270 = vunpack.c.l.b16 %v2501
    %v5271 = vunpack.c.h.b16 %v2501
    %v5272 = vunpack.c.l.b16 %v2502
    %v5273 = vunpack.c.h.b16 %v2502
    %v5274 = vunpack.c.l.b16 %v2503
    %v5275 = vunpack.c.h.b16 %v2503
    %v5276 = vunpack.c.l.b16 %v2504
    %v5277 = vunpack.c.h.b16 %v2504
    %v5278 = vunpack.c.l.b16 %v2505
    %v5279 = vunpack.c.h.b16 %v2505
    %v5280 = vunpack.c.l.b16 %v2506
    %v5281 = vunpack.c.h.b16 %v2506
    %v5282 = vunpack.c.l.b16 %v2507
    %v5283 = vunpack.c.h.b16 %v2507
    %v5284 = vunpack.c.l.b16 %v2508
    %v5285 = vunpack.c.h.b16 %v2508
    %v5286 = vunpack.c.l.b16 %v2509
    %v5287 = vunpack.c.h.b16 %v2509
    %v5288 = vunpack.c.l.b16 %v2510
    %v5289 = vunpack.c.h.b16 %v2510
    %v5290 = vunpack.c.l.b16 %v2511
    %v5291 = vunpack.c.h.b16 %v2511
    %v5292 = vunpack.c.l.b16 %v2512
    %v5293 = vunpack.c.h.b16 %v2512
    %v5294 = vunpack.c.l.b16 %v2513
    %v5295 = vunpack.c.h.b16 %v2513
    %v5296 = vunpack.c.l.b16 %v2514
    %v5297 = vunpack.c.h.b16 %v2514
    %v5298 = vunpack.c.l.b16 %v2515
    %v5299 = vunpack.c.h.b16 %v2515
    %v5300 = vunpack.c.l.b16 %v2516
    %v5301 = vunpack.c.h.b16 %v2516
    %v5302 = vunpack.c.l.b16 %v2517
    %v5303 = vunpack.c.h.b16 %v2517
    %v5304 = vunpack.c.l.b16 %v2518
    %v5305 = vunpack.c.h.b16 %v2518
    %v5306 = vunpack.c.l.b16 %v2519
    %v5307 = vunpack.c.h.b16 %v2519
    %v5308 = vunpack.c.l.b16 %v2520
    %v5309 = vunpack.c.h.b16 %v2520
    %v5310 = vunpack.c.l.b16 %v2521
    %v5311 = vunpack.c.h.b16 %v2521
    %v5312 = vunpack.c.l.b16 %v2522
    %v5313 = vunpack.c.h.b16 %v2522
    %v5314 = vunpack.c.l.b16 %v2523
    %v5315 = vunpack.c.h.b16 %v2523
    %v5316 = vunpack.c.l.b16 %v2524
    %v5317 = vunpack.c.h.b16 %v2524
    %v5318 = vunpack.c.l.b16 %v2525
    %v5319 = vunpack.c.h.b16 %v2525
    %v5320 = vunpack.c.l.b16 %v2526
    %v5321 = vunpack.c.h.b16 %v2526
    %v5322 = vunpack.c.l.b16 %v2527
    %v5323 = vunpack.c.h.b16 %v2527
    %v5324 = vunpack.c.l.b16 %v2528
    %v5325 = vunpack.c.h.b16 %v2528
    %v5326 = vunpack.c.l.b16 %v2529
    %v5327 = vunpack.c.h.b16 %v2529
    %v5328 = vunpack.c.l.b16 %v2530
    %v5329 = vunpack.c.h.b16 %v2530
    %v5330 = vunpack.c.l.b16 %v2531
    %v5331 = vunpack.c.h.b16 %v2531
    %v5332 = vunpack.c.l.b16 %v2532
    %v5333 = vunpack.c.h.b16 %v2532
    %v5334 = vunpack.c.l.b16 %v2533
    %v5335 = vunpack.c.h.b16 %v2533
    %v5336 = vunpack.c.l.b16 %v2534
    %v5337 = vunpack.c.h.b16 %v2534
    %v5338 = vunpack.c.l.b16 %v2535
    %v5339 = vunpack.c.h.b16 %v2535
    %v5340 = vunpack.c.l.b16 %v2536
    %v5341 = vunpack.c.h.b16 %v2536
    %v5342 = vunpack.c.l.b16 %v2537
    %v5343 = vunpack.c.h.b16 %v2537
    %v5344 = vunpack.c.l.b16 %v2538
    %v5345 = vunpack.c.h.b16 %v2538
    %v5346 = vunpack.c.l.b16 %v2539
    %v5347 = vunpack.c.h.b16 %v2539
    %v5348 = vunpack.c.l.b16 %v2540
    %v5349 = vunpack.c.h.b16 %v2540
    %v5350 = vunpack.c.l.b16 %v2541
    %v5351 = vunpack.c.h.b16 %v2541
    %v5352 = vunpack.c.l.b16 %v2542
    %v5353 = vunpack.c.h.b16 %v2542
    %v5354 = vunpack.c.l.b16 %v2543
    %v5355 = vunpack.c.h.b16 %v2543
    %v5356 = vunpack.c.l.b16 %v2544
    %v5357 = vunpack.c.h.b16 %v2544
    %v5358 = vunpack.c.l.b16 %v2545
    %v5359 = vunpack.c.h.b16 %v2545
    %v5360 = vunpack.c.l.b16 %v2546
    %v5361 = vunpack.c.h.b16 %v2546
    %v5362 = vunpack.c.l.b16 %v2547
    %v5363 = vunpack.c.h.b16 %v2547
    %v5364 = vunpack.c.l.b16 %v2548
    %v5365 = vunpack.c.h.b16 %v2548
    %v5366 = vunpack.c.l.b16 %v2549
    %v5367 = vunpack.c.h.b16 %v2549
    %v5368 = vunpack.c.l.b16 %v2550
    %v5369 = vunpack.c.h.b16 %v2550
    %v5370 = vunpack.c.l.b16 %v2551
    %v5371 = vunpack.c.h.b16 %v2551
    %v5372 = vunpack.c.l.b16 %v2552
    %v5373 = vunpack.c.h.b16 %v2552
    %v5374 = vunpack.c.l.b16 %v2553
    %v5375 = vunpack.c.h.b16 %v2553
    %v5376 = vunpack.c.l.b16 %v2554
    %v5377 = vunpack.c.h.b16 %v2554
    %v5378 = vunpack.c.l.b16 %v2555
    %v5379 = vunpack.c.h.b16 %v2555
    %v5380 = vunpack.c.l.b16 %v2556
    %v5381 = vunpack.c.h.b16 %v2556
    %v5382 = vunpack.c.l.b16 %v2557
    %v5383 = vunpack.c.h.b16 %v2557
    %v5384 = vunpack.c.l.b16 %v2558
    %v5385 = vunpack.c.h.b16 %v2558
    %v5386 = vunpack.c.l.b16 %v2559
    %v5387 = vunpack.c.h.b16 %v2559
    %v5388 = vunpack.c.l.b16 %v2560
    %v5389 = vunpack.c.h.b16 %v2560
    %v5390 = vunpack.c.l.b16 %v2561
    %v5391 = vunpack.c.h.b16 %v2561
    %v5392 = vunpack.c.l.b16 %v2562
    %v5393 = vunpack.c.h.b16 %v2562
    %v5394 = vunpack.c.l.b16 %v2563
    %v5395 = vunpack.c.h.b16 %v2563
    %v5396 = vunpack.c.l.b16 %v2564
    %v5397 = vunpack.c.h.b16 %v2564
    %v5398 = vunpack.c.l.b16 %v2565
    %v5399 = vunpack.c.h.b16 %v2565
    %v5400 = vunpack.c.l.b16 %v2566
    %v5401 = vunpack.c.h.b16 %v2566
    %v5402 = vunpack.c.l.b16 %v2567
    %v5403 = vunpack.c.h.b16 %v2567
    %v5404 = vunpack.c.l.b16 %v2568
    %v5405 = vunpack.c.h.b16 %v2568
    %v5406 = vunpack.c.l.b16 %v2569
    %v5407 = vunpack.c.h.b16 %v2569
    %v5408 = vunpack.c.l.b16 %v2570
    %v5409 = vunpack.c.h.b16 %v2570
    %v5410 = vunpack.c.l.b16 %v2571
    %v5411 = vunpack.c.h.b16 %v2571
    %v5412 = vunpack.c.l.b16 %v2572
    %v5413 = vunpack.c.h.b16 %v2572
    %v5414 = vunpack.c.l.b16 %v2573
    %v5415 = vunpack.c.h.b16 %v2573
    %v5416 = vunpack.c.l.b16 %v2574
    %v5417 = vunpack.c.h.b16 %v2574
    %v5418 = vunpack.c.l.b16 %v2575
    %v5419 = vunpack.c.h.b16 %v2575
    %v5420 = vunpack.c.l.b16 %v2576
    %v5421 = vunpack.c.h.b16 %v2576
    %v5422 = vunpack.c.l.b16 %v2577
    %v5423 = vunpack.c.h.b16 %v2577
    %v5424 = vunpack.c.l.b16 %v2578
    %v5425 = vunpack.c.h.b16 %v2578
    %v5426 = vunpack.c.l.b16 %v2579
    %v5427 = vunpack.c.h.b16 %v2579
    %v5428 = vunpack.c.l.b16 %v2580
    %v5429 = vunpack.c.h.b16 %v2580
    %v5430 = vunpack.c.l.b16 %v2581
    %v5431 = vunpack.c.h.b16 %v2581
    %v5432 = vunpack.c.l.b16 %v2582
    %v5433 = vunpack.c.h.b16 %v2582
    %v5434 = vunpack.c.l.b16 %v2583
    %v5435 = vunpack.c.h.b16 %v2583
    %v5436 = vunpack.c.l.b16 %v2584
    %v5437 = vunpack.c.h.b16 %v2584
    %v5438 = vunpack.c.l.b16 %v2585
    %v5439 = vunpack.c.h.b16 %v2585
    %v5440 = vunpack.c.l.b16 %v2586
    %v5441 = vunpack.c.h.b16 %v2586
    %v5442 = vunpack.c.l.b16 %v2587
    %v5443 = vunpack.c.h.b16 %v2587
    %v5444 = vunpack.c.l.b16 %v2588
    %v5445 = vunpack.c.h.b16 %v2588
    %v5446 = vunpack.c.l.b16 %v2589
    %v5447 = vunpack.c.h.b16 %v2589
    %v5448 = vunpack.c.l.b16 %v2590
    %v5449 = vunpack.c.h.b16 %v2590
    %v5450 = vunpack.c.l.b16 %v2591
    %v5451 = vunpack.c.h.b16 %v2591
    %v5452 = vunpack.c.l.b16 %v2592
    %v5453 = vunpack.c.h.b16 %v2592
    %v5454 = vunpack.c.l.b16 %v2593
    %v5455 = vunpack.c.h.b16 %v2593
    %v5456 = vunpack.c.l.b16 %v2594
    %v5457 = vunpack.c.h.b16 %v2594
    %v5458 = vunpack.c.l.b16 %v2595
    %v5459 = vunpack.c.h.b16 %v2595
    %v5460 = vunpack.c.l.b16 %v2596
    %v5461 = vunpack.c.h.b16 %v2596
    %v5462 = vunpack.c.l.b16 %v2597
    %v5463 = vunpack.c.h.b16 %v2597
    %v5464 = vunpack.c.l.b16 %v2598
    %v5465 = vunpack.c.h.b16 %v2598
    %v5466 = vunpack.c.l.b16 %v2599
    %v5467 = vunpack.c.h.b16 %v2599
    %v5468 = vunpack.c.l.b16 %v2600
    %v5469 = vunpack.c.h.b16 %v2600
    %v5470 = vunpack.c.l.b16 %v2601
    %v5471 = vunpack.c.h.b16 %v2601
    %v5472 = vunpack.c.l.b16 %v2602
    %v5473 = vunpack.c.h.b16 %v2602
    %v5474 = vunpack.c.l.b16 %v2603
    %v5475 = vunpack.c.h.b16 %v2603
    %v5476 = vunpack.c.l.b16 %v2604
    %v5477 = vunpack.c.h.b16 %v2604
    %v5478 = vunpack.c.l.b16 %v2605
    %v5479 = vunpack.c.h.b16 %v2605
    %v5480 = vunpack.c.l.b16 %v2606
    %v5481 = vunpack.c.h.b16 %v2606
    %v5482 = vunpack.c.l.b16 %v2607
    %v5483 = vunpack.c.h.b16 %v2607
    %v5484 = vunpack.c.l.b16 %v2608
    %v5485 = vunpack.c.h.b16 %v2608
    %v5486 = vunpack.c.l.b16 %v2609
    %v5487 = vunpack.c.h.b16 %v2609
    %v5488 = vunpack.c.l.b16 %v2610
    %v5489 = vunpack.c.h.b16 %v2610
    %v5490 = vunpack.c.l.b16 %v2611
    %v5491 = vunpack.c.h.b16 %v2611
    %v5492 = vunpack.c.l.b16 %v2612
    %v5493 = vunpack.c.h.b16 %v2612
    %v5494 = vunpack.c.l.b16 %v2613
    %v5495 = vunpack.c.h.b16 %v2613
    %v5496 = vunpack.c.l.b16 %v2614
    %v5497 = vunpack.c.h.b16 %v2614
    %v5498 = vunpack.c.l.b16 %v2615
    %v5499 = vunpack.c.h.b16 %v2615
    %v5500 = vunpack.c.l.b16 %v2616
    %v5501 = vunpack.c.h.b16 %v2616
    %v5502 = vunpack.c.l.b16 %v2617
    %v5503 = vunpack.c.h.b16 %v2617
    %v5504 = vunpack.c.l.b16 %v2618
    %v5505 = vunpack.c.h.b16 %v2618
    %v5506 = vunpack.c.l.b16 %v2619
    %v5507 = vunpack.c.h.b16 %v2619
    %v5508 = vunpack.c.l.b16 %v2620
    %v5509 = vunpack.c.h.b16 %v2620
    %v5510 = vunpack.c.l.b16 %v2621
    %v5511 = vunpack.c.h.b16 %v2621
    %v5512 = vunpack.c.l.b16 %v2622
    %v5513 = vunpack.c.h.b16 %v2622
    %v5514 = vunpack.c.l.b16 %v2623
    %v5515 = vunpack.c.h.b16 %v2623
    %v5516 = vunpack.c.l.b16 %v2624
    %v5517 = vunpack.c.h.b16 %v2624
    %v5518 = vunpack.c.l.b16 %v2625
    %v5519 = vunpack.c.h.b16 %v2625
    %v5520 = vunpack.c.l.b16 %v2626
    %v5521 = vunpack.c.h.b16 %v2626
    %v5522 = vunpack.c.l.b16 %v2627
    %v5523 = vunpack.c.h.b16 %v2627
    %v5524 = vunpack.c.l.b16 %v2628
    %v5525 = vunpack.c.h.b16 %v2628
    %v5526 = vunpack.c.l.b16 %v2629
    %v5527 = vunpack.c.h.b16 %v2629
    %v5528 = vunpack.c.l.b16 %v2630
    %v5529 = vunpack.c.h.b16 %v2630
    %v5530 = vunpack.c.l.b16 %v2631
    %v5531 = vunpack.c.h.b16 %v2631
    %v5532 = vunpack.c.l.b16 %v2632
    %v5533 = vunpack.c.h.b16 %v2632
    %v5534 = vunpack.c.l.b16 %v2633
    %v5535 = vunpack.c.h.b16 %v2633
    %v5536 = vunpack.c.l.b16 %v2634
    %v5537 = vunpack.c.h.b16 %v2634
    %v5538 = vunpack.c.l.b16 %v2635
    %v5539 = vunpack.c.h.b16 %v2635
    %v5540 = vunpack.c.l.b16 %v2636
    %v5541 = vunpack.c.h.b16 %v2636
    %v5542 = vunpack.c.l.b16 %v2637
    %v5543 = vunpack.c.h.b16 %v2637
    %v5544 = vunpack.c.l.b16 %v2638
    %v5545 = vunpack.c.h.b16 %v2638
    %v5546 = vunpack.c.l.b16 %v2639
    %v5547 = vunpack.c.h.b16 %v2639
    %v5548 = vunpack.c.l.b16 %v2640
    %v5549 = vunpack.c.h.b16 %v2640
    %v5550 = vunpack.c.l.b16 %v2641
    %v5551 = vunpack.c.h.b16 %v2641
    %v5552 = vunpack.c.l.b16 %v2642
    %v5553 = vunpack.c.h.b16 %v2642
    %v5554 = vunpack.c.l.b16 %v2643
    %v5555 = vunpack.c.h.b16 %v2643
    %v5556 = vunpack.c.l.b16 %v2644
    %v5557 = vunpack.c.h.b16 %v2644
    %v5558 = vunpack.c.l.b16 %v2645
    %v5559 = vunpack.c.h.b16 %v2645
    %v5560 = vunpack.c.l.b16 %v2646
    %v5561 = vunpack.c.h.b16 %v2646
    %v5562 = vunpack.c.l.b16 %v2647
    %v5563 = vunpack.c.h.b16 %v2647
    %v5564 = vunpack.c.l.b16 %v2648
    %v5565 = vunpack.c.h.b16 %v2648
    %v5566 = vunpack.c.l.b16 %v2649
    %v5567 = vunpack.c.h.b16 %v2649
    %v5568 = vunpack.c.l.b16 %v2650
    %v5569 = vunpack.c.h.b16 %v2650
    %v5570 = vunpack.c.l.b16 %v2651
    %v5571 = vunpack.c.h.b16 %v2651
    %v5572 = vunpack.c.l.b16 %v2652
    %v5573 = vunpack.c.h.b16 %v2652
    %v5574 = vunpack.c.l.b16 %v2653
    %v5575 = vunpack.c.h.b16 %v2653
    %v5576 = vunpack.c.l.b16 %v2654
    %v5577 = vunpack.c.h.b16 %v2654
    %v5578 = vunpack.c.l.b16 %v2655
    %v5579 = vunpack.c.h.b16 %v2655
    %v5580 = vunpack.c.l.b16 %v2656
    %v5581 = vunpack.c.h.b16 %v2656
    %v5582 = vunpack.c.l.b16 %v2657
    %v5583 = vunpack.c.h.b16 %v2657
    %v5584 = vunpack.c.l.b16 %v2658
    %v5585 = vunpack.c.h.b16 %v2658
    %v5586 = vunpack.c.l.b16 %v2659
    %v5587 = vunpack.c.h.b16 %v2659
    %v5588 = vunpack.c.l.b16 %v2660
    %v5589 = vunpack.c.h.b16 %v2660
    %v5590 = vunpack.c.l.b16 %v2661
    %v5591 = vunpack.c.h.b16 %v2661
    %v5592 = vunpack.c.l.b16 %v2662
    %v5593 = vunpack.c.h.b16 %v2662
    %v5594 = vunpack.c.l.b16 %v2663
    %v5595 = vunpack.c.h.b16 %v2663
    %v5596 = vunpack.c.l.b16 %v2664
    %v5597 = vunpack.c.h.b16 %v2664
    %v5598 = vunpack.c.l.b16 %v2665
    %v5599 = vunpack.c.h.b16 %v2665
    %v5600 = vunpack.c.l.b16 %v2666
    %v5601 = vunpack.c.h.b16 %v2666
    %v5602 = vunpack.c.l.b16 %v2667
    %v5603 = vunpack.c.h.b16 %v2667
    %v5604 = vunpack.c.l.b16 %v2668
    %v5605 = vunpack.c.h.b16 %v2668
    %v5606 = vunpack.c.l.b16 %v2669
    %v5607 = vunpack.c.h.b16 %v2669
    %v5608 = vunpack.c.l.b16 %v2670
    %v5609 = vunpack.c.h.b16 %v2670
    %v5610 = vunpack.c.l.b16 %v2671
    %v5611 = vunpack.c.h.b16 %v2671
    %v5612 = vunpack.c.l.b16 %v2672
    %v5613 = vunpack.c.h.b16 %v2672
    %v5614 = vunpack.c.l.b16 %v2673
    %v5615 = vunpack.c.h.b16 %v2673
    %v5616 = vunpack.c.l.b16 %v2674
    %v5617 = vunpack.c.h.b16 %v2674
    %v5618 = vunpack.c.l.b16 %v2675
    %v5619 = vunpack.c.h.b16 %v2675
    %v5620 = vunpack.c.l.b16 %v2676
    %v5621 = vunpack.c.h.b16 %v2676
    %v5622 = vunpack.c.l.b16 %v2677
    %v5623 = vunpack.c.h.b16 %v2677
    %v5624 = vunpack.c.l.b16 %v2678
    %v5625 = vunpack.c.h.b16 %v2678
    %v5626 = vunpack.c.l.b16 %v2679
    %v5627 = vunpack.c.h.b16 %v2679
    %v5628 = vunpack.c.l.b16 %v2680
    %v5629 = vunpack.c.h.b16 %v2680
    %v5630 = vunpack.c.l.b16 %v2681
    %v5631 = vunpack.c.h.b16 %v2681
    %v5632 = vunpack.c.l.b16 %v2682
    %v5633 = vunpack.c.h.b16 %v2682
    %v5634 = vunpack.c.l.b16 %v2683
    %v5635 = vunpack.c.h.b16 %v2683
    %v5636 = vunpack.c.l.b16 %v2684
    %v5637 = vunpack.c.h.b16 %v2684
    %v5638 = vunpack.c.l.b16 %v2685
    %v5639 = vunpack.c.h.b16 %v2685
    %v5640 = vunpack.c.l.b16 %v2686
    %v5641 = vunpack.c.h.b16 %v2686
    %v5642 = vunpack.c.l.b16 %v2687
    %v5643 = vunpack.c.h.b16 %v2687
    %v5644 = vunpack.c.l.b16 %v2688
    %v5645 = vunpack.c.h.b16 %v2688
    %v5646 = vunpack.c.l.b16 %v2689
    %v5647 = vunpack.c.h.b16 %v2689
    %v5648 = vunpack.c.l.b16 %v2690
    %v5649 = vunpack.c.h.b16 %v2690
    %v5650 = vunpack.c.l.b16 %v2691
    %v5651 = vunpack.c.h.b16 %v2691
    %v5652 = vunpack.c.l.b16 %v2692
    %v5653 = vunpack.c.h.b16 %v2692
    %v5654 = vunpack.c.l.b16 %v2693
    %v5655 = vunpack.c.h.b16 %v2693
    %v5656 = vunpack.c.l.b16 %v2694
    %v5657 = vunpack.c.h.b16 %v2694
    %v5658 = vunpack.c.l.b16 %v2695
    %v5659 = vunpack.c.h.b16 %v2695
    %v5660 = vunpack.c.l.b16 %v2696
    %v5661 = vunpack.c.h.b16 %v2696
    %v5662 = vunpack.c.l.b16 %v2697
    %v5663 = vunpack.c.h.b16 %v2697
    %v5664 = vunpack.c.l.b16 %v2698
    %v5665 = vunpack.c.h.b16 %v2698
    %v5666 = vunpack.c.l.b16 %v2699
    %v5667 = vunpack.c.h.b16 %v2699
    %v5668 = vunpack.c.l.b16 %v2700
    %v5669 = vunpack.c.h.b16 %v2700
    %v5670 = vunpack.c.l.b16 %v2701
    %v5671 = vunpack.c.h.b16 %v2701
    %v5672 = vunpack.c.l.b16 %v2702
    %v5673 = vunpack.c.h.b16 %v2702
    %v5674 = vunpack.c.l.b16 %v2703
    %v5675 = vunpack.c.h.b16 %v2703
    %v5676 = vunpack.c.l.b16 %v2704
    %v5677 = vunpack.c.h.b16 %v2704
    %v5678 = vunpack.c.l.b16 %v2705
    %v5679 = vunpack.c.h.b16 %v2705
    %v5680 = vunpack.c.l.b16 %v2706
    %v5681 = vunpack.c.h.b16 %v2706
    %v5682 = vunpack.c.l.b16 %v2707
    %v5683 = vunpack.c.h.b16 %v2707
    %v5684 = vunpack.c.l.b16 %v2708
    %v5685 = vunpack.c.h.b16 %v2708
    %v5686 = vunpack.c.l.b16 %v2709
    %v5687 = vunpack.c.h.b16 %v2709
    %v5688 = vunpack.c.l.b16 %v2710
    %v5689 = vunpack.c.h.b16 %v2710
    %v5690 = vunpack.c.l.b16 %v2711
    %v5691 = vunpack.c.h.b16 %v2711
    %v5692 = vunpack.c.l.b16 %v2712
    %v5693 = vunpack.c.h.b16 %v2712
    %v5694 = vunpack.c.l.b16 %v2713
    %v5695 = vunpack.c.h.b16 %v2713
    %v5696 = vunpack.c.l.b16 %v2714
    %v5697 = vunpack.c.h.b16 %v2714
    %v5698 = vunpack.c.l.b16 %v2715
    %v5699 = vunpack.c.h.b16 %v2715
    %v5700 = vunpack.c.l.b16 %v2716
    %v5701 = vunpack.c.h.b16 %v2716
    %v5702 = vunpack.c.l.b16 %v2717
    %v5703 = vunpack.c.h.b16 %v2717
    %v5704 = vunpack.c.l.b16 %v2718
    %v5705 = vunpack.c.h.b16 %v2718
    %v5706 = vunpack.c.l.b16 %v2719
    %v5707 = vunpack.c.h.b16 %v2719
    %v5708 = vunpack.c.l.b16 %v2720
    %v5709 = vunpack.c.h.b16 %v2720
    %v5710 = vunpack.c.l.b16 %v2721
    %v5711 = vunpack.c.h.b16 %v2721
    %v5712 = vunpack.c.l.b16 %v2722
    %v5713 = vunpack.c.h.b16 %v2722
    %v5714 = vunpack.c.l.b16 %v2723
    %v5715 = vunpack.c.h.b16 %v2723
    %v5716 = vunpack.c.l.b16 %v2724
    %v5717 = vunpack.c.h.b16 %v2724
    %v5718 = vunpack.c.l.b16 %v2725
    %v5719 = vunpack.c.h.b16 %v2725
    %v5720 = vunpack.c.l.b16 %v2726
    %v5721 = vunpack.c.h.b16 %v2726
    %v5722 = vunpack.c.l.b16 %v2727
    %v5723 = vunpack.c.h.b16 %v2727
    %v5724 = vunpack.c.l.b16 %v2728
    %v5725 = vunpack.c.h.b16 %v2728
    %v5726 = vunpack.c.l.b16 %v2729
    %v5727 = vunpack.c.h.b16 %v2729
    %v5728 = vunpack.c.l.b16 %v2730
    %v5729 = vunpack.c.h.b16 %v2730
    %v5730 = vunpack.c.l.b16 %v2731
    %v5731 = vunpack.c.h.b16 %v2731
    %v5732 = vunpack.c.l.b16 %v2732
    %v5733 = vunpack.c.h.b16 %v2732
    %v5734 = vunpack.c.l.b16 %v2733
    %v5735 = vunpack.c.h.b16 %v2733
    %v5736 = vunpack.c.l.b16 %v2734
    %v5737 = vunpack.c.h.b16 %v2734
    %v5738 = vunpack.c.l.b16 %v2735
    %v5739 = vunpack.c.h.b16 %v2735
    %v5740 = vunpack.c.l.b16 %v2736
    %v5741 = vunpack.c.h.b16 %v2736
    %v5742 = vunpack.c.l.b16 %v2737
    %v5743 = vunpack.c.h.b16 %v2737
    %v5744 = vunpack.c.l.b16 %v2738
    %v5745 = vunpack.c.h.b16 %v2738
    %v5746 = vunpack.c.l.b16 %v2739
    %v5747 = vunpack.c.h.b16 %v2739
    %v5748 = vunpack.c.l.b16 %v2740
    %v5749 = vunpack.c.h.b16 %v2740
    %v5750 = vunpack.c.l.b16 %v2741
    %v5751 = vunpack.c.h.b16 %v2741
    %v5752 = vunpack.c.l.b16 %v2742
    %v5753 = vunpack.c.h.b16 %v2742
    %v5754 = vunpack.c.l.b16 %v2743
    %v5755 = vunpack.c.h.b16 %v2743
    %v5756 = vunpack.c.l.b16 %v2744
    %v5757 = vunpack.c.h.b16 %v2744
    %v5758 = vunpack.c.l.b16 %v2745
    %v5759 = vunpack.c.h.b16 %v2745
    %v5760 = vunpack.c.l.b16 %v2746
    %v5761 = vunpack.c.h.b16 %v2746
    %v5762 = vunpack.c.l.b16 %v2747
    %v5763 = vunpack.c.h.b16 %v2747
    %v5764 = vunpack.c.l.b16 %v2748
    %v5765 = vunpack.c.h.b16 %v2748
    %v5766 = vunpack.c.l.b16 %v2749
    %v5767 = vunpack.c.h.b16 %v2749
    %v5768 = vunpack.c.l.b16 %v2750
    %v5769 = vunpack.c.h.b16 %v2750
    %v5770 = vunpack.c.l.b16 %v2751
    %v5771 = vunpack.c.h.b16 %v2751
    %v5772 = vunpack.c.l.b16 %v2752
    %v5773 = vunpack.c.h.b16 %v2752
    %v5774 = vunpack.c.l.b16 %v2753
    %v5775 = vunpack.c.h.b16 %v2753
    %v5776 = vunpack.c.l.b16 %v2754
    %v5777 = vunpack.c.h.b16 %v2754
    %v5778 = vunpack.c.l.b16 %v2755
    %v5779 = vunpack.c.h.b16 %v2755
    %v5780 = vunpack.c.l.b16 %v2756
    %v5781 = vunpack.c.h.b16 %v2756
    %v5782 = vunpack.c.l.b16 %v2757
    %v5783 = vunpack.c.h.b16 %v2757
    %v5784 = vunpack.c.l.b16 %v2758
    %v5785 = vunpack.c.h.b16 %v2758
    %v5786 = vunpack.c.l.b16 %v2759
    %v5787 = vunpack.c.h.b16 %v2759
    %v5788 = vunpack.c.l.b16 %v2760
    %v5789 = vunpack.c.h.b16 %v2760
    %v5790 = vunpack.c.l.b16 %v2761
    %v5791 = vunpack.c.h.b16 %v2761
    %v5792 = vunpack.c.l.b16 %v2762
    %v5793 = vunpack.c.h.b16 %v2762
    %v5794 = vunpack.c.l.b16 %v2763
    %v5795 = vunpack.c.h.b16 %v2763
    %v5796 = vunpack.c.l.b16 %v2764
    %v5797 = vunpack.c.h.b16 %v2764
    %v5798 = vunpack.c.l.b16 %v2765
    %v5799 = vunpack.c.h.b16 %v2765
    %v5800 = vunpack.c.l.b16 %v2766
    %v5801 = vunpack.c.h.b16 %v2766
    %v5802 = vunpack.c.l.b16 %v2767
    %v5803 = vunpack.c.h.b16 %v2767
    %v5804 = vunpack.c.l.b16 %v2768
    %v5805 = vunpack.c.h.b16 %v2768
    %v5806 = vunpack.c.l.b16 %v2769
    %v5807 = vunpack.c.h.b16 %v2769
    %v5808 = vunpack.c.l.b16 %v2770
    %v5809 = vunpack.c.h.b16 %v2770
    %v5810 = vunpack.c.l.b16 %v2771
    %v5811 = vunpack.c.h.b16 %v2771
    %v5812 = vunpack.c.l.b16 %v2772
    %v5813 = vunpack.c.h.b16 %v2772
    %v5814 = vunpack.c.l.b16 %v2773
    %v5815 = vunpack.c.h.b16 %v2773
    %v5816 = vunpack.c.l.b16 %v2774
    %v5817 = vunpack.c.h.b16 %v2774
    %v5818 = vunpack.c.l.b16 %v2775
    %v5819 = vunpack.c.h.b16 %v2775
    %v5820 = vunpack.c.l.b16 %v2776
    %v5821 = vunpack.c.h.b16 %v2776
    %v5822 = vunpack.c.l.b16 %v2777
    %v5823 = vunpack.c.h.b16 %v2777
    %v5824 = vunpack.c.l.b16 %v2778
    %v5825 = vunpack.c.h.b16 %v2778
    %v5826 = vunpack.c.l.b16 %v2779
    %v5827 = vunpack.c.h.b16 %v2779
    %v5828 = vunpack.c.l.b16 %v2780
    %v5829 = vunpack.c.h.b16 %v2780
    %v5830 = vunpack.c.l.b16 %v2781
    %v5831 = vunpack.c.h.b16 %v2781
    %v5832 = vunpack.c.l.b16 %v2782
    %v5833 = vunpack.c.h.b16 %v2782
    %v5834 = vunpack.c.l.b16 %v2783
    %v5835 = vunpack.c.h.b16 %v2783
    %v5836 = vunpack.c.l.b16 %v2784
    %v5837 = vunpack.c.h.b16 %v2784
    %v5838 = vunpack.c.l.b16 %v2785
    %v5839 = vunpack.c.h.b16 %v2785
    %v5840 = vunpack.c.l.b16 %v2786
    %v5841 = vunpack.c.h.b16 %v2786
    %v5842 = vunpack.c.l.b16 %v2787
    %v5843 = vunpack.c.h.b16 %v2787
    %v5844 = vunpack.c.l.b16 %v2788
    %v5845 = vunpack.c.h.b16 %v2788
    %v5846 = vunpack.c.l.b16 %v2789
    %v5847 = vunpack.c.h.b16 %v2789
    %v5848 = vunpack.c.l.b16 %v2790
    %v5849 = vunpack.c.h.b16 %v2790
    %v5850 = vunpack.c.l.b16 %v2791
    %v5851 = vunpack.c.h.b16 %v2791
    %v5852 = vunpack.c.l.b16 %v2792
    %v5853 = vunpack.c.h.b16 %v2792
    %v5854 = vunpack.c.l.b16 %v2793
    %v5855 = vunpack.c.h.b16 %v2793
    %v5856 = vunpack.c.l.b16 %v2794
    %v5857 = vunpack.c.h.b16 %v2794
    %v5858 = vunpack.c.l.b16 %v2795
    %v5859 = vunpack.c.h.b16 %v2795
    %v5860 = vunpack.c.l.b16 %v2796
    %v5861 = vunpack.c.h.b16 %v2796
    %v5862 = vunpack.c.l.b16 %v2797
    %v5863 = vunpack.c.h.b16 %v2797
    %v5864 = vunpack.c.l.b16 %v2798
    %v5865 = vunpack.c.h.b16 %v2798
    %v5866 = vunpack.c.l.b16 %v2799
    %v5867 = vunpack.c.h.b16 %v2799
    %v5868 = vunpack.c.l.b16 %v2800
    %v5869 = vunpack.c.h.b16 %v2800
    %v5870 = vunpack.c.l.b16 %v2801
    %v5871 = vunpack.c.h.b16 %v2801
    %v5872 = vunpack.c.l.b16 %v2802
    %v5873 = vunpack.c.h.b16 %v2802
    %v5874 = vunpack.c.l.b16 %v2803
    %v5875 = vunpack.c.h.b16 %v2803
    %v5876 = vunpack.c.l.b16 %v2804
    %v5877 = vunpack.c.h.b16 %v2804
    %v5878 = vunpack.c.l.b16 %v2805
    %v5879 = vunpack.c.h.b16 %v2805
    %v5880 = vunpack.c.l.b16 %v2806
    %v5881 = vunpack.c.h.b16 %v2806
    %v5882 = vunpack.c.l.b16 %v2807
    %v5883 = vunpack.c.h.b16 %v2807
    %v5884 = vunpack.c.l.b16 %v2808
    %v5885 = vunpack.c.h.b16 %v2808
    %v5886 = vunpack.c.l.b16 %v2809
    %v5887 = vunpack.c.h.b16 %v2809
    %v5888 = vunpack.c.l.b16 %v2810
    %v5889 = vunpack.c.h.b16 %v2810
    %v5890 = vunpack.c.l.b16 %v2811
    %v5891 = vunpack.c.h.b16 %v2811
    %v5892 = vunpack.c.l.b16 %v2812
    %v5893 = vunpack.c.h.b16 %v2812
    %v5894 = vunpack.c.l.b16 %v2813
    %v5895 = vunpack.c.h.b16 %v2813
    %v5896 = vunpack.c.l.b16 %v2814
    %v5897 = vunpack.c.h.b16 %v2814
    %v5898 = vunpack.c.l.b16 %v2815
    %v5899 = vunpack.c.h.b16 %v2815
    %v5900 = vunpack.c.l.b16 %v2816
    %v5901 = vunpack.c.h.b16 %v2816
    %v5902 = vunpack.c.l.b16 %v2817
    %v5903 = vunpack.c.h.b16 %v2817
    %v5904 = vunpack.c.l.b16 %v2818
    %v5905 = vunpack.c.h.b16 %v2818
    %v5906 = vunpack.c.l.b16 %v2819
    %v5907 = vunpack.c.h.b16 %v2819
    %v5908 = vunpack.c.l.b16 %v2820
    %v5909 = vunpack.c.h.b16 %v2820
    %v5910 = vunpack.c.l.b16 %v2821
    %v5911 = vunpack.c.h.b16 %v2821
    %v5912 = vunpack.c.l.b16 %v2822
    %v5913 = vunpack.c.h.b16 %v2822
    %v5914 = vunpack.c.l.b16 %v2823
    %v5915 = vunpack.c.h.b16 %v2823
    %v5916 = vunpack.c.l.b16 %v2824
    %v5917 = vunpack.c.h.b16 %v2824
    %v5918 = vunpack.c.l.b16 %v2825
    %v5919 = vunpack.c.h.b16 %v2825
    %v5920 = vunpack.c.l.b16 %v2826
    %v5921 = vunpack.c.h.b16 %v2826
    %v5922 = vunpack.c.l.b16 %v2827
    %v5923 = vunpack.c.h.b16 %v2827
    %v5924 = vunpack.c.l.b16 %v2828
    %v5925 = vunpack.c.h.b16 %v2828
    %v5926 = vunpack.c.l.b16 %v2829
    %v5927 = vunpack.c.h.b16 %v2829
    %v5928 = vunpack.c.l.b16 %v2830
    %v5929 = vunpack.c.h.b16 %v2830
    %v5930 = vunpack.c.l.b16 %v2831
    %v5931 = vunpack.c.h.b16 %v2831
    %v5932 = vunpack.c.l.b16 %v2832
    %v5933 = vunpack.c.h.b16 %v2832
    %v5934 = vunpack.c.l.b16 %v2833
    %v5935 = vunpack.c.h.b16 %v2833
    %v5936 = vunpack.c.l.b16 %v2834
    %v5937 = vunpack.c.h.b16 %v2834
    %v5938 = vunpack.c.l.b16 %v2835
    %v5939 = vunpack.c.h.b16 %v2835
    %v5940 = vunpack.c.l.b16 %v2836
    %v5941 = vunpack.c.h.b16 %v2836
    %v5942 = vunpack.c.l.b16 %v2837
    %v5943 = vunpack.c.h.b16 %v2837
    %v5944 = vunpack.c.l.b16 %v2838
    %v5945 = vunpack.c.h.b16 %v2838
    %v5946 = vunpack.c.l.b16 %v2839
    %v5947 = vunpack.c.h.b16 %v2839
    %v5948 = vunpack.c.l.b16 %v2840
    %v5949 = vunpack.c.h.b16 %v2840
    %v5950 = vunpack.c.l.b16 %v2841
    %v5951 = vunpack.c.h.b16 %v2841
    %v5952 = vunpack.c.l.b16 %v2842
    %v5953 = vunpack.c.h.b16 %v2842
    %v5954 = vunpack.c.l.b16 %v2843
    %v5955 = vunpack.c.h.b16 %v2843
    %v5956 = vunpack.c.l.b16 %v2844
    %v5957 = vunpack.c.h.b16 %v2844
    %v5958 = vunpack.c.l.b16 %v2845
    %v5959 = vunpack.c.h.b16 %v2845
    %v5960 = vpack.c.b16 %v3920, %v3912
    %v5961 = vpack.c.b16 %v3921, %v3913
    %v5962 = vpack.c.b16 %v3922, %v3914
    %v5963 = vpack.c.b16 %v3923, %v3915
    %v5964 = vpack.c.b16 %v3924, %v3916
    %v5965 = vpack.c.b16 %v3925, %v3917
    %v5966 = vpack.c.b16 %v3926, %v3918
    %v5967 = vpack.c.b16 %v3927, %v3919
    %v5968 = vpack.c.b16 %v3936, %v3928
    %v5969 = vpack.c.b16 %v3937, %v3929
    %v5970 = vpack.c.b16 %v3938, %v3930
    %v5971 = vpack.c.b16 %v3939, %v3931
    %v5972 = vpack.c.b16 %v3940, %v3932
    %v5973 = vpack.c.b16 %v3941, %v3933
    %v5974 = vpack.c.b16 %v3942, %v3934
    %v5975 = vpack.c.b16 %v3943, %v3935
    %v5976 = vpack.c.b16 %v3952, %v3944
    %v5977 = vpack.c.b16 %v3953, %v3945
    %v5978 = vpack.c.b16 %v3954, %v3946
    %v5979 = vpack.c.b16 %v3955, %v3947
    %v5980 = vpack.c.b16 %v3956, %v3948
    %v5981 = vpack.c.b16 %v3957, %v3949
    %v5982 = vpack.c.b16 %v3958, %v3950
    %v5983 = vpack.c.b16 %v3959, %v3951
    %v5984 = vpack.c.b16 %v3968, %v3960
    %v5985 = vpack.c.b16 %v3969, %v3961
    %v5986 = vpack.c.b16 %v3970, %v3962
    %v5987 = vpack.c.b16 %v3971, %v3963
    %v5988 = vpack.c.b16 %v3972, %v3964
    %v5989 = vpack.c.b16 %v3973, %v3965
    %v5990 = vpack.c.b16 %v3974, %v3966
    %v5991 = vpack.c.b16 %v3975, %v3967
    %v5992 = vpack.c.b16 %v3984, %v3976
    %v5993 = vpack.c.b16 %v3985, %v3977
    %v5994 = vpack.c.b16 %v3986, %v3978
    %v5995 = vpack.c.b16 %v3987, %v3979
    %v5996 = vpack.c.b16 %v3988, %v3980
    %v5997 = vpack.c.b16 %v3989, %v3981
    %v5998 = vpack.c.b16 %v3990, %v3982
    %v5999 = vpack.c.b16 %v3991, %v3983
    %v6000 = vpack.c.b16 %v4000, %v3992
    %v6001 = vpack.c.b16 %v4001, %v3993
    %v6002 = vpack.c.b16 %v4002, %v3994
    %v6003 = vpack.c.b16 %v4003, %v3995
    %v6004 = vpack.c.b16 %v4004, %v3996
    %v6005 = vpack.c.b16 %v4005, %v3997
    %v6006 = vpack.c.b16 %v4006, %v3998
    %v6007 = vpack.c.b16 %v4007, %v3999
    %v6008 = vpack.c.b16 %v4016, %v4008
    %v6009 = vpack.c.b16 %v4017, %v4009
    %v6010 = vpack.c.b16 %v4018, %v4010
    %v6011 = vpack.c.b16 %v4019, %v4011
    %v6012 = vpack.c.b16 %v4020, %v4012
    %v6013 = vpack.c.b16 %v4021, %v4013
    %v6014 = vpack.c.b16 %v4022, %v4014
    %v6015 = vpack.c.b16 %v4023, %v4015
    %v6016 = vpack.c.b16 %v4032, %v4024
    %v6017 = vpack.c.b16 %v4033, %v4025
    %v6018 = vpack.c.b16 %v4034, %v4026
    %v6019 = vpack.c.b16 %v4035, %v4027
    %v6020 = vpack.c.b16 %v4036, %v4028
    %v6021 = vpack.c.b16 %v4037, %v4029
    %v6022 = vpack.c.b16 %v4038, %v4030
    %v6023 = vpack.c.b16 %v4039, %v4031
    %v6024 = vpack.c.b16 %v4048, %v4040
    %v6025 = vpack.c.b16 %v4049, %v4041
    %v6026 = vpack.c.b16 %v4050, %v4042
    %v6027 = vpack.c.b16 %v4051, %v4043
    %v6028 = vpack.c.b16 %v4052, %v4044
    %v6029 = vpack.c.b16 %v4053, %v4045
    %v6030 = vpack.c.b16 %v4054, %v4046
    %v6031 = vpack.c.b16 %v4055, %v4047
    %v6032 = vpack.c.b16 %v4064, %v4056
    %v6033 = vpack.c.b16 %v4065, %v4057
    %v6034 = vpack.c.b16 %v4066, %v4058
    %v6035 = vpack.c.b16 %v4067, %v4059
    %v6036 = vpack.c.b16 %v4068, %v4060
    %v6037 = vpack.c.b16 %v4069, %v4061
    %v6038 = vpack.c.b16 %v4070, %v4062
    %v6039 = vpack.c.b16 %v4071, %v4063
    %v6040 = vpack.c.b16 %v4080, %v4072
    %v6041 = vpack.c.b16 %v4081, %v4073
    %v6042 = vpack.c.b16 %v4082, %v4074
    %v6043 = vpack.c.b16 %v4083, %v4075
    %v6044 = vpack.c.b16 %v4084, %v4076
    %v6045 = vpack.c.b16 %v4085, %v4077
    %v6046 = vpack.c.b16 %v4086, %v4078
    %v6047 = vpack.c.b16 %v4087, %v4079
    %v6048 = vpack.c.b16 %v4096, %v4088
    %v6049 = vpack.c.b16 %v4097, %v4089
    %v6050 = vpack.c.b16 %v4098, %v4090
    %v6051 = vpack.c.b16 %v4099, %v4091
    %v6052 = vpack.c.b16 %v4100, %v4092
    %v6053 = vpack.c.b16 %v4101, %v4093
    %v6054 = vpack.c.b16 %v4102, %v4094
    %v6055 = vpack.c.b16 %v4103, %v4095
    %v6056 = vpack.c.b16 %v4112, %v4104
    %v6057 = vpack.c.b16 %v4113, %v4105
    %v6058 = vpack.c.b16 %v4114, %v4106
    %v6059 = vpack.c.b16 %v4115, %v4107
    %v6060 = vpack.c.b16 %v4116, %v4108
    %v6061 = vpack.c.b16 %v4117, %v4109
    %v6062 = vpack.c.b16 %v4118, %v4110
    %v6063 = vpack.c.b16 %v4119, %v4111
    %v6064 = vpack.c.b16 %v4128, %v4120
    %v6065 = vpack.c.b16 %v4129, %v4121
    %v6066 = vpack.c.b16 %v4130, %v4122
    %v6067 = vpack.c.b16 %v4131, %v4123
    %v6068 = vpack.c.b16 %v4132, %v4124
    %v6069 = vpack.c.b16 %v4133, %v4125
    %v6070 = vpack.c.b16 %v4134, %v4126
    %v6071 = vpack.c.b16 %v4135, %v4127
    %v6072 = vpack.c.b16 %v4144, %v4136
    %v6073 = vpack.c.b16 %v4145, %v4137
    %v6074 = vpack.c.b16 %v4146, %v4138
    %v6075 = vpack.c.b16 %v4147, %v4139
    %v6076 = vpack.c.b16 %v4148, %v4140
    %v6077 = vpack.c.b16 %v4149, %v4141
    %v6078 = vpack.c.b16 %v4150, %v4142
    %v6079 = vpack.c.b16 %v4151, %v4143
    %v6080 = vpack.c.b16 %v4160, %v4152
    %v6081 = vpack.c.b16 %v4161, %v4153
    %v6082 = vpack.c.b16 %v4162, %v4154
    %v6083 = vpack.c.b16 %v4163, %v4155
    %v6084 = vpack.c.b16 %v4164, %v4156
    %v6085 = vpack.c.b16 %v4165, %v4157
    %v6086 = vpack.c.b16 %v4166, %v4158
    %v6087 = vpack.c.b16 %v4167, %v4159
    %v6088 = vpack.c.b16 %v4176, %v4168
    %v6089 = vpack.c.b16 %v4177, %v4169
    %v6090 = vpack.c.b16 %v4178, %v4170
    %v6091 = vpack.c.b16 %v4179, %v4171
    %v6092 = vpack.c.b16 %v4180, %v4172
    %v6093 = vpack.c.b16 %v4181, %v4173
    %v6094 = vpack.c.b16 %v4182, %v4174
    %v6095 = vpack.c.b16 %v4183, %v4175
    %v6096 = vpack.c.b16 %v4192, %v4184
    %v6097 = vpack.c.b16 %v4193, %v4185
    %v6098 = vpack.c.b16 %v4194, %v4186
    %v6099 = vpack.c.b16 %v4195, %v4187
    %v6100 = vpack.c.b16 %v4196, %v4188
    %v6101 = vpack.c.b16 %v4197, %v4189
    %v6102 = vpack.c.b16 %v4198, %v4190
    %v6103 = vpack.c.b16 %v4199, %v4191
    %v6104 = vpack.c.b16 %v4208, %v4200
    %v6105 = vpack.c.b16 %v4209, %v4201
    %v6106 = vpack.c.b16 %v4210, %v4202
    %v6107 = vpack.c.b16 %v4211, %v4203
    %v6108 = vpack.c.b16 %v4212, %v4204
    %v6109 = vpack.c.b16 %v4213, %v4205
    %v6110 = vpack.c.b16 %v4214, %v4206
    %v6111 = vpack.c.b16 %v4215, %v4207
    %v6112 = vpack.c.b16 %v4224, %v4216
    %v6113 = vpack.c.b16 %v4225, %v4217
    %v6114 = vpack.c.b16 %v4226, %v4218
    %v6115 = vpack.c.b16 %v4227, %v4219
    %v6116 = vpack.c.b16 %v4228, %v4220
    %v6117 = vpack.c.b16 %v4229, %v4221
    %v6118 = vpack.c.b16 %v4230, %v4222
    %v6119 = vpack.c.b16 %v4231, %v4223
    %v6120 = vpack.c.b16 %v4240, %v4232
    %v6121 = vpack.c.b16 %v4241, %v4233
    %v6122 = vpack.c.b16 %v4242, %v4234
    %v6123 = vpack.c.b16 %v4243, %v4235
    %v6124 = vpack.c.b16 %v4244, %v4236
    %v6125 = vpack.c.b16 %v4245, %v4237
    %v6126 = vpack.c.b16 %v4246, %v4238
    %v6127 = vpack.c.b16 %v4247, %v4239
    %v6128 = vpack.c.b16 %v4256, %v4248
    %v6129 = vpack.c.b16 %v4257, %v4249
    %v6130 = vpack.c.b16 %v4258, %v4250
    %v6131 = vpack.c.b16 %v4259, %v4251
    %v6132 = vpack.c.b16 %v4260, %v4252
    %v6133 = vpack.c.b16 %v4261, %v4253
    %v6134 = vpack.c.b16 %v4262, %v4254
    %v6135 = vpack.c.b16 %v4263, %v4255
    %v6136 = vpack.c.b16 %v4272, %v4264
    %v6137 = vpack.c.b16 %v4273, %v4265
    %v6138 = vpack.c.b16 %v4274, %v4266
    %v6139 = vpack.c.b16 %v4275, %v4267
    %v6140 = vpack.c.b16 %v4276, %v4268
    %v6141 = vpack.c.b16 %v4277, %v4269
    %v6142 = vpack.c.b16 %v4278, %v4270
    %v6143 = vpack.c.b16 %v4279, %v4271
    %v6144 = vpack.c.b16 %v4288, %v4280
    %v6145 = vpack.c.b16 %v4289, %v4281
    %v6146 = vpack.c.b16 %v4290, %v4282
    %v6147 = vpack.c.b16 %v4291, %v4283
    %v6148 = vpack.c.b16 %v4292, %v4284
    %v6149 = vpack.c.b16 %v4293, %v4285
    %v6150 = vpack.c.b16 %v4294, %v4286
    %v6151 = vpack.c.b16 %v4295, %v4287
    %v6152 = vpack.c.b16 %v4304, %v4296
    %v6153 = vpack.c.b16 %v4305, %v4297
    %v6154 = vpack.c.b16 %v4306, %v4298
    %v6155 = vpack.c.b16 %v4307, %v4299
    %v6156 = vpack.c.b16 %v4308, %v4300
    %v6157 = vpack.c.b16 %v4309, %v4301
    %v6158 = vpack.c.b16 %v4310, %v4302
    %v6159 = vpack.c.b16 %v4311, %v4303
    %v6160 = vpack.c.b16 %v4320, %v4312
    %v6161 = vpack.c.b16 %v4321, %v4313
    %v6162 = vpack.c.b16 %v4322, %v4314
    %v6163 = vpack.c.b16 %v4323, %v4315
    %v6164 = vpack.c.b16 %v4324, %v4316
    %v6165 = vpack.c.b16 %v4325, %v4317
    %v6166 = vpack.c.b16 %v4326, %v4318
    %v6167 = vpack.c.b16 %v4327, %v4319
    %v6168 = vpack.c.b16 %v4336, %v4328
    %v6169 = vpack.c.b16 %v4337, %v4329
    %v6170 = vpack.c.b16 %v4338, %v4330
    %v6171 = vpack.c.b16 %v4339, %v4331
    %v6172 = vpack.c.b16 %v4340, %v4332
    %v6173 = vpack.c.b16 %v4341, %v4333
    %v6174 = vpack.c.b16 %v4342, %v4334
    %v6175 = vpack.c.b16 %v4343, %v4335
    %v6176 = vpack.c.b16 %v4352, %v4344
    %v6177 = vpack.c.b16 %v4353, %v4345
    %v6178 = vpack.c.b16 %v4354, %v4346
    %v6179 = vpack.c.b16 %v4355, %v4347
    %v6180 = vpack.c.b16 %v4356, %v4348
    %v6181 = vpack.c.b16 %v4357, %v4349
    %v6182 = vpack.c.b16 %v4358, %v4350
    %v6183 = vpack.c.b16 %v4359, %v4351
    %v6184 = vpack.c.b16 %v4368, %v4360
    %v6185 = vpack.c.b16 %v4369, %v4361
    %v6186 = vpack.c.b16 %v4370, %v4362
    %v6187 = vpack.c.b16 %v4371, %v4363
    %v6188 = vpack.c.b16 %v4372, %v4364
    %v6189 = vpack.c.b16 %v4373, %v4365
    %v6190 = vpack.c.b16 %v4374, %v4366
    %v6191 = vpack.c.b16 %v4375, %v4367
    %v6192 = vpack.c.b16 %v4384, %v4376
    %v6193 = vpack.c.b16 %v4385, %v4377
    %v6194 = vpack.c.b16 %v4386, %v4378
    %v6195 = vpack.c.b16 %v4387, %v4379
    %v6196 = vpack.c.b16 %v4388, %v4380
    %v6197 = vpack.c.b16 %v4389, %v4381
    %v6198 = vpack.c.b16 %v4390, %v4382
    %v6199 = vpack.c.b16 %v4391, %v4383
    %v6200 = vpack.c.b16 %v4400, %v4392
    %v6201 = vpack.c.b16 %v4401, %v4393
    %v6202 = vpack.c.b16 %v4402, %v4394
    %v6203 = vpack.c.b16 %v4403, %v4395
    %v6204 = vpack.c.b16 %v4404, %v4396
    %v6205 = vpack.c.b16 %v4405, %v4397
    %v6206 = vpack.c.b16 %v4406, %v4398
    %v6207 = vpack.c.b16 %v4407, %v4399
    %v6208 = vpack.c.b16 %v4416, %v4408
    %v6209 = vpack.c.b16 %v4417, %v4409
    %v6210 = vpack.c.b16 %v4418, %v4410
    %v6211 = vpack.c.b16 %v4419, %v4411
    %v6212 = vpack.c.b16 %v4420, %v4412
    %v6213 = vpack.c.b16 %v4421, %v4413
    %v6214 = vpack.c.b16 %v4422, %v4414
    %v6215 = vpack.c.b16 %v4423, %v4415
    %v6216 = vpack.c.b16 %v4432, %v4424
    %v6217 = vpack.c.b16 %v4433, %v4425
    %v6218 = vpack.c.b16 %v4434, %v4426
    %v6219 = vpack.c.b16 %v4435, %v4427
    %v6220 = vpack.c.b16 %v4436, %v4428
    %v6221 = vpack.c.b16 %v4437, %v4429
    %v6222 = vpack.c.b16 %v4438, %v4430
    %v6223 = vpack.c.b16 %v4439, %v4431
    %v6224 = vpack.c.b16 %v4448, %v4440
    %v6225 = vpack.c.b16 %v4449, %v4441
    %v6226 = vpack.c.b16 %v4450, %v4442
    %v6227 = vpack.c.b16 %v4451, %v4443
    %v6228 = vpack.c.b16 %v4452, %v4444
    %v6229 = vpack.c.b16 %v4453, %v4445
    %v6230 = vpack.c.b16 %v4454, %v4446
    %v6231 = vpack.c.b16 %v4455, %v4447
    %v6232 = vpack.c.b16 %v4464, %v4456
    %v6233 = vpack.c.b16 %v4465, %v4457
    %v6234 = vpack.c.b16 %v4466, %v4458
    %v6235 = vpack.c.b16 %v4467, %v4459
    %v6236 = vpack.c.b16 %v4468, %v4460
    %v6237 = vpack.c.b16 %v4469, %v4461
    %v6238 = vpack.c.b16 %v4470, %v4462
    %v6239 = vpack.c.b16 %v4471, %v4463
    %v6240 = vpack.c.b16 %v4480, %v4472
    %v6241 = vpack.c.b16 %v4481, %v4473
    %v6242 = vpack.c.b16 %v4482, %v4474
    %v6243 = vpack.c.b16 %v4483, %v4475
    %v6244 = vpack.c.b16 %v4484, %v4476
    %v6245 = vpack.c.b16 %v4485, %v4477
    %v6246 = vpack.c.b16 %v4486, %v4478
    %v6247 = vpack.c.b16 %v4487, %v4479
    %v6248 = vpack.c.b16 %v4496, %v4488
    %v6249 = vpack.c.b16 %v4497, %v4489
    %v6250 = vpack.c.b16 %v4498, %v4490
    %v6251 = vpack.c.b16 %v4499, %v4491
    %v6252 = vpack.c.b16 %v4500, %v4492
    %v6253 = vpack.c.b16 %v4501, %v4493
    %v6254 = vpack.c.b16 %v4502, %v4494
    %v6255 = vpack.c.b16 %v4503, %v4495
    %v6256 = vpack.c.b16 %v4512, %v4504
    %v6257 = vpack.c.b16 %v4513, %v4505
    %v6258 = vpack.c.b16 %v4514, %v4506
    %v6259 = vpack.c.b16 %v4515, %v4507
    %v6260 = vpack.c.b16 %v4516, %v4508
    %v6261 = vpack.c.b16 %v4517, %v4509
    %v6262 = vpack.c.b16 %v4518, %v4510
    %v6263 = vpack.c.b16 %v4519, %v4511
    %v6264 = vpack.c.b16 %v4528, %v4520
    %v6265 = vpack.c.b16 %v4529, %v4521
    %v6266 = vpack.c.b16 %v4530, %v4522
    %v6267 = vpack.c.b16 %v4531, %v4523
    %v6268 = vpack.c.b16 %v4532, %v4524
    %v6269 = vpack.c.b16 %v4533, %v4525
    %v6270 = vpack.c.b16 %v4534, %v4526
    %v6271 = vpack.c.b16 %v4535, %v4527
    %v6272 = vpack.c.b16 %v4544, %v4536
    %v6273 = vpack.c.b16 %v4545, %v4537
    %v6274 = vpack.c.b16 %v4546, %v4538
    %v6275 = vpack.c.b16 %v4547, %v4539
    %v6276 = vpack.c.b16 %v4548, %v4540
    %v6277 = vpack.c.b16 %v4549, %v4541
    %v6278 = vpack.c.b16 %v4550, %v4542
    %v6279 = vpack.c.b16 %v4551, %v4543
    %v6280 = vpack.c.b16 %v4560, %v4552
    %v6281 = vpack.c.b16 %v4561, %v4553
    %v6282 = vpack.c.b16 %v4562, %v4554
    %v6283 = vpack.c.b16 %v4563, %v4555
    %v6284 = vpack.c.b16 %v4564, %v4556
    %v6285 = vpack.c.b16 %v4565, %v4557
    %v6286 = vpack.c.b16 %v4566, %v4558
    %v6287 = vpack.c.b16 %v4567, %v4559
    %v6288 = vpack.c.b16 %v4576, %v4568
    %v6289 = vpack.c.b16 %v4577, %v4569
    %v6290 = vpack.c.b16 %v4578, %v4570
    %v6291 = vpack.c.b16 %v4579, %v4571
    %v6292 = vpack.c.b16 %v4580, %v4572
    %v6293 = vpack.c.b16 %v4581, %v4573
    %v6294 = vpack.c.b16 %v4582, %v4574
    %v6295 = vpack.c.b16 %v4583, %v4575
    %v6296 = vpack.c.b16 %v4592, %v4584
    %v6297 = vpack.c.b16 %v4593, %v4585
    %v6298 = vpack.c.b16 %v4594, %v4586
    %v6299 = vpack.c.b16 %v4595, %v4587
    %v6300 = vpack.c.b16 %v4596, %v4588
    %v6301 = vpack.c.b16 %v4597, %v4589
    %v6302 = vpack.c.b16 %v4598, %v4590
    %v6303 = vpack.c.b16 %v4599, %v4591
    %v6304 = vpack.c.b16 %v4608, %v4600
    %v6305 = vpack.c.b16 %v4609, %v4601
    %v6306 = vpack.c.b16 %v4610, %v4602
    %v6307 = vpack.c.b16 %v4611, %v4603
    %v6308 = vpack.c.b16 %v4612, %v4604
    %v6309 = vpack.c.b16 %v4613, %v4605
    %v6310 = vpack.c.b16 %v4614, %v4606
    %v6311 = vpack.c.b16 %v4615, %v4607
    %v6312 = vpack.c.b16 %v4624, %v4616
    %v6313 = vpack.c.b16 %v4625, %v4617
    %v6314 = vpack.c.b16 %v4626, %v4618
    %v6315 = vpack.c.b16 %v4627, %v4619
    %v6316 = vpack.c.b16 %v4628, %v4620
    %v6317 = vpack.c.b16 %v4629, %v4621
    %v6318 = vpack.c.b16 %v4630, %v4622
    %v6319 = vpack.c.b16 %v4631, %v4623
    %v6320 = vpack.c.b16 %v4640, %v4632
    %v6321 = vpack.c.b16 %v4641, %v4633
    %v6322 = vpack.c.b16 %v4642, %v4634
    %v6323 = vpack.c.b16 %v4643, %v4635
    %v6324 = vpack.c.b16 %v4644, %v4636
    %v6325 = vpack.c.b16 %v4645, %v4637
    %v6326 = vpack.c.b16 %v4646, %v4638
    %v6327 = vpack.c.b16 %v4647, %v4639
    %v6328 = vpack.c.b16 %v4656, %v4648
    %v6329 = vpack.c.b16 %v4657, %v4649
    %v6330 = vpack.c.b16 %v4658, %v4650
    %v6331 = vpack.c.b16 %v4659, %v4651
    %v6332 = vpack.c.b16 %v4660, %v4652
    %v6333 = vpack.c.b16 %v4661, %v4653
    %v6334 = vpack.c.b16 %v4662, %v4654
    %v6335 = vpack.c.b16 %v4663, %v4655
    %v6336 = vpack.c.b16 %v4672, %v4664
    %v6337 = vpack.c.b16 %v4673, %v4665
    %v6338 = vpack.c.b16 %v4674, %v4666
    %v6339 = vpack.c.b16 %v4675, %v4667
    %v6340 = vpack.c.b16 %v4676, %v4668
    %v6341 = vpack.c.b16 %v4677, %v4669
    %v6342 = vpack.c.b16 %v4678, %v4670
    %v6343 = vpack.c.b16 %v4679, %v4671
    %v6344 = vpack.c.b16 %v4688, %v4680
    %v6345 = vpack.c.b16 %v4689, %v4681
    %v6346 = vpack.c.b16 %v4690, %v4682
    %v6347 = vpack.c.b16 %v4691, %v4683
    %v6348 = vpack.c.b16 %v4692, %v4684
    %v6349 = vpack.c.b16 %v4693, %v4685
    %v6350 = vpack.c.b16 %v4694, %v4686
    %v6351 = vpack.c.b16 %v4695, %v4687
    %v6352 = vpack.c.b16 %v4704, %v4696
    %v6353 = vpack.c.b16 %v4705, %v4697
    %v6354 = vpack.c.b16 %v4706, %v4698
    %v6355 = vpack.c.b16 %v4707, %v4699
    %v6356 = vpack.c.b16 %v4708, %v4700
    %v6357 = vpack.c.b16 %v4709, %v4701
    %v6358 = vpack.c.b16 %v4710, %v4702
    %v6359 = vpack.c.b16 %v4711, %v4703
    %v6360 = vpack.c.b16 %v4720, %v4712
    %v6361 = vpack.c.b16 %v4721, %v4713
    %v6362 = vpack.c.b16 %v4722, %v4714
    %v6363 = vpack.c.b16 %v4723, %v4715
    %v6364 = vpack.c.b16 %v4724, %v4716
    %v6365 = vpack.c.b16 %v4725, %v4717
    %v6366 = vpack.c.b16 %v4726, %v4718
    %v6367 = vpack.c.b16 %v4727, %v4719
    %v6368 = vpack.c.b16 %v4736, %v4728
    %v6369 = vpack.c.b16 %v4737, %v4729
    %v6370 = vpack.c.b16 %v4738, %v4730
    %v6371 = vpack.c.b16 %v4739, %v4731
    %v6372 = vpack.c.b16 %v4740, %v4732
    %v6373 = vpack.c.b16 %v4741, %v4733
    %v6374 = vpack.c.b16 %v4742, %v4734
    %v6375 = vpack.c.b16 %v4743, %v4735
    %v6376 = vpack.c.b16 %v4752, %v4744
    %v6377 = vpack.c.b16 %v4753, %v4745
    %v6378 = vpack.c.b16 %v4754, %v4746
    %v6379 = vpack.c.b16 %v4755, %v4747
    %v6380 = vpack.c.b16 %v4756, %v4748
    %v6381 = vpack.c.b16 %v4757, %v4749
    %v6382 = vpack.c.b16 %v4758, %v4750
    %v6383 = vpack.c.b16 %v4759, %v4751
    %v6384 = vpack.c.b16 %v4768, %v4760
    %v6385 = vpack.c.b16 %v4769, %v4761
    %v6386 = vpack.c.b16 %v4770, %v4762
    %v6387 = vpack.c.b16 %v4771, %v4763
    %v6388 = vpack.c.b16 %v4772, %v4764
    %v6389 = vpack.c.b16 %v4773, %v4765
    %v6390 = vpack.c.b16 %v4774, %v4766
    %v6391 = vpack.c.b16 %v4775, %v4767
    %v6392 = vpack.c.b16 %v4784, %v4776
    %v6393 = vpack.c.b16 %v4785, %v4777
    %v6394 = vpack.c.b16 %v4786, %v4778
    %v6395 = vpack.c.b16 %v4787, %v4779
    %v6396 = vpack.c.b16 %v4788, %v4780
    %v6397 = vpack.c.b16 %v4789, %v4781
    %v6398 = vpack.c.b16 %v4790, %v4782
    %v6399 = vpack.c.b16 %v4791, %v4783
    %v6400 = vpack.c.b16 %v4800, %v4792
    %v6401 = vpack.c.b16 %v4801, %v4793
    %v6402 = vpack.c.b16 %v4802, %v4794
    %v6403 = vpack.c.b16 %v4803, %v4795
    %v6404 = vpack.c.b16 %v4804, %v4796
    %v6405 = vpack.c.b16 %v4805, %v4797
    %v6406 = vpack.c.b16 %v4806, %v4798
    %v6407 = vpack.c.b16 %v4807, %v4799
    %v6408 = vpack.c.b16 %v4816, %v4808
    %v6409 = vpack.c.b16 %v4817, %v4809
    %v6410 = vpack.c.b16 %v4818, %v4810
    %v6411 = vpack.c.b16 %v4819, %v4811
    %v6412 = vpack.c.b16 %v4820, %v4812
    %v6413 = vpack.c.b16 %v4821, %v4813
    %v6414 = vpack.c.b16 %v4822, %v4814
    %v6415 = vpack.c.b16 %v4823, %v4815
    %v6416 = vpack.c.b16 %v4832, %v4824
    %v6417 = vpack.c.b16 %v4833, %v4825
    %v6418 = vpack.c.b16 %v4834, %v4826
    %v6419 = vpack.c.b16 %v4835, %v4827
    %v6420 = vpack.c.b16 %v4836, %v4828
    %v6421 = vpack.c.b16 %v4837, %v4829
    %v6422 = vpack.c.b16 %v4838, %v4830
    %v6423 = vpack.c.b16 %v4839, %v4831
    %v6424 = vpack.c.b16 %v4848, %v4840
    %v6425 = vpack.c.b16 %v4849, %v4841
    %v6426 = vpack.c.b16 %v4850, %v4842
    %v6427 = vpack.c.b16 %v4851, %v4843
    %v6428 = vpack.c.b16 %v4852, %v4844
    %v6429 = vpack.c.b16 %v4853, %v4845
    %v6430 = vpack.c.b16 %v4854, %v4846
    %v6431 = vpack.c.b16 %v4855, %v4847
    %v6432 = vpack.c.b16 %v4864, %v4856
    %v6433 = vpack.c.b16 %v4865, %v4857
    %v6434 = vpack.c.b16 %v4866, %v4858
    %v6435 = vpack.c.b16 %v4867, %v4859
    %v6436 = vpack.c.b16 %v4868, %v4860
    %v6437 = vpack.c.b16 %v4869, %v4861
    %v6438 = vpack.c.b16 %v4870, %v4862
    %v6439 = vpack.c.b16 %v4871, %v4863
    %v6440 = vpack.c.b16 %v4880, %v4872
    %v6441 = vpack.c.b16 %v4881, %v4873
    %v6442 = vpack.c.b16 %v4882, %v4874
    %v6443 = vpack.c.b16 %v4883, %v4875
    %v6444 = vpack.c.b16 %v4884, %v4876
    %v6445 = vpack.c.b16 %v4885, %v4877
    %v6446 = vpack.c.b16 %v4886, %v4878
    %v6447 = vpack.c.b16 %v4887, %v4879
    %v6448 = vpack.c.b16 %v4896, %v4888
    %v6449 = vpack.c.b16 %v4897, %v4889
    %v6450 = vpack.c.b16 %v4898, %v4890
    %v6451 = vpack.c.b16 %v4899, %v4891
    %v6452 = vpack.c.b16 %v4900, %v4892
    %v6453 = vpack.c.b16 %v4901, %v4893
    %v6454 = vpack.c.b16 %v4902, %v4894
    %v6455 = vpack.c.b16 %v4903, %v4895
    %v6456 = vpack.c.b16 %v4912, %v4904
    %v6457 = vpack.c.b16 %v4913, %v4905
    %v6458 = vpack.c.b16 %v4914, %v4906
    %v6459 = vpack.c.b16 %v4915, %v4907
    %v6460 = vpack.c.b16 %v4916, %v4908
    %v6461 = vpack.c.b16 %v4917, %v4909
    %v6462 = vpack.c.b16 %v4918, %v4910
    %v6463 = vpack.c.b16 %v4919, %v4911
    %v6464 = vpack.c.b16 %v4928, %v4920
    %v6465 = vpack.c.b16 %v4929, %v4921
    %v6466 = vpack.c.b16 %v4930, %v4922
    %v6467 = vpack.c.b16 %v4931, %v4923
    %v6468 = vpack.c.b16 %v4932, %v4924
    %v6469 = vpack.c.b16 %v4933, %v4925
    %v6470 = vpack.c.b16 %v4934, %v4926
    %v6471 = vpack.c.b16 %v4935, %v4927
    %v6472 = vpack.c.b16 %v4944, %v4936
    %v6473 = vpack.c.b16 %v4945, %v4937
    %v6474 = vpack.c.b16 %v4946, %v4938
    %v6475 = vpack.c.b16 %v4947, %v4939
    %v6476 = vpack.c.b16 %v4948, %v4940
    %v6477 = vpack.c.b16 %v4949, %v4941
    %v6478 = vpack.c.b16 %v4950, %v4942
    %v6479 = vpack.c.b16 %v4951, %v4943
    %v6480 = vpack.c.b16 %v4960, %v4952
    %v6481 = vpack.c.b16 %v4961, %v4953
    %v6482 = vpack.c.b16 %v4962, %v4954
    %v6483 = vpack.c.b16 %v4963, %v4955
    %v6484 = vpack.c.b16 %v4964, %v4956
    %v6485 = vpack.c.b16 %v4965, %v4957
    %v6486 = vpack.c.b16 %v4966, %v4958
    %v6487 = vpack.c.b16 %v4967, %v4959
    %v6488 = vpack.c.b16 %v4976, %v4968
    %v6489 = vpack.c.b16 %v4977, %v4969
    %v6490 = vpack.c.b16 %v4978, %v4970
    %v6491 = vpack.c.b16 %v4979, %v4971
    %v6492 = vpack.c.b16 %v4980, %v4972
    %v6493 = vpack.c.b16 %v4981, %v4973
    %v6494 = vpack.c.b16 %v4982, %v4974
    %v6495 = vpack.c.b16 %v4983, %v4975
    %v6496 = vpack.c.b16 %v4992, %v4984
    %v6497 = vpack.c.b16 %v4993, %v4985
    %v6498 = vpack.c.b16 %v4994, %v4986
    %v6499 = vpack.c.b16 %v4995, %v4987
    %v6500 = vpack.c.b16 %v4996, %v4988
    %v6501 = vpack.c.b16 %v4997, %v4989
    %v6502 = vpack.c.b16 %v4998, %v4990
    %v6503 = vpack.c.b16 %v4999, %v4991
    %v6504 = vpack.c.b16 %v5008, %v5000
    %v6505 = vpack.c.b16 %v5009, %v5001
    %v6506 = vpack.c.b16 %v5010, %v5002
    %v6507 = vpack.c.b16 %v5011, %v5003
    %v6508 = vpack.c.b16 %v5012, %v5004
    %v6509 = vpack.c.b16 %v5013, %v5005
    %v6510 = vpack.c.b16 %v5014, %v5006
    %v6511 = vpack.c.b16 %v5015, %v5007
    %v6512 = vpack.c.b16 %v5024, %v5016
    %v6513 = vpack.c.b16 %v5025, %v5017
    %v6514 = vpack.c.b16 %v5026, %v5018
    %v6515 = vpack.c.b16 %v5027, %v5019
    %v6516 = vpack.c.b16 %v5028, %v5020
    %v6517 = vpack.c.b16 %v5029, %v5021
    %v6518 = vpack.c.b16 %v5030, %v5022
    %v6519 = vpack.c.b16 %v5031, %v5023
    %v6520 = vpack.c.b16 %v5040, %v5032
    %v6521 = vpack.c.b16 %v5041, %v5033
    %v6522 = vpack.c.b16 %v5042, %v5034
    %v6523 = vpack.c.b16 %v5043, %v5035
    %v6524 = vpack.c.b16 %v5044, %v5036
    %v6525 = vpack.c.b16 %v5045, %v5037
    %v6526 = vpack.c.b16 %v5046, %v5038
    %v6527 = vpack.c.b16 %v5047, %v5039
    %v6528 = vpack.c.b16 %v5056, %v5048
    %v6529 = vpack.c.b16 %v5057, %v5049
    %v6530 = vpack.c.b16 %v5058, %v5050
    %v6531 = vpack.c.b16 %v5059, %v5051
    %v6532 = vpack.c.b16 %v5060, %v5052
    %v6533 = vpack.c.b16 %v5061, %v5053
    %v6534 = vpack.c.b16 %v5062, %v5054
    %v6535 = vpack.c.b16 %v5063, %v5055
    %v6536 = vpack.c.b16 %v5072, %v5064
    %v6537 = vpack.c.b16 %v5073, %v5065
    %v6538 = vpack.c.b16 %v5074, %v5066
    %v6539 = vpack.c.b16 %v5075, %v5067
    %v6540 = vpack.c.b16 %v5076, %v5068
    %v6541 = vpack.c.b16 %v5077, %v5069
    %v6542 = vpack.c.b16 %v5078, %v5070
    %v6543 = vpack.c.b16 %v5079, %v5071
    %v6544 = vpack.c.b16 %v5088, %v5080
    %v6545 = vpack.c.b16 %v5089, %v5081
    %v6546 = vpack.c.b16 %v5090, %v5082
    %v6547 = vpack.c.b16 %v5091, %v5083
    %v6548 = vpack.c.b16 %v5092, %v5084
    %v6549 = vpack.c.b16 %v5093, %v5085
    %v6550 = vpack.c.b16 %v5094, %v5086
    %v6551 = vpack.c.b16 %v5095, %v5087
    %v6552 = vpack.c.b16 %v5104, %v5096
    %v6553 = vpack.c.b16 %v5105, %v5097
    %v6554 = vpack.c.b16 %v5106, %v5098
    %v6555 = vpack.c.b16 %v5107, %v5099
    %v6556 = vpack.c.b16 %v5108, %v5100
    %v6557 = vpack.c.b16 %v5109, %v5101
    %v6558 = vpack.c.b16 %v5110, %v5102
    %v6559 = vpack.c.b16 %v5111, %v5103
    %v6560 = vpack.c.b16 %v5120, %v5112
    %v6561 = vpack.c.b16 %v5121, %v5113
    %v6562 = vpack.c.b16 %v5122, %v5114
    %v6563 = vpack.c.b16 %v5123, %v5115
    %v6564 = vpack.c.b16 %v5124, %v5116
    %v6565 = vpack.c.b16 %v5125, %v5117
    %v6566 = vpack.c.b16 %v5126, %v5118
    %v6567 = vpack.c.b16 %v5127, %v5119
    %v6568 = vpack.c.b16 %v5136, %v5128
    %v6569 = vpack.c.b16 %v5137, %v5129
    %v6570 = vpack.c.b16 %v5138, %v5130
    %v6571 = vpack.c.b16 %v5139, %v5131
    %v6572 = vpack.c.b16 %v5140, %v5132
    %v6573 = vpack.c.b16 %v5141, %v5133
    %v6574 = vpack.c.b16 %v5142, %v5134
    %v6575 = vpack.c.b16 %v5143, %v5135
    %v6576 = vpack.c.b16 %v5152, %v5144
    %v6577 = vpack.c.b16 %v5153, %v5145
    %v6578 = vpack.c.b16 %v5154, %v5146
    %v6579 = vpack.c.b16 %v5155, %v5147
    %v6580 = vpack.c.b16 %v5156, %v5148
    %v6581 = vpack.c.b16 %v5157, %v5149
    %v6582 = vpack.c.b16 %v5158, %v5150
    %v6583 = vpack.c.b16 %v5159, %v5151
    %v6584 = vpack.c.b16 %v5168, %v5160
    %v6585 = vpack.c.b16 %v5169, %v5161
    %v6586 = vpack.c.b16 %v5170, %v5162
    %v6587 = vpack.c.b16 %v5171, %v5163
    %v6588 = vpack.c.b16 %v5172, %v5164
    %v6589 = vpack.c.b16 %v5173, %v5165
    %v6590 = vpack.c.b16 %v5174, %v5166
    %v6591 = vpack.c.b16 %v5175, %v5167
    %v6592 = vpack.c.b16 %v5184, %v5176
    %v6593 = vpack.c.b16 %v5185, %v5177
    %v6594 = vpack.c.b16 %v5186, %v5178
    %v6595 = vpack.c.b16 %v5187, %v5179
    %v6596 = vpack.c.b16 %v5188, %v5180
    %v6597 = vpack.c.b16 %v5189, %v5181
    %v6598 = vpack.c.b16 %v5190, %v5182
    %v6599 = vpack.c.b16 %v5191, %v5183
    %v6600 = vpack.c.b16 %v5200, %v5192
    %v6601 = vpack.c.b16 %v5201, %v5193
    %v6602 = vpack.c.b16 %v5202, %v5194
    %v6603 = vpack.c.b16 %v5203, %v5195
    %v6604 = vpack.c.b16 %v5204, %v5196
    %v6605 = vpack.c.b16 %v5205, %v5197
    %v6606 = vpack.c.b16 %v5206, %v5198
    %v6607 = vpack.c.b16 %v5207, %v5199
    %v6608 = vpack.c.b16 %v5216, %v5208
    %v6609 = vpack.c.b16 %v5217, %v5209
    %v6610 = vpack.c.b16 %v5218, %v5210
    %v6611 = vpack.c.b16 %v5219, %v5211
    %v6612 = vpack.c.b16 %v5220, %v5212
    %v6613 = vpack.c.b16 %v5221, %v5213
    %v6614 = vpack.c.b16 %v5222, %v5214
    %v6615 = vpack.c.b16 %v5223, %v5215
    %v6616 = vpack.c.b16 %v5232, %v5224
    %v6617 = vpack.c.b16 %v5233, %v5225
    %v6618 = vpack.c.b16 %v5234, %v5226
    %v6619 = vpack.c.b16 %v5235, %v5227
    %v6620 = vpack.c.b16 %v5236, %v5228
    %v6621 = vpack.c.b16 %v5237, %v5229
    %v6622 = vpack.c.b16 %v5238, %v5230
    %v6623 = vpack.c.b16 %v5239, %v5231
    %v6624 = vpack.c.b16 %v5248, %v5240
    %v6625 = vpack.c.b16 %v5249, %v5241
    %v6626 = vpack.c.b16 %v5250, %v5242
    %v6627 = vpack.c.b16 %v5251, %v5243
    %v6628 = vpack.c.b16 %v5252, %v5244
    %v6629 = vpack.c.b16 %v5253, %v5245
    %v6630 = vpack.c.b16 %v5254, %v5246
    %v6631 = vpack.c.b16 %v5255, %v5247
    %v6632 = vpack.c.b16 %v5264, %v5256
    %v6633 = vpack.c.b16 %v5265, %v5257
    %v6634 = vpack.c.b16 %v5266, %v5258
    %v6635 = vpack.c.b16 %v5267, %v5259
    %v6636 = vpack.c.b16 %v5268, %v5260
    %v6637 = vpack.c.b16 %v5269, %v5261
    %v6638 = vpack.c.b16 %v5270, %v5262
    %v6639 = vpack.c.b16 %v5271, %v5263
    %v6640 = vpack.c.b16 %v5280, %v5272
    %v6641 = vpack.c.b16 %v5281, %v5273
    %v6642 = vpack.c.b16 %v5282, %v5274
    %v6643 = vpack.c.b16 %v5283, %v5275
    %v6644 = vpack.c.b16 %v5284, %v5276
    %v6645 = vpack.c.b16 %v5285, %v5277
    %v6646 = vpack.c.b16 %v5286, %v5278
    %v6647 = vpack.c.b16 %v5287, %v5279
    %v6648 = vpack.c.b16 %v5296, %v5288
    %v6649 = vpack.c.b16 %v5297, %v5289
    %v6650 = vpack.c.b16 %v5298, %v5290
    %v6651 = vpack.c.b16 %v5299, %v5291
    %v6652 = vpack.c.b16 %v5300, %v5292
    %v6653 = vpack.c.b16 %v5301, %v5293
    %v6654 = vpack.c.b16 %v5302, %v5294
    %v6655 = vpack.c.b16 %v5303, %v5295
    %v6656 = vpack.c.b16 %v5312, %v5304
    %v6657 = vpack.c.b16 %v5313, %v5305
    %v6658 = vpack.c.b16 %v5314, %v5306
    %v6659 = vpack.c.b16 %v5315, %v5307
    %v6660 = vpack.c.b16 %v5316, %v5308
    %v6661 = vpack.c.b16 %v5317, %v5309
    %v6662 = vpack.c.b16 %v5318, %v5310
    %v6663 = vpack.c.b16 %v5319, %v5311
    %v6664 = vpack.c.b16 %v5328, %v5320
    %v6665 = vpack.c.b16 %v5329, %v5321
    %v6666 = vpack.c.b16 %v5330, %v5322
    %v6667 = vpack.c.b16 %v5331, %v5323
    %v6668 = vpack.c.b16 %v5332, %v5324
    %v6669 = vpack.c.b16 %v5333, %v5325
    %v6670 = vpack.c.b16 %v5334, %v5326
    %v6671 = vpack.c.b16 %v5335, %v5327
    %v6672 = vpack.c.b16 %v5344, %v5336
    %v6673 = vpack.c.b16 %v5345, %v5337
    %v6674 = vpack.c.b16 %v5346, %v5338
    %v6675 = vpack.c.b16 %v5347, %v5339
    %v6676 = vpack.c.b16 %v5348, %v5340
    %v6677 = vpack.c.b16 %v5349, %v5341
    %v6678 = vpack.c.b16 %v5350, %v5342
    %v6679 = vpack.c.b16 %v5351, %v5343
    %v6680 = vpack.c.b16 %v5360, %v5352
    %v6681 = vpack.c.b16 %v5361, %v5353
    %v6682 = vpack.c.b16 %v5362, %v5354
    %v6683 = vpack.c.b16 %v5363, %v5355
    %v6684 = vpack.c.b16 %v5364, %v5356
    %v6685 = vpack.c.b16 %v5365, %v5357
    %v6686 = vpack.c.b16 %v5366, %v5358
    %v6687 = vpack.c.b16 %v5367, %v5359
    %v6688 = vpack.c.b16 %v5376, %v5368
    %v6689 = vpack.c.b16 %v5377, %v5369
    %v6690 = vpack.c.b16 %v5378, %v5370
    %v6691 = vpack.c.b16 %v5379, %v5371
    %v6692 = vpack.c.b16 %v5380, %v5372
    %v6693 = vpack.c.b16 %v5381, %v5373
    %v6694 = vpack.c.b16 %v5382, %v5374
    %v6695 = vpack.c.b16 %v5383, %v5375
    %v6696 = vpack.c.b16 %v5392, %v5384
    %v6697 = vpack.c.b16 %v5393, %v5385
    %v6698 = vpack.c.b16 %v5394, %v5386
    %v6699 = vpack.c.b16 %v5395, %v5387
    %v6700 = vpack.c.b16 %v5396, %v5388
    %v6701 = vpack.c.b16 %v5397, %v5389
    %v6702 = vpack.c.b16 %v5398, %v5390
    %v6703 = vpack.c.b16 %v5399, %v5391
    %v6704 = vpack.c.b16 %v5408, %v5400
    %v6705 = vpack.c.b16 %v5409, %v5401
    %v6706 = vpack.c.b16 %v5410, %v5402
    %v6707 = vpack.c.b16 %v5411, %v5403
    %v6708 = vpack.c.b16 %v5412, %v5404
    %v6709 = vpack.c.b16 %v5413, %v5405
    %v6710 = vpack.c.b16 %v5414, %v5406
    %v6711 = vpack.c.b16 %v5415, %v5407
    %v6712 = vpack.c.b16 %v5424, %v5416
    %v6713 = vpack.c.b16 %v5425, %v5417
    %v6714 = vpack.c.b16 %v5426, %v5418
    %v6715 = vpack.c.b16 %v5427, %v5419
    %v6716 = vpack.c.b16 %v5428, %v5420
    %v6717 = vpack.c.b16 %v5429, %v5421
    %v6718 = vpack.c.b16 %v5430, %v5422
    %v6719 = vpack.c.b16 %v5431, %v5423
    %v6720 = vpack.c.b16 %v5440, %v5432
    %v6721 = vpack.c.b16 %v5441, %v5433
    %v6722 = vpack.c.b16 %v5442, %v5434
    %v6723 = vpack.c.b16 %v5443, %v5435
    %v6724 = vpack.c.b16 %v5444, %v5436
    %v6725 = vpack.c.b16 %v5445, %v5437
    %v6726 = vpack.c.b16 %v5446, %v5438
    %v6727 = vpack.c.b16 %v5447, %v5439
    %v6728 = vpack.c.b16 %v5456, %v5448
    %v6729 = vpack.c.b16 %v5457, %v5449
    %v6730 = vpack.c.b16 %v5458, %v5450
    %v6731 = vpack.c.b16 %v5459, %v5451
    %v6732 = vpack.c.b16 %v5460, %v5452
    %v6733 = vpack.c.b16 %v5461, %v5453
    %v6734 = vpack.c.b16 %v5462, %v5454
    %v6735 = vpack.c.b16 %v5463, %v5455
    %v6736 = vpack.c.b16 %v5472, %v5464
    %v6737 = vpack.c.b16 %v5473, %v5465
    %v6738 = vpack.c.b16 %v5474, %v5466
    %v6739 = vpack.c.b16 %v5475, %v5467
    %v6740 = vpack.c.b16 %v5476, %v5468
    %v6741 = vpack.c.b16 %v5477, %v5469
    %v6742 = vpack.c.b16 %v5478, %v5470
    %v6743 = vpack.c.b16 %v5479, %v5471
    %v6744 = vpack.c.b16 %v5488, %v5480
    %v6745 = vpack.c.b16 %v5489, %v5481
    %v6746 = vpack.c.b16 %v5490, %v5482
    %v6747 = vpack.c.b16 %v5491, %v5483
    %v6748 = vpack.c.b16 %v5492, %v5484
    %v6749 = vpack.c.b16 %v5493, %v5485
    %v6750 = vpack.c.b16 %v5494, %v5486
    %v6751 = vpack.c.b16 %v5495, %v5487
    %v6752 = vpack.c.b16 %v5504, %v5496
    %v6753 = vpack.c.b16 %v5505, %v5497
    %v6754 = vpack.c.b16 %v5506, %v5498
    %v6755 = vpack.c.b16 %v5507, %v5499
    %v6756 = vpack.c.b16 %v5508, %v5500
    %v6757 = vpack.c.b16 %v5509, %v5501
    %v6758 = vpack.c.b16 %v5510, %v5502
    %v6759 = vpack.c.b16 %v5511, %v5503
    %v6760 = vpack.c.b16 %v5520, %v5512
    %v6761 = vpack.c.b16 %v5521, %v5513
    %v6762 = vpack.c.b16 %v5522, %v5514
    %v6763 = vpack.c.b16 %v5523, %v5515
    %v6764 = vpack.c.b16 %v5524, %v5516
    %v6765 = vpack.c.b16 %v5525, %v5517
    %v6766 = vpack.c.b16 %v5526, %v5518
    %v6767 = vpack.c.b16 %v5527, %v5519
    %v6768 = vpack.c.b16 %v5536, %v5528
    %v6769 = vpack.c.b16 %v5537, %v5529
    %v6770 = vpack.c.b16 %v5538, %v5530
    %v6771 = vpack.c.b16 %v5539, %v5531
    %v6772 = vpack.c.b16 %v5540, %v5532
    %v6773 = vpack.c.b16 %v5541, %v5533
    %v6774 = vpack.c.b16 %v5542, %v5534
    %v6775 = vpack.c.b16 %v5543, %v5535
    %v6776 = vpack.c.b16 %v5552, %v5544
    %v6777 = vpack.c.b16 %v5553, %v5545
    %v6778 = vpack.c.b16 %v5554, %v5546
    %v6779 = vpack.c.b16 %v5555, %v5547
    %v6780 = vpack.c.b16 %v5556, %v5548
    %v6781 = vpack.c.b16 %v5557, %v5549
    %v6782 = vpack.c.b16 %v5558, %v5550
    %v6783 = vpack.c.b16 %v5559, %v5551
    %v6784 = vpack.c.b16 %v5568, %v5560
    %v6785 = vpack.c.b16 %v5569, %v5561
    %v6786 = vpack.c.b16 %v5570, %v5562
    %v6787 = vpack.c.b16 %v5571, %v5563
    %v6788 = vpack.c.b16 %v5572, %v5564
    %v6789 = vpack.c.b16 %v5573, %v5565
    %v6790 = vpack.c.b16 %v5574, %v5566
    %v6791 = vpack.c.b16 %v5575, %v5567
    %v6792 = vpack.c.b16 %v5584, %v5576
    %v6793 = vpack.c.b16 %v5585, %v5577
    %v6794 = vpack.c.b16 %v5586, %v5578
    %v6795 = vpack.c.b16 %v5587, %v5579
    %v6796 = vpack.c.b16 %v5588, %v5580
    %v6797 = vpack.c.b16 %v5589, %v5581
    %v6798 = vpack.c.b16 %v5590, %v5582
    %v6799 = vpack.c.b16 %v5591, %v5583
    %v6800 = vpack.c.b16 %v5600, %v5592
    %v6801 = vpack.c.b16 %v5601, %v5593
    %v6802 = vpack.c.b16 %v5602, %v5594
    %v6803 = vpack.c.b16 %v5603, %v5595
    %v6804 = vpack.c.b16 %v5604, %v5596
    %v6805 = vpack.c.b16 %v5605, %v5597
    %v6806 = vpack.c.b16 %v5606, %v5598
    %v6807 = vpack.c.b16 %v5607, %v5599
    %v6808 = vpack.c.b16 %v5616, %v5608
    %v6809 = vpack.c.b16 %v5617, %v5609
    %v6810 = vpack.c.b16 %v5618, %v5610
    %v6811 = vpack.c.b16 %v5619, %v5611
    %v6812 = vpack.c.b16 %v5620, %v5612
    %v6813 = vpack.c.b16 %v5621, %v5613
    %v6814 = vpack.c.b16 %v5622, %v5614
    %v6815 = vpack.c.b16 %v5623, %v5615
    %v6816 = vpack.c.b16 %v5632, %v5624
    %v6817 = vpack.c.b16 %v5633, %v5625
    %v6818 = vpack.c.b16 %v5634, %v5626
    %v6819 = vpack.c.b16 %v5635, %v5627
    %v6820 = vpack.c.b16 %v5636, %v5628
    %v6821 = vpack.c.b16 %v5637, %v5629
    %v6822 = vpack.c.b16 %v5638, %v5630
    %v6823 = vpack.c.b16 %v5639, %v5631
    %v6824 = vpack.c.b16 %v5648, %v5640
    %v6825 = vpack.c.b16 %v5649, %v5641
    %v6826 = vpack.c.b16 %v5650, %v5642
    %v6827 = vpack.c.b16 %v5651, %v5643
    %v6828 = vpack.c.b16 %v5652, %v5644
    %v6829 = vpack.c.b16 %v5653, %v5645
    %v6830 = vpack.c.b16 %v5654, %v5646
    %v6831 = vpack.c.b16 %v5655, %v5647
    %v6832 = vpack.c.b16 %v5664, %v5656
    %v6833 = vpack.c.b16 %v5665, %v5657
    %v6834 = vpack.c.b16 %v5666, %v5658
    %v6835 = vpack.c.b16 %v5667, %v5659
    %v6836 = vpack.c.b16 %v5668, %v5660
    %v6837 = vpack.c.b16 %v5669, %v5661
    %v6838 = vpack.c.b16 %v5670, %v5662
    %v6839 = vpack.c.b16 %v5671, %v5663
    %v6840 = vpack.c.b16 %v5680, %v5672
    %v6841 = vpack.c.b16 %v5681, %v5673
    %v6842 = vpack.c.b16 %v5682, %v5674
    %v6843 = vpack.c.b16 %v5683, %v5675
    %v6844 = vpack.c.b16 %v5684, %v5676
    %v6845 = vpack.c.b16 %v5685, %v5677
    %v6846 = vpack.c.b16 %v5686, %v5678
    %v6847 = vpack.c.b16 %v5687, %v5679
    %v6848 = vpack.c.b16 %v5696, %v5688
    %v6849 = vpack.c.b16 %v5697, %v5689
    %v6850 = vpack.c.b16 %v5698, %v5690
    %v6851 = vpack.c.b16 %v5699, %v5691
    %v6852 = vpack.c.b16 %v5700, %v5692
    %v6853 = vpack.c.b16 %v5701, %v5693
    %v6854 = vpack.c.b16 %v5702, %v5694
    %v6855 = vpack.c.b16 %v5703, %v5695
    %v6856 = vpack.c.b16 %v5712, %v5704
    %v6857 = vpack.c.b16 %v5713, %v5705
    %v6858 = vpack.c.b16 %v5714, %v5706
    %v6859 = vpack.c.b16 %v5715, %v5707
    %v6860 = vpack.c.b16 %v5716, %v5708
    %v6861 = vpack.c.b16 %v5717, %v5709
    %v6862 = vpack.c.b16 %v5718, %v5710
    %v6863 = vpack.c.b16 %v5719, %v5711
    %v6864 = vpack.c.b16 %v5728, %v5720
    %v6865 = vpack.c.b16 %v5729, %v5721
    %v6866 = vpack.c.b16 %v5730, %v5722
    %v6867 = vpack.c.b16 %v5731, %v5723
    %v6868 = vpack.c.b16 %v5732, %v5724
    %v6869 = vpack.c.b16 %v5733, %v5725
    %v6870 = vpack.c.b16 %v5734, %v5726
    %v6871 = vpack.c.b16 %v5735, %v5727
    %v6872 = vpack.c.b16 %v5744, %v5736
    %v6873 = vpack.c.b16 %v5745, %v5737
    %v6874 = vpack.c.b16 %v5746, %v5738
    %v6875 = vpack.c.b16 %v5747, %v5739
    %v6876 = vpack.c.b16 %v5748, %v5740
    %v6877 = vpack.c.b16 %v5749, %v5741
    %v6878 = vpack.c.b16 %v5750, %v5742
    %v6879 = vpack.c.b16 %v5751, %v5743
    %v6880 = vpack.c.b16 %v5760, %v5752
    %v6881 = vpack.c.b16 %v5761, %v5753
    %v6882 = vpack.c.b16 %v5762, %v5754
    %v6883 = vpack.c.b16 %v5763, %v5755
    %v6884 = vpack.c.b16 %v5764, %v5756
    %v6885 = vpack.c.b16 %v5765, %v5757
    %v6886 = vpack.c.b16 %v5766, %v5758
    %v6887 = vpack.c.b16 %v5767, %v5759
    %v6888 = vpack.c.b16 %v5776, %v5768
    %v6889 = vpack.c.b16 %v5777, %v5769
    %v6890 = vpack.c.b16 %v5778, %v5770
    %v6891 = vpack.c.b16 %v5779, %v5771
    %v6892 = vpack.c.b16 %v5780, %v5772
    %v6893 = vpack.c.b16 %v5781, %v5773
    %v6894 = vpack.c.b16 %v5782, %v5774
    %v6895 = vpack.c.b16 %v5783, %v5775
    %v6896 = vpack.c.b16 %v5792, %v5784
    %v6897 = vpack.c.b16 %v5793, %v5785
    %v6898 = vpack.c.b16 %v5794, %v5786
    %v6899 = vpack.c.b16 %v5795, %v5787
    %v6900 = vpack.c.b16 %v5796, %v5788
    %v6901 = vpack.c.b16 %v5797, %v5789
    %v6902 = vpack.c.b16 %v5798, %v5790
    %v6903 = vpack.c.b16 %v5799, %v5791
    %v6904 = vpack.c.b16 %v5808, %v5800
    %v6905 = vpack.c.b16 %v5809, %v5801
    %v6906 = vpack.c.b16 %v5810, %v5802
    %v6907 = vpack.c.b16 %v5811, %v5803
    %v6908 = vpack.c.b16 %v5812, %v5804
    %v6909 = vpack.c.b16 %v5813, %v5805
    %v6910 = vpack.c.b16 %v5814, %v5806
    %v6911 = vpack.c.b16 %v5815, %v5807
    %v6912 = vpack.c.b16 %v5824, %v5816
    %v6913 = vpack.c.b16 %v5825, %v5817
    %v6914 = vpack.c.b16 %v5826, %v5818
    %v6915 = vpack.c.b16 %v5827, %v5819
    %v6916 = vpack.c.b16 %v5828, %v5820
    %v6917 = vpack.c.b16 %v5829, %v5821
    %v6918 = vpack.c.b16 %v5830, %v5822
    %v6919 = vpack.c.b16 %v5831, %v5823
    %v6920 = vpack.c.b16 %v5840, %v5832
    %v6921 = vpack.c.b16 %v5841, %v5833
    %v6922 = vpack.c.b16 %v5842, %v5834
    %v6923 = vpack.c.b16 %v5843, %v5835
    %v6924 = vpack.c.b16 %v5844, %v5836
    %v6925 = vpack.c.b16 %v5845, %v5837
    %v6926 = vpack.c.b16 %v5846, %v5838
    %v6927 = vpack.c.b16 %v5847, %v5839
    %v6928 = vpack.c.b16 %v5856, %v5848
    %v6929 = vpack.c.b16 %v5857, %v5849
    %v6930 = vpack.c.b16 %v5858, %v5850
    %v6931 = vpack.c.b16 %v5859, %v5851
    %v6932 = vpack.c.b16 %v5860, %v5852
    %v6933 = vpack.c.b16 %v5861, %v5853
    %v6934 = vpack.c.b16 %v5862, %v5854
    %v6935 = vpack.c.b16 %v5863, %v5855
    %v6936 = vpack.c.b16 %v5872, %v5864
    %v6937 = vpack.c.b16 %v5873, %v5865
    %v6938 = vpack.c.b16 %v5874, %v5866
    %v6939 = vpack.c.b16 %v5875, %v5867
    %v6940 = vpack.c.b16 %v5876, %v5868
    %v6941 = vpack.c.b16 %v5877, %v5869
    %v6942 = vpack.c.b16 %v5878, %v5870
    %v6943 = vpack.c.b16 %v5879, %v5871
    %v6944 = vpack.c.b16 %v5888, %v5880
    %v6945 = vpack.c.b16 %v5889, %v5881
    %v6946 = vpack.c.b16 %v5890, %v5882
    %v6947 = vpack.c.b16 %v5891, %v5883
    %v6948 = vpack.c.b16 %v5892, %v5884
    %v6949 = vpack.c.b16 %v5893, %v5885
    %v6950 = vpack.c.b16 %v5894, %v5886
    %v6951 = vpack.c.b16 %v5895, %v5887
    %v6952 = vpack.c.b16 %v5904, %v5896
    %v6953 = vpack.c.b16 %v5905, %v5897
    %v6954 = vpack.c.b16 %v5906, %v5898
    %v6955 = vpack.c.b16 %v5907, %v5899
    %v6956 = vpack.c.b16 %v5908, %v5900
    %v6957 = vpack.c.b16 %v5909, %v5901
    %v6958 = vpack.c.b16 %v5910, %v5902
    %v6959 = vpack.c.b16 %v5911, %v5903
    %v6960 = vpack.c.b16 %v5920, %v5912
    %v6961 = vpack.c.b16 %v5921, %v5913
    %v6962 = vpack.c.b16 %v5922, %v5914
    %v6963 = vpack.c.b16 %v5923, %v5915
    %v6964 = vpack.c.b16 %v5924, %v5916
    %v6965 = vpack.c.b16 %v5925, %v5917
    %v6966 = vpack.c.b16 %v5926, %v5918
    %v6967 = vpack.c.b16 %v5927, %v5919
    %v6968 = vpack.c.b16 %v5936, %v5928
    %v6969 = vpack.c.b16 %v5937, %v5929
    %v6970 = vpack.c.b16 %v5938, %v5930
    %v6971 = vpack.c.b16 %v5939, %v5931
    %v6972 = vpack.c.b16 %v5940, %v5932
    %v6973 = vpack.c.b16 %v5941, %v5933
    %v6974 = vpack.c.b16 %v5942, %v5934
    %v6975 = vpack.c.b16 %v5943, %v5935
    %v6976 = vpack.c.b16 %v5952, %v5944
    %v6977 = vpack.c.b16 %v5953, %v5945
    %v6978 = vpack.c.b16 %v5954, %v5946
    %v6979 = vpack.c.b16 %v5955, %v5947
    %v6980 = vpack.c.b16 %v5956, %v5948
    %v6981 = vpack.c.b16 %v5957, %v5949
    %v6982 = vpack.c.b16 %v5958, %v5950
    %v6983 = vpack.c.b16 %v5959, %v5951
    %8008 = vmatprep.subr.bf16.mxu0 %v5961
    %8009 = vmatpush1.bf16.msra.mxu0 %v5960
    %8010 = vmatprep.subr.bf16.mxu0 %v5969
    %8011 = vmatpush1.bf16.msra.mxu0 %v5968
    %8012 = vmatprep.subr.bf16.mxu0 %v5977
    %8013 = vmatpush1.bf16.msra.mxu0 %v5976
    %8014 = vmatprep.subr.bf16.mxu0 %v5985
    %8015 = vmatpush1.bf16.msra.mxu0 %v5984
    %8016 = vmatprep.subr.bf16.mxu0 %v5993
    %8017 = vmatpush1.bf16.msra.mxu0 %v5992
    %8018 = vmatprep.subr.bf16.mxu0 %v6001
    %8019 = vmatpush1.bf16.msra.mxu0 %v6000
    %8020 = vmatprep.subr.bf16.mxu0 %v6009
    %8021 = vmatpush1.bf16.msra.mxu0 %v6008
    %8022 = vmatprep.subr.bf16.mxu0 %v6017
    %8023 = vmatpush1.bf16.msra.mxu0 %v6016
    %8024 = vmatprep.subr.bf16.mxu0 %v6025
    %8025 = vmatpush1.bf16.msra.mxu0 %v6024
    %8026 = vmatprep.subr.bf16.mxu0 %v6033
    %8027 = vmatpush1.bf16.msra.mxu0 %v6032
    %8028 = vmatprep.subr.bf16.mxu0 %v6041
    %8029 = vmatpush1.bf16.msra.mxu0 %v6040
    %8030 = vmatprep.subr.bf16.mxu0 %v6049
    %8031 = vmatpush1.bf16.msra.mxu0 %v6048
    %8032 = vmatprep.subr.bf16.mxu0 %v6057
    %8033 = vmatpush1.bf16.msra.mxu0 %v6056
    %8034 = vmatprep.subr.bf16.mxu0 %v6065
    %8035 = vmatpush1.bf16.msra.mxu0 %v6064
    %8036 = vmatprep.subr.bf16.mxu0 %v6073
    %8037 = vmatpush1.bf16.msra.mxu0 %v6072
    %8038 = vmatprep.subr.bf16.mxu0 %v6081
    %8039 = vmatpush1.bf16.msra.mxu0 %v6080
    %8040 = vmatprep.mubr.bf16.mxu0 %v1807
    %8041 = vmatmul.mubr.bf16.gmra.mrb[0].mxu0 %v1806
    %v8042 = vpop.f32.mrb[0].mxu0
    %v8043 = vadd.f32 %v2851, %v8042
    %v8044 = vpop.f32.mrb[0].mxu0
    %v8045 = vadd.f32 %v2855, %v8044
    %v8046 = vpop.f32.mrb[0].mxu0
    %v8047 = vpop.f32.mrb[0].mxu0
    %8048 = vdwg.mxu0
    %8049 = vmatprep.subr.bf16.mxu0 %v6089
    %8050 = vmatpush1.bf16.msra.mxu0 %v6088
    %8051 = vmatprep.subr.bf16.mxu0 %v6097
    %8052 = vmatpush1.bf16.msra.mxu0 %v6096
    %8053 = vmatprep.subr.bf16.mxu0 %v6105
    %8054 = vmatpush1.bf16.msra.mxu0 %v6104
    %8055 = vmatprep.subr.bf16.mxu0 %v6113
    %8056 = vmatpush1.bf16.msra.mxu0 %v6112
    %8057 = vmatprep.subr.bf16.mxu0 %v6121
    %8058 = vmatpush1.bf16.msra.mxu0 %v6120
    %8059 = vmatprep.subr.bf16.mxu0 %v6129
    %8060 = vmatpush1.bf16.msra.mxu0 %v6128
    %8061 = vmatprep.subr.bf16.mxu0 %v6137
    %8062 = vmatpush1.bf16.msra.mxu0 %v6136
    %8063 = vmatprep.subr.bf16.mxu0 %v6145
    %8064 = vmatpush1.bf16.msra.mxu0 %v6144
    %8065 = vmatprep.subr.bf16.mxu0 %v6153
    %8066 = vmatpush1.bf16.msra.mxu0 %v6152
    %8067 = vmatprep.subr.bf16.mxu0 %v6161
    %8068 = vmatpush1.bf16.msra.mxu0 %v6160
    %8069 = vmatprep.subr.bf16.mxu0 %v6169
    %8070 = vmatpush1.bf16.msra.mxu0 %v6168
    %8071 = vmatprep.subr.bf16.mxu0 %v6177
    %8072 = vmatpush1.bf16.msra.mxu0 %v6176
    %8073 = vmatprep.subr.bf16.mxu0 %v6185
    %8074 = vmatpush1.bf16.msra.mxu0 %v6184
    %8075 = vmatprep.subr.bf16.mxu0 %v6193
    %8076 = vmatpush1.bf16.msra.mxu0 %v6192
    %8077 = vmatprep.subr.bf16.mxu0 %v6201
    %8078 = vmatpush1.bf16.msra.mxu0 %v6200
    %8079 = vmatprep.subr.bf16.mxu0 %v6209
    %8080 = vmatpush1.bf16.msra.mxu0 %v6208
    %8081 = vmatprep.mubr.bf16.mxu0 %v1809
    %8082 = vmatmul.mubr.bf16.gmra.mrb[0].mxu0 %v1808
    %v8083 = vpop.f32.mrb[0].mxu0
    %v8084 = vadd.f32 %v8043, %v8083
    %v8085 = vpop.f32.mrb[0].mxu0
    %v8086 = vadd.f32 %v8045, %v8085
    %v8087 = vpop.f32.mrb[0].mxu0
    %v8088 = vpop.f32.mrb[0].mxu0
    %8089 = vdwg.mxu0
    %8090 = vmatprep.subr.bf16.mxu0 %v6217
    %8091 = vmatpush1.bf16.msra.mxu0 %v6216
    %8092 = vmatprep.subr.bf16.mxu0 %v6225
    %8093 = vmatpush1.bf16.msra.mxu0 %v6224
    %8094 = vmatprep.subr.bf16.mxu0 %v6233
    %8095 = vmatpush1.bf16.msra.mxu0 %v6232
    %8096 = vmatprep.subr.bf16.mxu0 %v6241
    %8097 = vmatpush1.bf16.msra.mxu0 %v6240
    %8098 = vmatprep.subr.bf16.mxu0 %v6249
    %8099 = vmatpush1.bf16.msra.mxu0 %v6248
    %8100 = vmatprep.subr.bf16.mxu0 %v6257
    %8101 = vmatpush1.bf16.msra.mxu0 %v6256
    %8102 = vmatprep.subr.bf16.mxu0 %v6265
    %8103 = vmatpush1.bf16.msra.mxu0 %v6264
    %8104 = vmatprep.subr.bf16.mxu0 %v6273
    %8105 = vmatpush1.bf16.msra.mxu0 %v6272
    %8106 = vmatprep.subr.bf16.mxu0 %v6281
    %8107 = vmatpush1.bf16.msra.mxu0 %v6280
    %8108 = vmatprep.subr.bf16.mxu0 %v6289
    %8109 = vmatpush1.bf16.msra.mxu0 %v6288
    %8110 = vmatprep.subr.bf16.mxu0 %v6297
    %8111 = vmatpush1.bf16.msra.mxu0 %v6296
    %8112 = vmatprep.subr.bf16.mxu0 %v6305
    %8113 = vmatpush1.bf16.msra.mxu0 %v6304
    %8114 = vmatprep.subr.bf16.mxu0 %v6313
    %8115 = vmatpush1.bf16.msra.mxu0 %v6312
    %8116 = vmatprep.subr.bf16.mxu0 %v6321
    %8117 = vmatpush1.bf16.msra.mxu0 %v6320
    %8118 = vmatprep.subr.bf16.mxu0 %v6329
    %8119 = vmatpush1.bf16.msra.mxu0 %v6328
    %8120 = vmatprep.subr.bf16.mxu0 %v6337
    %8121 = vmatpush1.bf16.msra.mxu0 %v6336
    %8122 = vmatprep.mubr.bf16.mxu0 %v1811
    %8123 = vmatmul.mubr.bf16.gmra.mrb[0].mxu0 %v1810
    %v8124 = vpop.f32.mrb[0].mxu0
    %v8125 = vadd.f32 %v8084, %v8124
    %v8126 = vpop.f32.mrb[0].mxu0
    %v8127 = vadd.f32 %v8086, %v8126
    %v8128 = vpop.f32.mrb[0].mxu0
    %v8129 = vpop.f32.mrb[0].mxu0
    %8130 = vdwg.mxu0
    %8131 = vmatprep.subr.bf16.mxu0 %v6345
    %8132 = vmatpush1.bf16.msra.mxu0 %v6344
    %8133 = vmatprep.subr.bf16.mxu0 %v6353
    %8134 = vmatpush1.bf16.msra.mxu0 %v6352
    %8135 = vmatprep.subr.bf16.mxu0 %v6361
    %8136 = vmatpush1.bf16.msra.mxu0 %v6360
    %8137 = vmatprep.subr.bf16.mxu0 %v6369
    %8138 = vmatpush1.bf16.msra.mxu0 %v6368
    %8139 = vmatprep.subr.bf16.mxu0 %v6377
    %8140 = vmatpush1.bf16.msra.mxu0 %v6376
    %8141 = vmatprep.subr.bf16.mxu0 %v6385
    %8142 = vmatpush1.bf16.msra.mxu0 %v6384
    %8143 = vmatprep.subr.bf16.mxu0 %v6393
    %8144 = vmatpush1.bf16.msra.mxu0 %v6392
    %8145 = vmatprep.subr.bf16.mxu0 %v6401
    %8146 = vmatpush1.bf16.msra.mxu0 %v6400
    %8147 = vmatprep.subr.bf16.mxu0 %v6409
    %8148 = vmatpush1.bf16.msra.mxu0 %v6408
    %8149 = vmatprep.subr.bf16.mxu0 %v6417
    %8150 = vmatpush1.bf16.msra.mxu0 %v6416
    %8151 = vmatprep.subr.bf16.mxu0 %v6425
    %8152 = vmatpush1.bf16.msra.mxu0 %v6424
    %8153 = vmatprep.subr.bf16.mxu0 %v6433
    %8154 = vmatpush1.bf16.msra.mxu0 %v6432
    %8155 = vmatprep.subr.bf16.mxu0 %v6441
    %8156 = vmatpush1.bf16.msra.mxu0 %v6440
    %8157 = vmatprep.subr.bf16.mxu0 %v6449
    %8158 = vmatpush1.bf16.msra.mxu0 %v6448
    %8159 = vmatprep.subr.bf16.mxu0 %v6457
    %8160 = vmatpush1.bf16.msra.mxu0 %v6456
    %8161 = vmatprep.subr.bf16.mxu0 %v6465
    %8162 = vmatpush1.bf16.msra.mxu0 %v6464
    %8163 = vmatprep.mubr.bf16.mxu0 %v1813
    %8164 = vmatmul.mubr.bf16.gmra.mrb[0].mxu0 %v1812
    %v8165 = vpop.f32.mrb[0].mxu0
    %v8166 = vadd.f32 %v8125, %v8165
    %v8167 = vpop.f32.mrb[0].mxu0
    %v8168 = vadd.f32 %v8127, %v8167
    %v8169 = vpop.f32.mrb[0].mxu0
    %v8170 = vpop.f32.mrb[0].mxu0
    %8171 = vdwg.mxu0
    %8172 = vmatprep.subr.bf16.mxu0 %v6473
    %8173 = vmatpush1.bf16.msra.mxu0 %v6472
    %8174 = vmatprep.subr.bf16.mxu0 %v6481
    %8175 = vmatpush1.bf16.msra.mxu0 %v6480
    %8176 = vmatprep.subr.bf16.mxu0 %v6489
    %8177 = vmatpush1.bf16.msra.mxu0 %v6488
    %8178 = vmatprep.subr.bf16.mxu0 %v6497
    %8179 = vmatpush1.bf16.msra.mxu0 %v6496
    %8180 = vmatprep.subr.bf16.mxu0 %v6505
    %8181 = vmatpush1.bf16.msra.mxu0 %v6504
    %8182 = vmatprep.subr.bf16.mxu0 %v6513
    %8183 = vmatpush1.bf16.msra.mxu0 %v6512
    %8184 = vmatprep.subr.bf16.mxu0 %v6521
    %8185 = vmatpush1.bf16.msra.mxu0 %v6520
    %8186 = vmatprep.subr.bf16.mxu0 %v6529
    %8187 = vmatpush1.bf16.msra.mxu0 %v6528
    %8188 = vmatprep.subr.bf16.mxu0 %v6537
    %8189 = vmatpush1.bf16.msra.mxu0 %v6536
    %8190 = vmatprep.subr.bf16.mxu0 %v6545
    %8191 = vmatpush1.bf16.msra.mxu0 %v6544
    %8192 = vmatprep.subr.bf16.mxu0 %v6553
    %8193 = vmatpush1.bf16.msra.mxu0 %v6552
    %8194 = vmatprep.subr.bf16.mxu0 %v6561
    %8195 = vmatpush1.bf16.msra.mxu0 %v6560
    %8196 = vmatprep.subr.bf16.mxu0 %v6569
    %8197 = vmatpush1.bf16.msra.mxu0 %v6568
    %8198 = vmatprep.subr.bf16.mxu0 %v6577
    %8199 = vmatpush1.bf16.msra.mxu0 %v6576
    %8200 = vmatprep.subr.bf16.mxu0 %v6585
    %8201 = vmatpush1.bf16.msra.mxu0 %v6584
    %8202 = vmatprep.subr.bf16.mxu0 %v6593
    %8203 = vmatpush1.bf16.msra.mxu0 %v6592
    %8204 = vmatprep.mubr.bf16.mxu0 %v1815
    %8205 = vmatmul.mubr.bf16.gmra.mrb[0].mxu0 %v1814
    %v8206 = vpop.f32.mrb[0].mxu0
    %v8207 = vadd.f32 %v8166, %v8206
    %v8208 = vpop.f32.mrb[0].mxu0
    %v8209 = vadd.f32 %v8168, %v8208
    %v8210 = vpop.f32.mrb[0].mxu0
    %v8211 = vpop.f32.mrb[0].mxu0
    %8212 = vdwg.mxu0
    %8213 = vmatprep.subr.bf16.mxu0 %v6601
    %8214 = vmatpush1.bf16.msra.mxu0 %v6600
    %8215 = vmatprep.subr.bf16.mxu0 %v6609
    %8216 = vmatpush1.bf16.msra.mxu0 %v6608
    %8217 = vmatprep.subr.bf16.mxu0 %v6617
    %8218 = vmatpush1.bf16.msra.mxu0 %v6616
    %8219 = vmatprep.subr.bf16.mxu0 %v6625
    %8220 = vmatpush1.bf16.msra.mxu0 %v6624
    %8221 = vmatprep.subr.bf16.mxu0 %v6633
    %8222 = vmatpush1.bf16.msra.mxu0 %v6632
    %8223 = vmatprep.subr.bf16.mxu0 %v6641
    %8224 = vmatpush1.bf16.msra.mxu0 %v6640
    %8225 = vmatprep.subr.bf16.mxu0 %v6649
    %8226 = vmatpush1.bf16.msra.mxu0 %v6648
    %8227 = vmatprep.subr.bf16.mxu0 %v6657
    %8228 = vmatpush1.bf16.msra.mxu0 %v6656
    %8229 = vmatprep.subr.bf16.mxu0 %v6665
    %8230 = vmatpush1.bf16.msra.mxu0 %v6664
    %8231 = vmatprep.subr.bf16.mxu0 %v6673
    %8232 = vmatpush1.bf16.msra.mxu0 %v6672
    %8233 = vmatprep.subr.bf16.mxu0 %v6681
    %8234 = vmatpush1.bf16.msra.mxu0 %v6680
    %8235 = vmatprep.subr.bf16.mxu0 %v6689
    %8236 = vmatpush1.bf16.msra.mxu0 %v6688
    %8237 = vmatprep.subr.bf16.mxu0 %v6697
    %8238 = vmatpush1.bf16.msra.mxu0 %v6696
    %8239 = vmatprep.subr.bf16.mxu0 %v6705
    %8240 = vmatpush1.bf16.msra.mxu0 %v6704
    %8241 = vmatprep.subr.bf16.mxu0 %v6713
    %8242 = vmatpush1.bf16.msra.mxu0 %v6712
    %8243 = vmatprep.subr.bf16.mxu0 %v6721
    %8244 = vmatpush1.bf16.msra.mxu0 %v6720
    %8245 = vmatprep.mubr.bf16.mxu0 %v1817
    %8246 = vmatmul.mubr.bf16.gmra.mrb[0].mxu0 %v1816
    %v8247 = vpop.f32.mrb[0].mxu0
    %v8248 = vadd.f32 %v8207, %v8247
    %v8249 = vpop.f32.mrb[0].mxu0
    %v8250 = vadd.f32 %v8209, %v8249
    %v8251 = vpop.f32.mrb[0].mxu0
    %v8252 = vpop.f32.mrb[0].mxu0
    %8253 = vdwg.mxu0
    %8254 = vmatprep.subr.bf16.mxu0 %v6729
    %8255 = vmatpush1.bf16.msra.mxu0 %v6728
    %8256 = vmatprep.subr.bf16.mxu0 %v6737
    %8257 = vmatpush1.bf16.msra.mxu0 %v6736
    %8258 = vmatprep.subr.bf16.mxu0 %v6745
    %8259 = vmatpush1.bf16.msra.mxu0 %v6744
    %8260 = vmatprep.subr.bf16.mxu0 %v6753
    %8261 = vmatpush1.bf16.msra.mxu0 %v6752
    %8262 = vmatprep.subr.bf16.mxu0 %v6761
    %8263 = vmatpush1.bf16.msra.mxu0 %v6760
    %8264 = vmatprep.subr.bf16.mxu0 %v6769
    %8265 = vmatpush1.bf16.msra.mxu0 %v6768
    %8266 = vmatprep.subr.bf16.mxu0 %v6777
    %8267 = vmatpush1.bf16.msra.mxu0 %v6776
    %8268 = vmatprep.subr.bf16.mxu0 %v6785
    %8269 = vmatpush1.bf16.msra.mxu0 %v6784
    %8270 = vmatprep.subr.bf16.mxu0 %v6793
    %8271 = vmatpush1.bf16.msra.mxu0 %v6792
    %8272 = vmatprep.subr.bf16.mxu0 %v6801
    %8273 = vmatpush1.bf16.msra.mxu0 %v6800
    %8274 = vmatprep.subr.bf16.mxu0 %v6809
    %8275 = vmatpush1.bf16.msra.mxu0 %v6808
    %8276 = vmatprep.subr.bf16.mxu0 %v6817
    %8277 = vmatpush1.bf16.msra.mxu0 %v6816
    %8278 = vmatprep.subr.bf16.mxu0 %v6825
    %8279 = vmatpush1.bf16.msra.mxu0 %v6824
    %8280 = vmatprep.subr.bf16.mxu0 %v6833
    %8281 = vmatpush1.bf16.msra.mxu0 %v6832
    %8282 = vmatprep.subr.bf16.mxu0 %v6841
    %8283 = vmatpush1.bf16.msra.mxu0 %v6840
    %8284 = vmatprep.subr.bf16.mxu0 %v6849
    %8285 = vmatpush1.bf16.msra.mxu0 %v6848
    %8286 = vmatprep.mubr.bf16.mxu0 %v1819
    %8287 = vmatmul.mubr.bf16.gmra.mrb[0].mxu0 %v1818
    %v8288 = vpop.f32.mrb[0].mxu0
    %v8289 = vadd.f32 %v8248, %v8288
    %v8290 = vpop.f32.mrb[0].mxu0
    %v8291 = vadd.f32 %v8250, %v8290
    %v8292 = vpop.f32.mrb[0].mxu0
    %v8293 = vpop.f32.mrb[0].mxu0
    %8294 = vdwg.mxu0
    %8295 = vmatprep.subr.bf16.mxu0 %v6857
    %8296 = vmatpush1.bf16.msra.mxu0 %v6856
    %8297 = vmatprep.subr.bf16.mxu0 %v6865
    %8298 = vmatpush1.bf16.msra.mxu0 %v6864
    %8299 = vmatprep.subr.bf16.mxu0 %v6873
    %8300 = vmatpush1.bf16.msra.mxu0 %v6872
    %8301 = vmatprep.subr.bf16.mxu0 %v6881
    %8302 = vmatpush1.bf16.msra.mxu0 %v6880
    %8303 = vmatprep.subr.bf16.mxu0 %v6889
    %8304 = vmatpush1.bf16.msra.mxu0 %v6888
    %8305 = vmatprep.subr.bf16.mxu0 %v6897
    %8306 = vmatpush1.bf16.msra.mxu0 %v6896
    %8307 = vmatprep.subr.bf16.mxu0 %v6905
    %8308 = vmatpush1.bf16.msra.mxu0 %v6904
    %8309 = vmatprep.subr.bf16.mxu0 %v6913
    %8310 = vmatpush1.bf16.msra.mxu0 %v6912
    %8311 = vmatprep.subr.bf16.mxu0 %v6921
    %8312 = vmatpush1.bf16.msra.mxu0 %v6920
    %8313 = vmatprep.subr.bf16.mxu0 %v6929
    %8314 = vmatpush1.bf16.msra.mxu0 %v6928
    %8315 = vmatprep.subr.bf16.mxu0 %v6937
    %8316 = vmatpush1.bf16.msra.mxu0 %v6936
    %8317 = vmatprep.subr.bf16.mxu0 %v6945
    %8318 = vmatpush1.bf16.msra.mxu0 %v6944
    %8319 = vmatprep.subr.bf16.mxu0 %v6953
    %8320 = vmatpush1.bf16.msra.mxu0 %v6952
    %8321 = vmatprep.subr.bf16.mxu0 %v6961
    %8322 = vmatpush1.bf16.msra.mxu0 %v6960
    %8323 = vmatprep.subr.bf16.mxu0 %v6969
    %8324 = vmatpush1.bf16.msra.mxu0 %v6968
    %8325 = vmatprep.subr.bf16.mxu0 %v6977
    %8326 = vmatpush1.bf16.msra.mxu0 %v6976
    %8327 = vmatprep.mubr.bf16.mxu0 %v1821
    %8328 = vmatmul.mubr.bf16.gmra.mrb[0].mxu0 %v1820
    %v8329 = vpop.f32.mrb[0].mxu0
    %v8330 = vadd.f32 %v8289, %v8329
    %v8331 = vpop.f32.mrb[0].mxu0
    %v8332 = vadd.f32 %v8291, %v8331
    %v8333 = vpop.f32.mrb[0].mxu0
    %v8334 = vpop.f32.mrb[0].mxu0
    %8335 = vdwg.mxu0
    %8336 = vmatprep.subr.bf16.mxu0 %v5963
    %8337 = vmatpush1.bf16.msra.mxu0 %v5962
    %8338 = vmatprep.subr.bf16.mxu0 %v5971
    %8339 = vmatpush1.bf16.msra.mxu0 %v5970
    %8340 = vmatprep.subr.bf16.mxu0 %v5979
    %8341 = vmatpush1.bf16.msra.mxu0 %v5978
    %8342 = vmatprep.subr.bf16.mxu0 %v5987
    %8343 = vmatpush1.bf16.msra.mxu0 %v5986
    %8344 = vmatprep.subr.bf16.mxu0 %v5995
    %8345 = vmatpush1.bf16.msra.mxu0 %v5994
    %8346 = vmatprep.subr.bf16.mxu0 %v6003
    %8347 = vmatpush1.bf16.msra.mxu0 %v6002
    %8348 = vmatprep.subr.bf16.mxu0 %v6011
    %8349 = vmatpush1.bf16.msra.mxu0 %v6010
    %8350 = vmatprep.subr.bf16.mxu0 %v6019
    %8351 = vmatpush1.bf16.msra.mxu0 %v6018
    %8352 = vmatprep.subr.bf16.mxu0 %v6027
    %8353 = vmatpush1.bf16.msra.mxu0 %v6026
    %8354 = vmatprep.subr.bf16.mxu0 %v6035
    %8355 = vmatpush1.bf16.msra.mxu0 %v6034
    %8356 = vmatprep.subr.bf16.mxu0 %v6043
    %8357 = vmatpush1.bf16.msra.mxu0 %v6042
    %8358 = vmatprep.subr.bf16.mxu0 %v6051
    %8359 = vmatpush1.bf16.msra.mxu0 %v6050
    %8360 = vmatprep.subr.bf16.mxu0 %v6059
    %8361 = vmatpush1.bf16.msra.mxu0 %v6058
    %8362 = vmatprep.subr.bf16.mxu0 %v6067
    %8363 = vmatpush1.bf16.msra.mxu0 %v6066
    %8364 = vmatprep.subr.bf16.mxu0 %v6075
    %8365 = vmatpush1.bf16.msra.mxu0 %v6074
    %8366 = vmatprep.subr.bf16.mxu0 %v6083
    %8367 = vmatpush1.bf16.msra.mxu0 %v6082
    %8368 = vmatprep.mubr.bf16.mxu0 %v1807
    %8369 = vmatmul.mubr.bf16.gmra.mrb[0].mxu0 %v1806
    %v8370 = vpop.f32.mrb[0].mxu0
    %v8371 = vadd.f32 %v2859, %v8370
    %v8372 = vpop.f32.mrb[0].mxu0
    %v8373 = vadd.f32 %v2863, %v8372
    %v8374 = vpop.f32.mrb[0].mxu0
    %v8375 = vpop.f32.mrb[0].mxu0
    %8376 = vdwg.mxu0
    %8377 = vmatprep.subr.bf16.mxu0 %v6091
    %8378 = vmatpush1.bf16.msra.mxu0 %v6090
    %8379 = vmatprep.subr.bf16.mxu0 %v6099
    %8380 = vmatpush1.bf16.msra.mxu0 %v6098
    %8381 = vmatprep.subr.bf16.mxu0 %v6107
    %8382 = vmatpush1.bf16.msra.mxu0 %v6106
    %8383 = vmatprep.subr.bf16.mxu0 %v6115
    %8384 = vmatpush1.bf16.msra.mxu0 %v6114
    %8385 = vmatprep.subr.bf16.mxu0 %v6123
    %8386 = vmatpush1.bf16.msra.mxu0 %v6122
    %8387 = vmatprep.subr.bf16.mxu0 %v6131
    %8388 = vmatpush1.bf16.msra.mxu0 %v6130
    %8389 = vmatprep.subr.bf16.mxu0 %v6139
    %8390 = vmatpush1.bf16.msra.mxu0 %v6138
    %8391 = vmatprep.subr.bf16.mxu0 %v6147
    %8392 = vmatpush1.bf16.msra.mxu0 %v6146
    %8393 = vmatprep.subr.bf16.mxu0 %v6155
    %8394 = vmatpush1.bf16.msra.mxu0 %v6154
    %8395 = vmatprep.subr.bf16.mxu0 %v6163
    %8396 = vmatpush1.bf16.msra.mxu0 %v6162
    %8397 = vmatprep.subr.bf16.mxu0 %v6171
    %8398 = vmatpush1.bf16.msra.mxu0 %v6170
    %8399 = vmatprep.subr.bf16.mxu0 %v6179
    %8400 = vmatpush1.bf16.msra.mxu0 %v6178
    %8401 = vmatprep.subr.bf16.mxu0 %v6187
    %8402 = vmatpush1.bf16.msra.mxu0 %v6186
    %8403 = vmatprep.subr.bf16.mxu0 %v6195
    %8404 = vmatpush1.bf16.msra.mxu0 %v6194
    %8405 = vmatprep.subr.bf16.mxu0 %v6203
    %8406 = vmatpush1.bf16.msra.mxu0 %v6202
    %8407 = vmatprep.subr.bf16.mxu0 %v6211
    %8408 = vmatpush1.bf16.msra.mxu0 %v6210
    %8409 = vmatprep.mubr.bf16.mxu0 %v1809
    %8410 = vmatmul.mubr.bf16.gmra.mrb[0].mxu0 %v1808
    %v8411 = vpop.f32.mrb[0].mxu0
    %v8412 = vadd.f32 %v8371, %v8411
    %v8413 = vpop.f32.mrb[0].mxu0
    %v8414 = vadd.f32 %v8373, %v8413
    %v8415 = vpop.f32.mrb[0].mxu0
    %v8416 = vpop.f32.mrb[0].mxu0
    %8417 = vdwg.mxu0
    %8418 = vmatprep.subr.bf16.mxu0 %v6219
    %8419 = vmatpush1.bf16.msra.mxu0 %v6218
    %8420 = vmatprep.subr.bf16.mxu0 %v6227
    %8421 = vmatpush1.bf16.msra.mxu0 %v6226
    %8422 = vmatprep.subr.bf16.mxu0 %v6235
    %8423 = vmatpush1.bf16.msra.mxu0 %v6234
    %8424 = vmatprep.subr.bf16.mxu0 %v6243
    %8425 = vmatpush1.bf16.msra.mxu0 %v6242
    %8426 = vmatprep.subr.bf16.mxu0 %v6251
    %8427 = vmatpush1.bf16.msra.mxu0 %v6250
    %8428 = vmatprep.subr.bf16.mxu0 %v6259
    %8429 = vmatpush1.bf16.msra.mxu0 %v6258
    %8430 = vmatprep.subr.bf16.mxu0 %v6267
    %8431 = vmatpush1.bf16.msra.mxu0 %v6266
    %8432 = vmatprep.subr.bf16.mxu0 %v6275
    %8433 = vmatpush1.bf16.msra.mxu0 %v6274
    %8434 = vmatprep.subr.bf16.mxu0 %v6283
    %8435 = vmatpush1.bf16.msra.mxu0 %v6282
    %8436 = vmatprep.subr.bf16.mxu0 %v6291
    %8437 = vmatpush1.bf16.msra.mxu0 %v6290
    %8438 = vmatprep.subr.bf16.mxu0 %v6299
    %8439 = vmatpush1.bf16.msra.mxu0 %v6298
    %8440 = vmatprep.subr.bf16.mxu0 %v6307
    %8441 = vmatpush1.bf16.msra.mxu0 %v6306
    %8442 = vmatprep.subr.bf16.mxu0 %v6315
    %8443 = vmatpush1.bf16.msra.mxu0 %v6314
    %8444 = vmatprep.subr.bf16.mxu0 %v6323
    %8445 = vmatpush1.bf16.msra.mxu0 %v6322
    %8446 = vmatprep.subr.bf16.mxu0 %v6331
    %8447 = vmatpush1.bf16.msra.mxu0 %v6330
    %8448 = vmatprep.subr.bf16.mxu0 %v6339
    %8449 = vmatpush1.bf16.msra.mxu0 %v6338
    %8450 = vmatprep.mubr.bf16.mxu0 %v1811
    %8451 = vmatmul.mubr.bf16.gmra.mrb[0].mxu0 %v1810
    %v8452 = vpop.f32.mrb[0].mxu0
    %v8453 = vadd.f32 %v8412, %v8452
    %v8454 = vpop.f32.mrb[0].mxu0
    %v8455 = vadd.f32 %v8414, %v8454
    %v8456 = vpop.f32.mrb[0].mxu0
    %v8457 = vpop.f32.mrb[0].mxu0
    %8458 = vdwg.mxu0
    %8459 = vmatprep.subr.bf16.mxu0 %v6347
    %8460 = vmatpush1.bf16.msra.mxu0 %v6346
    %8461 = vmatprep.subr.bf16.mxu0 %v6355
    %8462 = vmatpush1.bf16.msra.mxu0 %v6354
    %8463 = vmatprep.subr.bf16.mxu0 %v6363
    %8464 = vmatpush1.bf16.msra.mxu0 %v6362
    %8465 = vmatprep.subr.bf16.mxu0 %v6371
    %8466 = vmatpush1.bf16.msra.mxu0 %v6370
    %8467 = vmatprep.subr.bf16.mxu0 %v6379
    %8468 = vmatpush1.bf16.msra.mxu0 %v6378
    %8469 = vmatprep.subr.bf16.mxu0 %v6387
    %8470 = vmatpush1.bf16.msra.mxu0 %v6386
    %8471 = vmatprep.subr.bf16.mxu0 %v6395
    %8472 = vmatpush1.bf16.msra.mxu0 %v6394
    %8473 = vmatprep.subr.bf16.mxu0 %v6403
    %8474 = vmatpush1.bf16.msra.mxu0 %v6402
    %8475 = vmatprep.subr.bf16.mxu0 %v6411
    %8476 = vmatpush1.bf16.msra.mxu0 %v6410
    %8477 = vmatprep.subr.bf16.mxu0 %v6419
    %8478 = vmatpush1.bf16.msra.mxu0 %v6418
    %8479 = vmatprep.subr.bf16.mxu0 %v6427
    %8480 = vmatpush1.bf16.msra.mxu0 %v6426
    %8481 = vmatprep.subr.bf16.mxu0 %v6435
    %8482 = vmatpush1.bf16.msra.mxu0 %v6434
    %8483 = vmatprep.subr.bf16.mxu0 %v6443
    %8484 = vmatpush1.bf16.msra.mxu0 %v6442
    %8485 = vmatprep.subr.bf16.mxu0 %v6451
    %8486 = vmatpush1.bf16.msra.mxu0 %v6450
    %8487 = vmatprep.subr.bf16.mxu0 %v6459
    %8488 = vmatpush1.bf16.msra.mxu0 %v6458
    %8489 = vmatprep.subr.bf16.mxu0 %v6467
    %8490 = vmatpush1.bf16.msra.mxu0 %v6466
    %8491 = vmatprep.mubr.bf16.mxu0 %v1813
    %8492 = vmatmul.mubr.bf16.gmra.mrb[0].mxu0 %v1812
    %v8493 = vpop.f32.mrb[0].mxu0
    %v8494 = vadd.f32 %v8453, %v8493
    %v8495 = vpop.f32.mrb[0].mxu0
    %v8496 = vadd.f32 %v8455, %v8495
    %v8497 = vpop.f32.mrb[0].mxu0
    %v8498 = vpop.f32.mrb[0].mxu0
    %8499 = vdwg.mxu0
    %8500 = vmatprep.subr.bf16.mxu0 %v6475
    %8501 = vmatpush1.bf16.msra.mxu0 %v6474
    %8502 = vmatprep.subr.bf16.mxu0 %v6483
    %8503 = vmatpush1.bf16.msra.mxu0 %v6482
    %8504 = vmatprep.subr.bf16.mxu0 %v6491
    %8505 = vmatpush1.bf16.msra.mxu0 %v6490
    %8506 = vmatprep.subr.bf16.mxu0 %v6499
    %8507 = vmatpush1.bf16.msra.mxu0 %v6498
    %8508 = vmatprep.subr.bf16.mxu0 %v6507
    %8509 = vmatpush1.bf16.msra.mxu0 %v6506
    %8510 = vmatprep.subr.bf16.mxu0 %v6515
    %8511 = vmatpush1.bf16.msra.mxu0 %v6514
    %8512 = vmatprep.subr.bf16.mxu0 %v6523
    %8513 = vmatpush1.bf16.msra.mxu0 %v6522
    %8514 = vmatprep.subr.bf16.mxu0 %v6531
    %8515 = vmatpush1.bf16.msra.mxu0 %v6530
    %8516 = vmatprep.subr.bf16.mxu0 %v6539
    %8517 = vmatpush1.bf16.msra.mxu0 %v6538
    %8518 = vmatprep.subr.bf16.mxu0 %v6547
    %8519 = vmatpush1.bf16.msra.mxu0 %v6546
    %8520 = vmatprep.subr.bf16.mxu0 %v6555
    %8521 = vmatpush1.bf16.msra.mxu0 %v6554
    %8522 = vmatprep.subr.bf16.mxu0 %v6563
    %8523 = vmatpush1.bf16.msra.mxu0 %v6562
    %8524 = vmatprep.subr.bf16.mxu0 %v6571
    %8525 = vmatpush1.bf16.msra.mxu0 %v6570
    %8526 = vmatprep.subr.bf16.mxu0 %v6579
    %8527 = vmatpush1.bf16.msra.mxu0 %v6578
    %8528 = vmatprep.subr.bf16.mxu0 %v6587
    %8529 = vmatpush1.bf16.msra.mxu0 %v6586
    %8530 = vmatprep.subr.bf16.mxu0 %v6595
    %8531 = vmatpush1.bf16.msra.mxu0 %v6594
    %8532 = vmatprep.mubr.bf16.mxu0 %v1815
    %8533 = vmatmul.mubr.bf16.gmra.mrb[0].mxu0 %v1814
    %v8534 = vpop.f32.mrb[0].mxu0
    %v8535 = vadd.f32 %v8494, %v8534
    %v8536 = vpop.f32.mrb[0].mxu0
    %v8537 = vadd.f32 %v8496, %v8536
    %v8538 = vpop.f32.mrb[0].mxu0
    %v8539 = vpop.f32.mrb[0].mxu0
    %8540 = vdwg.mxu0
    %8541 = vmatprep.subr.bf16.mxu0 %v6603
    %8542 = vmatpush1.bf16.msra.mxu0 %v6602
    %8543 = vmatprep.subr.bf16.mxu0 %v6611
    %8544 = vmatpush1.bf16.msra.mxu0 %v6610
    %8545 = vmatprep.subr.bf16.mxu0 %v6619
    %8546 = vmatpush1.bf16.msra.mxu0 %v6618
    %8547 = vmatprep.subr.bf16.mxu0 %v6627
    %8548 = vmatpush1.bf16.msra.mxu0 %v6626
    %8549 = vmatprep.subr.bf16.mxu0 %v6635
    %8550 = vmatpush1.bf16.msra.mxu0 %v6634
    %8551 = vmatprep.subr.bf16.mxu0 %v6643
    %8552 = vmatpush1.bf16.msra.mxu0 %v6642
    %8553 = vmatprep.subr.bf16.mxu0 %v6651
    %8554 = vmatpush1.bf16.msra.mxu0 %v6650
    %8555 = vmatprep.subr.bf16.mxu0 %v6659
    %8556 = vmatpush1.bf16.msra.mxu0 %v6658
    %8557 = vmatprep.subr.bf16.mxu0 %v6667
    %8558 = vmatpush1.bf16.msra.mxu0 %v6666
    %8559 = vmatprep.subr.bf16.mxu0 %v6675
    %8560 = vmatpush1.bf16.msra.mxu0 %v6674
    %8561 = vmatprep.subr.bf16.mxu0 %v6683
    %8562 = vmatpush1.bf16.msra.mxu0 %v6682
    %8563 = vmatprep.subr.bf16.mxu0 %v6691
    %8564 = vmatpush1.bf16.msra.mxu0 %v6690
    %8565 = vmatprep.subr.bf16.mxu0 %v6699
    %8566 = vmatpush1.bf16.msra.mxu0 %v6698
    %8567 = vmatprep.subr.bf16.mxu0 %v6707
    %8568 = vmatpush1.bf16.msra.mxu0 %v6706
    %8569 = vmatprep.subr.bf16.mxu0 %v6715
    %8570 = vmatpush1.bf16.msra.mxu0 %v6714
    %8571 = vmatprep.subr.bf16.mxu0 %v6723
    %8572 = vmatpush1.bf16.msra.mxu0 %v6722
    %8573 = vmatprep.mubr.bf16.mxu0 %v1817
    %8574 = vmatmul.mubr.bf16.gmra.mrb[0].mxu0 %v1816
    %v8575 = vpop.f32.mrb[0].mxu0
    %v8576 = vadd.f32 %v8535, %v8575
    %v8577 = vpop.f32.mrb[0].mxu0
    %v8578 = vadd.f32 %v8537, %v8577
    %v8579 = vpop.f32.mrb[0].mxu0
    %v8580 = vpop.f32.mrb[0].mxu0
    %8581 = vdwg.mxu0
    %8582 = vmatprep.subr.bf16.mxu0 %v6731
    %8583 = vmatpush1.bf16.msra.mxu0 %v6730
    %8584 = vmatprep.subr.bf16.mxu0 %v6739
    %8585 = vmatpush1.bf16.msra.mxu0 %v6738
    %8586 = vmatprep.subr.bf16.mxu0 %v6747
    %8587 = vmatpush1.bf16.msra.mxu0 %v6746
    %8588 = vmatprep.subr.bf16.mxu0 %v6755
    %8589 = vmatpush1.bf16.msra.mxu0 %v6754
    %8590 = vmatprep.subr.bf16.mxu0 %v6763
    %8591 = vmatpush1.bf16.msra.mxu0 %v6762
    %8592 = vmatprep.subr.bf16.mxu0 %v6771
    %8593 = vmatpush1.bf16.msra.mxu0 %v6770
    %8594 = vmatprep.subr.bf16.mxu0 %v6779
    %8595 = vmatpush1.bf16.msra.mxu0 %v6778
    %8596 = vmatprep.subr.bf16.mxu0 %v6787
    %8597 = vmatpush1.bf16.msra.mxu0 %v6786
    %8598 = vmatprep.subr.bf16.mxu0 %v6795
    %8599 = vmatpush1.bf16.msra.mxu0 %v6794
    %8600 = vmatprep.subr.bf16.mxu0 %v6803
    %8601 = vmatpush1.bf16.msra.mxu0 %v6802
    %8602 = vmatprep.subr.bf16.mxu0 %v6811
    %8603 = vmatpush1.bf16.msra.mxu0 %v6810
    %8604 = vmatprep.subr.bf16.mxu0 %v6819
    %8605 = vmatpush1.bf16.msra.mxu0 %v6818
    %8606 = vmatprep.subr.bf16.mxu0 %v6827
    %8607 = vmatpush1.bf16.msra.mxu0 %v6826
    %8608 = vmatprep.subr.bf16.mxu0 %v6835
    %8609 = vmatpush1.bf16.msra.mxu0 %v6834
    %8610 = vmatprep.subr.bf16.mxu0 %v6843
    %8611 = vmatpush1.bf16.msra.mxu0 %v6842
    %8612 = vmatprep.subr.bf16.mxu0 %v6851
    %8613 = vmatpush1.bf16.msra.mxu0 %v6850
    %8614 = vmatprep.mubr.bf16.mxu0 %v1819
    %8615 = vmatmul.mubr.bf16.gmra.mrb[0].mxu0 %v1818
    %v8616 = vpop.f32.mrb[0].mxu0
    %v8617 = vadd.f32 %v8576, %v8616
    %v8618 = vpop.f32.mrb[0].mxu0
    %v8619 = vadd.f32 %v8578, %v8618
    %v8620 = vpop.f32.mrb[0].mxu0
    %v8621 = vpop.f32.mrb[0].mxu0
    %8622 = vdwg.mxu0
    %8623 = vmatprep.subr.bf16.mxu0 %v6859
    %8624 = vmatpush1.bf16.msra.mxu0 %v6858
    %8625 = vmatprep.subr.bf16.mxu0 %v6867
    %8626 = vmatpush1.bf16.msra.mxu0 %v6866
    %8627 = vmatprep.subr.bf16.mxu0 %v6875
    %8628 = vmatpush1.bf16.msra.mxu0 %v6874
    %8629 = vmatprep.subr.bf16.mxu0 %v6883
    %8630 = vmatpush1.bf16.msra.mxu0 %v6882
    %8631 = vmatprep.subr.bf16.mxu0 %v6891
    %8632 = vmatpush1.bf16.msra.mxu0 %v6890
    %8633 = vmatprep.subr.bf16.mxu0 %v6899
    %8634 = vmatpush1.bf16.msra.mxu0 %v6898
    %8635 = vmatprep.subr.bf16.mxu0 %v6907
    %8636 = vmatpush1.bf16.msra.mxu0 %v6906
    %8637 = vmatprep.subr.bf16.mxu0 %v6915
    %8638 = vmatpush1.bf16.msra.mxu0 %v6914
    %8639 = vmatprep.subr.bf16.mxu0 %v6923
    %8640 = vmatpush1.bf16.msra.mxu0 %v6922
    %8641 = vmatprep.subr.bf16.mxu0 %v6931
    %8642 = vmatpush1.bf16.msra.mxu0 %v6930
    %8643 = vmatprep.subr.bf16.mxu0 %v6939
    %8644 = vmatpush1.bf16.msra.mxu0 %v6938
    %8645 = vmatprep.subr.bf16.mxu0 %v6947
    %8646 = vmatpush1.bf16.msra.mxu0 %v6946
    %8647 = vmatprep.subr.bf16.mxu0 %v6955
    %8648 = vmatpush1.bf16.msra.mxu0 %v6954
    %8649 = vmatprep.subr.bf16.mxu0 %v6963
    %8650 = vmatpush1.bf16.msra.mxu0 %v6962
    %8651 = vmatprep.subr.bf16.mxu0 %v6971
    %8652 = vmatpush1.bf16.msra.mxu0 %v6970
    %8653 = vmatprep.subr.bf16.mxu0 %v6979
    %8654 = vmatpush1.bf16.msra.mxu0 %v6978
    %8655 = vmatprep.mubr.bf16.mxu0 %v1821
    %8656 = vmatmul.mubr.bf16.gmra.mrb[0].mxu0 %v1820
    %v8657 = vpop.f32.mrb[0].mxu0
    %v8658 = vadd.f32 %v8617, %v8657
    %v8659 = vpop.f32.mrb[0].mxu0
    %v8660 = vadd.f32 %v8619, %v8659
    %v8661 = vpop.f32.mrb[0].mxu0
    %v8662 = vpop.f32.mrb[0].mxu0
    %8663 = vdwg.mxu0
    %8664 = vmatprep.subr.bf16.mxu0 %v5965
    %8665 = vmatpush1.bf16.msra.mxu0 %v5964
    %8666 = vmatprep.subr.bf16.mxu0 %v5973
    %8667 = vmatpush1.bf16.msra.mxu0 %v5972
    %8668 = vmatprep.subr.bf16.mxu0 %v5981
    %8669 = vmatpush1.bf16.msra.mxu0 %v5980
    %8670 = vmatprep.subr.bf16.mxu0 %v5989
    %8671 = vmatpush1.bf16.msra.mxu0 %v5988
    %8672 = vmatprep.subr.bf16.mxu0 %v5997
    %8673 = vmatpush1.bf16.msra.mxu0 %v5996
    %8674 = vmatprep.subr.bf16.mxu0 %v6005
    %8675 = vmatpush1.bf16.msra.mxu0 %v6004
    %8676 = vmatprep.subr.bf16.mxu0 %v6013
    %8677 = vmatpush1.bf16.msra.mxu0 %v6012
    %8678 = vmatprep.subr.bf16.mxu0 %v6021
    %8679 = vmatpush1.bf16.msra.mxu0 %v6020
    %8680 = vmatprep.subr.bf16.mxu0 %v6029
    %8681 = vmatpush1.bf16.msra.mxu0 %v6028
    %8682 = vmatprep.subr.bf16.mxu0 %v6037
    %8683 = vmatpush1.bf16.msra.mxu0 %v6036
    %8684 = vmatprep.subr.bf16.mxu0 %v6045
    %8685 = vmatpush1.bf16.msra.mxu0 %v6044
    %8686 = vmatprep.subr.bf16.mxu0 %v6053
    %8687 = vmatpush1.bf16.msra.mxu0 %v6052
    %8688 = vmatprep.subr.bf16.mxu0 %v6061
    %8689 = vmatpush1.bf16.msra.mxu0 %v6060
    %8690 = vmatprep.subr.bf16.mxu0 %v6069
    %8691 = vmatpush1.bf16.msra.mxu0 %v6068
    %8692 = vmatprep.subr.bf16.mxu0 %v6077
    %8693 = vmatpush1.bf16.msra.mxu0 %v6076
    %8694 = vmatprep.subr.bf16.mxu0 %v6085
    %8695 = vmatpush1.bf16.msra.mxu0 %v6084
    %8696 = vmatprep.mubr.bf16.mxu0 %v1807
    %8697 = vmatmul.mubr.bf16.gmra.mrb[0].mxu0 %v1806
    %v8698 = vpop.f32.mrb[0].mxu0
    %v8699 = vadd.f32 %v2867, %v8698
    %v8700 = vpop.f32.mrb[0].mxu0
    %v8701 = vadd.f32 %v2871, %v8700
    %v8702 = vpop.f32.mrb[0].mxu0
    %v8703 = vpop.f32.mrb[0].mxu0
    %8704 = vdwg.mxu0
    %8705 = vmatprep.subr.bf16.mxu0 %v6093
    %8706 = vmatpush1.bf16.msra.mxu0 %v6092
    %8707 = vmatprep.subr.bf16.mxu0 %v6101
    %8708 = vmatpush1.bf16.msra.mxu0 %v6100
    %8709 = vmatprep.subr.bf16.mxu0 %v6109
    %8710 = vmatpush1.bf16.msra.mxu0 %v6108
    %8711 = vmatprep.subr.bf16.mxu0 %v6117
    %8712 = vmatpush1.bf16.msra.mxu0 %v6116
    %8713 = vmatprep.subr.bf16.mxu0 %v6125
    %8714 = vmatpush1.bf16.msra.mxu0 %v6124
    %8715 = vmatprep.subr.bf16.mxu0 %v6133
    %8716 = vmatpush1.bf16.msra.mxu0 %v6132
    %8717 = vmatprep.subr.bf16.mxu0 %v6141
    %8718 = vmatpush1.bf16.msra.mxu0 %v6140
    %8719 = vmatprep.subr.bf16.mxu0 %v6149
    %8720 = vmatpush1.bf16.msra.mxu0 %v6148
    %8721 = vmatprep.subr.bf16.mxu0 %v6157
    %8722 = vmatpush1.bf16.msra.mxu0 %v6156
    %8723 = vmatprep.subr.bf16.mxu0 %v6165
    %8724 = vmatpush1.bf16.msra.mxu0 %v6164
    %8725 = vmatprep.subr.bf16.mxu0 %v6173
    %8726 = vmatpush1.bf16.msra.mxu0 %v6172
    %8727 = vmatprep.subr.bf16.mxu0 %v6181
    %8728 = vmatpush1.bf16.msra.mxu0 %v6180
    %8729 = vmatprep.subr.bf16.mxu0 %v6189
    %8730 = vmatpush1.bf16.msra.mxu0 %v6188
    %8731 = vmatprep.subr.bf16.mxu0 %v6197
    %8732 = vmatpush1.bf16.msra.mxu0 %v6196
    %8733 = vmatprep.subr.bf16.mxu0 %v6205
    %8734 = vmatpush1.bf16.msra.mxu0 %v6204
    %8735 = vmatprep.subr.bf16.mxu0 %v6213
    %8736 = vmatpush1.bf16.msra.mxu0 %v6212
    %8737 = vmatprep.mubr.bf16.mxu0 %v1809
    %8738 = vmatmul.mubr.bf16.gmra.mrb[0].mxu0 %v1808
    %v8739 = vpop.f32.mrb[0].mxu0
    %v8740 = vadd.f32 %v8699, %v8739
    %v8741 = vpop.f32.mrb[0].mxu0
    %v8742 = vadd.f32 %v8701, %v8741
    %v8743 = vpop.f32.mrb[0].mxu0
    %v8744 = vpop.f32.mrb[0].mxu0
    %8745 = vdwg.mxu0
    %8746 = vmatprep.subr.bf16.mxu0 %v6221
    %8747 = vmatpush1.bf16.msra.mxu0 %v6220
    %8748 = vmatprep.subr.bf16.mxu0 %v6229
    %8749 = vmatpush1.bf16.msra.mxu0 %v6228
    %8750 = vmatprep.subr.bf16.mxu0 %v6237
    %8751 = vmatpush1.bf16.msra.mxu0 %v6236
    %8752 = vmatprep.subr.bf16.mxu0 %v6245
    %8753 = vmatpush1.bf16.msra.mxu0 %v6244
    %8754 = vmatprep.subr.bf16.mxu0 %v6253
    %8755 = vmatpush1.bf16.msra.mxu0 %v6252
    %8756 = vmatprep.subr.bf16.mxu0 %v6261
    %8757 = vmatpush1.bf16.msra.mxu0 %v6260
    %8758 = vmatprep.subr.bf16.mxu0 %v6269
    %8759 = vmatpush1.bf16.msra.mxu0 %v6268
    %8760 = vmatprep.subr.bf16.mxu0 %v6277
    %8761 = vmatpush1.bf16.msra.mxu0 %v6276
    %8762 = vmatprep.subr.bf16.mxu0 %v6285
    %8763 = vmatpush1.bf16.msra.mxu0 %v6284
    %8764 = vmatprep.subr.bf16.mxu0 %v6293
    %8765 = vmatpush1.bf16.msra.mxu0 %v6292
    %8766 = vmatprep.subr.bf16.mxu0 %v6301
    %8767 = vmatpush1.bf16.msra.mxu0 %v6300
    %8768 = vmatprep.subr.bf16.mxu0 %v6309
    %8769 = vmatpush1.bf16.msra.mxu0 %v6308
    %8770 = vmatprep.subr.bf16.mxu0 %v6317
    %8771 = vmatpush1.bf16.msra.mxu0 %v6316
    %8772 = vmatprep.subr.bf16.mxu0 %v6325
    %8773 = vmatpush1.bf16.msra.mxu0 %v6324
    %8774 = vmatprep.subr.bf16.mxu0 %v6333
    %8775 = vmatpush1.bf16.msra.mxu0 %v6332
    %8776 = vmatprep.subr.bf16.mxu0 %v6341
    %8777 = vmatpush1.bf16.msra.mxu0 %v6340
    %8778 = vmatprep.mubr.bf16.mxu0 %v1811
    %8779 = vmatmul.mubr.bf16.gmra.mrb[0].mxu0 %v1810
    %v8780 = vpop.f32.mrb[0].mxu0
    %v8781 = vadd.f32 %v8740, %v8780
    %v8782 = vpop.f32.mrb[0].mxu0
    %v8783 = vadd.f32 %v8742, %v8782
    %v8784 = vpop.f32.mrb[0].mxu0
    %v8785 = vpop.f32.mrb[0].mxu0
    %8786 = vdwg.mxu0
    %8787 = vmatprep.subr.bf16.mxu0 %v6349
    %8788 = vmatpush1.bf16.msra.mxu0 %v6348
    %8789 = vmatprep.subr.bf16.mxu0 %v6357
    %8790 = vmatpush1.bf16.msra.mxu0 %v6356
    %8791 = vmatprep.subr.bf16.mxu0 %v6365
    %8792 = vmatpush1.bf16.msra.mxu0 %v6364
    %8793 = vmatprep.subr.bf16.mxu0 %v6373
    %8794 = vmatpush1.bf16.msra.mxu0 %v6372
    %8795 = vmatprep.subr.bf16.mxu0 %v6381
    %8796 = vmatpush1.bf16.msra.mxu0 %v6380
    %8797 = vmatprep.subr.bf16.mxu0 %v6389
    %8798 = vmatpush1.bf16.msra.mxu0 %v6388
    %8799 = vmatprep.subr.bf16.mxu0 %v6397
    %8800 = vmatpush1.bf16.msra.mxu0 %v6396
    %8801 = vmatprep.subr.bf16.mxu0 %v6405
    %8802 = vmatpush1.bf16.msra.mxu0 %v6404
    %8803 = vmatprep.subr.bf16.mxu0 %v6413
    %8804 = vmatpush1.bf16.msra.mxu0 %v6412
    %8805 = vmatprep.subr.bf16.mxu0 %v6421
    %8806 = vmatpush1.bf16.msra.mxu0 %v6420
    %8807 = vmatprep.subr.bf16.mxu0 %v6429
    %8808 = vmatpush1.bf16.msra.mxu0 %v6428
    %8809 = vmatprep.subr.bf16.mxu0 %v6437
    %8810 = vmatpush1.bf16.msra.mxu0 %v6436
    %8811 = vmatprep.subr.bf16.mxu0 %v6445
    %8812 = vmatpush1.bf16.msra.mxu0 %v6444
    %8813 = vmatprep.subr.bf16.mxu0 %v6453
    %8814 = vmatpush1.bf16.msra.mxu0 %v6452
    %8815 = vmatprep.subr.bf16.mxu0 %v6461
    %8816 = vmatpush1.bf16.msra.mxu0 %v6460
    %8817 = vmatprep.subr.bf16.mxu0 %v6469
    %8818 = vmatpush1.bf16.msra.mxu0 %v6468
    %8819 = vmatprep.mubr.bf16.mxu0 %v1813
    %8820 = vmatmul.mubr.bf16.gmra.mrb[0].mxu0 %v1812
    %v8821 = vpop.f32.mrb[0].mxu0
    %v8822 = vadd.f32 %v8781, %v8821
    %v8823 = vpop.f32.mrb[0].mxu0
    %v8824 = vadd.f32 %v8783, %v8823
    %v8825 = vpop.f32.mrb[0].mxu0
    %v8826 = vpop.f32.mrb[0].mxu0
    %8827 = vdwg.mxu0
    %8828 = vmatprep.subr.bf16.mxu0 %v6477
    %8829 = vmatpush1.bf16.msra.mxu0 %v6476
    %8830 = vmatprep.subr.bf16.mxu0 %v6485
    %8831 = vmatpush1.bf16.msra.mxu0 %v6484
    %8832 = vmatprep.subr.bf16.mxu0 %v6493
    %8833 = vmatpush1.bf16.msra.mxu0 %v6492
    %8834 = vmatprep.subr.bf16.mxu0 %v6501
    %8835 = vmatpush1.bf16.msra.mxu0 %v6500
    %8836 = vmatprep.subr.bf16.mxu0 %v6509
    %8837 = vmatpush1.bf16.msra.mxu0 %v6508
    %8838 = vmatprep.subr.bf16.mxu0 %v6517
    %8839 = vmatpush1.bf16.msra.mxu0 %v6516
    %8840 = vmatprep.subr.bf16.mxu0 %v6525
    %8841 = vmatpush1.bf16.msra.mxu0 %v6524
    %8842 = vmatprep.subr.bf16.mxu0 %v6533
    %8843 = vmatpush1.bf16.msra.mxu0 %v6532
    %8844 = vmatprep.subr.bf16.mxu0 %v6541
    %8845 = vmatpush1.bf16.msra.mxu0 %v6540
    %8846 = vmatprep.subr.bf16.mxu0 %v6549
    %8847 = vmatpush1.bf16.msra.mxu0 %v6548
    %8848 = vmatprep.subr.bf16.mxu0 %v6557
    %8849 = vmatpush1.bf16.msra.mxu0 %v6556
    %8850 = vmatprep.subr.bf16.mxu0 %v6565
    %8851 = vmatpush1.bf16.msra.mxu0 %v6564
    %8852 = vmatprep.subr.bf16.mxu0 %v6573
    %8853 = vmatpush1.bf16.msra.mxu0 %v6572
    %8854 = vmatprep.subr.bf16.mxu0 %v6581
    %8855 = vmatpush1.bf16.msra.mxu0 %v6580
    %8856 = vmatprep.subr.bf16.mxu0 %v6589
    %8857 = vmatpush1.bf16.msra.mxu0 %v6588
    %8858 = vmatprep.subr.bf16.mxu0 %v6597
    %8859 = vmatpush1.bf16.msra.mxu0 %v6596
    %8860 = vmatprep.mubr.bf16.mxu0 %v1815
    %8861 = vmatmul.mubr.bf16.gmra.mrb[0].mxu0 %v1814
    %v8862 = vpop.f32.mrb[0].mxu0
    %v8863 = vadd.f32 %v8822, %v8862
    %v8864 = vpop.f32.mrb[0].mxu0
    %v8865 = vadd.f32 %v8824, %v8864
    %v8866 = vpop.f32.mrb[0].mxu0
    %v8867 = vpop.f32.mrb[0].mxu0
    %8868 = vdwg.mxu0
    %8869 = vmatprep.subr.bf16.mxu0 %v6605
    %8870 = vmatpush1.bf16.msra.mxu0 %v6604
    %8871 = vmatprep.subr.bf16.mxu0 %v6613
    %8872 = vmatpush1.bf16.msra.mxu0 %v6612
    %8873 = vmatprep.subr.bf16.mxu0 %v6621
    %8874 = vmatpush1.bf16.msra.mxu0 %v6620
    %8875 = vmatprep.subr.bf16.mxu0 %v6629
    %8876 = vmatpush1.bf16.msra.mxu0 %v6628
    %8877 = vmatprep.subr.bf16.mxu0 %v6637
    %8878 = vmatpush1.bf16.msra.mxu0 %v6636
    %8879 = vmatprep.subr.bf16.mxu0 %v6645
    %8880 = vmatpush1.bf16.msra.mxu0 %v6644
    %8881 = vmatprep.subr.bf16.mxu0 %v6653
    %8882 = vmatpush1.bf16.msra.mxu0 %v6652
    %8883 = vmatprep.subr.bf16.mxu0 %v6661
    %8884 = vmatpush1.bf16.msra.mxu0 %v6660
    %8885 = vmatprep.subr.bf16.mxu0 %v6669
    %8886 = vmatpush1.bf16.msra.mxu0 %v6668
    %8887 = vmatprep.subr.bf16.mxu0 %v6677
    %8888 = vmatpush1.bf16.msra.mxu0 %v6676
    %8889 = vmatprep.subr.bf16.mxu0 %v6685
    %8890 = vmatpush1.bf16.msra.mxu0 %v6684
    %8891 = vmatprep.subr.bf16.mxu0 %v6693
    %8892 = vmatpush1.bf16.msra.mxu0 %v6692
    %8893 = vmatprep.subr.bf16.mxu0 %v6701
    %8894 = vmatpush1.bf16.msra.mxu0 %v6700
    %8895 = vmatprep.subr.bf16.mxu0 %v6709
    %8896 = vmatpush1.bf16.msra.mxu0 %v6708
    %8897 = vmatprep.subr.bf16.mxu0 %v6717
    %8898 = vmatpush1.bf16.msra.mxu0 %v6716
    %8899 = vmatprep.subr.bf16.mxu0 %v6725
    %8900 = vmatpush1.bf16.msra.mxu0 %v6724
    %8901 = vmatprep.mubr.bf16.mxu0 %v1817
    %8902 = vmatmul.mubr.bf16.gmra.mrb[0].mxu0 %v1816
    %v8903 = vpop.f32.mrb[0].mxu0
    %v8904 = vadd.f32 %v8863, %v8903
    %v8905 = vpop.f32.mrb[0].mxu0
    %v8906 = vadd.f32 %v8865, %v8905
    %v8907 = vpop.f32.mrb[0].mxu0
    %v8908 = vpop.f32.mrb[0].mxu0
    %8909 = vdwg.mxu0
    %8910 = vmatprep.subr.bf16.mxu0 %v6733
    %8911 = vmatpush1.bf16.msra.mxu0 %v6732
    %8912 = vmatprep.subr.bf16.mxu0 %v6741
    %8913 = vmatpush1.bf16.msra.mxu0 %v6740
    %8914 = vmatprep.subr.bf16.mxu0 %v6749
    %8915 = vmatpush1.bf16.msra.mxu0 %v6748
    %8916 = vmatprep.subr.bf16.mxu0 %v6757
    %8917 = vmatpush1.bf16.msra.mxu0 %v6756
    %8918 = vmatprep.subr.bf16.mxu0 %v6765
    %8919 = vmatpush1.bf16.msra.mxu0 %v6764
    %8920 = vmatprep.subr.bf16.mxu0 %v6773
    %8921 = vmatpush1.bf16.msra.mxu0 %v6772
    %8922 = vmatprep.subr.bf16.mxu0 %v6781
    %8923 = vmatpush1.bf16.msra.mxu0 %v6780
    %8924 = vmatprep.subr.bf16.mxu0 %v6789
    %8925 = vmatpush1.bf16.msra.mxu0 %v6788
    %8926 = vmatprep.subr.bf16.mxu0 %v6797
    %8927 = vmatpush1.bf16.msra.mxu0 %v6796
    %8928 = vmatprep.subr.bf16.mxu0 %v6805
    %8929 = vmatpush1.bf16.msra.mxu0 %v6804
    %8930 = vmatprep.subr.bf16.mxu0 %v6813
    %8931 = vmatpush1.bf16.msra.mxu0 %v6812
    %8932 = vmatprep.subr.bf16.mxu0 %v6821
    %8933 = vmatpush1.bf16.msra.mxu0 %v6820
    %8934 = vmatprep.subr.bf16.mxu0 %v6829
    %8935 = vmatpush1.bf16.msra.mxu0 %v6828
    %8936 = vmatprep.subr.bf16.mxu0 %v6837
    %8937 = vmatpush1.bf16.msra.mxu0 %v6836
    %8938 = vmatprep.subr.bf16.mxu0 %v6845
    %8939 = vmatpush1.bf16.msra.mxu0 %v6844
    %8940 = vmatprep.subr.bf16.mxu0 %v6853
    %8941 = vmatpush1.bf16.msra.mxu0 %v6852
    %8942 = vmatprep.mubr.bf16.mxu0 %v1819
    %8943 = vmatmul.mubr.bf16.gmra.mrb[0].mxu0 %v1818
    %v8944 = vpop.f32.mrb[0].mxu0
    %v8945 = vadd.f32 %v8904, %v8944
    %v8946 = vpop.f32.mrb[0].mxu0
    %v8947 = vadd.f32 %v8906, %v8946
    %v8948 = vpop.f32.mrb[0].mxu0
    %v8949 = vpop.f32.mrb[0].mxu0
    %8950 = vdwg.mxu0
    %8951 = vmatprep.subr.bf16.mxu0 %v6861
    %8952 = vmatpush1.bf16.msra.mxu0 %v6860
    %8953 = vmatprep.subr.bf16.mxu0 %v6869
    %8954 = vmatpush1.bf16.msra.mxu0 %v6868
    %8955 = vmatprep.subr.bf16.mxu0 %v6877
    %8956 = vmatpush1.bf16.msra.mxu0 %v6876
    %8957 = vmatprep.subr.bf16.mxu0 %v6885
    %8958 = vmatpush1.bf16.msra.mxu0 %v6884
    %8959 = vmatprep.subr.bf16.mxu0 %v6893
    %8960 = vmatpush1.bf16.msra.mxu0 %v6892
    %8961 = vmatprep.subr.bf16.mxu0 %v6901
    %8962 = vmatpush1.bf16.msra.mxu0 %v6900
    %8963 = vmatprep.subr.bf16.mxu0 %v6909
    %8964 = vmatpush1.bf16.msra.mxu0 %v6908
    %8965 = vmatprep.subr.bf16.mxu0 %v6917
    %8966 = vmatpush1.bf16.msra.mxu0 %v6916
    %8967 = vmatprep.subr.bf16.mxu0 %v6925
    %8968 = vmatpush1.bf16.msra.mxu0 %v6924
    %8969 = vmatprep.subr.bf16.mxu0 %v6933
    %8970 = vmatpush1.bf16.msra.mxu0 %v6932
    %8971 = vmatprep.subr.bf16.mxu0 %v6941
    %8972 = vmatpush1.bf16.msra.mxu0 %v6940
    %8973 = vmatprep.subr.bf16.mxu0 %v6949
    %8974 = vmatpush1.bf16.msra.mxu0 %v6948
    %8975 = vmatprep.subr.bf16.mxu0 %v6957
    %8976 = vmatpush1.bf16.msra.mxu0 %v6956
    %8977 = vmatprep.subr.bf16.mxu0 %v6965
    %8978 = vmatpush1.bf16.msra.mxu0 %v6964
    %8979 = vmatprep.subr.bf16.mxu0 %v6973
    %8980 = vmatpush1.bf16.msra.mxu0 %v6972
    %8981 = vmatprep.subr.bf16.mxu0 %v6981
    %8982 = vmatpush1.bf16.msra.mxu0 %v6980
    %8983 = vmatprep.mubr.bf16.mxu0 %v1821
    %8984 = vmatmul.mubr.bf16.gmra.mrb[0].mxu0 %v1820
    %v8985 = vpop.f32.mrb[0].mxu0
    %v8986 = vadd.f32 %v8945, %v8985
    %v8987 = vpop.f32.mrb[0].mxu0
    %v8988 = vadd.f32 %v8947, %v8987
    %v8989 = vpop.f32.mrb[0].mxu0
    %v8990 = vpop.f32.mrb[0].mxu0
    %8991 = vdwg.mxu0
    %8992 = vmatprep.subr.bf16.mxu0 %v5967
    %8993 = vmatpush1.bf16.msra.mxu0 %v5966
    %8994 = vmatprep.subr.bf16.mxu0 %v5975
    %8995 = vmatpush1.bf16.msra.mxu0 %v5974
    %8996 = vmatprep.subr.bf16.mxu0 %v5983
    %8997 = vmatpush1.bf16.msra.mxu0 %v5982
    %8998 = vmatprep.subr.bf16.mxu0 %v5991
    %8999 = vmatpush1.bf16.msra.mxu0 %v5990
    %9000 = vmatprep.subr.bf16.mxu0 %v5999
    %9001 = vmatpush1.bf16.msra.mxu0 %v5998
    %9002 = vmatprep.subr.bf16.mxu0 %v6007
    %9003 = vmatpush1.bf16.msra.mxu0 %v6006
    %9004 = vmatprep.subr.bf16.mxu0 %v6015
    %9005 = vmatpush1.bf16.msra.mxu0 %v6014
    %9006 = vmatprep.subr.bf16.mxu0 %v6023
    %9007 = vmatpush1.bf16.msra.mxu0 %v6022
    %9008 = vmatprep.subr.bf16.mxu0 %v6031
    %9009 = vmatpush1.bf16.msra.mxu0 %v6030
    %9010 = vmatprep.subr.bf16.mxu0 %v6039
    %9011 = vmatpush1.bf16.msra.mxu0 %v6038
    %9012 = vmatprep.subr.bf16.mxu0 %v6047
    %9013 = vmatpush1.bf16.msra.mxu0 %v6046
    %9014 = vmatprep.subr.bf16.mxu0 %v6055
    %9015 = vmatpush1.bf16.msra.mxu0 %v6054
    %9016 = vmatprep.subr.bf16.mxu0 %v6063
    %9017 = vmatpush1.bf16.msra.mxu0 %v6062
    %9018 = vmatprep.subr.bf16.mxu0 %v6071
    %9019 = vmatpush1.bf16.msra.mxu0 %v6070
    %9020 = vmatprep.subr.bf16.mxu0 %v6079
    %9021 = vmatpush1.bf16.msra.mxu0 %v6078
    %9022 = vmatprep.subr.bf16.mxu0 %v6087
    %9023 = vmatpush1.bf16.msra.mxu0 %v6086
    %9024 = vmatprep.mubr.bf16.mxu0 %v1807
    %9025 = vmatmul.mubr.bf16.gmra.mrb[0].mxu0 %v1806
    %v9026 = vpop.f32.mrb[0].mxu0
    %v9027 = vadd.f32 %v2875, %v9026
    %v9028 = vpop.f32.mrb[0].mxu0
    %v9029 = vadd.f32 %v2879, %v9028
    %v9030 = vpop.f32.mrb[0].mxu0
    %v9031 = vpop.f32.mrb[0].mxu0
    %9032 = vdwg.mxu0
    %9033 = vmatprep.subr.bf16.mxu0 %v6095
    %9034 = vmatpush1.bf16.msra.mxu0 %v6094
    %9035 = vmatprep.subr.bf16.mxu0 %v6103
    %9036 = vmatpush1.bf16.msra.mxu0 %v6102
    %9037 = vmatprep.subr.bf16.mxu0 %v6111
    %9038 = vmatpush1.bf16.msra.mxu0 %v6110
    %9039 = vmatprep.subr.bf16.mxu0 %v6119
    %9040 = vmatpush1.bf16.msra.mxu0 %v6118
    %9041 = vmatprep.subr.bf16.mxu0 %v6127
    %9042 = vmatpush1.bf16.msra.mxu0 %v6126
    %9043 = vmatprep.subr.bf16.mxu0 %v6135
    %9044 = vmatpush1.bf16.msra.mxu0 %v6134
    %9045 = vmatprep.subr.bf16.mxu0 %v6143
    %9046 = vmatpush1.bf16.msra.mxu0 %v6142
    %9047 = vmatprep.subr.bf16.mxu0 %v6151
    %9048 = vmatpush1.bf16.msra.mxu0 %v6150
    %9049 = vmatprep.subr.bf16.mxu0 %v6159
    %9050 = vmatpush1.bf16.msra.mxu0 %v6158
    %9051 = vmatprep.subr.bf16.mxu0 %v6167
    %9052 = vmatpush1.bf16.msra.mxu0 %v6166
    %9053 = vmatprep.subr.bf16.mxu0 %v6175
    %9054 = vmatpush1.bf16.msra.mxu0 %v6174
    %9055 = vmatprep.subr.bf16.mxu0 %v6183
    %9056 = vmatpush1.bf16.msra.mxu0 %v6182
    %9057 = vmatprep.subr.bf16.mxu0 %v6191
    %9058 = vmatpush1.bf16.msra.mxu0 %v6190
    %9059 = vmatprep.subr.bf16.mxu0 %v6199
    %9060 = vmatpush1.bf16.msra.mxu0 %v6198
    %9061 = vmatprep.subr.bf16.mxu0 %v6207
    %9062 = vmatpush1.bf16.msra.mxu0 %v6206
    %9063 = vmatprep.subr.bf16.mxu0 %v6215
    %9064 = vmatpush1.bf16.msra.mxu0 %v6214
    %9065 = vmatprep.mubr.bf16.mxu0 %v1809
    %9066 = vmatmul.mubr.bf16.gmra.mrb[0].mxu0 %v1808
    %v9067 = vpop.f32.mrb[0].mxu0
    %v9068 = vadd.f32 %v9027, %v9067
    %v9069 = vpop.f32.mrb[0].mxu0
    %v9070 = vadd.f32 %v9029, %v9069
    %v9071 = vpop.f32.mrb[0].mxu0
    %v9072 = vpop.f32.mrb[0].mxu0
    %9073 = vdwg.mxu0
    %9074 = vmatprep.subr.bf16.mxu0 %v6223
    %9075 = vmatpush1.bf16.msra.mxu0 %v6222
    %9076 = vmatprep.subr.bf16.mxu0 %v6231
    %9077 = vmatpush1.bf16.msra.mxu0 %v6230
    %9078 = vmatprep.subr.bf16.mxu0 %v6239
    %9079 = vmatpush1.bf16.msra.mxu0 %v6238
    %9080 = vmatprep.subr.bf16.mxu0 %v6247
    %9081 = vmatpush1.bf16.msra.mxu0 %v6246
    %9082 = vmatprep.subr.bf16.mxu0 %v6255
    %9083 = vmatpush1.bf16.msra.mxu0 %v6254
    %9084 = vmatprep.subr.bf16.mxu0 %v6263
    %9085 = vmatpush1.bf16.msra.mxu0 %v6262
    %9086 = vmatprep.subr.bf16.mxu0 %v6271
    %9087 = vmatpush1.bf16.msra.mxu0 %v6270
    %9088 = vmatprep.subr.bf16.mxu0 %v6279
    %9089 = vmatpush1.bf16.msra.mxu0 %v6278
    %9090 = vmatprep.subr.bf16.mxu0 %v6287
    %9091 = vmatpush1.bf16.msra.mxu0 %v6286
    %9092 = vmatprep.subr.bf16.mxu0 %v6295
    %9093 = vmatpush1.bf16.msra.mxu0 %v6294
    %9094 = vmatprep.subr.bf16.mxu0 %v6303
    %9095 = vmatpush1.bf16.msra.mxu0 %v6302
    %9096 = vmatprep.subr.bf16.mxu0 %v6311
    %9097 = vmatpush1.bf16.msra.mxu0 %v6310
    %9098 = vmatprep.subr.bf16.mxu0 %v6319
    %9099 = vmatpush1.bf16.msra.mxu0 %v6318
    %9100 = vmatprep.subr.bf16.mxu0 %v6327
    %9101 = vmatpush1.bf16.msra.mxu0 %v6326
    %9102 = vmatprep.subr.bf16.mxu0 %v6335
    %9103 = vmatpush1.bf16.msra.mxu0 %v6334
    %9104 = vmatprep.subr.bf16.mxu0 %v6343
    %9105 = vmatpush1.bf16.msra.mxu0 %v6342
    %9106 = vmatprep.mubr.bf16.mxu0 %v1811
    %9107 = vmatmul.mubr.bf16.gmra.mrb[0].mxu0 %v1810
    %v9108 = vpop.f32.mrb[0].mxu0
    %v9109 = vadd.f32 %v9068, %v9108
    %v9110 = vpop.f32.mrb[0].mxu0
    %v9111 = vadd.f32 %v9070, %v9110
    %v9112 = vpop.f32.mrb[0].mxu0
    %v9113 = vpop.f32.mrb[0].mxu0
    %9114 = vdwg.mxu0
    %9115 = vmatprep.subr.bf16.mxu0 %v6351
    %9116 = vmatpush1.bf16.msra.mxu0 %v6350
    %9117 = vmatprep.subr.bf16.mxu0 %v6359
    %9118 = vmatpush1.bf16.msra.mxu0 %v6358
    %9119 = vmatprep.subr.bf16.mxu0 %v6367
    %9120 = vmatpush1.bf16.msra.mxu0 %v6366
    %9121 = vmatprep.subr.bf16.mxu0 %v6375
    %9122 = vmatpush1.bf16.msra.mxu0 %v6374
    %9123 = vmatprep.subr.bf16.mxu0 %v6383
    %9124 = vmatpush1.bf16.msra.mxu0 %v6382
    %9125 = vmatprep.subr.bf16.mxu0 %v6391
    %9126 = vmatpush1.bf16.msra.mxu0 %v6390
    %9127 = vmatprep.subr.bf16.mxu0 %v6399
    %9128 = vmatpush1.bf16.msra.mxu0 %v6398
    %9129 = vmatprep.subr.bf16.mxu0 %v6407
    %9130 = vmatpush1.bf16.msra.mxu0 %v6406
    %9131 = vmatprep.subr.bf16.mxu0 %v6415
    %9132 = vmatpush1.bf16.msra.mxu0 %v6414
    %9133 = vmatprep.subr.bf16.mxu0 %v6423
    %9134 = vmatpush1.bf16.msra.mxu0 %v6422
    %9135 = vmatprep.subr.bf16.mxu0 %v6431
    %9136 = vmatpush1.bf16.msra.mxu0 %v6430
    %9137 = vmatprep.subr.bf16.mxu0 %v6439
    %9138 = vmatpush1.bf16.msra.mxu0 %v6438
    %9139 = vmatprep.subr.bf16.mxu0 %v6447
    %9140 = vmatpush1.bf16.msra.mxu0 %v6446
    %9141 = vmatprep.subr.bf16.mxu0 %v6455
    %9142 = vmatpush1.bf16.msra.mxu0 %v6454
    %9143 = vmatprep.subr.bf16.mxu0 %v6463
    %9144 = vmatpush1.bf16.msra.mxu0 %v6462
    %9145 = vmatprep.subr.bf16.mxu0 %v6471
    %9146 = vmatpush1.bf16.msra.mxu0 %v6470
    %9147 = vmatprep.mubr.bf16.mxu0 %v1813
    %9148 = vmatmul.mubr.bf16.gmra.mrb[0].mxu0 %v1812
    %v9149 = vpop.f32.mrb[0].mxu0
    %v9150 = vadd.f32 %v9109, %v9149
    %v9151 = vpop.f32.mrb[0].mxu0
    %v9152 = vadd.f32 %v9111, %v9151
    %v9153 = vpop.f32.mrb[0].mxu0
    %v9154 = vpop.f32.mrb[0].mxu0
    %9155 = vdwg.mxu0
    %9156 = vmatprep.subr.bf16.mxu0 %v6479
    %9157 = vmatpush1.bf16.msra.mxu0 %v6478
    %9158 = vmatprep.subr.bf16.mxu0 %v6487
    %9159 = vmatpush1.bf16.msra.mxu0 %v6486
    %9160 = vmatprep.subr.bf16.mxu0 %v6495
    %9161 = vmatpush1.bf16.msra.mxu0 %v6494
    %9162 = vmatprep.subr.bf16.mxu0 %v6503
    %9163 = vmatpush1.bf16.msra.mxu0 %v6502
    %9164 = vmatprep.subr.bf16.mxu0 %v6511
    %9165 = vmatpush1.bf16.msra.mxu0 %v6510
    %9166 = vmatprep.subr.bf16.mxu0 %v6519
    %9167 = vmatpush1.bf16.msra.mxu0 %v6518
    %9168 = vmatprep.subr.bf16.mxu0 %v6527
    %9169 = vmatpush1.bf16.msra.mxu0 %v6526
    %9170 = vmatprep.subr.bf16.mxu0 %v6535
    %9171 = vmatpush1.bf16.msra.mxu0 %v6534
    %9172 = vmatprep.subr.bf16.mxu0 %v6543
    %9173 = vmatpush1.bf16.msra.mxu0 %v6542
    %9174 = vmatprep.subr.bf16.mxu0 %v6551
    %9175 = vmatpush1.bf16.msra.mxu0 %v6550
    %9176 = vmatprep.subr.bf16.mxu0 %v6559
    %9177 = vmatpush1.bf16.msra.mxu0 %v6558
    %9178 = vmatprep.subr.bf16.mxu0 %v6567
    %9179 = vmatpush1.bf16.msra.mxu0 %v6566
    %9180 = vmatprep.subr.bf16.mxu0 %v6575
    %9181 = vmatpush1.bf16.msra.mxu0 %v6574
    %9182 = vmatprep.subr.bf16.mxu0 %v6583
    %9183 = vmatpush1.bf16.msra.mxu0 %v6582
    %9184 = vmatprep.subr.bf16.mxu0 %v6591
    %9185 = vmatpush1.bf16.msra.mxu0 %v6590
    %9186 = vmatprep.subr.bf16.mxu0 %v6599
    %9187 = vmatpush1.bf16.msra.mxu0 %v6598
    %9188 = vmatprep.mubr.bf16.mxu0 %v1815
    %9189 = vmatmul.mubr.bf16.gmra.mrb[0].mxu0 %v1814
    %v9190 = vpop.f32.mrb[0].mxu0
    %v9191 = vadd.f32 %v9150, %v9190
    %v9192 = vpop.f32.mrb[0].mxu0
    %v9193 = vadd.f32 %v9152, %v9192
    %v9194 = vpop.f32.mrb[0].mxu0
    %v9195 = vpop.f32.mrb[0].mxu0
    %9196 = vdwg.mxu0
    %9197 = vmatprep.subr.bf16.mxu0 %v6607
    %9198 = vmatpush1.bf16.msra.mxu0 %v6606
    %9199 = vmatprep.subr.bf16.mxu0 %v6615
    %9200 = vmatpush1.bf16.msra.mxu0 %v6614
    %9201 = vmatprep.subr.bf16.mxu0 %v6623
    %9202 = vmatpush1.bf16.msra.mxu0 %v6622
    %9203 = vmatprep.subr.bf16.mxu0 %v6631
    %9204 = vmatpush1.bf16.msra.mxu0 %v6630
    %9205 = vmatprep.subr.bf16.mxu0 %v6639
    %9206 = vmatpush1.bf16.msra.mxu0 %v6638
    %9207 = vmatprep.subr.bf16.mxu0 %v6647
    %9208 = vmatpush1.bf16.msra.mxu0 %v6646
    %9209 = vmatprep.subr.bf16.mxu0 %v6655
    %9210 = vmatpush1.bf16.msra.mxu0 %v6654
    %9211 = vmatprep.subr.bf16.mxu0 %v6663
    %9212 = vmatpush1.bf16.msra.mxu0 %v6662
    %9213 = vmatprep.subr.bf16.mxu0 %v6671
    %9214 = vmatpush1.bf16.msra.mxu0 %v6670
    %9215 = vmatprep.subr.bf16.mxu0 %v6679
    %9216 = vmatpush1.bf16.msra.mxu0 %v6678
    %9217 = vmatprep.subr.bf16.mxu0 %v6687
    %9218 = vmatpush1.bf16.msra.mxu0 %v6686
    %9219 = vmatprep.subr.bf16.mxu0 %v6695
    %9220 = vmatpush1.bf16.msra.mxu0 %v6694
    %9221 = vmatprep.subr.bf16.mxu0 %v6703
    %9222 = vmatpush1.bf16.msra.mxu0 %v6702
    %9223 = vmatprep.subr.bf16.mxu0 %v6711
    %9224 = vmatpush1.bf16.msra.mxu0 %v6710
    %9225 = vmatprep.subr.bf16.mxu0 %v6719
    %9226 = vmatpush1.bf16.msra.mxu0 %v6718
    %9227 = vmatprep.subr.bf16.mxu0 %v6727
    %9228 = vmatpush1.bf16.msra.mxu0 %v6726
    %9229 = vmatprep.mubr.bf16.mxu0 %v1817
    %9230 = vmatmul.mubr.bf16.gmra.mrb[0].mxu0 %v1816
    %v9231 = vpop.f32.mrb[0].mxu0
    %v9232 = vadd.f32 %v9191, %v9231
    %v9233 = vpop.f32.mrb[0].mxu0
    %v9234 = vadd.f32 %v9193, %v9233
    %v9235 = vpop.f32.mrb[0].mxu0
    %v9236 = vpop.f32.mrb[0].mxu0
    %9237 = vdwg.mxu0
    %9238 = vmatprep.subr.bf16.mxu0 %v6735
    %9239 = vmatpush1.bf16.msra.mxu0 %v6734
    %9240 = vmatprep.subr.bf16.mxu0 %v6743
    %9241 = vmatpush1.bf16.msra.mxu0 %v6742
    %9242 = vmatprep.subr.bf16.mxu0 %v6751
    %9243 = vmatpush1.bf16.msra.mxu0 %v6750
    %9244 = vmatprep.subr.bf16.mxu0 %v6759
    %9245 = vmatpush1.bf16.msra.mxu0 %v6758
    %9246 = vmatprep.subr.bf16.mxu0 %v6767
    %9247 = vmatpush1.bf16.msra.mxu0 %v6766
    %9248 = vmatprep.subr.bf16.mxu0 %v6775
    %9249 = vmatpush1.bf16.msra.mxu0 %v6774
    %9250 = vmatprep.subr.bf16.mxu0 %v6783
    %9251 = vmatpush1.bf16.msra.mxu0 %v6782
    %9252 = vmatprep.subr.bf16.mxu0 %v6791
    %9253 = vmatpush1.bf16.msra.mxu0 %v6790
    %9254 = vmatprep.subr.bf16.mxu0 %v6799
    %9255 = vmatpush1.bf16.msra.mxu0 %v6798
    %9256 = vmatprep.subr.bf16.mxu0 %v6807
    %9257 = vmatpush1.bf16.msra.mxu0 %v6806
    %9258 = vmatprep.subr.bf16.mxu0 %v6815
    %9259 = vmatpush1.bf16.msra.mxu0 %v6814
    %9260 = vmatprep.subr.bf16.mxu0 %v6823
    %9261 = vmatpush1.bf16.msra.mxu0 %v6822
    %9262 = vmatprep.subr.bf16.mxu0 %v6831
    %9263 = vmatpush1.bf16.msra.mxu0 %v6830
    %9264 = vmatprep.subr.bf16.mxu0 %v6839
    %9265 = vmatpush1.bf16.msra.mxu0 %v6838
    %9266 = vmatprep.subr.bf16.mxu0 %v6847
    %9267 = vmatpush1.bf16.msra.mxu0 %v6846
    %9268 = vmatprep.subr.bf16.mxu0 %v6855
    %9269 = vmatpush1.bf16.msra.mxu0 %v6854
    %9270 = vmatprep.mubr.bf16.mxu0 %v1819
    %9271 = vmatmul.mubr.bf16.gmra.mrb[0].mxu0 %v1818
    %v9272 = vpop.f32.mrb[0].mxu0
    %v9273 = vadd.f32 %v9232, %v9272
    %v9274 = vpop.f32.mrb[0].mxu0
    %v9275 = vadd.f32 %v9234, %v9274
    %v9276 = vpop.f32.mrb[0].mxu0
    %v9277 = vpop.f32.mrb[0].mxu0
    %9278 = vdwg.mxu0
    %9279 = vmatprep.subr.bf16.mxu0 %v6863
    %9280 = vmatpush1.bf16.msra.mxu0 %v6862
    %9281 = vmatprep.subr.bf16.mxu0 %v6871
    %9282 = vmatpush1.bf16.msra.mxu0 %v6870
    %9283 = vmatprep.subr.bf16.mxu0 %v6879
    %9284 = vmatpush1.bf16.msra.mxu0 %v6878
    %9285 = vmatprep.subr.bf16.mxu0 %v6887
    %9286 = vmatpush1.bf16.msra.mxu0 %v6886
    %9287 = vmatprep.subr.bf16.mxu0 %v6895
    %9288 = vmatpush1.bf16.msra.mxu0 %v6894
    %9289 = vmatprep.subr.bf16.mxu0 %v6903
    %9290 = vmatpush1.bf16.msra.mxu0 %v6902
    %9291 = vmatprep.subr.bf16.mxu0 %v6911
    %9292 = vmatpush1.bf16.msra.mxu0 %v6910
    %9293 = vmatprep.subr.bf16.mxu0 %v6919
    %9294 = vmatpush1.bf16.msra.mxu0 %v6918
    %9295 = vmatprep.subr.bf16.mxu0 %v6927
    %9296 = vmatpush1.bf16.msra.mxu0 %v6926
    %9297 = vmatprep.subr.bf16.mxu0 %v6935
    %9298 = vmatpush1.bf16.msra.mxu0 %v6934
    %9299 = vmatprep.subr.bf16.mxu0 %v6943
    %9300 = vmatpush1.bf16.msra.mxu0 %v6942
    %9301 = vmatprep.subr.bf16.mxu0 %v6951
    %9302 = vmatpush1.bf16.msra.mxu0 %v6950
    %9303 = vmatprep.subr.bf16.mxu0 %v6959
    %9304 = vmatpush1.bf16.msra.mxu0 %v6958
    %9305 = vmatprep.subr.bf16.mxu0 %v6967
    %9306 = vmatpush1.bf16.msra.mxu0 %v6966
    %9307 = vmatprep.subr.bf16.mxu0 %v6975
    %9308 = vmatpush1.bf16.msra.mxu0 %v6974
    %9309 = vmatprep.subr.bf16.mxu0 %v6983
    %9310 = vmatpush1.bf16.msra.mxu0 %v6982
    %9311 = vmatprep.mubr.bf16.mxu0 %v1821
    %9312 = vmatmul.mubr.bf16.gmra.mrb[0].mxu0 %v1820
    %v9313 = vpop.f32.mrb[0].mxu0
    %v9314 = vadd.f32 %v9273, %v9313
    %v9315 = vpop.f32.mrb[0].mxu0
    %v9316 = vadd.f32 %v9275, %v9315
    %v9317 = vpop.f32.mrb[0].mxu0
    %v9318 = vpop.f32.mrb[0].mxu0
    %9319 = vdwg.mxu0
    %v9320 = vmax.f32 %v8330, 0.0
    %v9321 = vmax.f32 %v8332, 0.0
    %v9322 = vmax.f32 %v8658, 0.0
    %v9323 = vmax.f32 %v8660, 0.0
    %v9324 = vmax.f32 %v8986, 0.0
    %v9325 = vmax.f32 %v8988, 0.0
    %v9326 = vmax.f32 %v9314, 0.0
    %v9327 = vmax.f32 %v9316, 0.0
    %v9328 = vadd.f32 %v9320, %v9321
    %v9329 = vadd.f32 %v9328, %v9322
    %v9330 = vadd.f32 %v9329, %v9323
    %v9331 = vadd.f32 %v9330, %v9324
    %v9332 = vadd.f32 %v9331, %v9325
    %v9333 = vadd.f32 %v9332, %v9326
    %v9334 = vadd.f32 %v9333, %v9327
    %9335 = vadd.xlane.f32.xlu0 %v9334
    %v9336 = vpop.xlane.xlu0 %9335
    %v9337 = vrcp.pop 1024.0
    %v9338 = vmul.f32 %v9336, %v9337
    %v9339 = vsub.f32 %v9320, %v9338
    %v9340 = vsub.f32 %v9321, %v9338
    %v9341 = vsub.f32 %v9322, %v9338
    %v9342 = vsub.f32 %v9323, %v9338
    %v9343 = vsub.f32 %v9324, %v9338
    %v9344 = vsub.f32 %v9325, %v9338
    %v9345 = vsub.f32 %v9326, %v9338
    %v9346 = vsub.f32 %v9327, %v9338
    %v9347 = vmul.f32 %v9339, %v9339
    %v9348 = vmul.f32 %v9340, %v9340
    %v9349 = vmul.f32 %v9341, %v9341
    %v9350 = vmul.f32 %v9342, %v9342
    %v9351 = vmul.f32 %v9343, %v9343
    %v9352 = vmul.f32 %v9344, %v9344
    %v9353 = vmul.f32 %v9345, %v9345
    %v9354 = vmul.f32 %v9346, %v9346
    %v9355 = vadd.f32 %v9347, %v9348
    %v9356 = vadd.f32 %v9355, %v9349
    %v9357 = vadd.f32 %v9356, %v9350
    %v9358 = vadd.f32 %v9357, %v9351
    %v9359 = vadd.f32 %v9358, %v9352
    %v9360 = vadd.f32 %v9359, %v9353
    %v9361 = vadd.f32 %v9360, %v9354
    %9362 = vadd.xlane.f32.xlu0 %v9361
    %v9363 = vpop.xlane.xlu0 %9362
    %v9364 = vmul.f32 %v9363, %v9337
    %v9365 = vadd.f32 %v9364, 1e-05
    %v9366 = vrsqrt.pop %v9365
    %v9367 = vmul.f32 %v9339, %v9366
    %v9368 = vmul.f32 %v9340, %v9366
    %v9369 = vmul.f32 %v9341, %v9366
    %v9370 = vmul.f32 %v9342, %v9366
    %v9371 = vmul.f32 %v9343, %v9366
    %v9372 = vmul.f32 %v9344, %v9366
    %v9373 = vmul.f32 %v9345, %v9366
    %v9374 = vmul.f32 %v9346, %v9366
    %v9375 = vld [vmem:[#allocation19] sm:$0xff]
    %v9377 = vlaneseq
    %v9378 = vshrl.u32 %v9377, 7
    %v9379 = vsub.s32 0, %v9378
    %v9380 = vrot.slane %v9375, %v9379
    %v9381 = vlaneseq
    %v9382 = vshrl.u32 %v9381, 7
    %v9383 = vsub.s32 1, %v9382
    %v9384 = vrot.slane %v9375, %v9383
    %v9385 = vlaneseq
    %v9386 = vshrl.u32 %v9385, 7
    %v9387 = vsub.s32 2, %v9386
    %v9388 = vrot.slane %v9375, %v9387
    %v9389 = vlaneseq
    %v9390 = vshrl.u32 %v9389, 7
    %v9391 = vsub.s32 3, %v9390
    %v9392 = vrot.slane %v9375, %v9391
    %v9393 = vlaneseq
    %v9394 = vshrl.u32 %v9393, 7
    %v9395 = vsub.s32 4, %v9394
    %v9396 = vrot.slane %v9375, %v9395
    %v9397 = vlaneseq
    %v9398 = vshrl.u32 %v9397, 7
    %v9399 = vsub.s32 5, %v9398
    %v9400 = vrot.slane %v9375, %v9399
    %v9401 = vlaneseq
    %v9402 = vshrl.u32 %v9401, 7
    %v9403 = vsub.s32 6, %v9402
    %v9404 = vrot.slane %v9375, %v9403
    %v9405 = vlaneseq
    %v9406 = vshrl.u32 %v9405, 7
    %v9407 = vsub.s32 7, %v9406
    %v9408 = vrot.slane %v9375, %v9407
    %v9417 = vmul.f32 %v9367, %v9380
    %v9418 = vmul.f32 %v9368, %v9384
    %v9419 = vmul.f32 %v9369, %v9388
    %v9420 = vmul.f32 %v9370, %v9392
    %v9421 = vmul.f32 %v9371, %v9396
    %v9422 = vmul.f32 %v9372, %v9400
    %v9423 = vmul.f32 %v9373, %v9404
    %v9424 = vmul.f32 %v9374, %v9408
    %v9425 = vld [vmem:[#allocation20] sm:$0xff]
    %v9427 = vlaneseq
    %v9428 = vshrl.u32 %v9427, 7
    %v9429 = vsub.s32 0, %v9428
    %v9430 = vrot.slane %v9425, %v9429
    %v9431 = vlaneseq
    %v9432 = vshrl.u32 %v9431, 7
    %v9433 = vsub.s32 1, %v9432
    %v9434 = vrot.slane %v9425, %v9433
    %v9435 = vlaneseq
    %v9436 = vshrl.u32 %v9435, 7
    %v9437 = vsub.s32 2, %v9436
    %v9438 = vrot.slane %v9425, %v9437
    %v9439 = vlaneseq
    %v9440 = vshrl.u32 %v9439, 7
    %v9441 = vsub.s32 3, %v9440
    %v9442 = vrot.slane %v9425, %v9441
    %v9443 = vlaneseq
    %v9444 = vshrl.u32 %v9443, 7
    %v9445 = vsub.s32 4, %v9444
    %v9446 = vrot.slane %v9425, %v9445
    %v9447 = vlaneseq
    %v9448 = vshrl.u32 %v9447, 7
    %v9449 = vsub.s32 5, %v9448
    %v9450 = vrot.slane %v9425, %v9449
    %v9451 = vlaneseq
    %v9452 = vshrl.u32 %v9451, 7
    %v9453 = vsub.s32 6, %v9452
    %v9454 = vrot.slane %v9425, %v9453
    %v9455 = vlaneseq
    %v9456 = vshrl.u32 %v9455, 7
    %v9457 = vsub.s32 7, %v9456
    %v9458 = vrot.slane %v9425, %v9457
    %v9467 = vadd.f32 %v9417, %v9430
    %v9468 = vadd.f32 %v9418, %v9434
    %v9469 = vadd.f32 %v9419, %v9438
    %v9470 = vadd.f32 %v9420, %v9442
    %v9471 = vadd.f32 %v9421, %v9446
    %v9472 = vadd.f32 %v9422, %v9450
    %v9473 = vadd.f32 %v9423, %v9454
    %v9474 = vadd.f32 %v9424, %v9458
    %v9475 = vpack.c.bf16 %v9467, %v9467
    %v9476 = vpack.c.bf16 %v9468, %v9468
    %v9477 = vpack.c.bf16 %v9469, %v9469
    %v9478 = vpack.c.bf16 %v9470, %v9470
    %v9479 = vpack.c.bf16 %v9471, %v9471
    %v9480 = vpack.c.bf16 %v9472, %v9472
    %v9481 = vpack.c.bf16 %v9473, %v9473
    %v9482 = vpack.c.bf16 %v9474, %v9474
    %v9483 = vld [vmem:[#allocation22] sm:$0xff]
    %v9484 = vld [vmem:[#allocation22 + $0x8] sm:$0xff]
    %v9485 = vld [vmem:[#allocation22 + $0x10] sm:$0xff]
    %v9486 = vld [vmem:[#allocation22 + $0x18] sm:$0xff]
    %v9487 = vld [vmem:[#allocation22 + $0x20] sm:$0xff]
    %v9488 = vld [vmem:[#allocation22 + $0x28] sm:$0xff]
    %v9489 = vld [vmem:[#allocation22 + $0x30] sm:$0xff]
    %v9490 = vld [vmem:[#allocation22 + $0x38] sm:$0xff]
    %v9491 = vld [vmem:[#allocation22 + $0x40] sm:$0xff]
    %v9492 = vld [vmem:[#allocation22 + $0x48] sm:$0xff]
    %v9493 = vld [vmem:[#allocation22 + $0x50] sm:$0xff]
    %v9494 = vld [vmem:[#allocation22 + $0x58] sm:$0xff]
    %v9495 = vld [vmem:[#allocation22 + $0x60] sm:$0xff]
    %v9496 = vld [vmem:[#allocation22 + $0x68] sm:$0xff]
    %v9497 = vld [vmem:[#allocation22 + $0x70] sm:$0xff]
    %v9498 = vld [vmem:[#allocation22 + $0x78] sm:$0xff]
    %v9499 = vld [vmem:[#allocation22 + $0x80] sm:$0xff]
    %v9500 = vld [vmem:[#allocation22 + $0x88] sm:$0xff]
    %v9501 = vld [vmem:[#allocation22 + $0x90] sm:$0xff]
    %v9502 = vld [vmem:[#allocation22 + $0x98] sm:$0xff]
    %v9503 = vld [vmem:[#allocation22 + $0xa0] sm:$0xff]
    %v9504 = vld [vmem:[#allocation22 + $0xa8] sm:$0xff]
    %v9505 = vld [vmem:[#allocation22 + $0xb0] sm:$0xff]
    %v9506 = vld [vmem:[#allocation22 + $0xb8] sm:$0xff]
    %v9507 = vld [vmem:[#allocation22 + $0xc0] sm:$0xff]
    %v9508 = vld [vmem:[#allocation22 + $0xc8] sm:$0xff]
    %v9509 = vld [vmem:[#allocation22 + $0xd0] sm:$0xff]
    %v9510 = vld [vmem:[#allocation22 + $0xd8] sm:$0xff]
    %v9511 = vld [vmem:[#allocation22 + $0xe0] sm:$0xff]
    %v9512 = vld [vmem:[#allocation22 + $0xe8] sm:$0xff]
    %v9513 = vld [vmem:[#allocation22 + $0xf0] sm:$0xff]
    %v9514 = vld [vmem:[#allocation22 + $0xf8] sm:$0xff]
    %v9515 = vld [vmem:[#allocation22 + $0x100] sm:$0xff]
    %v9516 = vld [vmem:[#allocation22 + $0x108] sm:$0xff]
    %v9517 = vld [vmem:[#allocation22 + $0x110] sm:$0xff]
    %v9518 = vld [vmem:[#allocation22 + $0x118] sm:$0xff]
    %v9519 = vld [vmem:[#allocation22 + $0x120] sm:$0xff]
    %v9520 = vld [vmem:[#allocation22 + $0x128] sm:$0xff]
    %v9521 = vld [vmem:[#allocation22 + $0x130] sm:$0xff]
    %v9522 = vld [vmem:[#allocation22 + $0x138] sm:$0xff]
    %v9523 = vld [vmem:[#allocation22 + $0x140] sm:$0xff]
    %v9524 = vld [vmem:[#allocation22 + $0x148] sm:$0xff]
    %v9525 = vld [vmem:[#allocation22 + $0x150] sm:$0xff]
    %v9526 = vld [vmem:[#allocation22 + $0x158] sm:$0xff]
    %v9527 = vld [vmem:[#allocation22 + $0x160] sm:$0xff]
    %v9528 = vld [vmem:[#allocation22 + $0x168] sm:$0xff]
    %v9529 = vld [vmem:[#allocation22 + $0x170] sm:$0xff]
    %v9530 = vld [vmem:[#allocation22 + $0x178] sm:$0xff]
    %v9531 = vld [vmem:[#allocation22 + $0x180] sm:$0xff]
    %v9532 = vld [vmem:[#allocation22 + $0x188] sm:$0xff]
    %v9533 = vld [vmem:[#allocation22 + $0x190] sm:$0xff]
    %v9534 = vld [vmem:[#allocation22 + $0x198] sm:$0xff]
    %v9535 = vld [vmem:[#allocation22 + $0x1a0] sm:$0xff]
    %v9536 = vld [vmem:[#allocation22 + $0x1a8] sm:$0xff]
    %v9537 = vld [vmem:[#allocation22 + $0x1b0] sm:$0xff]
    %v9538 = vld [vmem:[#allocation22 + $0x1b8] sm:$0xff]
    %v9539 = vld [vmem:[#allocation22 + $0x1c0] sm:$0xff]
    %v9540 = vld [vmem:[#allocation22 + $0x1c8] sm:$0xff]
    %v9541 = vld [vmem:[#allocation22 + $0x1d0] sm:$0xff]
    %v9542 = vld [vmem:[#allocation22 + $0x1d8] sm:$0xff]
    %v9543 = vld [vmem:[#allocation22 + $0x1e0] sm:$0xff]
    %v9544 = vld [vmem:[#allocation22 + $0x1e8] sm:$0xff]
    %v9545 = vld [vmem:[#allocation22 + $0x1f0] sm:$0xff]
    %v9546 = vld [vmem:[#allocation22 + $0x1f8] sm:$0xff]
    %v9547 = vld [vmem:[#allocation22 + $0x200] sm:$0xff]
    %v9548 = vld [vmem:[#allocation22 + $0x208] sm:$0xff]
    %v9549 = vld [vmem:[#allocation22 + $0x210] sm:$0xff]
    %v9550 = vld [vmem:[#allocation22 + $0x218] sm:$0xff]
    %v9551 = vld [vmem:[#allocation22 + $0x220] sm:$0xff]
    %v9552 = vld [vmem:[#allocation22 + $0x228] sm:$0xff]
    %v9553 = vld [vmem:[#allocation22 + $0x230] sm:$0xff]
    %v9554 = vld [vmem:[#allocation22 + $0x238] sm:$0xff]
    %v9555 = vld [vmem:[#allocation22 + $0x240] sm:$0xff]
    %v9556 = vld [vmem:[#allocation22 + $0x248] sm:$0xff]
    %v9557 = vld [vmem:[#allocation22 + $0x250] sm:$0xff]
    %v9558 = vld [vmem:[#allocation22 + $0x258] sm:$0xff]
    %v9559 = vld [vmem:[#allocation22 + $0x260] sm:$0xff]
    %v9560 = vld [vmem:[#allocation22 + $0x268] sm:$0xff]
    %v9561 = vld [vmem:[#allocation22 + $0x270] sm:$0xff]
    %v9562 = vld [vmem:[#allocation22 + $0x278] sm:$0xff]
    %v9563 = vld [vmem:[#allocation22 + $0x280] sm:$0xff]
    %v9564 = vld [vmem:[#allocation22 + $0x288] sm:$0xff]
    %v9565 = vld [vmem:[#allocation22 + $0x290] sm:$0xff]
    %v9566 = vld [vmem:[#allocation22 + $0x298] sm:$0xff]
    %v9567 = vld [vmem:[#allocation22 + $0x2a0] sm:$0xff]
    %v9568 = vld [vmem:[#allocation22 + $0x2a8] sm:$0xff]
    %v9569 = vld [vmem:[#allocation22 + $0x2b0] sm:$0xff]
    %v9570 = vld [vmem:[#allocation22 + $0x2b8] sm:$0xff]
    %v9571 = vld [vmem:[#allocation22 + $0x2c0] sm:$0xff]
    %v9572 = vld [vmem:[#allocation22 + $0x2c8] sm:$0xff]
    %v9573 = vld [vmem:[#allocation22 + $0x2d0] sm:$0xff]
    %v9574 = vld [vmem:[#allocation22 + $0x2d8] sm:$0xff]
    %v9575 = vld [vmem:[#allocation22 + $0x2e0] sm:$0xff]
    %v9576 = vld [vmem:[#allocation22 + $0x2e8] sm:$0xff]
    %v9577 = vld [vmem:[#allocation22 + $0x2f0] sm:$0xff]
    %v9578 = vld [vmem:[#allocation22 + $0x2f8] sm:$0xff]
    %v9579 = vld [vmem:[#allocation22 + $0x300] sm:$0xff]
    %v9580 = vld [vmem:[#allocation22 + $0x308] sm:$0xff]
    %v9581 = vld [vmem:[#allocation22 + $0x310] sm:$0xff]
    %v9582 = vld [vmem:[#allocation22 + $0x318] sm:$0xff]
    %v9583 = vld [vmem:[#allocation22 + $0x320] sm:$0xff]
    %v9584 = vld [vmem:[#allocation22 + $0x328] sm:$0xff]
    %v9585 = vld [vmem:[#allocation22 + $0x330] sm:$0xff]
    %v9586 = vld [vmem:[#allocation22 + $0x338] sm:$0xff]
    %v9587 = vld [vmem:[#allocation22 + $0x340] sm:$0xff]
    %v9588 = vld [vmem:[#allocation22 + $0x348] sm:$0xff]
    %v9589 = vld [vmem:[#allocation22 + $0x350] sm:$0xff]
    %v9590 = vld [vmem:[#allocation22 + $0x358] sm:$0xff]
    %v9591 = vld [vmem:[#allocation22 + $0x360] sm:$0xff]
    %v9592 = vld [vmem:[#allocation22 + $0x368] sm:$0xff]
    %v9593 = vld [vmem:[#allocation22 + $0x370] sm:$0xff]
    %v9594 = vld [vmem:[#allocation22 + $0x378] sm:$0xff]
    %v9595 = vld [vmem:[#allocation22 + $0x380] sm:$0xff]
    %v9596 = vld [vmem:[#allocation22 + $0x388] sm:$0xff]
    %v9597 = vld [vmem:[#allocation22 + $0x390] sm:$0xff]
    %v9598 = vld [vmem:[#allocation22 + $0x398] sm:$0xff]
    %v9599 = vld [vmem:[#allocation22 + $0x3a0] sm:$0xff]
    %v9600 = vld [vmem:[#allocation22 + $0x3a8] sm:$0xff]
    %v9601 = vld [vmem:[#allocation22 + $0x3b0] sm:$0xff]
    %v9602 = vld [vmem:[#allocation22 + $0x3b8] sm:$0xff]
    %v9603 = vld [vmem:[#allocation22 + $0x3c0] sm:$0xff]
    %v9604 = vld [vmem:[#allocation22 + $0x3c8] sm:$0xff]
    %v9605 = vld [vmem:[#allocation22 + $0x3d0] sm:$0xff]
    %v9606 = vld [vmem:[#allocation22 + $0x3d8] sm:$0xff]
    %v9607 = vld [vmem:[#allocation22 + $0x3e0] sm:$0xff]
    %v9608 = vld [vmem:[#allocation22 + $0x3e8] sm:$0xff]
    %v9609 = vld [vmem:[#allocation22 + $0x3f0] sm:$0xff]
    %v9610 = vld [vmem:[#allocation22 + $0x3f8] sm:$0xff]
    %v9611 = vld [vmem:[#allocation22 + $0x400] sm:$0xff]
    %v9612 = vld [vmem:[#allocation22 + $0x408] sm:$0xff]
    %v9613 = vld [vmem:[#allocation22 + $0x410] sm:$0xff]
    %v9614 = vld [vmem:[#allocation22 + $0x418] sm:$0xff]
    %v9615 = vld [vmem:[#allocation22 + $0x420] sm:$0xff]
    %v9616 = vld [vmem:[#allocation22 + $0x428] sm:$0xff]
    %v9617 = vld [vmem:[#allocation22 + $0x430] sm:$0xff]
    %v9618 = vld [vmem:[#allocation22 + $0x438] sm:$0xff]
    %v9619 = vld [vmem:[#allocation22 + $0x440] sm:$0xff]
    %v9620 = vld [vmem:[#allocation22 + $0x448] sm:$0xff]
    %v9621 = vld [vmem:[#allocation22 + $0x450] sm:$0xff]
    %v9622 = vld [vmem:[#allocation22 + $0x458] sm:$0xff]
    %v9623 = vld [vmem:[#allocation22 + $0x460] sm:$0xff]
    %v9624 = vld [vmem:[#allocation22 + $0x468] sm:$0xff]
    %v9625 = vld [vmem:[#allocation22 + $0x470] sm:$0xff]
    %v9626 = vld [vmem:[#allocation22 + $0x478] sm:$0xff]
    %v9627 = vld [vmem:[#allocation22 + $0x480] sm:$0xff]
    %v9628 = vld [vmem:[#allocation22 + $0x488] sm:$0xff]
    %v9629 = vld [vmem:[#allocation22 + $0x490] sm:$0xff]
    %v9630 = vld [vmem:[#allocation22 + $0x498] sm:$0xff]
    %v9631 = vld [vmem:[#allocation22 + $0x4a0] sm:$0xff]
    %v9632 = vld [vmem:[#allocation22 + $0x4a8] sm:$0xff]
    %v9633 = vld [vmem:[#allocation22 + $0x4b0] sm:$0xff]
    %v9634 = vld [vmem:[#allocation22 + $0x4b8] sm:$0xff]
    %v9635 = vld [vmem:[#allocation22 + $0x4c0] sm:$0xff]
    %v9636 = vld [vmem:[#allocation22 + $0x4c8] sm:$0xff]
    %v9637 = vld [vmem:[#allocation22 + $0x4d0] sm:$0xff]
    %v9638 = vld [vmem:[#allocation22 + $0x4d8] sm:$0xff]
    %v9639 = vld [vmem:[#allocation22 + $0x4e0] sm:$0xff]
    %v9640 = vld [vmem:[#allocation22 + $0x4e8] sm:$0xff]
    %v9641 = vld [vmem:[#allocation22 + $0x4f0] sm:$0xff]
    %v9642 = vld [vmem:[#allocation22 + $0x4f8] sm:$0xff]
    %v9643 = vld [vmem:[#allocation22 + $0x500] sm:$0xff]
    %v9644 = vld [vmem:[#allocation22 + $0x508] sm:$0xff]
    %v9645 = vld [vmem:[#allocation22 + $0x510] sm:$0xff]
    %v9646 = vld [vmem:[#allocation22 + $0x518] sm:$0xff]
    %v9647 = vld [vmem:[#allocation22 + $0x520] sm:$0xff]
    %v9648 = vld [vmem:[#allocation22 + $0x528] sm:$0xff]
    %v9649 = vld [vmem:[#allocation22 + $0x530] sm:$0xff]
    %v9650 = vld [vmem:[#allocation22 + $0x538] sm:$0xff]
    %v9651 = vld [vmem:[#allocation22 + $0x540] sm:$0xff]
    %v9652 = vld [vmem:[#allocation22 + $0x548] sm:$0xff]
    %v9653 = vld [vmem:[#allocation22 + $0x550] sm:$0xff]
    %v9654 = vld [vmem:[#allocation22 + $0x558] sm:$0xff]
    %v9655 = vld [vmem:[#allocation22 + $0x560] sm:$0xff]
    %v9656 = vld [vmem:[#allocation22 + $0x568] sm:$0xff]
    %v9657 = vld [vmem:[#allocation22 + $0x570] sm:$0xff]
    %v9658 = vld [vmem:[#allocation22 + $0x578] sm:$0xff]
    %v9659 = vld [vmem:[#allocation22 + $0x580] sm:$0xff]
    %v9660 = vld [vmem:[#allocation22 + $0x588] sm:$0xff]
    %v9661 = vld [vmem:[#allocation22 + $0x590] sm:$0xff]
    %v9662 = vld [vmem:[#allocation22 + $0x598] sm:$0xff]
    %v9663 = vld [vmem:[#allocation22 + $0x5a0] sm:$0xff]
    %v9664 = vld [vmem:[#allocation22 + $0x5a8] sm:$0xff]
    %v9665 = vld [vmem:[#allocation22 + $0x5b0] sm:$0xff]
    %v9666 = vld [vmem:[#allocation22 + $0x5b8] sm:$0xff]
    %v9667 = vld [vmem:[#allocation22 + $0x5c0] sm:$0xff]
    %v9668 = vld [vmem:[#allocation22 + $0x5c8] sm:$0xff]
    %v9669 = vld [vmem:[#allocation22 + $0x5d0] sm:$0xff]
    %v9670 = vld [vmem:[#allocation22 + $0x5d8] sm:$0xff]
    %v9671 = vld [vmem:[#allocation22 + $0x5e0] sm:$0xff]
    %v9672 = vld [vmem:[#allocation22 + $0x5e8] sm:$0xff]
    %v9673 = vld [vmem:[#allocation22 + $0x5f0] sm:$0xff]
    %v9674 = vld [vmem:[#allocation22 + $0x5f8] sm:$0xff]
    %v9675 = vld [vmem:[#allocation22 + $0x600] sm:$0xff]
    %v9676 = vld [vmem:[#allocation22 + $0x608] sm:$0xff]
    %v9677 = vld [vmem:[#allocation22 + $0x610] sm:$0xff]
    %v9678 = vld [vmem:[#allocation22 + $0x618] sm:$0xff]
    %v9679 = vld [vmem:[#allocation22 + $0x620] sm:$0xff]
    %v9680 = vld [vmem:[#allocation22 + $0x628] sm:$0xff]
    %v9681 = vld [vmem:[#allocation22 + $0x630] sm:$0xff]
    %v9682 = vld [vmem:[#allocation22 + $0x638] sm:$0xff]
    %v9683 = vld [vmem:[#allocation22 + $0x640] sm:$0xff]
    %v9684 = vld [vmem:[#allocation22 + $0x648] sm:$0xff]
    %v9685 = vld [vmem:[#allocation22 + $0x650] sm:$0xff]
    %v9686 = vld [vmem:[#allocation22 + $0x658] sm:$0xff]
    %v9687 = vld [vmem:[#allocation22 + $0x660] sm:$0xff]
    %v9688 = vld [vmem:[#allocation22 + $0x668] sm:$0xff]
    %v9689 = vld [vmem:[#allocation22 + $0x670] sm:$0xff]
    %v9690 = vld [vmem:[#allocation22 + $0x678] sm:$0xff]
    %v9691 = vld [vmem:[#allocation22 + $0x680] sm:$0xff]
    %v9692 = vld [vmem:[#allocation22 + $0x688] sm:$0xff]
    %v9693 = vld [vmem:[#allocation22 + $0x690] sm:$0xff]
    %v9694 = vld [vmem:[#allocation22 + $0x698] sm:$0xff]
    %v9695 = vld [vmem:[#allocation22 + $0x6a0] sm:$0xff]
    %v9696 = vld [vmem:[#allocation22 + $0x6a8] sm:$0xff]
    %v9697 = vld [vmem:[#allocation22 + $0x6b0] sm:$0xff]
    %v9698 = vld [vmem:[#allocation22 + $0x6b8] sm:$0xff]
    %v9699 = vld [vmem:[#allocation22 + $0x6c0] sm:$0xff]
    %v9700 = vld [vmem:[#allocation22 + $0x6c8] sm:$0xff]
    %v9701 = vld [vmem:[#allocation22 + $0x6d0] sm:$0xff]
    %v9702 = vld [vmem:[#allocation22 + $0x6d8] sm:$0xff]
    %v9703 = vld [vmem:[#allocation22 + $0x6e0] sm:$0xff]
    %v9704 = vld [vmem:[#allocation22 + $0x6e8] sm:$0xff]
    %v9705 = vld [vmem:[#allocation22 + $0x6f0] sm:$0xff]
    %v9706 = vld [vmem:[#allocation22 + $0x6f8] sm:$0xff]
    %v9707 = vld [vmem:[#allocation22 + $0x700] sm:$0xff]
    %v9708 = vld [vmem:[#allocation22 + $0x708] sm:$0xff]
    %v9709 = vld [vmem:[#allocation22 + $0x710] sm:$0xff]
    %v9710 = vld [vmem:[#allocation22 + $0x718] sm:$0xff]
    %v9711 = vld [vmem:[#allocation22 + $0x720] sm:$0xff]
    %v9712 = vld [vmem:[#allocation22 + $0x728] sm:$0xff]
    %v9713 = vld [vmem:[#allocation22 + $0x730] sm:$0xff]
    %v9714 = vld [vmem:[#allocation22 + $0x738] sm:$0xff]
    %v9715 = vld [vmem:[#allocation22 + $0x740] sm:$0xff]
    %v9716 = vld [vmem:[#allocation22 + $0x748] sm:$0xff]
    %v9717 = vld [vmem:[#allocation22 + $0x750] sm:$0xff]
    %v9718 = vld [vmem:[#allocation22 + $0x758] sm:$0xff]
    %v9719 = vld [vmem:[#allocation22 + $0x760] sm:$0xff]
    %v9720 = vld [vmem:[#allocation22 + $0x768] sm:$0xff]
    %v9721 = vld [vmem:[#allocation22 + $0x770] sm:$0xff]
    %v9722 = vld [vmem:[#allocation22 + $0x778] sm:$0xff]
    %v9723 = vld [vmem:[#allocation22 + $0x780] sm:$0xff]
    %v9724 = vld [vmem:[#allocation22 + $0x788] sm:$0xff]
    %v9725 = vld [vmem:[#allocation22 + $0x790] sm:$0xff]
    %v9726 = vld [vmem:[#allocation22 + $0x798] sm:$0xff]
    %v9727 = vld [vmem:[#allocation22 + $0x7a0] sm:$0xff]
    %v9728 = vld [vmem:[#allocation22 + $0x7a8] sm:$0xff]
    %v9729 = vld [vmem:[#allocation22 + $0x7b0] sm:$0xff]
    %v9730 = vld [vmem:[#allocation22 + $0x7b8] sm:$0xff]
    %v9731 = vld [vmem:[#allocation22 + $0x7c0] sm:$0xff]
    %v9732 = vld [vmem:[#allocation22 + $0x7c8] sm:$0xff]
    %v9733 = vld [vmem:[#allocation22 + $0x7d0] sm:$0xff]
    %v9734 = vld [vmem:[#allocation22 + $0x7d8] sm:$0xff]
    %v9735 = vld [vmem:[#allocation22 + $0x7e0] sm:$0xff]
    %v9736 = vld [vmem:[#allocation22 + $0x7e8] sm:$0xff]
    %v9737 = vld [vmem:[#allocation22 + $0x7f0] sm:$0xff]
    %v9738 = vld [vmem:[#allocation22 + $0x7f8] sm:$0xff]
    %v9739 = vld [vmem:[#allocation23] sm:$0xf]
    %v9741 = vlaneseq
    %v9742 = vshrl.u32 %v9741, 7
    %v9743 = vsub.s32 0, %v9742
    %v9744 = vrot.slane %v9739, %v9743
    %v9745 = vlaneseq
    %v9746 = vshrl.u32 %v9745, 7
    %v9747 = vsub.s32 1, %v9746
    %v9748 = vrot.slane %v9739, %v9747
    %v9749 = vlaneseq
    %v9750 = vshrl.u32 %v9749, 7
    %v9751 = vsub.s32 2, %v9750
    %v9752 = vrot.slane %v9739, %v9751
    %v9753 = vlaneseq
    %v9754 = vshrl.u32 %v9753, 7
    %v9755 = vsub.s32 3, %v9754
    %v9756 = vrot.slane %v9739, %v9755
    %v10017 = vunpack.c.l.b16 %v9483
    %v10018 = vunpack.c.h.b16 %v9483
    %v10019 = vunpack.c.l.b16 %v9484
    %v10020 = vunpack.c.h.b16 %v9484
    %v10021 = vunpack.c.l.b16 %v9485
    %v10022 = vunpack.c.h.b16 %v9485
    %v10023 = vunpack.c.l.b16 %v9486
    %v10024 = vunpack.c.h.b16 %v9486
    %v10025 = vunpack.c.l.b16 %v9487
    %v10026 = vunpack.c.h.b16 %v9487
    %v10027 = vunpack.c.l.b16 %v9488
    %v10028 = vunpack.c.h.b16 %v9488
    %v10029 = vunpack.c.l.b16 %v9489
    %v10030 = vunpack.c.h.b16 %v9489
    %v10031 = vunpack.c.l.b16 %v9490
    %v10032 = vunpack.c.h.b16 %v9490
    %v10033 = vunpack.c.l.b16 %v9491
    %v10034 = vunpack.c.h.b16 %v9491
    %v10035 = vunpack.c.l.b16 %v9492
    %v10036 = vunpack.c.h.b16 %v9492
    %v10037 = vunpack.c.l.b16 %v9493
    %v10038 = vunpack.c.h.b16 %v9493
    %v10039 = vunpack.c.l.b16 %v9494
    %v10040 = vunpack.c.h.b16 %v9494
    %v10041 = vunpack.c.l.b16 %v9495
    %v10042 = vunpack.c.h.b16 %v9495
    %v10043 = vunpack.c.l.b16 %v9496
    %v10044 = vunpack.c.h.b16 %v9496
    %v10045 = vunpack.c.l.b16 %v9497
    %v10046 = vunpack.c.h.b16 %v9497
    %v10047 = vunpack.c.l.b16 %v9498
    %v10048 = vunpack.c.h.b16 %v9498
    %v10049 = vunpack.c.l.b16 %v9499
    %v10050 = vunpack.c.h.b16 %v9499
    %v10051 = vunpack.c.l.b16 %v9500
    %v10052 = vunpack.c.h.b16 %v9500
    %v10053 = vunpack.c.l.b16 %v9501
    %v10054 = vunpack.c.h.b16 %v9501
    %v10055 = vunpack.c.l.b16 %v9502
    %v10056 = vunpack.c.h.b16 %v9502
    %v10057 = vunpack.c.l.b16 %v9503
    %v10058 = vunpack.c.h.b16 %v9503
    %v10059 = vunpack.c.l.b16 %v9504
    %v10060 = vunpack.c.h.b16 %v9504
    %v10061 = vunpack.c.l.b16 %v9505
    %v10062 = vunpack.c.h.b16 %v9505
    %v10063 = vunpack.c.l.b16 %v9506
    %v10064 = vunpack.c.h.b16 %v9506
    %v10065 = vunpack.c.l.b16 %v9507
    %v10066 = vunpack.c.h.b16 %v9507
    %v10067 = vunpack.c.l.b16 %v9508
    %v10068 = vunpack.c.h.b16 %v9508
    %v10069 = vunpack.c.l.b16 %v9509
    %v10070 = vunpack.c.h.b16 %v9509
    %v10071 = vunpack.c.l.b16 %v9510
    %v10072 = vunpack.c.h.b16 %v9510
    %v10073 = vunpack.c.l.b16 %v9511
    %v10074 = vunpack.c.h.b16 %v9511
    %v10075 = vunpack.c.l.b16 %v9512
    %v10076 = vunpack.c.h.b16 %v9512
    %v10077 = vunpack.c.l.b16 %v9513
    %v10078 = vunpack.c.h.b16 %v9513
    %v10079 = vunpack.c.l.b16 %v9514
    %v10080 = vunpack.c.h.b16 %v9514
    %v10081 = vunpack.c.l.b16 %v9515
    %v10082 = vunpack.c.h.b16 %v9515
    %v10083 = vunpack.c.l.b16 %v9516
    %v10084 = vunpack.c.h.b16 %v9516
    %v10085 = vunpack.c.l.b16 %v9517
    %v10086 = vunpack.c.h.b16 %v9517
    %v10087 = vunpack.c.l.b16 %v9518
    %v10088 = vunpack.c.h.b16 %v9518
    %v10089 = vunpack.c.l.b16 %v9519
    %v10090 = vunpack.c.h.b16 %v9519
    %v10091 = vunpack.c.l.b16 %v9520
    %v10092 = vunpack.c.h.b16 %v9520
    %v10093 = vunpack.c.l.b16 %v9521
    %v10094 = vunpack.c.h.b16 %v9521
    %v10095 = vunpack.c.l.b16 %v9522
    %v10096 = vunpack.c.h.b16 %v9522
    %v10097 = vunpack.c.l.b16 %v9523
    %v10098 = vunpack.c.h.b16 %v9523
    %v10099 = vunpack.c.l.b16 %v9524
    %v10100 = vunpack.c.h.b16 %v9524
    %v10101 = vunpack.c.l.b16 %v9525
    %v10102 = vunpack.c.h.b16 %v9525
    %v10103 = vunpack.c.l.b16 %v9526
    %v10104 = vunpack.c.h.b16 %v9526
    %v10105 = vunpack.c.l.b16 %v9527
    %v10106 = vunpack.c.h.b16 %v9527
    %v10107 = vunpack.c.l.b16 %v9528
    %v10108 = vunpack.c.h.b16 %v9528
    %v10109 = vunpack.c.l.b16 %v9529
    %v10110 = vunpack.c.h.b16 %v9529
    %v10111 = vunpack.c.l.b16 %v9530
    %v10112 = vunpack.c.h.b16 %v9530
    %v10113 = vunpack.c.l.b16 %v9531
    %v10114 = vunpack.c.h.b16 %v9531
    %v10115 = vunpack.c.l.b16 %v9532
    %v10116 = vunpack.c.h.b16 %v9532
    %v10117 = vunpack.c.l.b16 %v9533
    %v10118 = vunpack.c.h.b16 %v9533
    %v10119 = vunpack.c.l.b16 %v9534
    %v10120 = vunpack.c.h.b16 %v9534
    %v10121 = vunpack.c.l.b16 %v9535
    %v10122 = vunpack.c.h.b16 %v9535
    %v10123 = vunpack.c.l.b16 %v9536
    %v10124 = vunpack.c.h.b16 %v9536
    %v10125 = vunpack.c.l.b16 %v9537
    %v10126 = vunpack.c.h.b16 %v9537
    %v10127 = vunpack.c.l.b16 %v9538
    %v10128 = vunpack.c.h.b16 %v9538
    %v10129 = vunpack.c.l.b16 %v9539
    %v10130 = vunpack.c.h.b16 %v9539
    %v10131 = vunpack.c.l.b16 %v9540
    %v10132 = vunpack.c.h.b16 %v9540
    %v10133 = vunpack.c.l.b16 %v9541
    %v10134 = vunpack.c.h.b16 %v9541
    %v10135 = vunpack.c.l.b16 %v9542
    %v10136 = vunpack.c.h.b16 %v9542
    %v10137 = vunpack.c.l.b16 %v9543
    %v10138 = vunpack.c.h.b16 %v9543
    %v10139 = vunpack.c.l.b16 %v9544
    %v10140 = vunpack.c.h.b16 %v9544
    %v10141 = vunpack.c.l.b16 %v9545
    %v10142 = vunpack.c.h.b16 %v9545
    %v10143 = vunpack.c.l.b16 %v9546
    %v10144 = vunpack.c.h.b16 %v9546
    %v10145 = vunpack.c.l.b16 %v9547
    %v10146 = vunpack.c.h.b16 %v9547
    %v10147 = vunpack.c.l.b16 %v9548
    %v10148 = vunpack.c.h.b16 %v9548
    %v10149 = vunpack.c.l.b16 %v9549
    %v10150 = vunpack.c.h.b16 %v9549
    %v10151 = vunpack.c.l.b16 %v9550
    %v10152 = vunpack.c.h.b16 %v9550
    %v10153 = vunpack.c.l.b16 %v9551
    %v10154 = vunpack.c.h.b16 %v9551
    %v10155 = vunpack.c.l.b16 %v9552
    %v10156 = vunpack.c.h.b16 %v9552
    %v10157 = vunpack.c.l.b16 %v9553
    %v10158 = vunpack.c.h.b16 %v9553
    %v10159 = vunpack.c.l.b16 %v9554
    %v10160 = vunpack.c.h.b16 %v9554
    %v10161 = vunpack.c.l.b16 %v9555
    %v10162 = vunpack.c.h.b16 %v9555
    %v10163 = vunpack.c.l.b16 %v9556
    %v10164 = vunpack.c.h.b16 %v9556
    %v10165 = vunpack.c.l.b16 %v9557
    %v10166 = vunpack.c.h.b16 %v9557
    %v10167 = vunpack.c.l.b16 %v9558
    %v10168 = vunpack.c.h.b16 %v9558
    %v10169 = vunpack.c.l.b16 %v9559
    %v10170 = vunpack.c.h.b16 %v9559
    %v10171 = vunpack.c.l.b16 %v9560
    %v10172 = vunpack.c.h.b16 %v9560
    %v10173 = vunpack.c.l.b16 %v9561
    %v10174 = vunpack.c.h.b16 %v9561
    %v10175 = vunpack.c.l.b16 %v9562
    %v10176 = vunpack.c.h.b16 %v9562
    %v10177 = vunpack.c.l.b16 %v9563
    %v10178 = vunpack.c.h.b16 %v9563
    %v10179 = vunpack.c.l.b16 %v9564
    %v10180 = vunpack.c.h.b16 %v9564
    %v10181 = vunpack.c.l.b16 %v9565
    %v10182 = vunpack.c.h.b16 %v9565
    %v10183 = vunpack.c.l.b16 %v9566
    %v10184 = vunpack.c.h.b16 %v9566
    %v10185 = vunpack.c.l.b16 %v9567
    %v10186 = vunpack.c.h.b16 %v9567
    %v10187 = vunpack.c.l.b16 %v9568
    %v10188 = vunpack.c.h.b16 %v9568
    %v10189 = vunpack.c.l.b16 %v9569
    %v10190 = vunpack.c.h.b16 %v9569
    %v10191 = vunpack.c.l.b16 %v9570
    %v10192 = vunpack.c.h.b16 %v9570
    %v10193 = vunpack.c.l.b16 %v9571
    %v10194 = vunpack.c.h.b16 %v9571
    %v10195 = vunpack.c.l.b16 %v9572
    %v10196 = vunpack.c.h.b16 %v9572
    %v10197 = vunpack.c.l.b16 %v9573
    %v10198 = vunpack.c.h.b16 %v9573
    %v10199 = vunpack.c.l.b16 %v9574
    %v10200 = vunpack.c.h.b16 %v9574
    %v10201 = vunpack.c.l.b16 %v9575
    %v10202 = vunpack.c.h.b16 %v9575
    %v10203 = vunpack.c.l.b16 %v9576
    %v10204 = vunpack.c.h.b16 %v9576
    %v10205 = vunpack.c.l.b16 %v9577
    %v10206 = vunpack.c.h.b16 %v9577
    %v10207 = vunpack.c.l.b16 %v9578
    %v10208 = vunpack.c.h.b16 %v9578
    %v10209 = vunpack.c.l.b16 %v9579
    %v10210 = vunpack.c.h.b16 %v9579
    %v10211 = vunpack.c.l.b16 %v9580
    %v10212 = vunpack.c.h.b16 %v9580
    %v10213 = vunpack.c.l.b16 %v9581
    %v10214 = vunpack.c.h.b16 %v9581
    %v10215 = vunpack.c.l.b16 %v9582
    %v10216 = vunpack.c.h.b16 %v9582
    %v10217 = vunpack.c.l.b16 %v9583
    %v10218 = vunpack.c.h.b16 %v9583
    %v10219 = vunpack.c.l.b16 %v9584
    %v10220 = vunpack.c.h.b16 %v9584
    %v10221 = vunpack.c.l.b16 %v9585
    %v10222 = vunpack.c.h.b16 %v9585
    %v10223 = vunpack.c.l.b16 %v9586
    %v10224 = vunpack.c.h.b16 %v9586
    %v10225 = vunpack.c.l.b16 %v9587
    %v10226 = vunpack.c.h.b16 %v9587
    %v10227 = vunpack.c.l.b16 %v9588
    %v10228 = vunpack.c.h.b16 %v9588
    %v10229 = vunpack.c.l.b16 %v9589
    %v10230 = vunpack.c.h.b16 %v9589
    %v10231 = vunpack.c.l.b16 %v9590
    %v10232 = vunpack.c.h.b16 %v9590
    %v10233 = vunpack.c.l.b16 %v9591
    %v10234 = vunpack.c.h.b16 %v9591
    %v10235 = vunpack.c.l.b16 %v9592
    %v10236 = vunpack.c.h.b16 %v9592
    %v10237 = vunpack.c.l.b16 %v9593
    %v10238 = vunpack.c.h.b16 %v9593
    %v10239 = vunpack.c.l.b16 %v9594
    %v10240 = vunpack.c.h.b16 %v9594
    %v10241 = vunpack.c.l.b16 %v9595
    %v10242 = vunpack.c.h.b16 %v9595
    %v10243 = vunpack.c.l.b16 %v9596
    %v10244 = vunpack.c.h.b16 %v9596
    %v10245 = vunpack.c.l.b16 %v9597
    %v10246 = vunpack.c.h.b16 %v9597
    %v10247 = vunpack.c.l.b16 %v9598
    %v10248 = vunpack.c.h.b16 %v9598
    %v10249 = vunpack.c.l.b16 %v9599
    %v10250 = vunpack.c.h.b16 %v9599
    %v10251 = vunpack.c.l.b16 %v9600
    %v10252 = vunpack.c.h.b16 %v9600
    %v10253 = vunpack.c.l.b16 %v9601
    %v10254 = vunpack.c.h.b16 %v9601
    %v10255 = vunpack.c.l.b16 %v9602
    %v10256 = vunpack.c.h.b16 %v9602
    %v10257 = vunpack.c.l.b16 %v9603
    %v10258 = vunpack.c.h.b16 %v9603
    %v10259 = vunpack.c.l.b16 %v9604
    %v10260 = vunpack.c.h.b16 %v9604
    %v10261 = vunpack.c.l.b16 %v9605
    %v10262 = vunpack.c.h.b16 %v9605
    %v10263 = vunpack.c.l.b16 %v9606
    %v10264 = vunpack.c.h.b16 %v9606
    %v10265 = vunpack.c.l.b16 %v9607
    %v10266 = vunpack.c.h.b16 %v9607
    %v10267 = vunpack.c.l.b16 %v9608
    %v10268 = vunpack.c.h.b16 %v9608
    %v10269 = vunpack.c.l.b16 %v9609
    %v10270 = vunpack.c.h.b16 %v9609
    %v10271 = vunpack.c.l.b16 %v9610
    %v10272 = vunpack.c.h.b16 %v9610
    %v10273 = vunpack.c.l.b16 %v9611
    %v10274 = vunpack.c.h.b16 %v9611
    %v10275 = vunpack.c.l.b16 %v9612
    %v10276 = vunpack.c.h.b16 %v9612
    %v10277 = vunpack.c.l.b16 %v9613
    %v10278 = vunpack.c.h.b16 %v9613
    %v10279 = vunpack.c.l.b16 %v9614
    %v10280 = vunpack.c.h.b16 %v9614
    %v10281 = vunpack.c.l.b16 %v9615
    %v10282 = vunpack.c.h.b16 %v9615
    %v10283 = vunpack.c.l.b16 %v9616
    %v10284 = vunpack.c.h.b16 %v9616
    %v10285 = vunpack.c.l.b16 %v9617
    %v10286 = vunpack.c.h.b16 %v9617
    %v10287 = vunpack.c.l.b16 %v9618
    %v10288 = vunpack.c.h.b16 %v9618
    %v10289 = vunpack.c.l.b16 %v9619
    %v10290 = vunpack.c.h.b16 %v9619
    %v10291 = vunpack.c.l.b16 %v9620
    %v10292 = vunpack.c.h.b16 %v9620
    %v10293 = vunpack.c.l.b16 %v9621
    %v10294 = vunpack.c.h.b16 %v9621
    %v10295 = vunpack.c.l.b16 %v9622
    %v10296 = vunpack.c.h.b16 %v9622
    %v10297 = vunpack.c.l.b16 %v9623
    %v10298 = vunpack.c.h.b16 %v9623
    %v10299 = vunpack.c.l.b16 %v9624
    %v10300 = vunpack.c.h.b16 %v9624
    %v10301 = vunpack.c.l.b16 %v9625
    %v10302 = vunpack.c.h.b16 %v9625
    %v10303 = vunpack.c.l.b16 %v9626
    %v10304 = vunpack.c.h.b16 %v9626
    %v10305 = vunpack.c.l.b16 %v9627
    %v10306 = vunpack.c.h.b16 %v9627
    %v10307 = vunpack.c.l.b16 %v9628
    %v10308 = vunpack.c.h.b16 %v9628
    %v10309 = vunpack.c.l.b16 %v9629
    %v10310 = vunpack.c.h.b16 %v9629
    %v10311 = vunpack.c.l.b16 %v9630
    %v10312 = vunpack.c.h.b16 %v9630
    %v10313 = vunpack.c.l.b16 %v9631
    %v10314 = vunpack.c.h.b16 %v9631
    %v10315 = vunpack.c.l.b16 %v9632
    %v10316 = vunpack.c.h.b16 %v9632
    %v10317 = vunpack.c.l.b16 %v9633
    %v10318 = vunpack.c.h.b16 %v9633
    %v10319 = vunpack.c.l.b16 %v9634
    %v10320 = vunpack.c.h.b16 %v9634
    %v10321 = vunpack.c.l.b16 %v9635
    %v10322 = vunpack.c.h.b16 %v9635
    %v10323 = vunpack.c.l.b16 %v9636
    %v10324 = vunpack.c.h.b16 %v9636
    %v10325 = vunpack.c.l.b16 %v9637
    %v10326 = vunpack.c.h.b16 %v9637
    %v10327 = vunpack.c.l.b16 %v9638
    %v10328 = vunpack.c.h.b16 %v9638
    %v10329 = vunpack.c.l.b16 %v9639
    %v10330 = vunpack.c.h.b16 %v9639
    %v10331 = vunpack.c.l.b16 %v9640
    %v10332 = vunpack.c.h.b16 %v9640
    %v10333 = vunpack.c.l.b16 %v9641
    %v10334 = vunpack.c.h.b16 %v9641
    %v10335 = vunpack.c.l.b16 %v9642
    %v10336 = vunpack.c.h.b16 %v9642
    %v10337 = vunpack.c.l.b16 %v9643
    %v10338 = vunpack.c.h.b16 %v9643
    %v10339 = vunpack.c.l.b16 %v9644
    %v10340 = vunpack.c.h.b16 %v9644
    %v10341 = vunpack.c.l.b16 %v9645
    %v10342 = vunpack.c.h.b16 %v9645
    %v10343 = vunpack.c.l.b16 %v9646
    %v10344 = vunpack.c.h.b16 %v9646
    %v10345 = vunpack.c.l.b16 %v9647
    %v10346 = vunpack.c.h.b16 %v9647
    %v10347 = vunpack.c.l.b16 %v9648
    %v10348 = vunpack.c.h.b16 %v9648
    %v10349 = vunpack.c.l.b16 %v9649
    %v10350 = vunpack.c.h.b16 %v9649
    %v10351 = vunpack.c.l.b16 %v9650
    %v10352 = vunpack.c.h.b16 %v9650
    %v10353 = vunpack.c.l.b16 %v9651
    %v10354 = vunpack.c.h.b16 %v9651
    %v10355 = vunpack.c.l.b16 %v9652
    %v10356 = vunpack.c.h.b16 %v9652
    %v10357 = vunpack.c.l.b16 %v9653
    %v10358 = vunpack.c.h.b16 %v9653
    %v10359 = vunpack.c.l.b16 %v9654
    %v10360 = vunpack.c.h.b16 %v9654
    %v10361 = vunpack.c.l.b16 %v9655
    %v10362 = vunpack.c.h.b16 %v9655
    %v10363 = vunpack.c.l.b16 %v9656
    %v10364 = vunpack.c.h.b16 %v9656
    %v10365 = vunpack.c.l.b16 %v9657
    %v10366 = vunpack.c.h.b16 %v9657
    %v10367 = vunpack.c.l.b16 %v9658
    %v10368 = vunpack.c.h.b16 %v9658
    %v10369 = vunpack.c.l.b16 %v9659
    %v10370 = vunpack.c.h.b16 %v9659
    %v10371 = vunpack.c.l.b16 %v9660
    %v10372 = vunpack.c.h.b16 %v9660
    %v10373 = vunpack.c.l.b16 %v9661
    %v10374 = vunpack.c.h.b16 %v9661
    %v10375 = vunpack.c.l.b16 %v9662
    %v10376 = vunpack.c.h.b16 %v9662
    %v10377 = vunpack.c.l.b16 %v9663
    %v10378 = vunpack.c.h.b16 %v9663
    %v10379 = vunpack.c.l.b16 %v9664
    %v10380 = vunpack.c.h.b16 %v9664
    %v10381 = vunpack.c.l.b16 %v9665
    %v10382 = vunpack.c.h.b16 %v9665
    %v10383 = vunpack.c.l.b16 %v9666
    %v10384 = vunpack.c.h.b16 %v9666
    %v10385 = vunpack.c.l.b16 %v9667
    %v10386 = vunpack.c.h.b16 %v9667
    %v10387 = vunpack.c.l.b16 %v9668
    %v10388 = vunpack.c.h.b16 %v9668
    %v10389 = vunpack.c.l.b16 %v9669
    %v10390 = vunpack.c.h.b16 %v9669
    %v10391 = vunpack.c.l.b16 %v9670
    %v10392 = vunpack.c.h.b16 %v9670
    %v10393 = vunpack.c.l.b16 %v9671
    %v10394 = vunpack.c.h.b16 %v9671
    %v10395 = vunpack.c.l.b16 %v9672
    %v10396 = vunpack.c.h.b16 %v9672
    %v10397 = vunpack.c.l.b16 %v9673
    %v10398 = vunpack.c.h.b16 %v9673
    %v10399 = vunpack.c.l.b16 %v9674
    %v10400 = vunpack.c.h.b16 %v9674
    %v10401 = vunpack.c.l.b16 %v9675
    %v10402 = vunpack.c.h.b16 %v9675
    %v10403 = vunpack.c.l.b16 %v9676
    %v10404 = vunpack.c.h.b16 %v9676
    %v10405 = vunpack.c.l.b16 %v9677
    %v10406 = vunpack.c.h.b16 %v9677
    %v10407 = vunpack.c.l.b16 %v9678
    %v10408 = vunpack.c.h.b16 %v9678
    %v10409 = vunpack.c.l.b16 %v9679
    %v10410 = vunpack.c.h.b16 %v9679
    %v10411 = vunpack.c.l.b16 %v9680
    %v10412 = vunpack.c.h.b16 %v9680
    %v10413 = vunpack.c.l.b16 %v9681
    %v10414 = vunpack.c.h.b16 %v9681
    %v10415 = vunpack.c.l.b16 %v9682
    %v10416 = vunpack.c.h.b16 %v9682
    %v10417 = vunpack.c.l.b16 %v9683
    %v10418 = vunpack.c.h.b16 %v9683
    %v10419 = vunpack.c.l.b16 %v9684
    %v10420 = vunpack.c.h.b16 %v9684
    %v10421 = vunpack.c.l.b16 %v9685
    %v10422 = vunpack.c.h.b16 %v9685
    %v10423 = vunpack.c.l.b16 %v9686
    %v10424 = vunpack.c.h.b16 %v9686
    %v10425 = vunpack.c.l.b16 %v9687
    %v10426 = vunpack.c.h.b16 %v9687
    %v10427 = vunpack.c.l.b16 %v9688
    %v10428 = vunpack.c.h.b16 %v9688
    %v10429 = vunpack.c.l.b16 %v9689
    %v10430 = vunpack.c.h.b16 %v9689
    %v10431 = vunpack.c.l.b16 %v9690
    %v10432 = vunpack.c.h.b16 %v9690
    %v10433 = vunpack.c.l.b16 %v9691
    %v10434 = vunpack.c.h.b16 %v9691
    %v10435 = vunpack.c.l.b16 %v9692
    %v10436 = vunpack.c.h.b16 %v9692
    %v10437 = vunpack.c.l.b16 %v9693
    %v10438 = vunpack.c.h.b16 %v9693
    %v10439 = vunpack.c.l.b16 %v9694
    %v10440 = vunpack.c.h.b16 %v9694
    %v10441 = vunpack.c.l.b16 %v9695
    %v10442 = vunpack.c.h.b16 %v9695
    %v10443 = vunpack.c.l.b16 %v9696
    %v10444 = vunpack.c.h.b16 %v9696
    %v10445 = vunpack.c.l.b16 %v9697
    %v10446 = vunpack.c.h.b16 %v9697
    %v10447 = vunpack.c.l.b16 %v9698
    %v10448 = vunpack.c.h.b16 %v9698
    %v10449 = vunpack.c.l.b16 %v9699
    %v10450 = vunpack.c.h.b16 %v9699
    %v10451 = vunpack.c.l.b16 %v9700
    %v10452 = vunpack.c.h.b16 %v9700
    %v10453 = vunpack.c.l.b16 %v9701
    %v10454 = vunpack.c.h.b16 %v9701
    %v10455 = vunpack.c.l.b16 %v9702
    %v10456 = vunpack.c.h.b16 %v9702
    %v10457 = vunpack.c.l.b16 %v9703
    %v10458 = vunpack.c.h.b16 %v9703
    %v10459 = vunpack.c.l.b16 %v9704
    %v10460 = vunpack.c.h.b16 %v9704
    %v10461 = vunpack.c.l.b16 %v9705
    %v10462 = vunpack.c.h.b16 %v9705
    %v10463 = vunpack.c.l.b16 %v9706
    %v10464 = vunpack.c.h.b16 %v9706
    %v10465 = vunpack.c.l.b16 %v9707
    %v10466 = vunpack.c.h.b16 %v9707
    %v10467 = vunpack.c.l.b16 %v9708
    %v10468 = vunpack.c.h.b16 %v9708
    %v10469 = vunpack.c.l.b16 %v9709
    %v10470 = vunpack.c.h.b16 %v9709
    %v10471 = vunpack.c.l.b16 %v9710
    %v10472 = vunpack.c.h.b16 %v9710
    %v10473 = vunpack.c.l.b16 %v9711
    %v10474 = vunpack.c.h.b16 %v9711
    %v10475 = vunpack.c.l.b16 %v9712
    %v10476 = vunpack.c.h.b16 %v9712
    %v10477 = vunpack.c.l.b16 %v9713
    %v10478 = vunpack.c.h.b16 %v9713
    %v10479 = vunpack.c.l.b16 %v9714
    %v10480 = vunpack.c.h.b16 %v9714
    %v10481 = vunpack.c.l.b16 %v9715
    %v10482 = vunpack.c.h.b16 %v9715
    %v10483 = vunpack.c.l.b16 %v9716
    %v10484 = vunpack.c.h.b16 %v9716
    %v10485 = vunpack.c.l.b16 %v9717
    %v10486 = vunpack.c.h.b16 %v9717
    %v10487 = vunpack.c.l.b16 %v9718
    %v10488 = vunpack.c.h.b16 %v9718
    %v10489 = vunpack.c.l.b16 %v9719
    %v10490 = vunpack.c.h.b16 %v9719
    %v10491 = vunpack.c.l.b16 %v9720
    %v10492 = vunpack.c.h.b16 %v9720
    %v10493 = vunpack.c.l.b16 %v9721
    %v10494 = vunpack.c.h.b16 %v9721
    %v10495 = vunpack.c.l.b16 %v9722
    %v10496 = vunpack.c.h.b16 %v9722
    %v10497 = vunpack.c.l.b16 %v9723
    %v10498 = vunpack.c.h.b16 %v9723
    %v10499 = vunpack.c.l.b16 %v9724
    %v10500 = vunpack.c.h.b16 %v9724
    %v10501 = vunpack.c.l.b16 %v9725
    %v10502 = vunpack.c.h.b16 %v9725
    %v10503 = vunpack.c.l.b16 %v9726
    %v10504 = vunpack.c.h.b16 %v9726
    %v10505 = vunpack.c.l.b16 %v9727
    %v10506 = vunpack.c.h.b16 %v9727
    %v10507 = vunpack.c.l.b16 %v9728
    %v10508 = vunpack.c.h.b16 %v9728
    %v10509 = vunpack.c.l.b16 %v9729
    %v10510 = vunpack.c.h.b16 %v9729
    %v10511 = vunpack.c.l.b16 %v9730
    %v10512 = vunpack.c.h.b16 %v9730
    %v10513 = vunpack.c.l.b16 %v9731
    %v10514 = vunpack.c.h.b16 %v9731
    %v10515 = vunpack.c.l.b16 %v9732
    %v10516 = vunpack.c.h.b16 %v9732
    %v10517 = vunpack.c.l.b16 %v9733
    %v10518 = vunpack.c.h.b16 %v9733
    %v10519 = vunpack.c.l.b16 %v9734
    %v10520 = vunpack.c.h.b16 %v9734
    %v10521 = vunpack.c.l.b16 %v9735
    %v10522 = vunpack.c.h.b16 %v9735
    %v10523 = vunpack.c.l.b16 %v9736
    %v10524 = vunpack.c.h.b16 %v9736
    %v10525 = vunpack.c.l.b16 %v9737
    %v10526 = vunpack.c.h.b16 %v9737
    %v10527 = vunpack.c.l.b16 %v9738
    %v10528 = vunpack.c.h.b16 %v9738
    %v10529 = vpack.c.b16 %v10021, %v10017
    %v10530 = vpack.c.b16 %v10022, %v10018
    %v10531 = vpack.c.b16 %v10023, %v10019
    %v10532 = vpack.c.b16 %v10024, %v10020
    %v10533 = vpack.c.b16 %v10029, %v10025
    %v10534 = vpack.c.b16 %v10030, %v10026
    %v10535 = vpack.c.b16 %v10031, %v10027
    %v10536 = vpack.c.b16 %v10032, %v10028
    %v10537 = vpack.c.b16 %v10037, %v10033
    %v10538 = vpack.c.b16 %v10038, %v10034
    %v10539 = vpack.c.b16 %v10039, %v10035
    %v10540 = vpack.c.b16 %v10040, %v10036
    %v10541 = vpack.c.b16 %v10045, %v10041
    %v10542 = vpack.c.b16 %v10046, %v10042
    %v10543 = vpack.c.b16 %v10047, %v10043
    %v10544 = vpack.c.b16 %v10048, %v10044
    %v10545 = vpack.c.b16 %v10053, %v10049
    %v10546 = vpack.c.b16 %v10054, %v10050
    %v10547 = vpack.c.b16 %v10055, %v10051
    %v10548 = vpack.c.b16 %v10056, %v10052
    %v10549 = vpack.c.b16 %v10061, %v10057
    %v10550 = vpack.c.b16 %v10062, %v10058
    %v10551 = vpack.c.b16 %v10063, %v10059
    %v10552 = vpack.c.b16 %v10064, %v10060
    %v10553 = vpack.c.b16 %v10069, %v10065
    %v10554 = vpack.c.b16 %v10070, %v10066
    %v10555 = vpack.c.b16 %v10071, %v10067
    %v10556 = vpack.c.b16 %v10072, %v10068
    %v10557 = vpack.c.b16 %v10077, %v10073
    %v10558 = vpack.c.b16 %v10078, %v10074
    %v10559 = vpack.c.b16 %v10079, %v10075
    %v10560 = vpack.c.b16 %v10080, %v10076
    %v10561 = vpack.c.b16 %v10085, %v10081
    %v10562 = vpack.c.b16 %v10086, %v10082
    %v10563 = vpack.c.b16 %v10087, %v10083
    %v10564 = vpack.c.b16 %v10088, %v10084
    %v10565 = vpack.c.b16 %v10093, %v10089
    %v10566 = vpack.c.b16 %v10094, %v10090
    %v10567 = vpack.c.b16 %v10095, %v10091
    %v10568 = vpack.c.b16 %v10096, %v10092
    %v10569 = vpack.c.b16 %v10101, %v10097
    %v10570 = vpack.c.b16 %v10102, %v10098
    %v10571 = vpack.c.b16 %v10103, %v10099
    %v10572 = vpack.c.b16 %v10104, %v10100
    %v10573 = vpack.c.b16 %v10109, %v10105
    %v10574 = vpack.c.b16 %v10110, %v10106
    %v10575 = vpack.c.b16 %v10111, %v10107
    %v10576 = vpack.c.b16 %v10112, %v10108
    %v10577 = vpack.c.b16 %v10117, %v10113
    %v10578 = vpack.c.b16 %v10118, %v10114
    %v10579 = vpack.c.b16 %v10119, %v10115
    %v10580 = vpack.c.b16 %v10120, %v10116
    %v10581 = vpack.c.b16 %v10125, %v10121
    %v10582 = vpack.c.b16 %v10126, %v10122
    %v10583 = vpack.c.b16 %v10127, %v10123
    %v10584 = vpack.c.b16 %v10128, %v10124
    %v10585 = vpack.c.b16 %v10133, %v10129
    %v10586 = vpack.c.b16 %v10134, %v10130
    %v10587 = vpack.c.b16 %v10135, %v10131
    %v10588 = vpack.c.b16 %v10136, %v10132
    %v10589 = vpack.c.b16 %v10141, %v10137
    %v10590 = vpack.c.b16 %v10142, %v10138
    %v10591 = vpack.c.b16 %v10143, %v10139
    %v10592 = vpack.c.b16 %v10144, %v10140
    %v10593 = vpack.c.b16 %v10149, %v10145
    %v10594 = vpack.c.b16 %v10150, %v10146
    %v10595 = vpack.c.b16 %v10151, %v10147
    %v10596 = vpack.c.b16 %v10152, %v10148
    %v10597 = vpack.c.b16 %v10157, %v10153
    %v10598 = vpack.c.b16 %v10158, %v10154
    %v10599 = vpack.c.b16 %v10159, %v10155
    %v10600 = vpack.c.b16 %v10160, %v10156
    %v10601 = vpack.c.b16 %v10165, %v10161
    %v10602 = vpack.c.b16 %v10166, %v10162
    %v10603 = vpack.c.b16 %v10167, %v10163
    %v10604 = vpack.c.b16 %v10168, %v10164
    %v10605 = vpack.c.b16 %v10173, %v10169
    %v10606 = vpack.c.b16 %v10174, %v10170
    %v10607 = vpack.c.b16 %v10175, %v10171
    %v10608 = vpack.c.b16 %v10176, %v10172
    %v10609 = vpack.c.b16 %v10181, %v10177
    %v10610 = vpack.c.b16 %v10182, %v10178
    %v10611 = vpack.c.b16 %v10183, %v10179
    %v10612 = vpack.c.b16 %v10184, %v10180
    %v10613 = vpack.c.b16 %v10189, %v10185
    %v10614 = vpack.c.b16 %v10190, %v10186
    %v10615 = vpack.c.b16 %v10191, %v10187
    %v10616 = vpack.c.b16 %v10192, %v10188
    %v10617 = vpack.c.b16 %v10197, %v10193
    %v10618 = vpack.c.b16 %v10198, %v10194
    %v10619 = vpack.c.b16 %v10199, %v10195
    %v10620 = vpack.c.b16 %v10200, %v10196
    %v10621 = vpack.c.b16 %v10205, %v10201
    %v10622 = vpack.c.b16 %v10206, %v10202
    %v10623 = vpack.c.b16 %v10207, %v10203
    %v10624 = vpack.c.b16 %v10208, %v10204
    %v10625 = vpack.c.b16 %v10213, %v10209
    %v10626 = vpack.c.b16 %v10214, %v10210
    %v10627 = vpack.c.b16 %v10215, %v10211
    %v10628 = vpack.c.b16 %v10216, %v10212
    %v10629 = vpack.c.b16 %v10221, %v10217
    %v10630 = vpack.c.b16 %v10222, %v10218
    %v10631 = vpack.c.b16 %v10223, %v10219
    %v10632 = vpack.c.b16 %v10224, %v10220
    %v10633 = vpack.c.b16 %v10229, %v10225
    %v10634 = vpack.c.b16 %v10230, %v10226
    %v10635 = vpack.c.b16 %v10231, %v10227
    %v10636 = vpack.c.b16 %v10232, %v10228
    %v10637 = vpack.c.b16 %v10237, %v10233
    %v10638 = vpack.c.b16 %v10238, %v10234
    %v10639 = vpack.c.b16 %v10239, %v10235
    %v10640 = vpack.c.b16 %v10240, %v10236
    %v10641 = vpack.c.b16 %v10245, %v10241
    %v10642 = vpack.c.b16 %v10246, %v10242
    %v10643 = vpack.c.b16 %v10247, %v10243
    %v10644 = vpack.c.b16 %v10248, %v10244
    %v10645 = vpack.c.b16 %v10253, %v10249
    %v10646 = vpack.c.b16 %v10254, %v10250
    %v10647 = vpack.c.b16 %v10255, %v10251
    %v10648 = vpack.c.b16 %v10256, %v10252
    %v10649 = vpack.c.b16 %v10261, %v10257
    %v10650 = vpack.c.b16 %v10262, %v10258
    %v10651 = vpack.c.b16 %v10263, %v10259
    %v10652 = vpack.c.b16 %v10264, %v10260
    %v10653 = vpack.c.b16 %v10269, %v10265
    %v10654 = vpack.c.b16 %v10270, %v10266
    %v10655 = vpack.c.b16 %v10271, %v10267
    %v10656 = vpack.c.b16 %v10272, %v10268
    %v10657 = vpack.c.b16 %v10277, %v10273
    %v10658 = vpack.c.b16 %v10278, %v10274
    %v10659 = vpack.c.b16 %v10279, %v10275
    %v10660 = vpack.c.b16 %v10280, %v10276
    %v10661 = vpack.c.b16 %v10285, %v10281
    %v10662 = vpack.c.b16 %v10286, %v10282
    %v10663 = vpack.c.b16 %v10287, %v10283
    %v10664 = vpack.c.b16 %v10288, %v10284
    %v10665 = vpack.c.b16 %v10293, %v10289
    %v10666 = vpack.c.b16 %v10294, %v10290
    %v10667 = vpack.c.b16 %v10295, %v10291
    %v10668 = vpack.c.b16 %v10296, %v10292
    %v10669 = vpack.c.b16 %v10301, %v10297
    %v10670 = vpack.c.b16 %v10302, %v10298
    %v10671 = vpack.c.b16 %v10303, %v10299
    %v10672 = vpack.c.b16 %v10304, %v10300
    %v10673 = vpack.c.b16 %v10309, %v10305
    %v10674 = vpack.c.b16 %v10310, %v10306
    %v10675 = vpack.c.b16 %v10311, %v10307
    %v10676 = vpack.c.b16 %v10312, %v10308
    %v10677 = vpack.c.b16 %v10317, %v10313
    %v10678 = vpack.c.b16 %v10318, %v10314
    %v10679 = vpack.c.b16 %v10319, %v10315
    %v10680 = vpack.c.b16 %v10320, %v10316
    %v10681 = vpack.c.b16 %v10325, %v10321
    %v10682 = vpack.c.b16 %v10326, %v10322
    %v10683 = vpack.c.b16 %v10327, %v10323
    %v10684 = vpack.c.b16 %v10328, %v10324
    %v10685 = vpack.c.b16 %v10333, %v10329
    %v10686 = vpack.c.b16 %v10334, %v10330
    %v10687 = vpack.c.b16 %v10335, %v10331
    %v10688 = vpack.c.b16 %v10336, %v10332
    %v10689 = vpack.c.b16 %v10341, %v10337
    %v10690 = vpack.c.b16 %v10342, %v10338
    %v10691 = vpack.c.b16 %v10343, %v10339
    %v10692 = vpack.c.b16 %v10344, %v10340
    %v10693 = vpack.c.b16 %v10349, %v10345
    %v10694 = vpack.c.b16 %v10350, %v10346
    %v10695 = vpack.c.b16 %v10351, %v10347
    %v10696 = vpack.c.b16 %v10352, %v10348
    %v10697 = vpack.c.b16 %v10357, %v10353
    %v10698 = vpack.c.b16 %v10358, %v10354
    %v10699 = vpack.c.b16 %v10359, %v10355
    %v10700 = vpack.c.b16 %v10360, %v10356
    %v10701 = vpack.c.b16 %v10365, %v10361
    %v10702 = vpack.c.b16 %v10366, %v10362
    %v10703 = vpack.c.b16 %v10367, %v10363
    %v10704 = vpack.c.b16 %v10368, %v10364
    %v10705 = vpack.c.b16 %v10373, %v10369
    %v10706 = vpack.c.b16 %v10374, %v10370
    %v10707 = vpack.c.b16 %v10375, %v10371
    %v10708 = vpack.c.b16 %v10376, %v10372
    %v10709 = vpack.c.b16 %v10381, %v10377
    %v10710 = vpack.c.b16 %v10382, %v10378
    %v10711 = vpack.c.b16 %v10383, %v10379
    %v10712 = vpack.c.b16 %v10384, %v10380
    %v10713 = vpack.c.b16 %v10389, %v10385
    %v10714 = vpack.c.b16 %v10390, %v10386
    %v10715 = vpack.c.b16 %v10391, %v10387
    %v10716 = vpack.c.b16 %v10392, %v10388
    %v10717 = vpack.c.b16 %v10397, %v10393
    %v10718 = vpack.c.b16 %v10398, %v10394
    %v10719 = vpack.c.b16 %v10399, %v10395
    %v10720 = vpack.c.b16 %v10400, %v10396
    %v10721 = vpack.c.b16 %v10405, %v10401
    %v10722 = vpack.c.b16 %v10406, %v10402
    %v10723 = vpack.c.b16 %v10407, %v10403
    %v10724 = vpack.c.b16 %v10408, %v10404
    %v10725 = vpack.c.b16 %v10413, %v10409
    %v10726 = vpack.c.b16 %v10414, %v10410
    %v10727 = vpack.c.b16 %v10415, %v10411
    %v10728 = vpack.c.b16 %v10416, %v10412
    %v10729 = vpack.c.b16 %v10421, %v10417
    %v10730 = vpack.c.b16 %v10422, %v10418
    %v10731 = vpack.c.b16 %v10423, %v10419
    %v10732 = vpack.c.b16 %v10424, %v10420
    %v10733 = vpack.c.b16 %v10429, %v10425
    %v10734 = vpack.c.b16 %v10430, %v10426
    %v10735 = vpack.c.b16 %v10431, %v10427
    %v10736 = vpack.c.b16 %v10432, %v10428
    %v10737 = vpack.c.b16 %v10437, %v10433
    %v10738 = vpack.c.b16 %v10438, %v10434
    %v10739 = vpack.c.b16 %v10439, %v10435
    %v10740 = vpack.c.b16 %v10440, %v10436
    %v10741 = vpack.c.b16 %v10445, %v10441
    %v10742 = vpack.c.b16 %v10446, %v10442
    %v10743 = vpack.c.b16 %v10447, %v10443
    %v10744 = vpack.c.b16 %v10448, %v10444
    %v10745 = vpack.c.b16 %v10453, %v10449
    %v10746 = vpack.c.b16 %v10454, %v10450
    %v10747 = vpack.c.b16 %v10455, %v10451
    %v10748 = vpack.c.b16 %v10456, %v10452
    %v10749 = vpack.c.b16 %v10461, %v10457
    %v10750 = vpack.c.b16 %v10462, %v10458
    %v10751 = vpack.c.b16 %v10463, %v10459
    %v10752 = vpack.c.b16 %v10464, %v10460
    %v10753 = vpack.c.b16 %v10469, %v10465
    %v10754 = vpack.c.b16 %v10470, %v10466
    %v10755 = vpack.c.b16 %v10471, %v10467
    %v10756 = vpack.c.b16 %v10472, %v10468
    %v10757 = vpack.c.b16 %v10477, %v10473
    %v10758 = vpack.c.b16 %v10478, %v10474
    %v10759 = vpack.c.b16 %v10479, %v10475
    %v10760 = vpack.c.b16 %v10480, %v10476
    %v10761 = vpack.c.b16 %v10485, %v10481
    %v10762 = vpack.c.b16 %v10486, %v10482
    %v10763 = vpack.c.b16 %v10487, %v10483
    %v10764 = vpack.c.b16 %v10488, %v10484
    %v10765 = vpack.c.b16 %v10493, %v10489
    %v10766 = vpack.c.b16 %v10494, %v10490
    %v10767 = vpack.c.b16 %v10495, %v10491
    %v10768 = vpack.c.b16 %v10496, %v10492
    %v10769 = vpack.c.b16 %v10501, %v10497
    %v10770 = vpack.c.b16 %v10502, %v10498
    %v10771 = vpack.c.b16 %v10503, %v10499
    %v10772 = vpack.c.b16 %v10504, %v10500
    %v10773 = vpack.c.b16 %v10509, %v10505
    %v10774 = vpack.c.b16 %v10510, %v10506
    %v10775 = vpack.c.b16 %v10511, %v10507
    %v10776 = vpack.c.b16 %v10512, %v10508
    %v10777 = vpack.c.b16 %v10517, %v10513
    %v10778 = vpack.c.b16 %v10518, %v10514
    %v10779 = vpack.c.b16 %v10519, %v10515
    %v10780 = vpack.c.b16 %v10520, %v10516
    %v10781 = vpack.c.b16 %v10525, %v10521
    %v10782 = vpack.c.b16 %v10526, %v10522
    %v10783 = vpack.c.b16 %v10527, %v10523
    %v10784 = vpack.c.b16 %v10528, %v10524
    %11041 = vmatprep.subr.bf16.mxu0 %v10530
    %11042 = vmatpush1.bf16.msra.mxu0 %v10529
    %11043 = vmatprep.subr.bf16.mxu0 %v10534
    %11044 = vmatpush1.bf16.msra.mxu0 %v10533
    %11045 = vmatprep.subr.bf16.mxu0 %v10538
    %11046 = vmatpush1.bf16.msra.mxu0 %v10537
    %11047 = vmatprep.subr.bf16.mxu0 %v10542
    %11048 = vmatpush1.bf16.msra.mxu0 %v10541
    %11049 = vmatprep.subr.bf16.mxu0 %v10546
    %11050 = vmatpush1.bf16.msra.mxu0 %v10545
    %11051 = vmatprep.subr.bf16.mxu0 %v10550
    %11052 = vmatpush1.bf16.msra.mxu0 %v10549
    %11053 = vmatprep.subr.bf16.mxu0 %v10554
    %11054 = vmatpush1.bf16.msra.mxu0 %v10553
    %11055 = vmatprep.subr.bf16.mxu0 %v10558
    %11056 = vmatpush1.bf16.msra.mxu0 %v10557
    %11057 = vmatprep.subr.bf16.mxu0 %v10562
    %11058 = vmatpush1.bf16.msra.mxu0 %v10561
    %11059 = vmatprep.subr.bf16.mxu0 %v10566
    %11060 = vmatpush1.bf16.msra.mxu0 %v10565
    %11061 = vmatprep.subr.bf16.mxu0 %v10570
    %11062 = vmatpush1.bf16.msra.mxu0 %v10569
    %11063 = vmatprep.subr.bf16.mxu0 %v10574
    %11064 = vmatpush1.bf16.msra.mxu0 %v10573
    %11065 = vmatprep.subr.bf16.mxu0 %v10578
    %11066 = vmatpush1.bf16.msra.mxu0 %v10577
    %11067 = vmatprep.subr.bf16.mxu0 %v10582
    %11068 = vmatpush1.bf16.msra.mxu0 %v10581
    %11069 = vmatprep.subr.bf16.mxu0 %v10586
    %11070 = vmatpush1.bf16.msra.mxu0 %v10585
    %11071 = vmatprep.subr.bf16.mxu0 %v10590
    %11072 = vmatpush1.bf16.msra.mxu0 %v10589
    %11073 = vmatprep.mubr.bf16.mxu0 %v9476
    %11074 = vmatmul.mubr.bf16.gmra.mrb[0].mxu0 %v9475
    %v11075 = vpop.f32.mrb[0].mxu0
    %v11076 = vadd.f32 %v9744, %v11075
    %v11077 = vpop.f32.mrb[0].mxu0
    %v11078 = vadd.f32 %v9748, %v11077
    %v11079 = vpop.f32.mrb[0].mxu0
    %v11080 = vpop.f32.mrb[0].mxu0
    %11081 = vdwg.mxu0
    %11082 = vmatprep.subr.bf16.mxu0 %v10594
    %11083 = vmatpush1.bf16.msra.mxu0 %v10593
    %11084 = vmatprep.subr.bf16.mxu0 %v10598
    %11085 = vmatpush1.bf16.msra.mxu0 %v10597
    %11086 = vmatprep.subr.bf16.mxu0 %v10602
    %11087 = vmatpush1.bf16.msra.mxu0 %v10601
    %11088 = vmatprep.subr.bf16.mxu0 %v10606
    %11089 = vmatpush1.bf16.msra.mxu0 %v10605
    %11090 = vmatprep.subr.bf16.mxu0 %v10610
    %11091 = vmatpush1.bf16.msra.mxu0 %v10609
    %11092 = vmatprep.subr.bf16.mxu0 %v10614
    %11093 = vmatpush1.bf16.msra.mxu0 %v10613
    %11094 = vmatprep.subr.bf16.mxu0 %v10618
    %11095 = vmatpush1.bf16.msra.mxu0 %v10617
    %11096 = vmatprep.subr.bf16.mxu0 %v10622
    %11097 = vmatpush1.bf16.msra.mxu0 %v10621
    %11098 = vmatprep.subr.bf16.mxu0 %v10626
    %11099 = vmatpush1.bf16.msra.mxu0 %v10625
    %11100 = vmatprep.subr.bf16.mxu0 %v10630
    %11101 = vmatpush1.bf16.msra.mxu0 %v10629
    %11102 = vmatprep.subr.bf16.mxu0 %v10634
    %11103 = vmatpush1.bf16.msra.mxu0 %v10633
    %11104 = vmatprep.subr.bf16.mxu0 %v10638
    %11105 = vmatpush1.bf16.msra.mxu0 %v10637
    %11106 = vmatprep.subr.bf16.mxu0 %v10642
    %11107 = vmatpush1.bf16.msra.mxu0 %v10641
    %11108 = vmatprep.subr.bf16.mxu0 %v10646
    %11109 = vmatpush1.bf16.msra.mxu0 %v10645
    %11110 = vmatprep.subr.bf16.mxu0 %v10650
    %11111 = vmatpush1.bf16.msra.mxu0 %v10649
    %11112 = vmatprep.subr.bf16.mxu0 %v10654
    %11113 = vmatpush1.bf16.msra.mxu0 %v10653
    %11114 = vmatprep.mubr.bf16.mxu0 %v9478
    %11115 = vmatmul.mubr.bf16.gmra.mrb[0].mxu0 %v9477
    %v11116 = vpop.f32.mrb[0].mxu0
    %v11117 = vadd.f32 %v11076, %v11116
    %v11118 = vpop.f32.mrb[0].mxu0
    %v11119 = vadd.f32 %v11078, %v11118
    %v11120 = vpop.f32.mrb[0].mxu0
    %v11121 = vpop.f32.mrb[0].mxu0
    %11122 = vdwg.mxu0
    %11123 = vmatprep.subr.bf16.mxu0 %v10658
    %11124 = vmatpush1.bf16.msra.mxu0 %v10657
    %11125 = vmatprep.subr.bf16.mxu0 %v10662
    %11126 = vmatpush1.bf16.msra.mxu0 %v10661
    %11127 = vmatprep.subr.bf16.mxu0 %v10666
    %11128 = vmatpush1.bf16.msra.mxu0 %v10665
    %11129 = vmatprep.subr.bf16.mxu0 %v10670
    %11130 = vmatpush1.bf16.msra.mxu0 %v10669
    %11131 = vmatprep.subr.bf16.mxu0 %v10674
    %11132 = vmatpush1.bf16.msra.mxu0 %v10673
    %11133 = vmatprep.subr.bf16.mxu0 %v10678
    %11134 = vmatpush1.bf16.msra.mxu0 %v10677
    %11135 = vmatprep.subr.bf16.mxu0 %v10682
    %11136 = vmatpush1.bf16.msra.mxu0 %v10681
    %11137 = vmatprep.subr.bf16.mxu0 %v10686
    %11138 = vmatpush1.bf16.msra.mxu0 %v10685
    %11139 = vmatprep.subr.bf16.mxu0 %v10690
    %11140 = vmatpush1.bf16.msra.mxu0 %v10689
    %11141 = vmatprep.subr.bf16.mxu0 %v10694
    %11142 = vmatpush1.bf16.msra.mxu0 %v10693
    %11143 = vmatprep.subr.bf16.mxu0 %v10698
    %11144 = vmatpush1.bf16.msra.mxu0 %v10697
    %11145 = vmatprep.subr.bf16.mxu0 %v10702
    %11146 = vmatpush1.bf16.msra.mxu0 %v10701
    %11147 = vmatprep.subr.bf16.mxu0 %v10706
    %11148 = vmatpush1.bf16.msra.mxu0 %v10705
    %11149 = vmatprep.subr.bf16.mxu0 %v10710
    %11150 = vmatpush1.bf16.msra.mxu0 %v10709
    %11151 = vmatprep.subr.bf16.mxu0 %v10714
    %11152 = vmatpush1.bf16.msra.mxu0 %v10713
    %11153 = vmatprep.subr.bf16.mxu0 %v10718
    %11154 = vmatpush1.bf16.msra.mxu0 %v10717
    %11155 = vmatprep.mubr.bf16.mxu0 %v9480
    %11156 = vmatmul.mubr.bf16.gmra.mrb[0].mxu0 %v9479
    %v11157 = vpop.f32.mrb[0].mxu0
    %v11158 = vadd.f32 %v11117, %v11157
    %v11159 = vpop.f32.mrb[0].mxu0
    %v11160 = vadd.f32 %v11119, %v11159
    %v11161 = vpop.f32.mrb[0].mxu0
    %v11162 = vpop.f32.mrb[0].mxu0
    %11163 = vdwg.mxu0
    %11164 = vmatprep.subr.bf16.mxu0 %v10722
    %11165 = vmatpush1.bf16.msra.mxu0 %v10721
    %11166 = vmatprep.subr.bf16.mxu0 %v10726
    %11167 = vmatpush1.bf16.msra.mxu0 %v10725
    %11168 = vmatprep.subr.bf16.mxu0 %v10730
    %11169 = vmatpush1.bf16.msra.mxu0 %v10729
    %11170 = vmatprep.subr.bf16.mxu0 %v10734
    %11171 = vmatpush1.bf16.msra.mxu0 %v10733
    %11172 = vmatprep.subr.bf16.mxu0 %v10738
    %11173 = vmatpush1.bf16.msra.mxu0 %v10737
    %11174 = vmatprep.subr.bf16.mxu0 %v10742
    %11175 = vmatpush1.bf16.msra.mxu0 %v10741
    %11176 = vmatprep.subr.bf16.mxu0 %v10746
    %11177 = vmatpush1.bf16.msra.mxu0 %v10745
    %11178 = vmatprep.subr.bf16.mxu0 %v10750
    %11179 = vmatpush1.bf16.msra.mxu0 %v10749
    %11180 = vmatprep.subr.bf16.mxu0 %v10754
    %11181 = vmatpush1.bf16.msra.mxu0 %v10753
    %11182 = vmatprep.subr.bf16.mxu0 %v10758
    %11183 = vmatpush1.bf16.msra.mxu0 %v10757
    %11184 = vmatprep.subr.bf16.mxu0 %v10762
    %11185 = vmatpush1.bf16.msra.mxu0 %v10761
    %11186 = vmatprep.subr.bf16.mxu0 %v10766
    %11187 = vmatpush1.bf16.msra.mxu0 %v10765
    %11188 = vmatprep.subr.bf16.mxu0 %v10770
    %11189 = vmatpush1.bf16.msra.mxu0 %v10769
    %11190 = vmatprep.subr.bf16.mxu0 %v10774
    %11191 = vmatpush1.bf16.msra.mxu0 %v10773
    %11192 = vmatprep.subr.bf16.mxu0 %v10778
    %11193 = vmatpush1.bf16.msra.mxu0 %v10777
    %11194 = vmatprep.subr.bf16.mxu0 %v10782
    %11195 = vmatpush1.bf16.msra.mxu0 %v10781
    %11196 = vmatprep.mubr.bf16.mxu0 %v9482
    %11197 = vmatmul.mubr.bf16.gmra.mrb[0].mxu0 %v9481
    %v11198 = vpop.f32.mrb[0].mxu0
    %v11199 = vadd.f32 %v11158, %v11198
    %v11200 = vpop.f32.mrb[0].mxu0
    %v11201 = vadd.f32 %v11160, %v11200
    %v11202 = vpop.f32.mrb[0].mxu0
    %v11203 = vpop.f32.mrb[0].mxu0
    %11204 = vdwg.mxu0
    %11205 = vmatprep.subr.bf16.mxu0 %v10532
    %11206 = vmatpush1.bf16.msra.mxu0 %v10531
    %11207 = vmatprep.subr.bf16.mxu0 %v10536
    %11208 = vmatpush1.bf16.msra.mxu0 %v10535
    %11209 = vmatprep.subr.bf16.mxu0 %v10540
    %11210 = vmatpush1.bf16.msra.mxu0 %v10539
    %11211 = vmatprep.subr.bf16.mxu0 %v10544
    %11212 = vmatpush1.bf16.msra.mxu0 %v10543
    %11213 = vmatprep.subr.bf16.mxu0 %v10548
    %11214 = vmatpush1.bf16.msra.mxu0 %v10547
    %11215 = vmatprep.subr.bf16.mxu0 %v10552
    %11216 = vmatpush1.bf16.msra.mxu0 %v10551
    %11217 = vmatprep.subr.bf16.mxu0 %v10556
    %11218 = vmatpush1.bf16.msra.mxu0 %v10555
    %11219 = vmatprep.subr.bf16.mxu0 %v10560
    %11220 = vmatpush1.bf16.msra.mxu0 %v10559
    %11221 = vmatprep.subr.bf16.mxu0 %v10564
    %11222 = vmatpush1.bf16.msra.mxu0 %v10563
    %11223 = vmatprep.subr.bf16.mxu0 %v10568
    %11224 = vmatpush1.bf16.msra.mxu0 %v10567
    %11225 = vmatprep.subr.bf16.mxu0 %v10572
    %11226 = vmatpush1.bf16.msra.mxu0 %v10571
    %11227 = vmatprep.subr.bf16.mxu0 %v10576
    %11228 = vmatpush1.bf16.msra.mxu0 %v10575
    %11229 = vmatprep.subr.bf16.mxu0 %v10580
    %11230 = vmatpush1.bf16.msra.mxu0 %v10579
    %11231 = vmatprep.subr.bf16.mxu0 %v10584
    %11232 = vmatpush1.bf16.msra.mxu0 %v10583
    %11233 = vmatprep.subr.bf16.mxu0 %v10588
    %11234 = vmatpush1.bf16.msra.mxu0 %v10587
    %11235 = vmatprep.subr.bf16.mxu0 %v10592
    %11236 = vmatpush1.bf16.msra.mxu0 %v10591
    %11237 = vmatprep.mubr.bf16.mxu0 %v9476
    %11238 = vmatmul.mubr.bf16.gmra.mrb[0].mxu0 %v9475
    %v11239 = vpop.f32.mrb[0].mxu0
    %v11240 = vadd.f32 %v9752, %v11239
    %v11241 = vpop.f32.mrb[0].mxu0
    %v11242 = vadd.f32 %v9756, %v11241
    %v11243 = vpop.f32.mrb[0].mxu0
    %v11244 = vpop.f32.mrb[0].mxu0
    %11245 = vdwg.mxu0
    %11246 = vmatprep.subr.bf16.mxu0 %v10596
    %11247 = vmatpush1.bf16.msra.mxu0 %v10595
    %11248 = vmatprep.subr.bf16.mxu0 %v10600
    %11249 = vmatpush1.bf16.msra.mxu0 %v10599
    %11250 = vmatprep.subr.bf16.mxu0 %v10604
    %11251 = vmatpush1.bf16.msra.mxu0 %v10603
    %11252 = vmatprep.subr.bf16.mxu0 %v10608
    %11253 = vmatpush1.bf16.msra.mxu0 %v10607
    %11254 = vmatprep.subr.bf16.mxu0 %v10612
    %11255 = vmatpush1.bf16.msra.mxu0 %v10611
    %11256 = vmatprep.subr.bf16.mxu0 %v10616
    %11257 = vmatpush1.bf16.msra.mxu0 %v10615
    %11258 = vmatprep.subr.bf16.mxu0 %v10620
    %11259 = vmatpush1.bf16.msra.mxu0 %v10619
    %11260 = vmatprep.subr.bf16.mxu0 %v10624
    %11261 = vmatpush1.bf16.msra.mxu0 %v10623
    %11262 = vmatprep.subr.bf16.mxu0 %v10628
    %11263 = vmatpush1.bf16.msra.mxu0 %v10627
    %11264 = vmatprep.subr.bf16.mxu0 %v10632
    %11265 = vmatpush1.bf16.msra.mxu0 %v10631
    %11266 = vmatprep.subr.bf16.mxu0 %v10636
    %11267 = vmatpush1.bf16.msra.mxu0 %v10635
    %11268 = vmatprep.subr.bf16.mxu0 %v10640
    %11269 = vmatpush1.bf16.msra.mxu0 %v10639
    %11270 = vmatprep.subr.bf16.mxu0 %v10644
    %11271 = vmatpush1.bf16.msra.mxu0 %v10643
    %11272 = vmatprep.subr.bf16.mxu0 %v10648
    %11273 = vmatpush1.bf16.msra.mxu0 %v10647
    %11274 = vmatprep.subr.bf16.mxu0 %v10652
    %11275 = vmatpush1.bf16.msra.mxu0 %v10651
    %11276 = vmatprep.subr.bf16.mxu0 %v10656
    %11277 = vmatpush1.bf16.msra.mxu0 %v10655
    %11278 = vmatprep.mubr.bf16.mxu0 %v9478
    %11279 = vmatmul.mubr.bf16.gmra.mrb[0].mxu0 %v9477
    %v11280 = vpop.f32.mrb[0].mxu0
    %v11281 = vadd.f32 %v11240, %v11280
    %v11282 = vpop.f32.mrb[0].mxu0
    %v11283 = vadd.f32 %v11242, %v11282
    %v11284 = vpop.f32.mrb[0].mxu0
    %v11285 = vpop.f32.mrb[0].mxu0
    %11286 = vdwg.mxu0
    %11287 = vmatprep.subr.bf16.mxu0 %v10660
    %11288 = vmatpush1.bf16.msra.mxu0 %v10659
    %11289 = vmatprep.subr.bf16.mxu0 %v10664
    %11290 = vmatpush1.bf16.msra.mxu0 %v10663
    %11291 = vmatprep.subr.bf16.mxu0 %v10668
    %11292 = vmatpush1.bf16.msra.mxu0 %v10667
    %11293 = vmatprep.subr.bf16.mxu0 %v10672
    %11294 = vmatpush1.bf16.msra.mxu0 %v10671
    %11295 = vmatprep.subr.bf16.mxu0 %v10676
    %11296 = vmatpush1.bf16.msra.mxu0 %v10675
    %11297 = vmatprep.subr.bf16.mxu0 %v10680
    %11298 = vmatpush1.bf16.msra.mxu0 %v10679
    %11299 = vmatprep.subr.bf16.mxu0 %v10684
    %11300 = vmatpush1.bf16.msra.mxu0 %v10683
    %11301 = vmatprep.subr.bf16.mxu0 %v10688
    %11302 = vmatpush1.bf16.msra.mxu0 %v10687
    %11303 = vmatprep.subr.bf16.mxu0 %v10692
    %11304 = vmatpush1.bf16.msra.mxu0 %v10691
    %11305 = vmatprep.subr.bf16.mxu0 %v10696
    %11306 = vmatpush1.bf16.msra.mxu0 %v10695
    %11307 = vmatprep.subr.bf16.mxu0 %v10700
    %11308 = vmatpush1.bf16.msra.mxu0 %v10699
    %11309 = vmatprep.subr.bf16.mxu0 %v10704
    %11310 = vmatpush1.bf16.msra.mxu0 %v10703
    %11311 = vmatprep.subr.bf16.mxu0 %v10708
    %11312 = vmatpush1.bf16.msra.mxu0 %v10707
    %11313 = vmatprep.subr.bf16.mxu0 %v10712
    %11314 = vmatpush1.bf16.msra.mxu0 %v10711
    %11315 = vmatprep.subr.bf16.mxu0 %v10716
    %11316 = vmatpush1.bf16.msra.mxu0 %v10715
    %11317 = vmatprep.subr.bf16.mxu0 %v10720
    %11318 = vmatpush1.bf16.msra.mxu0 %v10719
    %11319 = vmatprep.mubr.bf16.mxu0 %v9480
    %11320 = vmatmul.mubr.bf16.gmra.mrb[0].mxu0 %v9479
    %v11321 = vpop.f32.mrb[0].mxu0
    %v11322 = vadd.f32 %v11281, %v11321
    %v11323 = vpop.f32.mrb[0].mxu0
    %v11324 = vadd.f32 %v11283, %v11323
    %v11325 = vpop.f32.mrb[0].mxu0
    %v11326 = vpop.f32.mrb[0].mxu0
    %11327 = vdwg.mxu0
    %11328 = vmatprep.subr.bf16.mxu0 %v10724
    %11329 = vmatpush1.bf16.msra.mxu0 %v10723
    %11330 = vmatprep.subr.bf16.mxu0 %v10728
    %11331 = vmatpush1.bf16.msra.mxu0 %v10727
    %11332 = vmatprep.subr.bf16.mxu0 %v10732
    %11333 = vmatpush1.bf16.msra.mxu0 %v10731
    %11334 = vmatprep.subr.bf16.mxu0 %v10736
    %11335 = vmatpush1.bf16.msra.mxu0 %v10735
    %11336 = vmatprep.subr.bf16.mxu0 %v10740
    %11337 = vmatpush1.bf16.msra.mxu0 %v10739
    %11338 = vmatprep.subr.bf16.mxu0 %v10744
    %11339 = vmatpush1.bf16.msra.mxu0 %v10743
    %11340 = vmatprep.subr.bf16.mxu0 %v10748
    %11341 = vmatpush1.bf16.msra.mxu0 %v10747
    %11342 = vmatprep.subr.bf16.mxu0 %v10752
    %11343 = vmatpush1.bf16.msra.mxu0 %v10751
    %11344 = vmatprep.subr.bf16.mxu0 %v10756
    %11345 = vmatpush1.bf16.msra.mxu0 %v10755
    %11346 = vmatprep.subr.bf16.mxu0 %v10760
    %11347 = vmatpush1.bf16.msra.mxu0 %v10759
    %11348 = vmatprep.subr.bf16.mxu0 %v10764
    %11349 = vmatpush1.bf16.msra.mxu0 %v10763
    %11350 = vmatprep.subr.bf16.mxu0 %v10768
    %11351 = vmatpush1.bf16.msra.mxu0 %v10767
    %11352 = vmatprep.subr.bf16.mxu0 %v10772
    %11353 = vmatpush1.bf16.msra.mxu0 %v10771
    %11354 = vmatprep.subr.bf16.mxu0 %v10776
    %11355 = vmatpush1.bf16.msra.mxu0 %v10775
    %11356 = vmatprep.subr.bf16.mxu0 %v10780
    %11357 = vmatpush1.bf16.msra.mxu0 %v10779
    %11358 = vmatprep.subr.bf16.mxu0 %v10784
    %11359 = vmatpush1.bf16.msra.mxu0 %v10783
    %11360 = vmatprep.mubr.bf16.mxu0 %v9482
    %11361 = vmatmul.mubr.bf16.gmra.mrb[0].mxu0 %v9481
    %v11362 = vpop.f32.mrb[0].mxu0
    %v11363 = vadd.f32 %v11322, %v11362
    %v11364 = vpop.f32.mrb[0].mxu0
    %v11365 = vadd.f32 %v11324, %v11364
    %v11366 = vpop.f32.mrb[0].mxu0
    %v11367 = vpop.f32.mrb[0].mxu0
    %11368 = vdwg.mxu0
    %v11369 = vmul.f32 %v11199, 0.5
    %v11370 = vmul.f32 %v11201, 0.5
    %v11371 = vmul.f32 %v11363, 0.5
    %v11372 = vmul.f32 %v11365, 0.5
    %v11373 = vtanh.pop %v11369
    %v11374 = vtanh.pop %v11370
    %v11375 = vtanh.pop %v11371
    %v11376 = vtanh.pop %v11372
    %v11377 = vmul.f32 %v11373, 0.5
    %v11378 = vmul.f32 %v11374, 0.5
    %v11379 = vmul.f32 %v11375, 0.5
    %v11380 = vmul.f32 %v11376, 0.5
    %v11381 = vadd.f32 %v11377, 0.5
    %v11382 = vadd.f32 %v11378, 0.5
    %v11383 = vadd.f32 %v11379, 0.5
    %v11384 = vadd.f32 %v11380, 0.5
    %v11385 = vmul.f32 %v11199, %v11381
    %v11386 = vmul.f32 %v11201, %v11382
    %v11387 = vmul.f32 %v11363, %v11383
    %v11388 = vmul.f32 %v11365, %v11384
    %v11389 = vpack.c.bf16 %v11385, %v11385
    %v11390 = vpack.c.bf16 %v11386, %v11386
    %v11391 = vpack.c.bf16 %v11387, %v11387
    %v11392 = vpack.c.bf16 %v11388, %v11388
    %v11393 = vld [vmem:[#allocation25] sm:$0xf]
    %v11394 = vld [vmem:[#allocation25 + $0x4] sm:$0xf]
    %v11395 = vld [vmem:[#allocation25 + $0x8] sm:$0xf]
    %v11396 = vld [vmem:[#allocation25 + $0xc] sm:$0xf]
    %v11397 = vld [vmem:[#allocation25 + $0x10] sm:$0xf]
    %v11398 = vld [vmem:[#allocation25 + $0x14] sm:$0xf]
    %v11399 = vld [vmem:[#allocation25 + $0x18] sm:$0xf]
    %v11400 = vld [vmem:[#allocation25 + $0x1c] sm:$0xf]
    %v11401 = vld [vmem:[#allocation25 + $0x20] sm:$0xf]
    %v11402 = vld [vmem:[#allocation25 + $0x24] sm:$0xf]
    %v11403 = vld [vmem:[#allocation25 + $0x28] sm:$0xf]
    %v11404 = vld [vmem:[#allocation25 + $0x2c] sm:$0xf]
    %v11405 = vld [vmem:[#allocation25 + $0x30] sm:$0xf]
    %v11406 = vld [vmem:[#allocation25 + $0x34] sm:$0xf]
    %v11407 = vld [vmem:[#allocation25 + $0x38] sm:$0xf]
    %v11408 = vld [vmem:[#allocation25 + $0x3c] sm:$0xf]
    %v11409 = vld [vmem:[#allocation25 + $0x40] sm:$0xf]
    %v11410 = vld [vmem:[#allocation25 + $0x44] sm:$0xf]
    %v11411 = vld [vmem:[#allocation25 + $0x48] sm:$0xf]
    %v11412 = vld [vmem:[#allocation25 + $0x4c] sm:$0xf]
    %v11413 = vld [vmem:[#allocation25 + $0x50] sm:$0xf]
    %v11414 = vld [vmem:[#allocation25 + $0x54] sm:$0xf]
    %v11415 = vld [vmem:[#allocation25 + $0x58] sm:$0xf]
    %v11416 = vld [vmem:[#allocation25 + $0x5c] sm:$0xf]
    %v11417 = vld [vmem:[#allocation25 + $0x60] sm:$0xf]
    %v11418 = vld [vmem:[#allocation25 + $0x64] sm:$0xf]
    %v11419 = vld [vmem:[#allocation25 + $0x68] sm:$0xf]
    %v11420 = vld [vmem:[#allocation25 + $0x6c] sm:$0xf]
    %v11421 = vld [vmem:[#allocation25 + $0x70] sm:$0xf]
    %v11422 = vld [vmem:[#allocation25 + $0x74] sm:$0xf]
    %v11423 = vld [vmem:[#allocation25 + $0x78] sm:$0xf]
    %v11424 = vld [vmem:[#allocation25 + $0x7c] sm:$0xf]
    %v11425 = vld [vmem:[#allocation25 + $0x80] sm:$0xf]
    %v11426 = vld [vmem:[#allocation25 + $0x84] sm:$0xf]
    %v11427 = vld [vmem:[#allocation25 + $0x88] sm:$0xf]
    %v11428 = vld [vmem:[#allocation25 + $0x8c] sm:$0xf]
    %v11429 = vld [vmem:[#allocation25 + $0x90] sm:$0xf]
    %v11430 = vld [vmem:[#allocation25 + $0x94] sm:$0xf]
    %v11431 = vld [vmem:[#allocation25 + $0x98] sm:$0xf]
    %v11432 = vld [vmem:[#allocation25 + $0x9c] sm:$0xf]
    %v11433 = vld [vmem:[#allocation25 + $0xa0] sm:$0xf]
    %v11434 = vld [vmem:[#allocation25 + $0xa4] sm:$0xf]
    %v11435 = vld [vmem:[#allocation25 + $0xa8] sm:$0xf]
    %v11436 = vld [vmem:[#allocation25 + $0xac] sm:$0xf]
    %v11437 = vld [vmem:[#allocation25 + $0xb0] sm:$0xf]
    %v11438 = vld [vmem:[#allocation25 + $0xb4] sm:$0xf]
    %v11439 = vld [vmem:[#allocation25 + $0xb8] sm:$0xf]
    %v11440 = vld [vmem:[#allocation25 + $0xbc] sm:$0xf]
    %v11441 = vld [vmem:[#allocation25 + $0xc0] sm:$0xf]
    %v11442 = vld [vmem:[#allocation25 + $0xc4] sm:$0xf]
    %v11443 = vld [vmem:[#allocation25 + $0xc8] sm:$0xf]
    %v11444 = vld [vmem:[#allocation25 + $0xcc] sm:$0xf]
    %v11445 = vld [vmem:[#allocation25 + $0xd0] sm:$0xf]
    %v11446 = vld [vmem:[#allocation25 + $0xd4] sm:$0xf]
    %v11447 = vld [vmem:[#allocation25 + $0xd8] sm:$0xf]
    %v11448 = vld [vmem:[#allocation25 + $0xdc] sm:$0xf]
    %v11449 = vld [vmem:[#allocation25 + $0xe0] sm:$0xf]
    %v11450 = vld [vmem:[#allocation25 + $0xe4] sm:$0xf]
    %v11451 = vld [vmem:[#allocation25 + $0xe8] sm:$0xf]
    %v11452 = vld [vmem:[#allocation25 + $0xec] sm:$0xf]
    %v11453 = vld [vmem:[#allocation25 + $0xf0] sm:$0xf]
    %v11454 = vld [vmem:[#allocation25 + $0xf4] sm:$0xf]
    %v11455 = vld [vmem:[#allocation25 + $0xf8] sm:$0xf]
    %v11456 = vld [vmem:[#allocation25 + $0xfc] sm:$0xf]
    %v11457 = vld [vmem:[#allocation26] sm:$0x1]
    %v11459 = vlaneseq
    %v11460 = vshrl.u32 %v11459, 7
    %v11461 = vsub.s32 0, %v11460
    %v11462 = vrot.slane %v11457, %v11461
    %v11528 = vunpack.c.l.b16 %v11393
    %v11529 = vunpack.c.l.b16 %v11394
    %v11530 = vunpack.c.l.b16 %v11395
    %v11531 = vunpack.c.l.b16 %v11396
    %v11532 = vunpack.c.l.b16 %v11397
    %v11533 = vunpack.c.l.b16 %v11398
    %v11534 = vunpack.c.l.b16 %v11399
    %v11535 = vunpack.c.l.b16 %v11400
    %v11536 = vunpack.c.l.b16 %v11401
    %v11537 = vunpack.c.l.b16 %v11402
    %v11538 = vunpack.c.l.b16 %v11403
    %v11539 = vunpack.c.l.b16 %v11404
    %v11540 = vunpack.c.l.b16 %v11405
    %v11541 = vunpack.c.l.b16 %v11406
    %v11542 = vunpack.c.l.b16 %v11407
    %v11543 = vunpack.c.l.b16 %v11408
    %v11544 = vunpack.c.l.b16 %v11409
    %v11545 = vunpack.c.l.b16 %v11410
    %v11546 = vunpack.c.l.b16 %v11411
    %v11547 = vunpack.c.l.b16 %v11412
    %v11548 = vunpack.c.l.b16 %v11413
    %v11549 = vunpack.c.l.b16 %v11414
    %v11550 = vunpack.c.l.b16 %v11415
    %v11551 = vunpack.c.l.b16 %v11416
    %v11552 = vunpack.c.l.b16 %v11417
    %v11553 = vunpack.c.l.b16 %v11418
    %v11554 = vunpack.c.l.b16 %v11419
    %v11555 = vunpack.c.l.b16 %v11420
    %v11556 = vunpack.c.l.b16 %v11421
    %v11557 = vunpack.c.l.b16 %v11422
    %v11558 = vunpack.c.l.b16 %v11423
    %v11559 = vunpack.c.l.b16 %v11424
    %v11560 = vunpack.c.l.b16 %v11425
    %v11561 = vunpack.c.l.b16 %v11426
    %v11562 = vunpack.c.l.b16 %v11427
    %v11563 = vunpack.c.l.b16 %v11428
    %v11564 = vunpack.c.l.b16 %v11429
    %v11565 = vunpack.c.l.b16 %v11430
    %v11566 = vunpack.c.l.b16 %v11431
    %v11567 = vunpack.c.l.b16 %v11432
    %v11568 = vunpack.c.l.b16 %v11433
    %v11569 = vunpack.c.l.b16 %v11434
    %v11570 = vunpack.c.l.b16 %v11435
    %v11571 = vunpack.c.l.b16 %v11436
    %v11572 = vunpack.c.l.b16 %v11437
    %v11573 = vunpack.c.l.b16 %v11438
    %v11574 = vunpack.c.l.b16 %v11439
    %v11575 = vunpack.c.l.b16 %v11440
    %v11576 = vunpack.c.l.b16 %v11441
    %v11577 = vunpack.c.l.b16 %v11442
    %v11578 = vunpack.c.l.b16 %v11443
    %v11579 = vunpack.c.l.b16 %v11444
    %v11580 = vunpack.c.l.b16 %v11445
    %v11581 = vunpack.c.l.b16 %v11446
    %v11582 = vunpack.c.l.b16 %v11447
    %v11583 = vunpack.c.l.b16 %v11448
    %v11584 = vunpack.c.l.b16 %v11449
    %v11585 = vunpack.c.l.b16 %v11450
    %v11586 = vunpack.c.l.b16 %v11451
    %v11587 = vunpack.c.l.b16 %v11452
    %v11588 = vunpack.c.l.b16 %v11453
    %v11589 = vunpack.c.l.b16 %v11454
    %v11590 = vunpack.c.l.b16 %v11455
    %v11591 = vunpack.c.l.b16 %v11456
    %v11592 = vpack.c.b16 %v11529, %v11528
    %v11593 = vpack.c.b16 %v11531, %v11530
    %v11594 = vpack.c.b16 %v11533, %v11532
    %v11595 = vpack.c.b16 %v11535, %v11534
    %v11596 = vpack.c.b16 %v11537, %v11536
    %v11597 = vpack.c.b16 %v11539, %v11538
    %v11598 = vpack.c.b16 %v11541, %v11540
    %v11599 = vpack.c.b16 %v11543, %v11542
    %v11600 = vpack.c.b16 %v11545, %v11544
    %v11601 = vpack.c.b16 %v11547, %v11546
    %v11602 = vpack.c.b16 %v11549, %v11548
    %v11603 = vpack.c.b16 %v11551, %v11550
    %v11604 = vpack.c.b16 %v11553, %v11552
    %v11605 = vpack.c.b16 %v11555, %v11554
    %v11606 = vpack.c.b16 %v11557, %v11556
    %v11607 = vpack.c.b16 %v11559, %v11558
    %v11608 = vpack.c.b16 %v11561, %v11560
    %v11609 = vpack.c.b16 %v11563, %v11562
    %v11610 = vpack.c.b16 %v11565, %v11564
    %v11611 = vpack.c.b16 %v11567, %v11566
    %v11612 = vpack.c.b16 %v11569, %v11568
    %v11613 = vpack.c.b16 %v11571, %v11570
    %v11614 = vpack.c.b16 %v11573, %v11572
    %v11615 = vpack.c.b16 %v11575, %v11574
    %v11616 = vpack.c.b16 %v11577, %v11576
    %v11617 = vpack.c.b16 %v11579, %v11578
    %v11618 = vpack.c.b16 %v11581, %v11580
    %v11619 = vpack.c.b16 %v11583, %v11582
    %v11620 = vpack.c.b16 %v11585, %v11584
    %v11621 = vpack.c.b16 %v11587, %v11586
    %v11622 = vpack.c.b16 %v11589, %v11588
    %v11623 = vpack.c.b16 %v11591, %v11590
    %11656 = vmatprep.subr.bf16.mxu0 0
    %11657 = vmatpush1.bf16.msra.mxu0 %v11592
    %11658 = vmatprep.subr.bf16.mxu0 0
    %11659 = vmatpush1.bf16.msra.mxu0 %v11593
    %11660 = vmatprep.subr.bf16.mxu0 0
    %11661 = vmatpush1.bf16.msra.mxu0 %v11594
    %11662 = vmatprep.subr.bf16.mxu0 0
    %11663 = vmatpush1.bf16.msra.mxu0 %v11595
    %11664 = vmatprep.subr.bf16.mxu0 0
    %11665 = vmatpush1.bf16.msra.mxu0 %v11596
    %11666 = vmatprep.subr.bf16.mxu0 0
    %11667 = vmatpush1.bf16.msra.mxu0 %v11597
    %11668 = vmatprep.subr.bf16.mxu0 0
    %11669 = vmatpush1.bf16.msra.mxu0 %v11598
    %11670 = vmatprep.subr.bf16.mxu0 0
    %11671 = vmatpush1.bf16.msra.mxu0 %v11599
    %11672 = vmatprep.subr.bf16.mxu0 0
    %11673 = vmatpush1.bf16.msra.mxu0 %v11600
    %11674 = vmatprep.subr.bf16.mxu0 0
    %11675 = vmatpush1.bf16.msra.mxu0 %v11601
    %11676 = vmatprep.subr.bf16.mxu0 0
    %11677 = vmatpush1.bf16.msra.mxu0 %v11602
    %11678 = vmatprep.subr.bf16.mxu0 0
    %11679 = vmatpush1.bf16.msra.mxu0 %v11603
    %11680 = vmatprep.subr.bf16.mxu0 0
    %11681 = vmatpush1.bf16.msra.mxu0 %v11604
    %11682 = vmatprep.subr.bf16.mxu0 0
    %11683 = vmatpush1.bf16.msra.mxu0 %v11605
    %11684 = vmatprep.subr.bf16.mxu0 0
    %11685 = vmatpush1.bf16.msra.mxu0 %v11606
    %11686 = vmatprep.subr.bf16.mxu0 0
    %11687 = vmatpush1.bf16.msra.mxu0 %v11607
    %11688 = vmatprep.mubr.bf16.mxu0 %v11390
    %11689 = vmatmul.mubr.bf16.gmra.mrb[0].mxu0 %v11389
    %v11690 = vpop.f32.mrb[0].mxu0
    %v11691 = vadd.f32 %v11462, %v11690
    %v11692 = vpop.f32.mrb[0].mxu0
    %v11693 = vpop.f32.mrb[0].mxu0
    %v11694 = vpop.f32.mrb[0].mxu0
    %11695 = vdwg.mxu0
    %11696 = vmatprep.subr.bf16.mxu0 0
    %11697 = vmatpush1.bf16.msra.mxu0 %v11608
    %11698 = vmatprep.subr.bf16.mxu0 0
    %11699 = vmatpush1.bf16.msra.mxu0 %v11609
    %11700 = vmatprep.subr.bf16.mxu0 0
    %11701 = vmatpush1.bf16.msra.mxu0 %v11610
    %11702 = vmatprep.subr.bf16.mxu0 0
    %11703 = vmatpush1.bf16.msra.mxu0 %v11611
    %11704 = vmatprep.subr.bf16.mxu0 0
    %11705 = vmatpush1.bf16.msra.mxu0 %v11612
    %11706 = vmatprep.subr.bf16.mxu0 0
    %11707 = vmatpush1.bf16.msra.mxu0 %v11613
    %11708 = vmatprep.subr.bf16.mxu0 0
    %11709 = vmatpush1.bf16.msra.mxu0 %v11614
    %11710 = vmatprep.subr.bf16.mxu0 0
    %11711 = vmatpush1.bf16.msra.mxu0 %v11615
    %11712 = vmatprep.subr.bf16.mxu0 0
    %11713 = vmatpush1.bf16.msra.mxu0 %v11616
    %11714 = vmatprep.subr.bf16.mxu0 0
    %11715 = vmatpush1.bf16.msra.mxu0 %v11617
    %11716 = vmatprep.subr.bf16.mxu0 0
    %11717 = vmatpush1.bf16.msra.mxu0 %v11618
    %11718 = vmatprep.subr.bf16.mxu0 0
    %11719 = vmatpush1.bf16.msra.mxu0 %v11619
    %11720 = vmatprep.subr.bf16.mxu0 0
    %11721 = vmatpush1.bf16.msra.mxu0 %v11620
    %11722 = vmatprep.subr.bf16.mxu0 0
    %11723 = vmatpush1.bf16.msra.mxu0 %v11621
    %11724 = vmatprep.subr.bf16.mxu0 0
    %11725 = vmatpush1.bf16.msra.mxu0 %v11622
    %11726 = vmatprep.subr.bf16.mxu0 0
    %11727 = vmatpush1.bf16.msra.mxu0 %v11623
    %11728 = vmatprep.mubr.bf16.mxu0 %v11392
    %11729 = vmatmul.mubr.bf16.gmra.mrb[0].mxu0 %v11391
    %v11730 = vpop.f32.mrb[0].mxu0
    %v11731 = vadd.f32 %v11691, %v11730
    %v11732 = vpop.f32.mrb[0].mxu0
    %v11733 = vpop.f32.mrb[0].mxu0
    %v11734 = vpop.f32.mrb[0].mxu0
    %11735 = vdwg.mxu0
    %11736 = vst [vmem:[#allocation28] sm:$0xff] %v11731
    // Predicated region
    $region130: #{tpu_custom_call.1} parent=1 // pred_check
      _
    $region131: #{tpu_custom_call.1} parent=1 // pred_check_branch
      %11738 = sbr.rel (0) target = $region133
    $region132: #{tpu_custom_call.1} parent=1 // pred_region
      %s11740 = ssub.s32 128, 128
      %11741 = vsyncadd [#allocation4], %s11740
      %s11743 = sshll.u32 [#allocation28], 4
      %s11744 = int_to_ptr.vmem [resolvable:$true] %s11743
      %11746 = dma.vmem_to_hbm [thread:$0]  %s11744, 128, %s16, [#allocation4]
    $region133: #{tpu_custom_call.1} parent=1 // pred_fallthru
      _
    // Predicated region
    $region134: #{tpu_custom_call.1} parent=1 // pred_check
      _
    $region135: #{tpu_custom_call.1} parent=1 // pred_check_branch
      %11748 = sbr.rel (0) target = $region137
    $region136: #{tpu_custom_call.1} parent=1 // pred_region
      %11749 = dma.done [#allocation4], 128
    $region137: #{tpu_custom_call.1} parent=1 // pred_fallthru
      _
    %11750 = vsyncpa [#allocation3], 1
    %11751 = vsyncpa [#allocation6], 1
    %11752 = vsyncpa [#allocation9], 1
    %11753 = vsyncpa [#allocation12], 1
    %11754 = vsyncpa [#allocation15], 1
    %11755 = vsyncpa [#allocation18], 1
    %11756 = vsyncpa [#allocation21], 1
    %11757 = vsyncpa [#allocation24], 1
    %11758 = vsyncpa [#allocation27], 1
    %11759 = vsyncpa [#allocation4], 1

</llo_original>
